<compile_context>
chip_gen: v5e
topology: v5e:2x2
jax: 0.10.0
libtpu: 0.0.40
codegen_flags: <defaults>
</compile_context>

<pallas_src>
import jax
import jax.numpy as jnp
from jax.experimental import pallas as pl
from jax.experimental.pallas import tpu as pltpu

D_IN = 6169
D_HID = 1024
D_OUT = 512
K_PAD = 6272                      # next multiple of 128 >= D_IN (padded once, at prep time)
N_HID_BLOCKS = 2                  # D_HID split for the megacore-parallel grid axis
HID_BLK = D_HID // N_HID_BLOCKS   # 512


def _encoder_kernel(x_ref, w1_ref, b1_ref, w2_ref, out_ref):
    # x: (b_pad, K_PAD) f32 (zero-padded cols) -> bf16 for the MXU.
    x = x_ref[...].astype(jnp.bfloat16)

    # Layer 1 (this hid-half): bf16 MXU matmul, f32 accumulate.  Zero-padded
    # rows of W1 / cols of x contribute nothing.
    h = jnp.dot(x, w1_ref[...], preferred_element_type=jnp.float32)
    h = jnp.tanh(h + b1_ref[...])                      # (b_pad, HID_BLK) f32

    # Layer 2 partial: contraction over this hid-half only; the partial sums
    # over the two halves (+ b2 + tanh) are combined in the tiny epilogue.
    out_ref[...] = jnp.dot(h.astype(jnp.bfloat16), w2_ref[...],
                           preferred_element_type=jnp.float32)


def prepare_params(w1, b1, w2, b2):
    """One-time prep (outside the per-call path): pad W1's K dim, cast to bf16."""
    w1_p = jnp.pad(w1, ((0, K_PAD - D_IN), (0, 0))).astype(jnp.bfloat16)   # (6272, 1024)
    w2_c = w2.astype(jnp.bfloat16)                                         # (1024, 512)
    b1_2d = b1.reshape(1, D_HID).astype(jnp.float32)
    b2_2d = b2.reshape(1, D_OUT).astype(jnp.float32)
    return w1_p, b1_2d, w2_c, b2_2d


@jax.jit
def texas_encoder_pallas(x, w1_p, b1_2d, w2_c, b2_2d):
    B, d_in = x.shape
    assert d_in == D_IN                           # trace-time shape check only
    assert w1_p.shape == (K_PAD, D_HID) and w2_c.shape == (D_HID, D_OUT)

    # Only a zero-pad of x (f32) remains on the per-call path; the bf16 cast
    # happens inside the kernel, and allow_input_fusion lets XLA fold this pad
    # into the pallas_call prologue.
    b_pad = ((B + 7) // 8) * 8
    x_p = jnp.pad(x, ((0, b_pad - B), (0, K_PAD - d_in)))

    partials = pl.pallas_call(
        _encoder_kernel,
        out_shape=jax.ShapeDtypeStruct((N_HID_BLOCKS, b_pad, D_OUT), jnp.float32),
        grid_spec=pltpu.PrefetchScalarGridSpec(
            num_scalar_prefetch=0,
            grid=(N_HID_BLOCKS,),
            in_specs=[
                pl.BlockSpec((b_pad, K_PAD), lambda i: (0, 0)),      # x (f32, resident)
                pl.BlockSpec((K_PAD, HID_BLK), lambda i: (0, i)),    # W1 half (bf16)
                pl.BlockSpec((1, HID_BLK), lambda i: (0, i)),        # b1 half
                pl.BlockSpec((HID_BLK, D_OUT), lambda i: (i, 0)),    # W2 half (bf16)
            ],
            out_specs=pl.BlockSpec((None, b_pad, D_OUT), lambda i: (i, 0, 0)),
        ),
        compiler_params=pltpu.CompilerParams(
            # Independent hid-halves: shards across both v7x TensorCores;
            # plain 2-step pipelined loop on single-core v5e/v6e.
            dimension_semantics=("parallel",),
            # ~14 MiB resident at B=8 (half-W1 double-buffered + x + W2);
            # 40 MiB leaves headroom and stays under v7x's 64 MiB physical.
            vmem_limit_bytes=40 * 1024 * 1024,
            # Allow XLA to fuse the x zero-pad producer into the call prologue.
            allow_input_fusion=[True, False, False, False],
        ),
    )(x_p, w1_p, b1_2d, w2_c)

    # Tiny epilogue (fuses to one small XLA op): sum the two layer-2 partials,
    # add b2, tanh.
    en = jnp.tanh(partials[0] + partials[1] + b2_2d)
    return en[:B]


def _init_params(key):
    # Deterministic synthetic init (PyTorch-Linear-style uniform bounds),
    # weights stored as (in, out)  ==  x @ W + b  ==  PyTorch x @ W.T + b.
    k1, k2, k3, k4 = jax.random.split(key, 4)
    bound1 = 1.0 / (D_IN ** 0.5)
    bound2 = 1.0 / (D_HID ** 0.5)
    w1 = jax.random.uniform(k1, (D_IN, D_HID), jnp.float32, -bound1, bound1)
    b1 = jax.random.uniform(k2, (D_HID,), jnp.float32, -bound1, bound1)
    w2 = jax.random.uniform(k3, (D_HID, D_OUT), jnp.float32, -bound2, bound2)
    b2 = jax.random.uniform(k4, (D_OUT,), jnp.float32, -bound2, bound2)
    return w1, b1, w2, b2


def _reference_bf16(x, w1, b1, w2, b2):
    # Same math as the module with inputs/weights rounded to bf16 exactly the
    # way the kernel consumes them (f32 accumulation everywhere).  Note h is
    # re-quantized to bf16 before layer 2, mirroring the kernel.
    hi = jax.lax.Precision.HIGHEST
    xf = x.astype(jnp.bfloat16).astype(jnp.float32)
    w1f = w1.astype(jnp.bfloat16).astype(jnp.float32)
    w2f = w2.astype(jnp.bfloat16).astype(jnp.float32)
    h = jnp.tanh(jnp.dot(xf, w1f, precision=hi) + b1)
    hb = h.astype(jnp.bfloat16).astype(jnp.float32)
    return jnp.tanh(jnp.dot(hb, w2f, precision=hi) + b2)


def _reference_f32(x, w1, b1, w2, b2):
    # Original (full-f32) module semantics, for a looser sanity check.
    hi = jax.lax.Precision.HIGHEST
    h = jnp.tanh(jnp.dot(x, w1, precision=hi) + b1)
    return jnp.tanh(jnp.dot(h, w2, precision=hi) + b2)


if __name__ == "__main__":
    key = jax.random.PRNGKey(0)
    kx, kp = jax.random.split(key)

    B = 8  # small batch for the demo; larger B amortizes the fixed weight stream
    x = jax.random.normal(kx, (B, D_IN), jnp.float32)
    w1, b1, w2, b2 = _init_params(kp)

    params = prepare_params(w1, b1, w2, b2)  # one-time pad + bf16 cast

    out = texas_encoder_pallas(x, *params)
    out = jax.block_until_ready(out)
    assert out.shape == (B, D_OUT)

    # Tight check vs a bf16-weight reference (same quantization as the kernel).
    ref_bf16 = _reference_bf16(x, w1, b1, w2, b2)
    assert jnp.allclose(out, ref_bf16, rtol=5e-3, atol=5e-3), "mismatch vs bf16 reference"

    # Loose check vs the original f32 module semantics (bf16 weight quant error).
    ref_f32 = _reference_f32(x, w1, b1, w2, b2)
    assert jnp.allclose(out, ref_f32, rtol=5e-2, atol=5e-2), "mismatch vs f32 reference"

    print("KERNEL_OK")
</pallas_src>

<mosaic_0001>
module attributes {stable_mosaic.version = 11 : i64} {
  func.func @_encoder_kernel(%arg0: i32, %arg1: memref<8x6272xf32, #tpu.memory_space<vmem>>, %arg2: memref<6272x512xbf16, #tpu.memory_space<vmem>>, %arg3: memref<1x512xf32, #tpu.memory_space<vmem>>, %arg4: memref<512x512xbf16, #tpu.memory_space<vmem>>, %arg5: memref<1x8x512xf32, #tpu.memory_space<vmem>>) attributes {dimension_semantics = [#tpu.dimension_semantics<parallel>], iteration_bounds = array<i64: 2>, scalar_prefetch = 0 : i64, scratch_operands = 0 : i64, tpu.core_type = #tpu.core_type<tc>, window_params = [{pipeline_mode = #tpu.pipeline_mode<synchronous>, transform_indices = @transform_0, window_bounds = array<i64: 8, 6272>}, {transform_indices = @transform_1, window_bounds = array<i64: 6272, 512>}, {transform_indices = @transform_2, window_bounds = array<i64: 1, 512>}, {transform_indices = @transform_3, window_bounds = array<i64: 512, 512>}, {transform_indices = @transform_4, window_bounds = array<i64: 1, 8, 512>}]} {
    %c0 = arith.constant 0 : index
    %c0_0 = arith.constant 0 : index
    %0 = vector.load %arg1[%c0, %c0_0] : memref<8x6272xf32, #tpu.memory_space<vmem>>, vector<8x6272xf32>
    %1 = arith.truncf %0 : vector<8x6272xf32> to vector<8x6272xbf16>
    %c0_1 = arith.constant 0 : index
    %c0_2 = arith.constant 0 : index
    %2 = vector.load %arg2[%c0_1, %c0_2] : memref<6272x512xbf16, #tpu.memory_space<vmem>>, vector<6272x512xbf16>
    %cst = arith.constant dense<0.000000e+00> : vector<8x512xf32>
    %3 = tpu.matmul %1, %2, %cst {dimension_numbers = #tpu.dot_dimension_numbers<[1], [0], [0], [1], [0, 0, 1, 1], [], []>} : vector<8x6272xbf16>, vector<6272x512xbf16>, vector<8x512xf32> -> vector<8x512xf32>
    %c0_3 = arith.constant 0 : index
    %c0_4 = arith.constant 0 : index
    %4 = vector.load %arg3[%c0_3, %c0_4] : memref<1x512xf32, #tpu.memory_space<vmem>>, vector<1x512xf32>
    %5 = vector.broadcast %4 : vector<1x512xf32> to vector<8x512xf32>
    %6 = arith.addf %3, %5 : vector<8x512xf32>
    %7 = math.tanh %6 : vector<8x512xf32>
    %8 = arith.truncf %7 : vector<8x512xf32> to vector<8x512xbf16>
    %c0_5 = arith.constant 0 : index
    %c0_6 = arith.constant 0 : index
    %9 = vector.load %arg4[%c0_5, %c0_6] : memref<512x512xbf16, #tpu.memory_space<vmem>>, vector<512x512xbf16>
    %cst_7 = arith.constant dense<0.000000e+00> : vector<8x512xf32>
    %10 = tpu.matmul %8, %9, %cst_7 {dimension_numbers = #tpu.dot_dimension_numbers<[1], [0], [0], [1], [0, 0, 1, 1], [], []>} : vector<8x512xbf16>, vector<512x512xbf16>, vector<8x512xf32> -> vector<8x512xf32>
    %c0_8 = arith.constant 0 : index
    %c0_9 = arith.constant 0 : index
    %c0_10 = arith.constant 0 : index
    %11 = vector.load %arg5[%c0_8, %c0_9, %c0_10] : memref<1x8x512xf32, #tpu.memory_space<vmem>>, vector<1x8x512xf32>
    %12 = vector.shape_cast %11 : vector<1x8x512xf32> to vector<8x512xf32>
    %13 = vector.shape_cast %10 : vector<8x512xf32> to vector<1x8x512xf32>
    tpu.vector_store %arg5[%c0_8, %c0_9, %c0_10], %13 {strides = array<i32>} : memref<1x8x512xf32, #tpu.memory_space<vmem>>, vector<1x8x512xf32>,
    return
  }
  func.func @transform_0(%arg0: i32) -> (i32, i32) {
    %c0_i32 = arith.constant 0 : i32
    %c0_i32_0 = arith.constant 0 : i32
    %c0_i32_1 = arith.constant 0 : i32
    return %c0_i32, %c0_i32_0 : i32, i32
  }
  func.func @transform_1(%arg0: i32) -> (i32, i32) {
    %c0_i32 = arith.constant 0 : i32
    %c0_i32_0 = arith.constant 0 : i32
    return %c0_i32, %arg0 : i32, i32
  }
  func.func @transform_2(%arg0: i32) -> (i32, i32) {
    %c0_i32 = arith.constant 0 : i32
    %c0_i32_0 = arith.constant 0 : i32
    return %c0_i32, %arg0 : i32, i32
  }
  func.func @transform_3(%arg0: i32) -> (i32, i32) {
    %c0_i32 = arith.constant 0 : i32
    %c0_i32_0 = arith.constant 0 : i32
    return %arg0, %c0_i32 : i32, i32
  }
  func.func @transform_4(%arg0: i32) -> (i32, i32, i32) {
    %c0_i32 = arith.constant 0 : i32
    %c0_i32_0 = arith.constant 0 : i32
    %c0_i32_1 = arith.constant 0 : i32
    return %arg0, %c0_i32, %c0_i32_0 : i32, i32, i32
  }
}

</mosaic_0001>

<llo_original>
// kernel: texas_encoder_pallas.1
$region0: #{texas_encoder_pallas.1}
  #allocation0 [shape = 'u32[]', space=smem, size = 0x4, offset = 0x4, fixed_abs, tag = 'smem constant byte address 0x4 - core index']
  #allocation1 [shape = 'u32[72,128]{1,0:T(1,128)}', space=vmem, size = 0x9000, scoped, tag = 'internal scratch']
  %s0 = inlined_call_operand.vmem [shape: f32[8,6272], index: 0, kind: input, shape index: {}]
  %s1 = inlined_call_operand.hbm [shape: bf16[6272,1024], index: 1, kind: input, shape index: {}]
  %s2 = inlined_call_operand.hbm [shape: f32[1,1024], index: 2, kind: input, shape index: {}]
  %s3 = inlined_call_operand.hbm [shape: bf16[1024,512], index: 3, kind: input, shape index: {}]
  %s4 = inlined_call_operand.vmem [shape: f32[2,8,512], index: 4, kind: output, shape index: {}]
  %s5 = sld [smem:[#allocation0]]
  $region61: #{texas_encoder_pallas.1} parent=0
    _
  %s7 = ssub.s32 1, %s5
  %s8 = scalar_select 0, %s7, %s5
  $region1: #{texas_encoder_pallas.1} parent=0
    #allocation2 [shape = 'u8[12845056]{0}', space=vmem, size = 0xc40000, scoped, tag = 'input window, operand 1']
    #allocation3 [shape = 's32[2]{0}', space=sflag, size = 0x8, scoped, tag = 'scoped memory for texas_encoder_pallas.1']
    #allocation4 [shape = 'u8[4096]{0}', space=vmem, size = 0x1000, scoped, tag = 'input window, operand 2']
    #allocation5 [shape = 's32[2]{0}', space=sflag, size = 0x8, scoped, tag = 'scoped memory for texas_encoder_pallas.1']
    #allocation6 [shape = 'u8[1048576]{0}', space=vmem, size = 0x100000, scoped, tag = 'input window, operand 3']
    %9 = vsyncpa [#allocation3], 0
    %s10 = scalar_lea.sflag [#allocation3], 1
    %11 = vsyncpa %s10, 0
    %12 = vsyncpa [#allocation5], 0
    %s13 = scalar_lea.sflag [#allocation5], 1
    %14 = vsyncpa %s13, 0
    loop: start=0, step=1, limit=4
    $region2: #{texas_encoder_pallas.1} parent=1 // loop_pre_header
      _
    $region3: #{texas_encoder_pallas.1} parent=1 // loop_header
      %s16 = sphi 0, %s20
      %p17 = scmp.ge.s32.totalorder %s16, 4
      %s24 = sphi 0, %s24
      %s26 = sphi 0, %s24
      %s27 = sphi 0, %s26
      %s41 = sphi 0, %s27
      %s47 = sphi 0, %s49
      %s50 = sphi 0, %s47
      %s51 = sphi 0, %s50
      %s67 = sphi 0, %s51
      %s73 = sphi 0, %s75
      %s76 = sphi 0, %s73
      %s77 = sphi 0, %s76
      %s93 = sphi 0, %s77
      %s99 = sphi 0, %s101
      %s102 = sphi 0, %s99
      %s103 = sphi 0, %s102
      %s119 = sphi 0, %s103
      %s125 = sphi 0, %s127
      %s128 = sphi 0, %s125
      %s129 = sphi 0, %s128
      %s145 = sphi 0, %s129
    $region4: #{texas_encoder_pallas.1} parent=1 // loop_header_branch
      %19 = sbr.rel (%p17) target = $region8
    $region5: #{texas_encoder_pallas.1} parent=1 // loop_body
      %s21 = ssub.s32 %s16, 1
      %s22 = ssub.s32 %s16, 2
      %s23 = sadd.s32 %s16, 1
      %s25 = sadd.s32 %s24, 1
      %p28 = scmp.eq.s32.totalorder %s16, 1
      %p29 = scmp.ne.s32.totalorder %s24, %s26
      %p30 = scmp.eq.s32.totalorder %s16, 0
      %p31 = por %p29, %p30
      %p32 = scmp.ne.s32.totalorder %s24, %s26
      %p33 = scmp.eq.s32.totalorder %s21, 1
      %p34 = por %p32, %p33
      %p35 = scmp.ne.s32.totalorder %s26, %s27
      %p36 = scmp.eq.s32.totalorder %s21, 0
      %p37 = por %p35, %p36
      %p38 = scmp.ne.s32.totalorder %s26, %s27
      %p39 = scmp.eq.s32.totalorder %s22, 1
      %p40 = por %p38, %p39
      %p42 = scmp.ne.s32.totalorder %s27, %s41
      %p43 = scmp.eq.s32.totalorder %s22, 0
      %p44 = por %p42, %p43
      %s45 = ssub.s32 %s16, %s23
      %p46 = scmp.eq.s32.totalorder %s45, 0
      %s48 = sadd.s32 %s47, 1
      %s49 = scalar_select %p46, %s47, %s48
      %p52 = pneg %p46
      %p53 = scmp.eq.s32.totalorder %s16, 1
      %p54 = por %p52, %p53
      %p55 = scmp.ne.s32.totalorder %s47, %s50
      %p56 = scmp.eq.s32.totalorder %s16, 0
      %p57 = por %p55, %p56
      %p58 = scmp.ne.s32.totalorder %s47, %s50
      %p59 = scmp.eq.s32.totalorder %s21, 1
      %p60 = por %p58, %p59
      %p61 = scmp.ne.s32.totalorder %s50, %s51
      %p62 = scmp.eq.s32.totalorder %s21, 0
      %p63 = por %p61, %p62
      %p64 = scmp.ne.s32.totalorder %s50, %s51
      %p65 = scmp.eq.s32.totalorder %s22, 1
      %p66 = por %p64, %p65
      %p68 = scmp.ne.s32.totalorder %s51, %s67
      %p69 = scmp.eq.s32.totalorder %s22, 0
      %p70 = por %p68, %p69
      %s71 = ssub.s32 %s16, %s23
      %p72 = scmp.eq.s32.totalorder %s71, 0
      %s74 = sadd.s32 %s73, 1
      %s75 = scalar_select %p72, %s73, %s74
      %p78 = pneg %p72
      %p79 = scmp.eq.s32.totalorder %s16, 1
      %p80 = por %p78, %p79
      %p81 = scmp.ne.s32.totalorder %s73, %s76
      %p82 = scmp.eq.s32.totalorder %s16, 0
      %p83 = por %p81, %p82
      %p84 = scmp.ne.s32.totalorder %s73, %s76
      %p85 = scmp.eq.s32.totalorder %s21, 1
      %p86 = por %p84, %p85
      %p87 = scmp.ne.s32.totalorder %s76, %s77
      %p88 = scmp.eq.s32.totalorder %s21, 0
      %p89 = por %p87, %p88
      %p90 = scmp.ne.s32.totalorder %s76, %s77
      %p91 = scmp.eq.s32.totalorder %s22, 1
      %p92 = por %p90, %p91
      %p94 = scmp.ne.s32.totalorder %s77, %s93
      %p95 = scmp.eq.s32.totalorder %s22, 0
      %p96 = por %p94, %p95
      %s97 = ssub.s32 %s16, %s23
      %p98 = scmp.eq.s32.totalorder %s97, 0
      %s100 = sadd.s32 %s99, 1
      %s101 = scalar_select %p98, %s99, %s100
      %p104 = pneg %p98
      %p105 = scmp.eq.s32.totalorder %s16, 1
      %p106 = por %p104, %p105
      %p107 = scmp.ne.s32.totalorder %s99, %s102
      %p108 = scmp.eq.s32.totalorder %s16, 0
      %p109 = por %p107, %p108
      %p110 = scmp.ne.s32.totalorder %s99, %s102
      %p111 = scmp.eq.s32.totalorder %s21, 1
      %p112 = por %p110, %p111
      %p113 = scmp.ne.s32.totalorder %s102, %s103
      %p114 = scmp.eq.s32.totalorder %s21, 0
      %p115 = por %p113, %p114
      %p116 = scmp.ne.s32.totalorder %s102, %s103
      %p117 = scmp.eq.s32.totalorder %s22, 1
      %p118 = por %p116, %p117
      %p120 = scmp.ne.s32.totalorder %s103, %s119
      %p121 = scmp.eq.s32.totalorder %s22, 0
      %p122 = por %p120, %p121
      %s123 = ssub.s32 %s16, %s23
      %p124 = scmp.eq.s32.totalorder %s123, 0
      %s126 = sadd.s32 %s125, 1
      %s127 = scalar_select %p124, %s125, %s126
      %p130 = pneg %p124
      %p131 = scmp.eq.s32.totalorder %s16, 1
      %p132 = por %p130, %p131
      %p133 = scmp.ne.s32.totalorder %s125, %s128
      %p134 = scmp.eq.s32.totalorder %s16, 0
      %p135 = por %p133, %p134
      %p136 = scmp.ne.s32.totalorder %s125, %s128
      %p137 = scmp.eq.s32.totalorder %s21, 1
      %p138 = por %p136, %p137
      %p139 = scmp.ne.s32.totalorder %s128, %s129
      %p140 = scmp.eq.s32.totalorder %s21, 0
      %p141 = por %p139, %p140
      %p142 = scmp.ne.s32.totalorder %s128, %s129
      %p143 = scmp.eq.s32.totalorder %s22, 1
      %p144 = por %p142, %p143
      %p146 = scmp.ne.s32.totalorder %s129, %s145
      %p147 = scmp.eq.s32.totalorder %s22, 0
      %p148 = por %p146, %p147
      %p149 = scmp.le.s32.totalorder 1, %s16
      %p150 = scmp.lt.s32.totalorder %s16, 3
      %p151 = pnand %p149, %p150
      %p152 = pneg %p151
      // Predicated region
      $region9: #{texas_encoder_pallas.1} parent=5 // pred_check
        _
      $region10: #{texas_encoder_pallas.1} parent=5 // pred_check_branch
        %154 = sbr.rel (%p151) target = $region12
      $region11: #{texas_encoder_pallas.1} parent=5 // pred_region
        %s155 = ssub.s32 %s16, 1
        // Predicated region
        $region13: #{texas_encoder_pallas.1} parent=11 // pred_check
          %p156 = pneg %p37
        $region14: #{texas_encoder_pallas.1} parent=11 // pred_check_branch
          %158 = sbr.rel (%p156) target = $region16
        $region15: #{texas_encoder_pallas.1} parent=11 // pred_region
          _
        $region16: #{texas_encoder_pallas.1} parent=11 // pred_fallthru
          _
      $region12: #{texas_encoder_pallas.1} parent=5 // pred_fallthru
        _
      %p159 = scmp.lt.s32.totalorder %s16, 2
      // Predicated region
      $region17: #{texas_encoder_pallas.1} parent=5 // pred_check
        %p160 = pneg %p159
      $region18: #{texas_encoder_pallas.1} parent=5 // pred_check_branch
        %162 = sbr.rel (%p160) target = $region20
      $region19: #{texas_encoder_pallas.1} parent=5 // pred_region
        // Predicated region
        $region21: #{texas_encoder_pallas.1} parent=19 // pred_check
          %p163 = pneg %p57
        $region22: #{texas_encoder_pallas.1} parent=19 // pred_check_branch
          %165 = sbr.rel (%p163) target = $region24
        $region23: #{texas_encoder_pallas.1} parent=19 // pred_region
          %s166 = sand.u32 %s47, 1
          %s167 = scalar_lea.sflag [#allocation3], %s166
          %s168 = sand.u32 %s47, 1
          %s169 = smul.addr %s168, 12544
          %s170 = scalar_lea.vmem [#allocation2], %s169
          %s171 = smul.u32 4, %s16
          %173 = vsyncadd %s167, 0
          %s174 = smul.addr %s171, 4
          %s175 = scalar_lea.hbm %s1, %s174
          %s176 = sshll.u32 %s175, 4
          %s177 = int_to_ptr.hbm [resolvable:$true] %s176
          %s178 = sshll.u32 %s170, 4
          %s179 = int_to_ptr.vmem [resolvable:$true] %s178
          %184 = dma.hbm_to_vmem [thread:$0]  %s177, 200704, %s179, %s167, 512, 256, 16
        $region24: #{texas_encoder_pallas.1} parent=19 // pred_fallthru
          _
        // Predicated region
        $region25: #{texas_encoder_pallas.1} parent=19 // pred_check
          %p185 = pneg %p83
        $region26: #{texas_encoder_pallas.1} parent=19 // pred_check_branch
          %187 = sbr.rel (%p185) target = $region28
        $region27: #{texas_encoder_pallas.1} parent=19 // pred_region
          %s188 = sand.u32 %s16, 1
          %s189 = scalar_lea.sflag [#allocation5], %s188
          %s190 = sand.u32 %s73, 1
          %s191 = smul.addr %s190, 4
          %s192 = scalar_lea.vmem [#allocation4], %s191
          %s193 = smul.u32 4, %s16
          %195 = vsyncadd %s189, 0
          %s196 = scalar_lea.hbm %s2, %s193
          %s198 = sshll.u32 %s196, 4
          %s199 = int_to_ptr.hbm [resolvable:$true] %s198
          %s200 = sshll.u32 %s192, 4
          %s201 = int_to_ptr.vmem [resolvable:$true] %s200
          %203 = dma.hbm_to_vmem [thread:$0]  %s199, 64, %s201, %s189
        $region28: #{texas_encoder_pallas.1} parent=19 // pred_fallthru
          _
        // Predicated region
        $region29: #{texas_encoder_pallas.1} parent=19 // pred_check
          %p204 = pneg %p109
        $region30: #{texas_encoder_pallas.1} parent=19 // pred_check_branch
          %206 = sbr.rel (%p204) target = $region32
        $region31: #{texas_encoder_pallas.1} parent=19 // pred_region
          %s207 = sand.u32 %s16, 1
          %s208 = scalar_lea.sflag [#allocation5], %s207
          %s209 = sand.u32 %s99, 1
          %s210 = smul.addr %s209, 1024
          %s211 = scalar_lea.vmem [#allocation6], %s210
          %s212 = smul.u32 64, %s16
          %214 = vsyncadd %s208, 0
          %s215 = smul.addr %s212, 4
          %s216 = smul.addr %s215, 4
          %s217 = scalar_lea.hbm %s3, %s216
          %s218 = sshll.u32 %s217, 4
          %s219 = int_to_ptr.hbm [resolvable:$true] %s218
          %s220 = sshll.u32 %s211, 4
          %s221 = int_to_ptr.vmem [resolvable:$true] %s220
          %226 = dma.hbm_to_vmem [thread:$0]  %s219, 16384, %s221, %s208, 256, 256, 16
        $region32: #{texas_encoder_pallas.1} parent=19 // pred_fallthru
          _
      $region20: #{texas_encoder_pallas.1} parent=5 // pred_fallthru
        _
      %p227 = scmp.le.s32.totalorder 1, %s16
      %p228 = scmp.lt.s32.totalorder %s16, 3
      %p229 = pnand %p227, %p228
      %p230 = pneg %p229
      // Predicated region
      $region33: #{texas_encoder_pallas.1} parent=5 // pred_check
        _
      $region34: #{texas_encoder_pallas.1} parent=5 // pred_check_branch
        %232 = sbr.rel (%p229) target = $region36
      $region35: #{texas_encoder_pallas.1} parent=5 // pred_region
        %s233 = ssub.s32 %s16, 1
        %s234 = sand.u32 %s50, 1
        %s235 = scalar_lea.sflag [#allocation3], %s234
        %s236 = sand.u32 %s50, 1
        %s237 = smul.addr %s236, 12544
        %s238 = scalar_lea.vmem [#allocation2], %s237
        // Predicated region
        $region37: #{texas_encoder_pallas.1} parent=35 // pred_check
          %p239 = pneg %p63
        $region38: #{texas_encoder_pallas.1} parent=35 // pred_check_branch
          %241 = sbr.rel (%p239) target = $region40
        $region39: #{texas_encoder_pallas.1} parent=35 // pred_region
          %243 = dma.done %s235, 200704
        $region40: #{texas_encoder_pallas.1} parent=35 // pred_fallthru
          _
        %s244 = sand.u32 %s21, 1
        %s245 = scalar_lea.sflag [#allocation5], %s244
        %s246 = sand.u32 %s76, 1
        %s247 = smul.addr %s246, 4
        %s248 = scalar_lea.vmem [#allocation4], %s247
        // Predicated region
        $region41: #{texas_encoder_pallas.1} parent=35 // pred_check
          %p249 = pneg %p89
        $region42: #{texas_encoder_pallas.1} parent=35 // pred_check_branch
          %251 = sbr.rel (%p249) target = $region44
        $region43: #{texas_encoder_pallas.1} parent=35 // pred_region
          %253 = dma.done %s245, 64
        $region44: #{texas_encoder_pallas.1} parent=35 // pred_fallthru
          _
        %s254 = sand.u32 %s21, 1
        %s255 = scalar_lea.sflag [#allocation5], %s254
        %s256 = sand.u32 %s102, 1
        %s257 = smul.addr %s256, 1024
        %s258 = scalar_lea.vmem [#allocation6], %s257
        // Predicated region
        $region45: #{texas_encoder_pallas.1} parent=35 // pred_check
          %p259 = pneg %p115
        $region46: #{texas_encoder_pallas.1} parent=35 // pred_check_branch
          %261 = sbr.rel (%p259) target = $region48
        $region47: #{texas_encoder_pallas.1} parent=35 // pred_region
          %263 = dma.done %s255, 16384
        $region48: #{texas_encoder_pallas.1} parent=35 // pred_fallthru
          _
        %p264 = pneg %p37
        %p265 = pneg %p34
        %s266 = sand.u32 %s50, 1
        %s267 = scalar_lea.sflag [#allocation3], %s266
        %s268 = sand.u32 %s50, 1
        %s269 = smul.addr %s268, 12544
        %s270 = scalar_lea.vmem [#allocation2], %s269
        %p271 = pneg %p63
        %p272 = pneg %p60
        %s273 = sand.u32 %s21, 1
        %s274 = scalar_lea.sflag [#allocation5], %s273
        %s275 = sand.u32 %s76, 1
        %s276 = smul.addr %s275, 4
        %s277 = scalar_lea.vmem [#allocation4], %s276
        %p278 = pneg %p89
        %p279 = pneg %p86
        %s280 = sand.u32 %s21, 1
        %s281 = scalar_lea.sflag [#allocation5], %s280
        %s282 = sand.u32 %s102, 1
        %s283 = smul.addr %s282, 1024
        %s284 = scalar_lea.vmem [#allocation6], %s283
        %p285 = pneg %p115
        %p286 = pneg %p112
        %p287 = pneg %p141
        %p288 = pneg %p138
        %p289 = scmp.lt.s32.totalorder %s21, 1
        %s290 = scalar_select %p289, %s21, 1
        %s291 = smul.addr %s290, 4
        %s292 = smul.addr %s291, 8
        %s293 = scalar_lea.vmem %s4, %s292
        %s294 = smul.u32 4, %s21
        %s295 = smul.u32 4, %s21
        %s296 = smul.u32 64, %s21
        %p297 = scmp.lt.s32.totalorder %s21, 1
        %s298 = scalar_select %p297, %s21, 1
        %s299 = smul.addr %s298, 4
        %s300 = smul.addr %s299, 8
        %s301 = scalar_lea.vmem %s4, %s300
        %v302 = vld [vmem:[%s0] sm:$0xff]
        %v303 = vld [vmem:[%s0 + $0x8] sm:$0xff]
        %v304 = vld [vmem:[%s0 + $0x10] sm:$0xff]
        %v305 = vld [vmem:[%s0 + $0x18] sm:$0xff]
        %v306 = vld [vmem:[%s0 + $0x20] sm:$0xff]
        %v307 = vld [vmem:[%s0 + $0x28] sm:$0xff]
        %v308 = vld [vmem:[%s0 + $0x30] sm:$0xff]
        %v309 = vld [vmem:[%s0 + $0x38] sm:$0xff]
        %v310 = vld [vmem:[%s0 + $0x40] sm:$0xff]
        %v311 = vld [vmem:[%s0 + $0x48] sm:$0xff]
        %v312 = vld [vmem:[%s0 + $0x50] sm:$0xff]
        %v313 = vld [vmem:[%s0 + $0x58] sm:$0xff]
        %v314 = vld [vmem:[%s0 + $0x60] sm:$0xff]
        %v315 = vld [vmem:[%s0 + $0x68] sm:$0xff]
        %v316 = vld [vmem:[%s0 + $0x70] sm:$0xff]
        %v317 = vld [vmem:[%s0 + $0x78] sm:$0xff]
        %v318 = vld [vmem:[%s0 + $0x80] sm:$0xff]
        %v319 = vld [vmem:[%s0 + $0x88] sm:$0xff]
        %v320 = vld [vmem:[%s0 + $0x90] sm:$0xff]
        %v321 = vld [vmem:[%s0 + $0x98] sm:$0xff]
        %v322 = vld [vmem:[%s0 + $0xa0] sm:$0xff]
        %v323 = vld [vmem:[%s0 + $0xa8] sm:$0xff]
        %v324 = vld [vmem:[%s0 + $0xb0] sm:$0xff]
        %v325 = vld [vmem:[%s0 + $0xb8] sm:$0xff]
        %v326 = vld [vmem:[%s0 + $0xc0] sm:$0xff]
        %v327 = vld [vmem:[%s0 + $0xc8] sm:$0xff]
        %v328 = vld [vmem:[%s0 + $0xd0] sm:$0xff]
        %v329 = vld [vmem:[%s0 + $0xd8] sm:$0xff]
        %v330 = vld [vmem:[%s0 + $0xe0] sm:$0xff]
        %v331 = vld [vmem:[%s0 + $0xe8] sm:$0xff]
        %v332 = vld [vmem:[%s0 + $0xf0] sm:$0xff]
        %v333 = vld [vmem:[%s0 + $0xf8] sm:$0xff]
        %v334 = vld [vmem:[%s0 + $0x100] sm:$0xff]
        %v335 = vld [vmem:[%s0 + $0x108] sm:$0xff]
        %v336 = vld [vmem:[%s0 + $0x110] sm:$0xff]
        %v337 = vld [vmem:[%s0 + $0x118] sm:$0xff]
        %v338 = vld [vmem:[%s0 + $0x120] sm:$0xff]
        %v339 = vld [vmem:[%s0 + $0x128] sm:$0xff]
        %v340 = vld [vmem:[%s0 + $0x130] sm:$0xff]
        %v341 = vld [vmem:[%s0 + $0x138] sm:$0xff]
        %v342 = vld [vmem:[%s0 + $0x140] sm:$0xff]
        %v343 = vld [vmem:[%s0 + $0x148] sm:$0xff]
        %v344 = vld [vmem:[%s0 + $0x150] sm:$0xff]
        %v345 = vld [vmem:[%s0 + $0x158] sm:$0xff]
        %v346 = vld [vmem:[%s0 + $0x160] sm:$0xff]
        %v347 = vld [vmem:[%s0 + $0x168] sm:$0xff]
        %v348 = vld [vmem:[%s0 + $0x170] sm:$0xff]
        %v349 = vld [vmem:[%s0 + $0x178] sm:$0xff]
        %v350 = vld [vmem:[%s0 + $0x180] sm:$0xff]
        %v351 = vpack.c.bf16 %v302, %v302
        %v352 = vpack.c.bf16 %v303, %v303
        %v353 = vpack.c.bf16 %v304, %v304
        %v354 = vpack.c.bf16 %v305, %v305
        %v355 = vpack.c.bf16 %v306, %v306
        %v356 = vpack.c.bf16 %v307, %v307
        %v357 = vpack.c.bf16 %v308, %v308
        %v358 = vpack.c.bf16 %v309, %v309
        %v359 = vpack.c.bf16 %v310, %v310
        %v360 = vpack.c.bf16 %v311, %v311
        %v361 = vpack.c.bf16 %v312, %v312
        %v362 = vpack.c.bf16 %v313, %v313
        %v363 = vpack.c.bf16 %v314, %v314
        %v364 = vpack.c.bf16 %v315, %v315
        %v365 = vpack.c.bf16 %v316, %v316
        %v366 = vpack.c.bf16 %v317, %v317
        %v367 = vpack.c.bf16 %v318, %v318
        %v368 = vpack.c.bf16 %v319, %v319
        %v369 = vpack.c.bf16 %v320, %v320
        %v370 = vpack.c.bf16 %v321, %v321
        %v371 = vpack.c.bf16 %v322, %v322
        %v372 = vpack.c.bf16 %v323, %v323
        %v373 = vpack.c.bf16 %v324, %v324
        %v374 = vpack.c.bf16 %v325, %v325
        %v375 = vpack.c.bf16 %v326, %v326
        %v376 = vpack.c.bf16 %v327, %v327
        %v377 = vpack.c.bf16 %v328, %v328
        %v378 = vpack.c.bf16 %v329, %v329
        %v379 = vpack.c.bf16 %v330, %v330
        %v380 = vpack.c.bf16 %v331, %v331
        %v381 = vpack.c.bf16 %v332, %v332
        %v382 = vpack.c.bf16 %v333, %v333
        %v383 = vpack.c.bf16 %v334, %v334
        %v384 = vpack.c.bf16 %v335, %v335
        %v385 = vpack.c.bf16 %v336, %v336
        %v386 = vpack.c.bf16 %v337, %v337
        %v387 = vpack.c.bf16 %v338, %v338
        %v388 = vpack.c.bf16 %v339, %v339
        %v389 = vpack.c.bf16 %v340, %v340
        %v390 = vpack.c.bf16 %v341, %v341
        %v391 = vpack.c.bf16 %v342, %v342
        %v392 = vpack.c.bf16 %v343, %v343
        %v393 = vpack.c.bf16 %v344, %v344
        %v394 = vpack.c.bf16 %v345, %v345
        %v395 = vpack.c.bf16 %v346, %v346
        %v396 = vpack.c.bf16 %v347, %v347
        %v397 = vpack.c.bf16 %v348, %v348
        %v398 = vpack.c.bf16 %v349, %v349
        %v399 = vpack.c.bf16 %v350, %v350
        %v400 = vld [vmem:[%s238] sm:$0xff]
        %v401 = vld [vmem:[%s238 + $0x8] sm:$0xff]
        %v402 = vld [vmem:[%s238 + $0x10] sm:$0xff]
        %v403 = vld [vmem:[%s238 + $0x18] sm:$0xff]
        %v404 = vld [vmem:[%s238 + $0x20] sm:$0xff]
        %v405 = vld [vmem:[%s238 + $0x28] sm:$0xff]
        %v406 = vld [vmem:[%s238 + $0x30] sm:$0xff]
        %v407 = vld [vmem:[%s238 + $0x38] sm:$0xff]
        %v408 = vld [vmem:[%s238 + $0x40] sm:$0xff]
        %v409 = vld [vmem:[%s238 + $0x48] sm:$0xff]
        %v410 = vld [vmem:[%s238 + $0x50] sm:$0xff]
        %v411 = vld [vmem:[%s238 + $0x58] sm:$0xff]
        %v412 = vld [vmem:[%s238 + $0x60] sm:$0xff]
        %v413 = vld [vmem:[%s238 + $0x68] sm:$0xff]
        %v414 = vld [vmem:[%s238 + $0x70] sm:$0xff]
        %v415 = vld [vmem:[%s238 + $0x78] sm:$0xff]
        %v416 = vld [vmem:[%s238 + $0x80] sm:$0xff]
        %v417 = vld [vmem:[%s238 + $0x88] sm:$0xff]
        %v418 = vld [vmem:[%s238 + $0x90] sm:$0xff]
        %v419 = vld [vmem:[%s238 + $0x98] sm:$0xff]
        %v420 = vld [vmem:[%s238 + $0xa0] sm:$0xff]
        %v421 = vld [vmem:[%s238 + $0xa8] sm:$0xff]
        %v422 = vld [vmem:[%s238 + $0xb0] sm:$0xff]
        %v423 = vld [vmem:[%s238 + $0xb8] sm:$0xff]
        %v424 = vld [vmem:[%s238 + $0xc0] sm:$0xff]
        %v425 = vld [vmem:[%s238 + $0xc8] sm:$0xff]
        %v426 = vld [vmem:[%s238 + $0xd0] sm:$0xff]
        %v427 = vld [vmem:[%s238 + $0xd8] sm:$0xff]
        %v428 = vld [vmem:[%s238 + $0xe0] sm:$0xff]
        %v429 = vld [vmem:[%s238 + $0xe8] sm:$0xff]
        %v430 = vld [vmem:[%s238 + $0xf0] sm:$0xff]
        %v431 = vld [vmem:[%s238 + $0xf8] sm:$0xff]
        %v432 = vld [vmem:[%s238 + $0x100] sm:$0xff]
        %v433 = vld [vmem:[%s238 + $0x108] sm:$0xff]
        %v434 = vld [vmem:[%s238 + $0x110] sm:$0xff]
        %v435 = vld [vmem:[%s238 + $0x118] sm:$0xff]
        %v436 = vld [vmem:[%s238 + $0x120] sm:$0xff]
        %v437 = vld [vmem:[%s238 + $0x128] sm:$0xff]
        %v438 = vld [vmem:[%s238 + $0x130] sm:$0xff]
        %v439 = vld [vmem:[%s238 + $0x138] sm:$0xff]
        %v440 = vld [vmem:[%s238 + $0x140] sm:$0xff]
        %v441 = vld [vmem:[%s238 + $0x148] sm:$0xff]
        %v442 = vld [vmem:[%s238 + $0x150] sm:$0xff]
        %v443 = vld [vmem:[%s238 + $0x158] sm:$0xff]
        %v444 = vld [vmem:[%s238 + $0x160] sm:$0xff]
        %v445 = vld [vmem:[%s238 + $0x168] sm:$0xff]
        %v446 = vld [vmem:[%s238 + $0x170] sm:$0xff]
        %v447 = vld [vmem:[%s238 + $0x178] sm:$0xff]
        %v448 = vld [vmem:[%s238 + $0x180] sm:$0xff]
        %v449 = vld [vmem:[%s238 + $0x188] sm:$0xff]
        %v450 = vld [vmem:[%s238 + $0x190] sm:$0xff]
        %v451 = vld [vmem:[%s238 + $0x198] sm:$0xff]
        %v452 = vld [vmem:[%s238 + $0x1a0] sm:$0xff]
        %v453 = vld [vmem:[%s238 + $0x1a8] sm:$0xff]
        %v454 = vld [vmem:[%s238 + $0x1b0] sm:$0xff]
        %v455 = vld [vmem:[%s238 + $0x1b8] sm:$0xff]
        %v456 = vld [vmem:[%s238 + $0x1c0] sm:$0xff]
        %v457 = vld [vmem:[%s238 + $0x1c8] sm:$0xff]
        %v458 = vld [vmem:[%s238 + $0x1d0] sm:$0xff]
        %v459 = vld [vmem:[%s238 + $0x1d8] sm:$0xff]
        %v460 = vld [vmem:[%s238 + $0x1e0] sm:$0xff]
        %v461 = vld [vmem:[%s238 + $0x1e8] sm:$0xff]
        %v462 = vld [vmem:[%s238 + $0x1f0] sm:$0xff]
        %v463 = vld [vmem:[%s238 + $0x1f8] sm:$0xff]
        %v464 = vld [vmem:[%s238 + $0x200] sm:$0xff]
        %v465 = vld [vmem:[%s238 + $0x208] sm:$0xff]
        %v466 = vld [vmem:[%s238 + $0x210] sm:$0xff]
        %v467 = vld [vmem:[%s238 + $0x218] sm:$0xff]
        %v468 = vld [vmem:[%s238 + $0x220] sm:$0xff]
        %v469 = vld [vmem:[%s238 + $0x228] sm:$0xff]
        %v470 = vld [vmem:[%s238 + $0x230] sm:$0xff]
        %v471 = vld [vmem:[%s238 + $0x238] sm:$0xff]
        %v472 = vld [vmem:[%s238 + $0x240] sm:$0xff]
        %v473 = vld [vmem:[%s238 + $0x248] sm:$0xff]
        %v474 = vld [vmem:[%s238 + $0x250] sm:$0xff]
        %v475 = vld [vmem:[%s238 + $0x258] sm:$0xff]
        %v476 = vld [vmem:[%s238 + $0x260] sm:$0xff]
        %v477 = vld [vmem:[%s238 + $0x268] sm:$0xff]
        %v478 = vld [vmem:[%s238 + $0x270] sm:$0xff]
        %v479 = vld [vmem:[%s238 + $0x278] sm:$0xff]
        %v480 = vld [vmem:[%s238 + $0x280] sm:$0xff]
        %v481 = vld [vmem:[%s238 + $0x288] sm:$0xff]
        %v482 = vld [vmem:[%s238 + $0x290] sm:$0xff]
        %v483 = vld [vmem:[%s238 + $0x298] sm:$0xff]
        %v484 = vld [vmem:[%s238 + $0x2a0] sm:$0xff]
        %v485 = vld [vmem:[%s238 + $0x2a8] sm:$0xff]
        %v486 = vld [vmem:[%s238 + $0x2b0] sm:$0xff]
        %v487 = vld [vmem:[%s238 + $0x2b8] sm:$0xff]
        %v488 = vld [vmem:[%s238 + $0x2c0] sm:$0xff]
        %v489 = vld [vmem:[%s238 + $0x2c8] sm:$0xff]
        %v490 = vld [vmem:[%s238 + $0x2d0] sm:$0xff]
        %v491 = vld [vmem:[%s238 + $0x2d8] sm:$0xff]
        %v492 = vld [vmem:[%s238 + $0x2e0] sm:$0xff]
        %v493 = vld [vmem:[%s238 + $0x2e8] sm:$0xff]
        %v494 = vld [vmem:[%s238 + $0x2f0] sm:$0xff]
        %v495 = vld [vmem:[%s238 + $0x2f8] sm:$0xff]
        %v496 = vld [vmem:[%s238 + $0x300] sm:$0xff]
        %v497 = vld [vmem:[%s238 + $0x308] sm:$0xff]
        %v498 = vld [vmem:[%s238 + $0x310] sm:$0xff]
        %v499 = vld [vmem:[%s238 + $0x318] sm:$0xff]
        %v500 = vld [vmem:[%s238 + $0x320] sm:$0xff]
        %v501 = vld [vmem:[%s238 + $0x328] sm:$0xff]
        %v502 = vld [vmem:[%s238 + $0x330] sm:$0xff]
        %v503 = vld [vmem:[%s238 + $0x338] sm:$0xff]
        %v504 = vld [vmem:[%s238 + $0x340] sm:$0xff]
        %v505 = vld [vmem:[%s238 + $0x348] sm:$0xff]
        %v506 = vld [vmem:[%s238 + $0x350] sm:$0xff]
        %v507 = vld [vmem:[%s238 + $0x358] sm:$0xff]
        %v508 = vld [vmem:[%s238 + $0x360] sm:$0xff]
        %v509 = vld [vmem:[%s238 + $0x368] sm:$0xff]
        %v510 = vld [vmem:[%s238 + $0x370] sm:$0xff]
        %v511 = vld [vmem:[%s238 + $0x378] sm:$0xff]
        %v512 = vld [vmem:[%s238 + $0x380] sm:$0xff]
        %v513 = vld [vmem:[%s238 + $0x388] sm:$0xff]
        %v514 = vld [vmem:[%s238 + $0x390] sm:$0xff]
        %v515 = vld [vmem:[%s238 + $0x398] sm:$0xff]
        %v516 = vld [vmem:[%s238 + $0x3a0] sm:$0xff]
        %v517 = vld [vmem:[%s238 + $0x3a8] sm:$0xff]
        %v518 = vld [vmem:[%s238 + $0x3b0] sm:$0xff]
        %v519 = vld [vmem:[%s238 + $0x3b8] sm:$0xff]
        %v520 = vld [vmem:[%s238 + $0x3c0] sm:$0xff]
        %v521 = vld [vmem:[%s238 + $0x3c8] sm:$0xff]
        %v522 = vld [vmem:[%s238 + $0x3d0] sm:$0xff]
        %v523 = vld [vmem:[%s238 + $0x3d8] sm:$0xff]
        %v524 = vld [vmem:[%s238 + $0x3e0] sm:$0xff]
        %v525 = vld [vmem:[%s238 + $0x3e8] sm:$0xff]
        %v526 = vld [vmem:[%s238 + $0x3f0] sm:$0xff]
        %v527 = vld [vmem:[%s238 + $0x3f8] sm:$0xff]
        %v528 = vld [vmem:[%s238 + $0x400] sm:$0xff]
        %v529 = vld [vmem:[%s238 + $0x408] sm:$0xff]
        %v530 = vld [vmem:[%s238 + $0x410] sm:$0xff]
        %v531 = vld [vmem:[%s238 + $0x418] sm:$0xff]
        %v532 = vld [vmem:[%s238 + $0x420] sm:$0xff]
        %v533 = vld [vmem:[%s238 + $0x428] sm:$0xff]
        %v534 = vld [vmem:[%s238 + $0x430] sm:$0xff]
        %v535 = vld [vmem:[%s238 + $0x438] sm:$0xff]
        %v536 = vld [vmem:[%s238 + $0x440] sm:$0xff]
        %v537 = vld [vmem:[%s238 + $0x448] sm:$0xff]
        %v538 = vld [vmem:[%s238 + $0x450] sm:$0xff]
        %v539 = vld [vmem:[%s238 + $0x458] sm:$0xff]
        %v540 = vld [vmem:[%s238 + $0x460] sm:$0xff]
        %v541 = vld [vmem:[%s238 + $0x468] sm:$0xff]
        %v542 = vld [vmem:[%s238 + $0x470] sm:$0xff]
        %v543 = vld [vmem:[%s238 + $0x478] sm:$0xff]
        %v544 = vld [vmem:[%s238 + $0x480] sm:$0xff]
        %v545 = vld [vmem:[%s238 + $0x488] sm:$0xff]
        %v546 = vld [vmem:[%s238 + $0x490] sm:$0xff]
        %v547 = vld [vmem:[%s238 + $0x498] sm:$0xff]
        %v548 = vld [vmem:[%s238 + $0x4a0] sm:$0xff]
        %v549 = vld [vmem:[%s238 + $0x4a8] sm:$0xff]
        %v550 = vld [vmem:[%s238 + $0x4b0] sm:$0xff]
        %v551 = vld [vmem:[%s238 + $0x4b8] sm:$0xff]
        %v552 = vld [vmem:[%s238 + $0x4c0] sm:$0xff]
        %v553 = vld [vmem:[%s238 + $0x4c8] sm:$0xff]
        %v554 = vld [vmem:[%s238 + $0x4d0] sm:$0xff]
        %v555 = vld [vmem:[%s238 + $0x4d8] sm:$0xff]
        %v556 = vld [vmem:[%s238 + $0x4e0] sm:$0xff]
        %v557 = vld [vmem:[%s238 + $0x4e8] sm:$0xff]
        %v558 = vld [vmem:[%s238 + $0x4f0] sm:$0xff]
        %v559 = vld [vmem:[%s238 + $0x4f8] sm:$0xff]
        %v560 = vld [vmem:[%s238 + $0x500] sm:$0xff]
        %v561 = vld [vmem:[%s238 + $0x508] sm:$0xff]
        %v562 = vld [vmem:[%s238 + $0x510] sm:$0xff]
        %v563 = vld [vmem:[%s238 + $0x518] sm:$0xff]
        %v564 = vld [vmem:[%s238 + $0x520] sm:$0xff]
        %v565 = vld [vmem:[%s238 + $0x528] sm:$0xff]
        %v566 = vld [vmem:[%s238 + $0x530] sm:$0xff]
        %v567 = vld [vmem:[%s238 + $0x538] sm:$0xff]
        %v568 = vld [vmem:[%s238 + $0x540] sm:$0xff]
        %v569 = vld [vmem:[%s238 + $0x548] sm:$0xff]
        %v570 = vld [vmem:[%s238 + $0x550] sm:$0xff]
        %v571 = vld [vmem:[%s238 + $0x558] sm:$0xff]
        %v572 = vld [vmem:[%s238 + $0x560] sm:$0xff]
        %v573 = vld [vmem:[%s238 + $0x568] sm:$0xff]
        %v574 = vld [vmem:[%s238 + $0x570] sm:$0xff]
        %v575 = vld [vmem:[%s238 + $0x578] sm:$0xff]
        %v576 = vld [vmem:[%s238 + $0x580] sm:$0xff]
        %v577 = vld [vmem:[%s238 + $0x588] sm:$0xff]
        %v578 = vld [vmem:[%s238 + $0x590] sm:$0xff]
        %v579 = vld [vmem:[%s238 + $0x598] sm:$0xff]
        %v580 = vld [vmem:[%s238 + $0x5a0] sm:$0xff]
        %v581 = vld [vmem:[%s238 + $0x5a8] sm:$0xff]
        %v582 = vld [vmem:[%s238 + $0x5b0] sm:$0xff]
        %v583 = vld [vmem:[%s238 + $0x5b8] sm:$0xff]
        %v584 = vld [vmem:[%s238 + $0x5c0] sm:$0xff]
        %v585 = vld [vmem:[%s238 + $0x5c8] sm:$0xff]
        %v586 = vld [vmem:[%s238 + $0x5d0] sm:$0xff]
        %v587 = vld [vmem:[%s238 + $0x5d8] sm:$0xff]
        %v588 = vld [vmem:[%s238 + $0x5e0] sm:$0xff]
        %v589 = vld [vmem:[%s238 + $0x5e8] sm:$0xff]
        %v590 = vld [vmem:[%s238 + $0x5f0] sm:$0xff]
        %v591 = vld [vmem:[%s238 + $0x5f8] sm:$0xff]
        %v592 = vld [vmem:[%s238 + $0x600] sm:$0xff]
        %v593 = vld [vmem:[%s238 + $0x608] sm:$0xff]
        %v594 = vld [vmem:[%s238 + $0x610] sm:$0xff]
        %v595 = vld [vmem:[%s238 + $0x618] sm:$0xff]
        %v596 = vld [vmem:[%s238 + $0x620] sm:$0xff]
        %v597 = vld [vmem:[%s238 + $0x628] sm:$0xff]
        %v598 = vld [vmem:[%s238 + $0x630] sm:$0xff]
        %v599 = vld [vmem:[%s238 + $0x638] sm:$0xff]
        %v600 = vld [vmem:[%s238 + $0x640] sm:$0xff]
        %v601 = vld [vmem:[%s238 + $0x648] sm:$0xff]
        %v602 = vld [vmem:[%s238 + $0x650] sm:$0xff]
        %v603 = vld [vmem:[%s238 + $0x658] sm:$0xff]
        %v604 = vld [vmem:[%s238 + $0x660] sm:$0xff]
        %v605 = vld [vmem:[%s238 + $0x668] sm:$0xff]
        %v606 = vld [vmem:[%s238 + $0x670] sm:$0xff]
        %v607 = vld [vmem:[%s238 + $0x678] sm:$0xff]
        %v608 = vld [vmem:[%s238 + $0x680] sm:$0xff]
        %v609 = vld [vmem:[%s238 + $0x688] sm:$0xff]
        %v610 = vld [vmem:[%s238 + $0x690] sm:$0xff]
        %v611 = vld [vmem:[%s238 + $0x698] sm:$0xff]
        %v612 = vld [vmem:[%s238 + $0x6a0] sm:$0xff]
        %v613 = vld [vmem:[%s238 + $0x6a8] sm:$0xff]
        %v614 = vld [vmem:[%s238 + $0x6b0] sm:$0xff]
        %v615 = vld [vmem:[%s238 + $0x6b8] sm:$0xff]
        %v616 = vld [vmem:[%s238 + $0x6c0] sm:$0xff]
        %v617 = vld [vmem:[%s238 + $0x6c8] sm:$0xff]
        %v618 = vld [vmem:[%s238 + $0x6d0] sm:$0xff]
        %v619 = vld [vmem:[%s238 + $0x6d8] sm:$0xff]
        %v620 = vld [vmem:[%s238 + $0x6e0] sm:$0xff]
        %v621 = vld [vmem:[%s238 + $0x6e8] sm:$0xff]
        %v622 = vld [vmem:[%s238 + $0x6f0] sm:$0xff]
        %v623 = vld [vmem:[%s238 + $0x6f8] sm:$0xff]
        %v624 = vld [vmem:[%s238 + $0x700] sm:$0xff]
        %v625 = vld [vmem:[%s238 + $0x708] sm:$0xff]
        %v626 = vld [vmem:[%s238 + $0x710] sm:$0xff]
        %v627 = vld [vmem:[%s238 + $0x718] sm:$0xff]
        %v628 = vld [vmem:[%s238 + $0x720] sm:$0xff]
        %v629 = vld [vmem:[%s238 + $0x728] sm:$0xff]
        %v630 = vld [vmem:[%s238 + $0x730] sm:$0xff]
        %v631 = vld [vmem:[%s238 + $0x738] sm:$0xff]
        %v632 = vld [vmem:[%s238 + $0x740] sm:$0xff]
        %v633 = vld [vmem:[%s238 + $0x748] sm:$0xff]
        %v634 = vld [vmem:[%s238 + $0x750] sm:$0xff]
        %v635 = vld [vmem:[%s238 + $0x758] sm:$0xff]
        %v636 = vld [vmem:[%s238 + $0x760] sm:$0xff]
        %v637 = vld [vmem:[%s238 + $0x768] sm:$0xff]
        %v638 = vld [vmem:[%s238 + $0x770] sm:$0xff]
        %v639 = vld [vmem:[%s238 + $0x778] sm:$0xff]
        %v640 = vld [vmem:[%s238 + $0x780] sm:$0xff]
        %v641 = vld [vmem:[%s238 + $0x788] sm:$0xff]
        %v642 = vld [vmem:[%s238 + $0x790] sm:$0xff]
        %v643 = vld [vmem:[%s238 + $0x798] sm:$0xff]
        %v644 = vld [vmem:[%s238 + $0x7a0] sm:$0xff]
        %v645 = vld [vmem:[%s238 + $0x7a8] sm:$0xff]
        %v646 = vld [vmem:[%s238 + $0x7b0] sm:$0xff]
        %v647 = vld [vmem:[%s238 + $0x7b8] sm:$0xff]
        %v648 = vld [vmem:[%s238 + $0x7c0] sm:$0xff]
        %v649 = vld [vmem:[%s238 + $0x7c8] sm:$0xff]
        %v650 = vld [vmem:[%s238 + $0x7d0] sm:$0xff]
        %v651 = vld [vmem:[%s238 + $0x7d8] sm:$0xff]
        %v652 = vld [vmem:[%s238 + $0x7e0] sm:$0xff]
        %v653 = vld [vmem:[%s238 + $0x7e8] sm:$0xff]
        %v654 = vld [vmem:[%s238 + $0x7f0] sm:$0xff]
        %v655 = vld [vmem:[%s238 + $0x7f8] sm:$0xff]
        %v656 = vld [vmem:[%s238 + $0x800] sm:$0xff]
        %v657 = vld [vmem:[%s238 + $0x808] sm:$0xff]
        %v658 = vld [vmem:[%s238 + $0x810] sm:$0xff]
        %v659 = vld [vmem:[%s238 + $0x818] sm:$0xff]
        %v660 = vld [vmem:[%s238 + $0x820] sm:$0xff]
        %v661 = vld [vmem:[%s238 + $0x828] sm:$0xff]
        %v662 = vld [vmem:[%s238 + $0x830] sm:$0xff]
        %v663 = vld [vmem:[%s238 + $0x838] sm:$0xff]
        %v664 = vld [vmem:[%s238 + $0x840] sm:$0xff]
        %v665 = vld [vmem:[%s238 + $0x848] sm:$0xff]
        %v666 = vld [vmem:[%s238 + $0x850] sm:$0xff]
        %v667 = vld [vmem:[%s238 + $0x858] sm:$0xff]
        %v668 = vld [vmem:[%s238 + $0x860] sm:$0xff]
        %v669 = vld [vmem:[%s238 + $0x868] sm:$0xff]
        %v670 = vld [vmem:[%s238 + $0x870] sm:$0xff]
        %v671 = vld [vmem:[%s238 + $0x878] sm:$0xff]
        %v672 = vld [vmem:[%s238 + $0x880] sm:$0xff]
        %v673 = vld [vmem:[%s238 + $0x888] sm:$0xff]
        %v674 = vld [vmem:[%s238 + $0x890] sm:$0xff]
        %v675 = vld [vmem:[%s238 + $0x898] sm:$0xff]
        %v676 = vld [vmem:[%s238 + $0x8a0] sm:$0xff]
        %v677 = vld [vmem:[%s238 + $0x8a8] sm:$0xff]
        %v678 = vld [vmem:[%s238 + $0x8b0] sm:$0xff]
        %v679 = vld [vmem:[%s238 + $0x8b8] sm:$0xff]
        %v680 = vld [vmem:[%s238 + $0x8c0] sm:$0xff]
        %v681 = vld [vmem:[%s238 + $0x8c8] sm:$0xff]
        %v682 = vld [vmem:[%s238 + $0x8d0] sm:$0xff]
        %v683 = vld [vmem:[%s238 + $0x8d8] sm:$0xff]
        %v684 = vld [vmem:[%s238 + $0x8e0] sm:$0xff]
        %v685 = vld [vmem:[%s238 + $0x8e8] sm:$0xff]
        %v686 = vld [vmem:[%s238 + $0x8f0] sm:$0xff]
        %v687 = vld [vmem:[%s238 + $0x8f8] sm:$0xff]
        %v688 = vld [vmem:[%s238 + $0x900] sm:$0xff]
        %v689 = vld [vmem:[%s238 + $0x908] sm:$0xff]
        %v690 = vld [vmem:[%s238 + $0x910] sm:$0xff]
        %v691 = vld [vmem:[%s238 + $0x918] sm:$0xff]
        %v692 = vld [vmem:[%s238 + $0x920] sm:$0xff]
        %v693 = vld [vmem:[%s238 + $0x928] sm:$0xff]
        %v694 = vld [vmem:[%s238 + $0x930] sm:$0xff]
        %v695 = vld [vmem:[%s238 + $0x938] sm:$0xff]
        %v696 = vld [vmem:[%s238 + $0x940] sm:$0xff]
        %v697 = vld [vmem:[%s238 + $0x948] sm:$0xff]
        %v698 = vld [vmem:[%s238 + $0x950] sm:$0xff]
        %v699 = vld [vmem:[%s238 + $0x958] sm:$0xff]
        %v700 = vld [vmem:[%s238 + $0x960] sm:$0xff]
        %v701 = vld [vmem:[%s238 + $0x968] sm:$0xff]
        %v702 = vld [vmem:[%s238 + $0x970] sm:$0xff]
        %v703 = vld [vmem:[%s238 + $0x978] sm:$0xff]
        %v704 = vld [vmem:[%s238 + $0x980] sm:$0xff]
        %v705 = vld [vmem:[%s238 + $0x988] sm:$0xff]
        %v706 = vld [vmem:[%s238 + $0x990] sm:$0xff]
        %v707 = vld [vmem:[%s238 + $0x998] sm:$0xff]
        %v708 = vld [vmem:[%s238 + $0x9a0] sm:$0xff]
        %v709 = vld [vmem:[%s238 + $0x9a8] sm:$0xff]
        %v710 = vld [vmem:[%s238 + $0x9b0] sm:$0xff]
        %v711 = vld [vmem:[%s238 + $0x9b8] sm:$0xff]
        %v712 = vld [vmem:[%s238 + $0x9c0] sm:$0xff]
        %v713 = vld [vmem:[%s238 + $0x9c8] sm:$0xff]
        %v714 = vld [vmem:[%s238 + $0x9d0] sm:$0xff]
        %v715 = vld [vmem:[%s238 + $0x9d8] sm:$0xff]
        %v716 = vld [vmem:[%s238 + $0x9e0] sm:$0xff]
        %v717 = vld [vmem:[%s238 + $0x9e8] sm:$0xff]
        %v718 = vld [vmem:[%s238 + $0x9f0] sm:$0xff]
        %v719 = vld [vmem:[%s238 + $0x9f8] sm:$0xff]
        %v720 = vld [vmem:[%s238 + $0xa00] sm:$0xff]
        %v721 = vld [vmem:[%s238 + $0xa08] sm:$0xff]
        %v722 = vld [vmem:[%s238 + $0xa10] sm:$0xff]
        %v723 = vld [vmem:[%s238 + $0xa18] sm:$0xff]
        %v724 = vld [vmem:[%s238 + $0xa20] sm:$0xff]
        %v725 = vld [vmem:[%s238 + $0xa28] sm:$0xff]
        %v726 = vld [vmem:[%s238 + $0xa30] sm:$0xff]
        %v727 = vld [vmem:[%s238 + $0xa38] sm:$0xff]
        %v728 = vld [vmem:[%s238 + $0xa40] sm:$0xff]
        %v729 = vld [vmem:[%s238 + $0xa48] sm:$0xff]
        %v730 = vld [vmem:[%s238 + $0xa50] sm:$0xff]
        %v731 = vld [vmem:[%s238 + $0xa58] sm:$0xff]
        %v732 = vld [vmem:[%s238 + $0xa60] sm:$0xff]
        %v733 = vld [vmem:[%s238 + $0xa68] sm:$0xff]
        %v734 = vld [vmem:[%s238 + $0xa70] sm:$0xff]
        %v735 = vld [vmem:[%s238 + $0xa78] sm:$0xff]
        %v736 = vld [vmem:[%s238 + $0xa80] sm:$0xff]
        %v737 = vld [vmem:[%s238 + $0xa88] sm:$0xff]
        %v738 = vld [vmem:[%s238 + $0xa90] sm:$0xff]
        %v739 = vld [vmem:[%s238 + $0xa98] sm:$0xff]
        %v740 = vld [vmem:[%s238 + $0xaa0] sm:$0xff]
        %v741 = vld [vmem:[%s238 + $0xaa8] sm:$0xff]
        %v742 = vld [vmem:[%s238 + $0xab0] sm:$0xff]
        %v743 = vld [vmem:[%s238 + $0xab8] sm:$0xff]
        %v744 = vld [vmem:[%s238 + $0xac0] sm:$0xff]
        %v745 = vld [vmem:[%s238 + $0xac8] sm:$0xff]
        %v746 = vld [vmem:[%s238 + $0xad0] sm:$0xff]
        %v747 = vld [vmem:[%s238 + $0xad8] sm:$0xff]
        %v748 = vld [vmem:[%s238 + $0xae0] sm:$0xff]
        %v749 = vld [vmem:[%s238 + $0xae8] sm:$0xff]
        %v750 = vld [vmem:[%s238 + $0xaf0] sm:$0xff]
        %v751 = vld [vmem:[%s238 + $0xaf8] sm:$0xff]
        %v752 = vld [vmem:[%s238 + $0xb00] sm:$0xff]
        %v753 = vld [vmem:[%s238 + $0xb08] sm:$0xff]
        %v754 = vld [vmem:[%s238 + $0xb10] sm:$0xff]
        %v755 = vld [vmem:[%s238 + $0xb18] sm:$0xff]
        %v756 = vld [vmem:[%s238 + $0xb20] sm:$0xff]
        %v757 = vld [vmem:[%s238 + $0xb28] sm:$0xff]
        %v758 = vld [vmem:[%s238 + $0xb30] sm:$0xff]
        %v759 = vld [vmem:[%s238 + $0xb38] sm:$0xff]
        %v760 = vld [vmem:[%s238 + $0xb40] sm:$0xff]
        %v761 = vld [vmem:[%s238 + $0xb48] sm:$0xff]
        %v762 = vld [vmem:[%s238 + $0xb50] sm:$0xff]
        %v763 = vld [vmem:[%s238 + $0xb58] sm:$0xff]
        %v764 = vld [vmem:[%s238 + $0xb60] sm:$0xff]
        %v765 = vld [vmem:[%s238 + $0xb68] sm:$0xff]
        %v766 = vld [vmem:[%s238 + $0xb70] sm:$0xff]
        %v767 = vld [vmem:[%s238 + $0xb78] sm:$0xff]
        %v768 = vld [vmem:[%s238 + $0xb80] sm:$0xff]
        %v769 = vld [vmem:[%s238 + $0xb88] sm:$0xff]
        %v770 = vld [vmem:[%s238 + $0xb90] sm:$0xff]
        %v771 = vld [vmem:[%s238 + $0xb98] sm:$0xff]
        %v772 = vld [vmem:[%s238 + $0xba0] sm:$0xff]
        %v773 = vld [vmem:[%s238 + $0xba8] sm:$0xff]
        %v774 = vld [vmem:[%s238 + $0xbb0] sm:$0xff]
        %v775 = vld [vmem:[%s238 + $0xbb8] sm:$0xff]
        %v776 = vld [vmem:[%s238 + $0xbc0] sm:$0xff]
        %v777 = vld [vmem:[%s238 + $0xbc8] sm:$0xff]
        %v778 = vld [vmem:[%s238 + $0xbd0] sm:$0xff]
        %v779 = vld [vmem:[%s238 + $0xbd8] sm:$0xff]
        %v780 = vld [vmem:[%s238 + $0xbe0] sm:$0xff]
        %v781 = vld [vmem:[%s238 + $0xbe8] sm:$0xff]
        %v782 = vld [vmem:[%s238 + $0xbf0] sm:$0xff]
        %v783 = vld [vmem:[%s238 + $0xbf8] sm:$0xff]
        %v784 = vld [vmem:[%s238 + $0xc00] sm:$0xff]
        %v785 = vld [vmem:[%s238 + $0xc08] sm:$0xff]
        %v786 = vld [vmem:[%s238 + $0xc10] sm:$0xff]
        %v787 = vld [vmem:[%s238 + $0xc18] sm:$0xff]
        %v788 = vld [vmem:[%s238 + $0xc20] sm:$0xff]
        %v789 = vld [vmem:[%s238 + $0xc28] sm:$0xff]
        %v790 = vld [vmem:[%s238 + $0xc30] sm:$0xff]
        %v791 = vld [vmem:[%s238 + $0xc38] sm:$0xff]
        %v792 = vld [vmem:[%s238 + $0xc40] sm:$0xff]
        %v793 = vld [vmem:[%s238 + $0xc48] sm:$0xff]
        %v794 = vld [vmem:[%s238 + $0xc50] sm:$0xff]
        %v795 = vld [vmem:[%s238 + $0xc58] sm:$0xff]
        %v796 = vld [vmem:[%s238 + $0xc60] sm:$0xff]
        %v797 = vld [vmem:[%s238 + $0xc68] sm:$0xff]
        %v798 = vld [vmem:[%s238 + $0xc70] sm:$0xff]
        %v799 = vld [vmem:[%s238 + $0xc78] sm:$0xff]
        %v800 = vld [vmem:[%s238 + $0xc80] sm:$0xff]
        %v801 = vld [vmem:[%s238 + $0xc88] sm:$0xff]
        %v802 = vld [vmem:[%s238 + $0xc90] sm:$0xff]
        %v803 = vld [vmem:[%s238 + $0xc98] sm:$0xff]
        %v804 = vld [vmem:[%s238 + $0xca0] sm:$0xff]
        %v805 = vld [vmem:[%s238 + $0xca8] sm:$0xff]
        %v806 = vld [vmem:[%s238 + $0xcb0] sm:$0xff]
        %v807 = vld [vmem:[%s238 + $0xcb8] sm:$0xff]
        %v808 = vld [vmem:[%s238 + $0xcc0] sm:$0xff]
        %v809 = vld [vmem:[%s238 + $0xcc8] sm:$0xff]
        %v810 = vld [vmem:[%s238 + $0xcd0] sm:$0xff]
        %v811 = vld [vmem:[%s238 + $0xcd8] sm:$0xff]
        %v812 = vld [vmem:[%s238 + $0xce0] sm:$0xff]
        %v813 = vld [vmem:[%s238 + $0xce8] sm:$0xff]
        %v814 = vld [vmem:[%s238 + $0xcf0] sm:$0xff]
        %v815 = vld [vmem:[%s238 + $0xcf8] sm:$0xff]
        %v816 = vld [vmem:[%s238 + $0xd00] sm:$0xff]
        %v817 = vld [vmem:[%s238 + $0xd08] sm:$0xff]
        %v818 = vld [vmem:[%s238 + $0xd10] sm:$0xff]
        %v819 = vld [vmem:[%s238 + $0xd18] sm:$0xff]
        %v820 = vld [vmem:[%s238 + $0xd20] sm:$0xff]
        %v821 = vld [vmem:[%s238 + $0xd28] sm:$0xff]
        %v822 = vld [vmem:[%s238 + $0xd30] sm:$0xff]
        %v823 = vld [vmem:[%s238 + $0xd38] sm:$0xff]
        %v824 = vld [vmem:[%s238 + $0xd40] sm:$0xff]
        %v825 = vld [vmem:[%s238 + $0xd48] sm:$0xff]
        %v826 = vld [vmem:[%s238 + $0xd50] sm:$0xff]
        %v827 = vld [vmem:[%s238 + $0xd58] sm:$0xff]
        %v828 = vld [vmem:[%s238 + $0xd60] sm:$0xff]
        %v829 = vld [vmem:[%s238 + $0xd68] sm:$0xff]
        %v830 = vld [vmem:[%s238 + $0xd70] sm:$0xff]
        %v831 = vld [vmem:[%s238 + $0xd78] sm:$0xff]
        %v832 = vld [vmem:[%s238 + $0xd80] sm:$0xff]
        %v833 = vld [vmem:[%s238 + $0xd88] sm:$0xff]
        %v834 = vld [vmem:[%s238 + $0xd90] sm:$0xff]
        %v835 = vld [vmem:[%s238 + $0xd98] sm:$0xff]
        %v836 = vld [vmem:[%s238 + $0xda0] sm:$0xff]
        %v837 = vld [vmem:[%s238 + $0xda8] sm:$0xff]
        %v838 = vld [vmem:[%s238 + $0xdb0] sm:$0xff]
        %v839 = vld [vmem:[%s238 + $0xdb8] sm:$0xff]
        %v840 = vld [vmem:[%s238 + $0xdc0] sm:$0xff]
        %v841 = vld [vmem:[%s238 + $0xdc8] sm:$0xff]
        %v842 = vld [vmem:[%s238 + $0xdd0] sm:$0xff]
        %v843 = vld [vmem:[%s238 + $0xdd8] sm:$0xff]
        %v844 = vld [vmem:[%s238 + $0xde0] sm:$0xff]
        %v845 = vld [vmem:[%s238 + $0xde8] sm:$0xff]
        %v846 = vld [vmem:[%s238 + $0xdf0] sm:$0xff]
        %v847 = vld [vmem:[%s238 + $0xdf8] sm:$0xff]
        %v848 = vld [vmem:[%s238 + $0xe00] sm:$0xff]
        %v849 = vld [vmem:[%s238 + $0xe08] sm:$0xff]
        %v850 = vld [vmem:[%s238 + $0xe10] sm:$0xff]
        %v851 = vld [vmem:[%s238 + $0xe18] sm:$0xff]
        %v852 = vld [vmem:[%s238 + $0xe20] sm:$0xff]
        %v853 = vld [vmem:[%s238 + $0xe28] sm:$0xff]
        %v854 = vld [vmem:[%s238 + $0xe30] sm:$0xff]
        %v855 = vld [vmem:[%s238 + $0xe38] sm:$0xff]
        %v856 = vld [vmem:[%s238 + $0xe40] sm:$0xff]
        %v857 = vld [vmem:[%s238 + $0xe48] sm:$0xff]
        %v858 = vld [vmem:[%s238 + $0xe50] sm:$0xff]
        %v859 = vld [vmem:[%s238 + $0xe58] sm:$0xff]
        %v860 = vld [vmem:[%s238 + $0xe60] sm:$0xff]
        %v861 = vld [vmem:[%s238 + $0xe68] sm:$0xff]
        %v862 = vld [vmem:[%s238 + $0xe70] sm:$0xff]
        %v863 = vld [vmem:[%s238 + $0xe78] sm:$0xff]
        %v864 = vld [vmem:[%s238 + $0xe80] sm:$0xff]
        %v865 = vld [vmem:[%s238 + $0xe88] sm:$0xff]
        %v866 = vld [vmem:[%s238 + $0xe90] sm:$0xff]
        %v867 = vld [vmem:[%s238 + $0xe98] sm:$0xff]
        %v868 = vld [vmem:[%s238 + $0xea0] sm:$0xff]
        %v869 = vld [vmem:[%s238 + $0xea8] sm:$0xff]
        %v870 = vld [vmem:[%s238 + $0xeb0] sm:$0xff]
        %v871 = vld [vmem:[%s238 + $0xeb8] sm:$0xff]
        %v872 = vld [vmem:[%s238 + $0xec0] sm:$0xff]
        %v873 = vld [vmem:[%s238 + $0xec8] sm:$0xff]
        %v874 = vld [vmem:[%s238 + $0xed0] sm:$0xff]
        %v875 = vld [vmem:[%s238 + $0xed8] sm:$0xff]
        %v876 = vld [vmem:[%s238 + $0xee0] sm:$0xff]
        %v877 = vld [vmem:[%s238 + $0xee8] sm:$0xff]
        %v878 = vld [vmem:[%s238 + $0xef0] sm:$0xff]
        %v879 = vld [vmem:[%s238 + $0xef8] sm:$0xff]
        %v880 = vld [vmem:[%s238 + $0xf00] sm:$0xff]
        %v881 = vld [vmem:[%s238 + $0xf08] sm:$0xff]
        %v882 = vld [vmem:[%s238 + $0xf10] sm:$0xff]
        %v883 = vld [vmem:[%s238 + $0xf18] sm:$0xff]
        %v884 = vld [vmem:[%s238 + $0xf20] sm:$0xff]
        %v885 = vld [vmem:[%s238 + $0xf28] sm:$0xff]
        %v886 = vld [vmem:[%s238 + $0xf30] sm:$0xff]
        %v887 = vld [vmem:[%s238 + $0xf38] sm:$0xff]
        %v888 = vld [vmem:[%s238 + $0xf40] sm:$0xff]
        %v889 = vld [vmem:[%s238 + $0xf48] sm:$0xff]
        %v890 = vld [vmem:[%s238 + $0xf50] sm:$0xff]
        %v891 = vld [vmem:[%s238 + $0xf58] sm:$0xff]
        %v892 = vld [vmem:[%s238 + $0xf60] sm:$0xff]
        %v893 = vld [vmem:[%s238 + $0xf68] sm:$0xff]
        %v894 = vld [vmem:[%s238 + $0xf70] sm:$0xff]
        %v895 = vld [vmem:[%s238 + $0xf78] sm:$0xff]
        %v896 = vld [vmem:[%s238 + $0xf80] sm:$0xff]
        %v897 = vld [vmem:[%s238 + $0xf88] sm:$0xff]
        %v898 = vld [vmem:[%s238 + $0xf90] sm:$0xff]
        %v899 = vld [vmem:[%s238 + $0xf98] sm:$0xff]
        %v900 = vld [vmem:[%s238 + $0xfa0] sm:$0xff]
        %v901 = vld [vmem:[%s238 + $0xfa8] sm:$0xff]
        %v902 = vld [vmem:[%s238 + $0xfb0] sm:$0xff]
        %v903 = vld [vmem:[%s238 + $0xfb8] sm:$0xff]
        %v904 = vld [vmem:[%s238 + $0xfc0] sm:$0xff]
        %v905 = vld [vmem:[%s238 + $0xfc8] sm:$0xff]
        %v906 = vld [vmem:[%s238 + $0xfd0] sm:$0xff]
        %v907 = vld [vmem:[%s238 + $0xfd8] sm:$0xff]
        %v908 = vld [vmem:[%s238 + $0xfe0] sm:$0xff]
        %v909 = vld [vmem:[%s238 + $0xfe8] sm:$0xff]
        %v910 = vld [vmem:[%s238 + $0xff0] sm:$0xff]
        %v911 = vld [vmem:[%s238 + $0xff8] sm:$0xff]
        %v912 = vld [vmem:[%s238 + $0x1000] sm:$0xff]
        %v913 = vld [vmem:[%s238 + $0x1008] sm:$0xff]
        %v914 = vld [vmem:[%s238 + $0x1010] sm:$0xff]
        %v915 = vld [vmem:[%s238 + $0x1018] sm:$0xff]
        %v916 = vld [vmem:[%s238 + $0x1020] sm:$0xff]
        %v917 = vld [vmem:[%s238 + $0x1028] sm:$0xff]
        %v918 = vld [vmem:[%s238 + $0x1030] sm:$0xff]
        %v919 = vld [vmem:[%s238 + $0x1038] sm:$0xff]
        %v920 = vld [vmem:[%s238 + $0x1040] sm:$0xff]
        %v921 = vld [vmem:[%s238 + $0x1048] sm:$0xff]
        %v922 = vld [vmem:[%s238 + $0x1050] sm:$0xff]
        %v923 = vld [vmem:[%s238 + $0x1058] sm:$0xff]
        %v924 = vld [vmem:[%s238 + $0x1060] sm:$0xff]
        %v925 = vld [vmem:[%s238 + $0x1068] sm:$0xff]
        %v926 = vld [vmem:[%s238 + $0x1070] sm:$0xff]
        %v927 = vld [vmem:[%s238 + $0x1078] sm:$0xff]
        %v928 = vld [vmem:[%s238 + $0x1080] sm:$0xff]
        %v929 = vld [vmem:[%s238 + $0x1088] sm:$0xff]
        %v930 = vld [vmem:[%s238 + $0x1090] sm:$0xff]
        %v931 = vld [vmem:[%s238 + $0x1098] sm:$0xff]
        %v932 = vld [vmem:[%s238 + $0x10a0] sm:$0xff]
        %v933 = vld [vmem:[%s238 + $0x10a8] sm:$0xff]
        %v934 = vld [vmem:[%s238 + $0x10b0] sm:$0xff]
        %v935 = vld [vmem:[%s238 + $0x10b8] sm:$0xff]
        %v936 = vld [vmem:[%s238 + $0x10c0] sm:$0xff]
        %v937 = vld [vmem:[%s238 + $0x10c8] sm:$0xff]
        %v938 = vld [vmem:[%s238 + $0x10d0] sm:$0xff]
        %v939 = vld [vmem:[%s238 + $0x10d8] sm:$0xff]
        %v940 = vld [vmem:[%s238 + $0x10e0] sm:$0xff]
        %v941 = vld [vmem:[%s238 + $0x10e8] sm:$0xff]
        %v942 = vld [vmem:[%s238 + $0x10f0] sm:$0xff]
        %v943 = vld [vmem:[%s238 + $0x10f8] sm:$0xff]
        %v944 = vld [vmem:[%s238 + $0x1100] sm:$0xff]
        %v945 = vld [vmem:[%s238 + $0x1108] sm:$0xff]
        %v946 = vld [vmem:[%s238 + $0x1110] sm:$0xff]
        %v947 = vld [vmem:[%s238 + $0x1118] sm:$0xff]
        %v948 = vld [vmem:[%s238 + $0x1120] sm:$0xff]
        %v949 = vld [vmem:[%s238 + $0x1128] sm:$0xff]
        %v950 = vld [vmem:[%s238 + $0x1130] sm:$0xff]
        %v951 = vld [vmem:[%s238 + $0x1138] sm:$0xff]
        %v952 = vld [vmem:[%s238 + $0x1140] sm:$0xff]
        %v953 = vld [vmem:[%s238 + $0x1148] sm:$0xff]
        %v954 = vld [vmem:[%s238 + $0x1150] sm:$0xff]
        %v955 = vld [vmem:[%s238 + $0x1158] sm:$0xff]
        %v956 = vld [vmem:[%s238 + $0x1160] sm:$0xff]
        %v957 = vld [vmem:[%s238 + $0x1168] sm:$0xff]
        %v958 = vld [vmem:[%s238 + $0x1170] sm:$0xff]
        %v959 = vld [vmem:[%s238 + $0x1178] sm:$0xff]
        %v960 = vld [vmem:[%s238 + $0x1180] sm:$0xff]
        %v961 = vld [vmem:[%s238 + $0x1188] sm:$0xff]
        %v962 = vld [vmem:[%s238 + $0x1190] sm:$0xff]
        %v963 = vld [vmem:[%s238 + $0x1198] sm:$0xff]
        %v964 = vld [vmem:[%s238 + $0x11a0] sm:$0xff]
        %v965 = vld [vmem:[%s238 + $0x11a8] sm:$0xff]
        %v966 = vld [vmem:[%s238 + $0x11b0] sm:$0xff]
        %v967 = vld [vmem:[%s238 + $0x11b8] sm:$0xff]
        %v968 = vld [vmem:[%s238 + $0x11c0] sm:$0xff]
        %v969 = vld [vmem:[%s238 + $0x11c8] sm:$0xff]
        %v970 = vld [vmem:[%s238 + $0x11d0] sm:$0xff]
        %v971 = vld [vmem:[%s238 + $0x11d8] sm:$0xff]
        %v972 = vld [vmem:[%s238 + $0x11e0] sm:$0xff]
        %v973 = vld [vmem:[%s238 + $0x11e8] sm:$0xff]
        %v974 = vld [vmem:[%s238 + $0x11f0] sm:$0xff]
        %v975 = vld [vmem:[%s238 + $0x11f8] sm:$0xff]
        %v976 = vld [vmem:[%s238 + $0x1200] sm:$0xff]
        %v977 = vld [vmem:[%s238 + $0x1208] sm:$0xff]
        %v978 = vld [vmem:[%s238 + $0x1210] sm:$0xff]
        %v979 = vld [vmem:[%s238 + $0x1218] sm:$0xff]
        %v980 = vld [vmem:[%s238 + $0x1220] sm:$0xff]
        %v981 = vld [vmem:[%s238 + $0x1228] sm:$0xff]
        %v982 = vld [vmem:[%s238 + $0x1230] sm:$0xff]
        %v983 = vld [vmem:[%s238 + $0x1238] sm:$0xff]
        %v984 = vld [vmem:[%s238 + $0x1240] sm:$0xff]
        %v985 = vld [vmem:[%s238 + $0x1248] sm:$0xff]
        %v986 = vld [vmem:[%s238 + $0x1250] sm:$0xff]
        %v987 = vld [vmem:[%s238 + $0x1258] sm:$0xff]
        %v988 = vld [vmem:[%s238 + $0x1260] sm:$0xff]
        %v989 = vld [vmem:[%s238 + $0x1268] sm:$0xff]
        %v990 = vld [vmem:[%s238 + $0x1270] sm:$0xff]
        %v991 = vld [vmem:[%s238 + $0x1278] sm:$0xff]
        %v992 = vld [vmem:[%s238 + $0x1280] sm:$0xff]
        %v993 = vld [vmem:[%s238 + $0x1288] sm:$0xff]
        %v994 = vld [vmem:[%s238 + $0x1290] sm:$0xff]
        %v995 = vld [vmem:[%s238 + $0x1298] sm:$0xff]
        %v996 = vld [vmem:[%s238 + $0x12a0] sm:$0xff]
        %v997 = vld [vmem:[%s238 + $0x12a8] sm:$0xff]
        %v998 = vld [vmem:[%s238 + $0x12b0] sm:$0xff]
        %v999 = vld [vmem:[%s238 + $0x12b8] sm:$0xff]
        %v1000 = vld [vmem:[%s238 + $0x12c0] sm:$0xff]
        %v1001 = vld [vmem:[%s238 + $0x12c8] sm:$0xff]
        %v1002 = vld [vmem:[%s238 + $0x12d0] sm:$0xff]
        %v1003 = vld [vmem:[%s238 + $0x12d8] sm:$0xff]
        %v1004 = vld [vmem:[%s238 + $0x12e0] sm:$0xff]
        %v1005 = vld [vmem:[%s238 + $0x12e8] sm:$0xff]
        %v1006 = vld [vmem:[%s238 + $0x12f0] sm:$0xff]
        %v1007 = vld [vmem:[%s238 + $0x12f8] sm:$0xff]
        %v1008 = vld [vmem:[%s238 + $0x1300] sm:$0xff]
        %v1009 = vld [vmem:[%s238 + $0x1308] sm:$0xff]
        %v1010 = vld [vmem:[%s238 + $0x1310] sm:$0xff]
        %v1011 = vld [vmem:[%s238 + $0x1318] sm:$0xff]
        %v1012 = vld [vmem:[%s238 + $0x1320] sm:$0xff]
        %v1013 = vld [vmem:[%s238 + $0x1328] sm:$0xff]
        %v1014 = vld [vmem:[%s238 + $0x1330] sm:$0xff]
        %v1015 = vld [vmem:[%s238 + $0x1338] sm:$0xff]
        %v1016 = vld [vmem:[%s238 + $0x1340] sm:$0xff]
        %v1017 = vld [vmem:[%s238 + $0x1348] sm:$0xff]
        %v1018 = vld [vmem:[%s238 + $0x1350] sm:$0xff]
        %v1019 = vld [vmem:[%s238 + $0x1358] sm:$0xff]
        %v1020 = vld [vmem:[%s238 + $0x1360] sm:$0xff]
        %v1021 = vld [vmem:[%s238 + $0x1368] sm:$0xff]
        %v1022 = vld [vmem:[%s238 + $0x1370] sm:$0xff]
        %v1023 = vld [vmem:[%s238 + $0x1378] sm:$0xff]
        %v1024 = vld [vmem:[%s238 + $0x1380] sm:$0xff]
        %v1025 = vld [vmem:[%s238 + $0x1388] sm:$0xff]
        %v1026 = vld [vmem:[%s238 + $0x1390] sm:$0xff]
        %v1027 = vld [vmem:[%s238 + $0x1398] sm:$0xff]
        %v1028 = vld [vmem:[%s238 + $0x13a0] sm:$0xff]
        %v1029 = vld [vmem:[%s238 + $0x13a8] sm:$0xff]
        %v1030 = vld [vmem:[%s238 + $0x13b0] sm:$0xff]
        %v1031 = vld [vmem:[%s238 + $0x13b8] sm:$0xff]
        %v1032 = vld [vmem:[%s238 + $0x13c0] sm:$0xff]
        %v1033 = vld [vmem:[%s238 + $0x13c8] sm:$0xff]
        %v1034 = vld [vmem:[%s238 + $0x13d0] sm:$0xff]
        %v1035 = vld [vmem:[%s238 + $0x13d8] sm:$0xff]
        %v1036 = vld [vmem:[%s238 + $0x13e0] sm:$0xff]
        %v1037 = vld [vmem:[%s238 + $0x13e8] sm:$0xff]
        %v1038 = vld [vmem:[%s238 + $0x13f0] sm:$0xff]
        %v1039 = vld [vmem:[%s238 + $0x13f8] sm:$0xff]
        %v1040 = vld [vmem:[%s238 + $0x1400] sm:$0xff]
        %v1041 = vld [vmem:[%s238 + $0x1408] sm:$0xff]
        %v1042 = vld [vmem:[%s238 + $0x1410] sm:$0xff]
        %v1043 = vld [vmem:[%s238 + $0x1418] sm:$0xff]
        %v1044 = vld [vmem:[%s238 + $0x1420] sm:$0xff]
        %v1045 = vld [vmem:[%s238 + $0x1428] sm:$0xff]
        %v1046 = vld [vmem:[%s238 + $0x1430] sm:$0xff]
        %v1047 = vld [vmem:[%s238 + $0x1438] sm:$0xff]
        %v1048 = vld [vmem:[%s238 + $0x1440] sm:$0xff]
        %v1049 = vld [vmem:[%s238 + $0x1448] sm:$0xff]
        %v1050 = vld [vmem:[%s238 + $0x1450] sm:$0xff]
        %v1051 = vld [vmem:[%s238 + $0x1458] sm:$0xff]
        %v1052 = vld [vmem:[%s238 + $0x1460] sm:$0xff]
        %v1053 = vld [vmem:[%s238 + $0x1468] sm:$0xff]
        %v1054 = vld [vmem:[%s238 + $0x1470] sm:$0xff]
        %v1055 = vld [vmem:[%s238 + $0x1478] sm:$0xff]
        %v1056 = vld [vmem:[%s238 + $0x1480] sm:$0xff]
        %v1057 = vld [vmem:[%s238 + $0x1488] sm:$0xff]
        %v1058 = vld [vmem:[%s238 + $0x1490] sm:$0xff]
        %v1059 = vld [vmem:[%s238 + $0x1498] sm:$0xff]
        %v1060 = vld [vmem:[%s238 + $0x14a0] sm:$0xff]
        %v1061 = vld [vmem:[%s238 + $0x14a8] sm:$0xff]
        %v1062 = vld [vmem:[%s238 + $0x14b0] sm:$0xff]
        %v1063 = vld [vmem:[%s238 + $0x14b8] sm:$0xff]
        %v1064 = vld [vmem:[%s238 + $0x14c0] sm:$0xff]
        %v1065 = vld [vmem:[%s238 + $0x14c8] sm:$0xff]
        %v1066 = vld [vmem:[%s238 + $0x14d0] sm:$0xff]
        %v1067 = vld [vmem:[%s238 + $0x14d8] sm:$0xff]
        %v1068 = vld [vmem:[%s238 + $0x14e0] sm:$0xff]
        %v1069 = vld [vmem:[%s238 + $0x14e8] sm:$0xff]
        %v1070 = vld [vmem:[%s238 + $0x14f0] sm:$0xff]
        %v1071 = vld [vmem:[%s238 + $0x14f8] sm:$0xff]
        %v1072 = vld [vmem:[%s238 + $0x1500] sm:$0xff]
        %v1073 = vld [vmem:[%s238 + $0x1508] sm:$0xff]
        %v1074 = vld [vmem:[%s238 + $0x1510] sm:$0xff]
        %v1075 = vld [vmem:[%s238 + $0x1518] sm:$0xff]
        %v1076 = vld [vmem:[%s238 + $0x1520] sm:$0xff]
        %v1077 = vld [vmem:[%s238 + $0x1528] sm:$0xff]
        %v1078 = vld [vmem:[%s238 + $0x1530] sm:$0xff]
        %v1079 = vld [vmem:[%s238 + $0x1538] sm:$0xff]
        %v1080 = vld [vmem:[%s238 + $0x1540] sm:$0xff]
        %v1081 = vld [vmem:[%s238 + $0x1548] sm:$0xff]
        %v1082 = vld [vmem:[%s238 + $0x1550] sm:$0xff]
        %v1083 = vld [vmem:[%s238 + $0x1558] sm:$0xff]
        %v1084 = vld [vmem:[%s238 + $0x1560] sm:$0xff]
        %v1085 = vld [vmem:[%s238 + $0x1568] sm:$0xff]
        %v1086 = vld [vmem:[%s238 + $0x1570] sm:$0xff]
        %v1087 = vld [vmem:[%s238 + $0x1578] sm:$0xff]
        %v1088 = vld [vmem:[%s238 + $0x1580] sm:$0xff]
        %v1089 = vld [vmem:[%s238 + $0x1588] sm:$0xff]
        %v1090 = vld [vmem:[%s238 + $0x1590] sm:$0xff]
        %v1091 = vld [vmem:[%s238 + $0x1598] sm:$0xff]
        %v1092 = vld [vmem:[%s238 + $0x15a0] sm:$0xff]
        %v1093 = vld [vmem:[%s238 + $0x15a8] sm:$0xff]
        %v1094 = vld [vmem:[%s238 + $0x15b0] sm:$0xff]
        %v1095 = vld [vmem:[%s238 + $0x15b8] sm:$0xff]
        %v1096 = vld [vmem:[%s238 + $0x15c0] sm:$0xff]
        %v1097 = vld [vmem:[%s238 + $0x15c8] sm:$0xff]
        %v1098 = vld [vmem:[%s238 + $0x15d0] sm:$0xff]
        %v1099 = vld [vmem:[%s238 + $0x15d8] sm:$0xff]
        %v1100 = vld [vmem:[%s238 + $0x15e0] sm:$0xff]
        %v1101 = vld [vmem:[%s238 + $0x15e8] sm:$0xff]
        %v1102 = vld [vmem:[%s238 + $0x15f0] sm:$0xff]
        %v1103 = vld [vmem:[%s238 + $0x15f8] sm:$0xff]
        %v1104 = vld [vmem:[%s238 + $0x1600] sm:$0xff]
        %v1105 = vld [vmem:[%s238 + $0x1608] sm:$0xff]
        %v1106 = vld [vmem:[%s238 + $0x1610] sm:$0xff]
        %v1107 = vld [vmem:[%s238 + $0x1618] sm:$0xff]
        %v1108 = vld [vmem:[%s238 + $0x1620] sm:$0xff]
        %v1109 = vld [vmem:[%s238 + $0x1628] sm:$0xff]
        %v1110 = vld [vmem:[%s238 + $0x1630] sm:$0xff]
        %v1111 = vld [vmem:[%s238 + $0x1638] sm:$0xff]
        %v1112 = vld [vmem:[%s238 + $0x1640] sm:$0xff]
        %v1113 = vld [vmem:[%s238 + $0x1648] sm:$0xff]
        %v1114 = vld [vmem:[%s238 + $0x1650] sm:$0xff]
        %v1115 = vld [vmem:[%s238 + $0x1658] sm:$0xff]
        %v1116 = vld [vmem:[%s238 + $0x1660] sm:$0xff]
        %v1117 = vld [vmem:[%s238 + $0x1668] sm:$0xff]
        %v1118 = vld [vmem:[%s238 + $0x1670] sm:$0xff]
        %v1119 = vld [vmem:[%s238 + $0x1678] sm:$0xff]
        %v1120 = vld [vmem:[%s238 + $0x1680] sm:$0xff]
        %v1121 = vld [vmem:[%s238 + $0x1688] sm:$0xff]
        %v1122 = vld [vmem:[%s238 + $0x1690] sm:$0xff]
        %v1123 = vld [vmem:[%s238 + $0x1698] sm:$0xff]
        %v1124 = vld [vmem:[%s238 + $0x16a0] sm:$0xff]
        %v1125 = vld [vmem:[%s238 + $0x16a8] sm:$0xff]
        %v1126 = vld [vmem:[%s238 + $0x16b0] sm:$0xff]
        %v1127 = vld [vmem:[%s238 + $0x16b8] sm:$0xff]
        %v1128 = vld [vmem:[%s238 + $0x16c0] sm:$0xff]
        %v1129 = vld [vmem:[%s238 + $0x16c8] sm:$0xff]
        %v1130 = vld [vmem:[%s238 + $0x16d0] sm:$0xff]
        %v1131 = vld [vmem:[%s238 + $0x16d8] sm:$0xff]
        %v1132 = vld [vmem:[%s238 + $0x16e0] sm:$0xff]
        %v1133 = vld [vmem:[%s238 + $0x16e8] sm:$0xff]
        %v1134 = vld [vmem:[%s238 + $0x16f0] sm:$0xff]
        %v1135 = vld [vmem:[%s238 + $0x16f8] sm:$0xff]
        %v1136 = vld [vmem:[%s238 + $0x1700] sm:$0xff]
        %v1137 = vld [vmem:[%s238 + $0x1708] sm:$0xff]
        %v1138 = vld [vmem:[%s238 + $0x1710] sm:$0xff]
        %v1139 = vld [vmem:[%s238 + $0x1718] sm:$0xff]
        %v1140 = vld [vmem:[%s238 + $0x1720] sm:$0xff]
        %v1141 = vld [vmem:[%s238 + $0x1728] sm:$0xff]
        %v1142 = vld [vmem:[%s238 + $0x1730] sm:$0xff]
        %v1143 = vld [vmem:[%s238 + $0x1738] sm:$0xff]
        %v1144 = vld [vmem:[%s238 + $0x1740] sm:$0xff]
        %v1145 = vld [vmem:[%s238 + $0x1748] sm:$0xff]
        %v1146 = vld [vmem:[%s238 + $0x1750] sm:$0xff]
        %v1147 = vld [vmem:[%s238 + $0x1758] sm:$0xff]
        %v1148 = vld [vmem:[%s238 + $0x1760] sm:$0xff]
        %v1149 = vld [vmem:[%s238 + $0x1768] sm:$0xff]
        %v1150 = vld [vmem:[%s238 + $0x1770] sm:$0xff]
        %v1151 = vld [vmem:[%s238 + $0x1778] sm:$0xff]
        %v1152 = vld [vmem:[%s238 + $0x1780] sm:$0xff]
        %v1153 = vld [vmem:[%s238 + $0x1788] sm:$0xff]
        %v1154 = vld [vmem:[%s238 + $0x1790] sm:$0xff]
        %v1155 = vld [vmem:[%s238 + $0x1798] sm:$0xff]
        %v1156 = vld [vmem:[%s238 + $0x17a0] sm:$0xff]
        %v1157 = vld [vmem:[%s238 + $0x17a8] sm:$0xff]
        %v1158 = vld [vmem:[%s238 + $0x17b0] sm:$0xff]
        %v1159 = vld [vmem:[%s238 + $0x17b8] sm:$0xff]
        %v1160 = vld [vmem:[%s238 + $0x17c0] sm:$0xff]
        %v1161 = vld [vmem:[%s238 + $0x17c8] sm:$0xff]
        %v1162 = vld [vmem:[%s238 + $0x17d0] sm:$0xff]
        %v1163 = vld [vmem:[%s238 + $0x17d8] sm:$0xff]
        %v1164 = vld [vmem:[%s238 + $0x17e0] sm:$0xff]
        %v1165 = vld [vmem:[%s238 + $0x17e8] sm:$0xff]
        %v1166 = vld [vmem:[%s238 + $0x17f0] sm:$0xff]
        %v1167 = vld [vmem:[%s238 + $0x17f8] sm:$0xff]
        %v1168 = vld [vmem:[%s238 + $0x1800] sm:$0xff]
        %v1169 = vld [vmem:[%s238 + $0x1808] sm:$0xff]
        %v1170 = vld [vmem:[%s238 + $0x1810] sm:$0xff]
        %v1171 = vld [vmem:[%s238 + $0x1818] sm:$0xff]
        %v1172 = vld [vmem:[%s238 + $0x1820] sm:$0xff]
        %v1173 = vld [vmem:[%s238 + $0x1828] sm:$0xff]
        %v1174 = vld [vmem:[%s238 + $0x1830] sm:$0xff]
        %v1175 = vld [vmem:[%s238 + $0x1838] sm:$0xff]
        %v1176 = vld [vmem:[%s238 + $0x1840] sm:$0xff]
        %v1177 = vld [vmem:[%s238 + $0x1848] sm:$0xff]
        %v1178 = vld [vmem:[%s238 + $0x1850] sm:$0xff]
        %v1179 = vld [vmem:[%s238 + $0x1858] sm:$0xff]
        %v1180 = vld [vmem:[%s238 + $0x1860] sm:$0xff]
        %v1181 = vld [vmem:[%s238 + $0x1868] sm:$0xff]
        %v1182 = vld [vmem:[%s238 + $0x1870] sm:$0xff]
        %v1183 = vld [vmem:[%s238 + $0x1878] sm:$0xff]
        %v1184 = vld [vmem:[%s238 + $0x1880] sm:$0xff]
        %v1185 = vld [vmem:[%s238 + $0x1888] sm:$0xff]
        %v1186 = vld [vmem:[%s238 + $0x1890] sm:$0xff]
        %v1187 = vld [vmem:[%s238 + $0x1898] sm:$0xff]
        %v1188 = vld [vmem:[%s238 + $0x18a0] sm:$0xff]
        %v1189 = vld [vmem:[%s238 + $0x18a8] sm:$0xff]
        %v1190 = vld [vmem:[%s238 + $0x18b0] sm:$0xff]
        %v1191 = vld [vmem:[%s238 + $0x18b8] sm:$0xff]
        %v1192 = vld [vmem:[%s238 + $0x18c0] sm:$0xff]
        %v1193 = vld [vmem:[%s238 + $0x18c8] sm:$0xff]
        %v1194 = vld [vmem:[%s238 + $0x18d0] sm:$0xff]
        %v1195 = vld [vmem:[%s238 + $0x18d8] sm:$0xff]
        %v1196 = vld [vmem:[%s238 + $0x18e0] sm:$0xff]
        %v1197 = vld [vmem:[%s238 + $0x18e8] sm:$0xff]
        %v1198 = vld [vmem:[%s238 + $0x18f0] sm:$0xff]
        %v1199 = vld [vmem:[%s238 + $0x18f8] sm:$0xff]
        %v1200 = vld [vmem:[%s238 + $0x1900] sm:$0xff]
        %v1201 = vld [vmem:[%s238 + $0x1908] sm:$0xff]
        %v1202 = vld [vmem:[%s238 + $0x1910] sm:$0xff]
        %v1203 = vld [vmem:[%s238 + $0x1918] sm:$0xff]
        %v1204 = vld [vmem:[%s238 + $0x1920] sm:$0xff]
        %v1205 = vld [vmem:[%s238 + $0x1928] sm:$0xff]
        %v1206 = vld [vmem:[%s238 + $0x1930] sm:$0xff]
        %v1207 = vld [vmem:[%s238 + $0x1938] sm:$0xff]
        %v1208 = vld [vmem:[%s238 + $0x1940] sm:$0xff]
        %v1209 = vld [vmem:[%s238 + $0x1948] sm:$0xff]
        %v1210 = vld [vmem:[%s238 + $0x1950] sm:$0xff]
        %v1211 = vld [vmem:[%s238 + $0x1958] sm:$0xff]
        %v1212 = vld [vmem:[%s238 + $0x1960] sm:$0xff]
        %v1213 = vld [vmem:[%s238 + $0x1968] sm:$0xff]
        %v1214 = vld [vmem:[%s238 + $0x1970] sm:$0xff]
        %v1215 = vld [vmem:[%s238 + $0x1978] sm:$0xff]
        %v1216 = vld [vmem:[%s238 + $0x1980] sm:$0xff]
        %v1217 = vld [vmem:[%s238 + $0x1988] sm:$0xff]
        %v1218 = vld [vmem:[%s238 + $0x1990] sm:$0xff]
        %v1219 = vld [vmem:[%s238 + $0x1998] sm:$0xff]
        %v1220 = vld [vmem:[%s238 + $0x19a0] sm:$0xff]
        %v1221 = vld [vmem:[%s238 + $0x19a8] sm:$0xff]
        %v1222 = vld [vmem:[%s238 + $0x19b0] sm:$0xff]
        %v1223 = vld [vmem:[%s238 + $0x19b8] sm:$0xff]
        %v1224 = vld [vmem:[%s238 + $0x19c0] sm:$0xff]
        %v1225 = vld [vmem:[%s238 + $0x19c8] sm:$0xff]
        %v1226 = vld [vmem:[%s238 + $0x19d0] sm:$0xff]
        %v1227 = vld [vmem:[%s238 + $0x19d8] sm:$0xff]
        %v1228 = vld [vmem:[%s238 + $0x19e0] sm:$0xff]
        %v1229 = vld [vmem:[%s238 + $0x19e8] sm:$0xff]
        %v1230 = vld [vmem:[%s238 + $0x19f0] sm:$0xff]
        %v1231 = vld [vmem:[%s238 + $0x19f8] sm:$0xff]
        %v1232 = vld [vmem:[%s238 + $0x1a00] sm:$0xff]
        %v1233 = vld [vmem:[%s238 + $0x1a08] sm:$0xff]
        %v1234 = vld [vmem:[%s238 + $0x1a10] sm:$0xff]
        %v1235 = vld [vmem:[%s238 + $0x1a18] sm:$0xff]
        %v1236 = vld [vmem:[%s238 + $0x1a20] sm:$0xff]
        %v1237 = vld [vmem:[%s238 + $0x1a28] sm:$0xff]
        %v1238 = vld [vmem:[%s238 + $0x1a30] sm:$0xff]
        %v1239 = vld [vmem:[%s238 + $0x1a38] sm:$0xff]
        %v1240 = vld [vmem:[%s238 + $0x1a40] sm:$0xff]
        %v1241 = vld [vmem:[%s238 + $0x1a48] sm:$0xff]
        %v1242 = vld [vmem:[%s238 + $0x1a50] sm:$0xff]
        %v1243 = vld [vmem:[%s238 + $0x1a58] sm:$0xff]
        %v1244 = vld [vmem:[%s238 + $0x1a60] sm:$0xff]
        %v1245 = vld [vmem:[%s238 + $0x1a68] sm:$0xff]
        %v1246 = vld [vmem:[%s238 + $0x1a70] sm:$0xff]
        %v1247 = vld [vmem:[%s238 + $0x1a78] sm:$0xff]
        %v1248 = vld [vmem:[%s238 + $0x1a80] sm:$0xff]
        %v1249 = vld [vmem:[%s238 + $0x1a88] sm:$0xff]
        %v1250 = vld [vmem:[%s238 + $0x1a90] sm:$0xff]
        %v1251 = vld [vmem:[%s238 + $0x1a98] sm:$0xff]
        %v1252 = vld [vmem:[%s238 + $0x1aa0] sm:$0xff]
        %v1253 = vld [vmem:[%s238 + $0x1aa8] sm:$0xff]
        %v1254 = vld [vmem:[%s238 + $0x1ab0] sm:$0xff]
        %v1255 = vld [vmem:[%s238 + $0x1ab8] sm:$0xff]
        %v1256 = vld [vmem:[%s238 + $0x1ac0] sm:$0xff]
        %v1257 = vld [vmem:[%s238 + $0x1ac8] sm:$0xff]
        %v1258 = vld [vmem:[%s238 + $0x1ad0] sm:$0xff]
        %v1259 = vld [vmem:[%s238 + $0x1ad8] sm:$0xff]
        %v1260 = vld [vmem:[%s238 + $0x1ae0] sm:$0xff]
        %v1261 = vld [vmem:[%s238 + $0x1ae8] sm:$0xff]
        %v1262 = vld [vmem:[%s238 + $0x1af0] sm:$0xff]
        %v1263 = vld [vmem:[%s238 + $0x1af8] sm:$0xff]
        %v1264 = vld [vmem:[%s238 + $0x1b00] sm:$0xff]
        %v1265 = vld [vmem:[%s238 + $0x1b08] sm:$0xff]
        %v1266 = vld [vmem:[%s238 + $0x1b10] sm:$0xff]
        %v1267 = vld [vmem:[%s238 + $0x1b18] sm:$0xff]
        %v1268 = vld [vmem:[%s238 + $0x1b20] sm:$0xff]
        %v1269 = vld [vmem:[%s238 + $0x1b28] sm:$0xff]
        %v1270 = vld [vmem:[%s238 + $0x1b30] sm:$0xff]
        %v1271 = vld [vmem:[%s238 + $0x1b38] sm:$0xff]
        %v1272 = vld [vmem:[%s238 + $0x1b40] sm:$0xff]
        %v1273 = vld [vmem:[%s238 + $0x1b48] sm:$0xff]
        %v1274 = vld [vmem:[%s238 + $0x1b50] sm:$0xff]
        %v1275 = vld [vmem:[%s238 + $0x1b58] sm:$0xff]
        %v1276 = vld [vmem:[%s238 + $0x1b60] sm:$0xff]
        %v1277 = vld [vmem:[%s238 + $0x1b68] sm:$0xff]
        %v1278 = vld [vmem:[%s238 + $0x1b70] sm:$0xff]
        %v1279 = vld [vmem:[%s238 + $0x1b78] sm:$0xff]
        %v1280 = vld [vmem:[%s238 + $0x1b80] sm:$0xff]
        %v1281 = vld [vmem:[%s238 + $0x1b88] sm:$0xff]
        %v1282 = vld [vmem:[%s238 + $0x1b90] sm:$0xff]
        %v1283 = vld [vmem:[%s238 + $0x1b98] sm:$0xff]
        %v1284 = vld [vmem:[%s238 + $0x1ba0] sm:$0xff]
        %v1285 = vld [vmem:[%s238 + $0x1ba8] sm:$0xff]
        %v1286 = vld [vmem:[%s238 + $0x1bb0] sm:$0xff]
        %v1287 = vld [vmem:[%s238 + $0x1bb8] sm:$0xff]
        %v1288 = vld [vmem:[%s238 + $0x1bc0] sm:$0xff]
        %v1289 = vld [vmem:[%s238 + $0x1bc8] sm:$0xff]
        %v1290 = vld [vmem:[%s238 + $0x1bd0] sm:$0xff]
        %v1291 = vld [vmem:[%s238 + $0x1bd8] sm:$0xff]
        %v1292 = vld [vmem:[%s238 + $0x1be0] sm:$0xff]
        %v1293 = vld [vmem:[%s238 + $0x1be8] sm:$0xff]
        %v1294 = vld [vmem:[%s238 + $0x1bf0] sm:$0xff]
        %v1295 = vld [vmem:[%s238 + $0x1bf8] sm:$0xff]
        %v1296 = vld [vmem:[%s238 + $0x1c00] sm:$0xff]
        %v1297 = vld [vmem:[%s238 + $0x1c08] sm:$0xff]
        %v1298 = vld [vmem:[%s238 + $0x1c10] sm:$0xff]
        %v1299 = vld [vmem:[%s238 + $0x1c18] sm:$0xff]
        %v1300 = vld [vmem:[%s238 + $0x1c20] sm:$0xff]
        %v1301 = vld [vmem:[%s238 + $0x1c28] sm:$0xff]
        %v1302 = vld [vmem:[%s238 + $0x1c30] sm:$0xff]
        %v1303 = vld [vmem:[%s238 + $0x1c38] sm:$0xff]
        %v1304 = vld [vmem:[%s238 + $0x1c40] sm:$0xff]
        %v1305 = vld [vmem:[%s238 + $0x1c48] sm:$0xff]
        %v1306 = vld [vmem:[%s238 + $0x1c50] sm:$0xff]
        %v1307 = vld [vmem:[%s238 + $0x1c58] sm:$0xff]
        %v1308 = vld [vmem:[%s238 + $0x1c60] sm:$0xff]
        %v1309 = vld [vmem:[%s238 + $0x1c68] sm:$0xff]
        %v1310 = vld [vmem:[%s238 + $0x1c70] sm:$0xff]
        %v1311 = vld [vmem:[%s238 + $0x1c78] sm:$0xff]
        %v1312 = vld [vmem:[%s238 + $0x1c80] sm:$0xff]
        %v1313 = vld [vmem:[%s238 + $0x1c88] sm:$0xff]
        %v1314 = vld [vmem:[%s238 + $0x1c90] sm:$0xff]
        %v1315 = vld [vmem:[%s238 + $0x1c98] sm:$0xff]
        %v1316 = vld [vmem:[%s238 + $0x1ca0] sm:$0xff]
        %v1317 = vld [vmem:[%s238 + $0x1ca8] sm:$0xff]
        %v1318 = vld [vmem:[%s238 + $0x1cb0] sm:$0xff]
        %v1319 = vld [vmem:[%s238 + $0x1cb8] sm:$0xff]
        %v1320 = vld [vmem:[%s238 + $0x1cc0] sm:$0xff]
        %v1321 = vld [vmem:[%s238 + $0x1cc8] sm:$0xff]
        %v1322 = vld [vmem:[%s238 + $0x1cd0] sm:$0xff]
        %v1323 = vld [vmem:[%s238 + $0x1cd8] sm:$0xff]
        %v1324 = vld [vmem:[%s238 + $0x1ce0] sm:$0xff]
        %v1325 = vld [vmem:[%s238 + $0x1ce8] sm:$0xff]
        %v1326 = vld [vmem:[%s238 + $0x1cf0] sm:$0xff]
        %v1327 = vld [vmem:[%s238 + $0x1cf8] sm:$0xff]
        %v1328 = vld [vmem:[%s238 + $0x1d00] sm:$0xff]
        %v1329 = vld [vmem:[%s238 + $0x1d08] sm:$0xff]
        %v1330 = vld [vmem:[%s238 + $0x1d10] sm:$0xff]
        %v1331 = vld [vmem:[%s238 + $0x1d18] sm:$0xff]
        %v1332 = vld [vmem:[%s238 + $0x1d20] sm:$0xff]
        %v1333 = vld [vmem:[%s238 + $0x1d28] sm:$0xff]
        %v1334 = vld [vmem:[%s238 + $0x1d30] sm:$0xff]
        %v1335 = vld [vmem:[%s238 + $0x1d38] sm:$0xff]
        %v1336 = vld [vmem:[%s238 + $0x1d40] sm:$0xff]
        %v1337 = vld [vmem:[%s238 + $0x1d48] sm:$0xff]
        %v1338 = vld [vmem:[%s238 + $0x1d50] sm:$0xff]
        %v1339 = vld [vmem:[%s238 + $0x1d58] sm:$0xff]
        %v1340 = vld [vmem:[%s238 + $0x1d60] sm:$0xff]
        %v1341 = vld [vmem:[%s238 + $0x1d68] sm:$0xff]
        %v1342 = vld [vmem:[%s238 + $0x1d70] sm:$0xff]
        %v1343 = vld [vmem:[%s238 + $0x1d78] sm:$0xff]
        %v1344 = vld [vmem:[%s238 + $0x1d80] sm:$0xff]
        %v1345 = vld [vmem:[%s238 + $0x1d88] sm:$0xff]
        %v1346 = vld [vmem:[%s238 + $0x1d90] sm:$0xff]
        %v1347 = vld [vmem:[%s238 + $0x1d98] sm:$0xff]
        %v1348 = vld [vmem:[%s238 + $0x1da0] sm:$0xff]
        %v1349 = vld [vmem:[%s238 + $0x1da8] sm:$0xff]
        %v1350 = vld [vmem:[%s238 + $0x1db0] sm:$0xff]
        %v1351 = vld [vmem:[%s238 + $0x1db8] sm:$0xff]
        %v1352 = vld [vmem:[%s238 + $0x1dc0] sm:$0xff]
        %v1353 = vld [vmem:[%s238 + $0x1dc8] sm:$0xff]
        %v1354 = vld [vmem:[%s238 + $0x1dd0] sm:$0xff]
        %v1355 = vld [vmem:[%s238 + $0x1dd8] sm:$0xff]
        %v1356 = vld [vmem:[%s238 + $0x1de0] sm:$0xff]
        %v1357 = vld [vmem:[%s238 + $0x1de8] sm:$0xff]
        %v1358 = vld [vmem:[%s238 + $0x1df0] sm:$0xff]
        %v1359 = vld [vmem:[%s238 + $0x1df8] sm:$0xff]
        %v1360 = vld [vmem:[%s238 + $0x1e00] sm:$0xff]
        %v1361 = vld [vmem:[%s238 + $0x1e08] sm:$0xff]
        %v1362 = vld [vmem:[%s238 + $0x1e10] sm:$0xff]
        %v1363 = vld [vmem:[%s238 + $0x1e18] sm:$0xff]
        %v1364 = vld [vmem:[%s238 + $0x1e20] sm:$0xff]
        %v1365 = vld [vmem:[%s238 + $0x1e28] sm:$0xff]
        %v1366 = vld [vmem:[%s238 + $0x1e30] sm:$0xff]
        %v1367 = vld [vmem:[%s238 + $0x1e38] sm:$0xff]
        %v1368 = vld [vmem:[%s238 + $0x1e40] sm:$0xff]
        %v1369 = vld [vmem:[%s238 + $0x1e48] sm:$0xff]
        %v1370 = vld [vmem:[%s238 + $0x1e50] sm:$0xff]
        %v1371 = vld [vmem:[%s238 + $0x1e58] sm:$0xff]
        %v1372 = vld [vmem:[%s238 + $0x1e60] sm:$0xff]
        %v1373 = vld [vmem:[%s238 + $0x1e68] sm:$0xff]
        %v1374 = vld [vmem:[%s238 + $0x1e70] sm:$0xff]
        %v1375 = vld [vmem:[%s238 + $0x1e78] sm:$0xff]
        %v1376 = vld [vmem:[%s238 + $0x1e80] sm:$0xff]
        %v1377 = vld [vmem:[%s238 + $0x1e88] sm:$0xff]
        %v1378 = vld [vmem:[%s238 + $0x1e90] sm:$0xff]
        %v1379 = vld [vmem:[%s238 + $0x1e98] sm:$0xff]
        %v1380 = vld [vmem:[%s238 + $0x1ea0] sm:$0xff]
        %v1381 = vld [vmem:[%s238 + $0x1ea8] sm:$0xff]
        %v1382 = vld [vmem:[%s238 + $0x1eb0] sm:$0xff]
        %v1383 = vld [vmem:[%s238 + $0x1eb8] sm:$0xff]
        %v1384 = vld [vmem:[%s238 + $0x1ec0] sm:$0xff]
        %v1385 = vld [vmem:[%s238 + $0x1ec8] sm:$0xff]
        %v1386 = vld [vmem:[%s238 + $0x1ed0] sm:$0xff]
        %v1387 = vld [vmem:[%s238 + $0x1ed8] sm:$0xff]
        %v1388 = vld [vmem:[%s238 + $0x1ee0] sm:$0xff]
        %v1389 = vld [vmem:[%s238 + $0x1ee8] sm:$0xff]
        %v1390 = vld [vmem:[%s238 + $0x1ef0] sm:$0xff]
        %v1391 = vld [vmem:[%s238 + $0x1ef8] sm:$0xff]
        %v1392 = vld [vmem:[%s238 + $0x1f00] sm:$0xff]
        %v1393 = vld [vmem:[%s238 + $0x1f08] sm:$0xff]
        %v1394 = vld [vmem:[%s238 + $0x1f10] sm:$0xff]
        %v1395 = vld [vmem:[%s238 + $0x1f18] sm:$0xff]
        %v1396 = vld [vmem:[%s238 + $0x1f20] sm:$0xff]
        %v1397 = vld [vmem:[%s238 + $0x1f28] sm:$0xff]
        %v1398 = vld [vmem:[%s238 + $0x1f30] sm:$0xff]
        %v1399 = vld [vmem:[%s238 + $0x1f38] sm:$0xff]
        %v1400 = vld [vmem:[%s238 + $0x1f40] sm:$0xff]
        %v1401 = vld [vmem:[%s238 + $0x1f48] sm:$0xff]
        %v1402 = vld [vmem:[%s238 + $0x1f50] sm:$0xff]
        %v1403 = vld [vmem:[%s238 + $0x1f58] sm:$0xff]
        %v1404 = vld [vmem:[%s238 + $0x1f60] sm:$0xff]
        %v1405 = vld [vmem:[%s238 + $0x1f68] sm:$0xff]
        %v1406 = vld [vmem:[%s238 + $0x1f70] sm:$0xff]
        %v1407 = vld [vmem:[%s238 + $0x1f78] sm:$0xff]
        %v1408 = vld [vmem:[%s238 + $0x1f80] sm:$0xff]
        %v1409 = vld [vmem:[%s238 + $0x1f88] sm:$0xff]
        %v1410 = vld [vmem:[%s238 + $0x1f90] sm:$0xff]
        %v1411 = vld [vmem:[%s238 + $0x1f98] sm:$0xff]
        %v1412 = vld [vmem:[%s238 + $0x1fa0] sm:$0xff]
        %v1413 = vld [vmem:[%s238 + $0x1fa8] sm:$0xff]
        %v1414 = vld [vmem:[%s238 + $0x1fb0] sm:$0xff]
        %v1415 = vld [vmem:[%s238 + $0x1fb8] sm:$0xff]
        %v1416 = vld [vmem:[%s238 + $0x1fc0] sm:$0xff]
        %v1417 = vld [vmem:[%s238 + $0x1fc8] sm:$0xff]
        %v1418 = vld [vmem:[%s238 + $0x1fd0] sm:$0xff]
        %v1419 = vld [vmem:[%s238 + $0x1fd8] sm:$0xff]
        %v1420 = vld [vmem:[%s238 + $0x1fe0] sm:$0xff]
        %v1421 = vld [vmem:[%s238 + $0x1fe8] sm:$0xff]
        %v1422 = vld [vmem:[%s238 + $0x1ff0] sm:$0xff]
        %v1423 = vld [vmem:[%s238 + $0x1ff8] sm:$0xff]
        %v1424 = vld [vmem:[%s238 + $0x2000] sm:$0xff]
        %v1425 = vld [vmem:[%s238 + $0x2008] sm:$0xff]
        %v1426 = vld [vmem:[%s238 + $0x2010] sm:$0xff]
        %v1427 = vld [vmem:[%s238 + $0x2018] sm:$0xff]
        %v1428 = vld [vmem:[%s238 + $0x2020] sm:$0xff]
        %v1429 = vld [vmem:[%s238 + $0x2028] sm:$0xff]
        %v1430 = vld [vmem:[%s238 + $0x2030] sm:$0xff]
        %v1431 = vld [vmem:[%s238 + $0x2038] sm:$0xff]
        %v1432 = vld [vmem:[%s238 + $0x2040] sm:$0xff]
        %v1433 = vld [vmem:[%s238 + $0x2048] sm:$0xff]
        %v1434 = vld [vmem:[%s238 + $0x2050] sm:$0xff]
        %v1435 = vld [vmem:[%s238 + $0x2058] sm:$0xff]
        %v1436 = vld [vmem:[%s238 + $0x2060] sm:$0xff]
        %v1437 = vld [vmem:[%s238 + $0x2068] sm:$0xff]
        %v1438 = vld [vmem:[%s238 + $0x2070] sm:$0xff]
        %v1439 = vld [vmem:[%s238 + $0x2078] sm:$0xff]
        %v1440 = vld [vmem:[%s238 + $0x2080] sm:$0xff]
        %v1441 = vld [vmem:[%s238 + $0x2088] sm:$0xff]
        %v1442 = vld [vmem:[%s238 + $0x2090] sm:$0xff]
        %v1443 = vld [vmem:[%s238 + $0x2098] sm:$0xff]
        %v1444 = vld [vmem:[%s238 + $0x20a0] sm:$0xff]
        %v1445 = vld [vmem:[%s238 + $0x20a8] sm:$0xff]
        %v1446 = vld [vmem:[%s238 + $0x20b0] sm:$0xff]
        %v1447 = vld [vmem:[%s238 + $0x20b8] sm:$0xff]
        %v1448 = vld [vmem:[%s238 + $0x20c0] sm:$0xff]
        %v1449 = vld [vmem:[%s238 + $0x20c8] sm:$0xff]
        %v1450 = vld [vmem:[%s238 + $0x20d0] sm:$0xff]
        %v1451 = vld [vmem:[%s238 + $0x20d8] sm:$0xff]
        %v1452 = vld [vmem:[%s238 + $0x20e0] sm:$0xff]
        %v1453 = vld [vmem:[%s238 + $0x20e8] sm:$0xff]
        %v1454 = vld [vmem:[%s238 + $0x20f0] sm:$0xff]
        %v1455 = vld [vmem:[%s238 + $0x20f8] sm:$0xff]
        %v1456 = vld [vmem:[%s238 + $0x2100] sm:$0xff]
        %v1457 = vld [vmem:[%s238 + $0x2108] sm:$0xff]
        %v1458 = vld [vmem:[%s238 + $0x2110] sm:$0xff]
        %v1459 = vld [vmem:[%s238 + $0x2118] sm:$0xff]
        %v1460 = vld [vmem:[%s238 + $0x2120] sm:$0xff]
        %v1461 = vld [vmem:[%s238 + $0x2128] sm:$0xff]
        %v1462 = vld [vmem:[%s238 + $0x2130] sm:$0xff]
        %v1463 = vld [vmem:[%s238 + $0x2138] sm:$0xff]
        %v1464 = vld [vmem:[%s238 + $0x2140] sm:$0xff]
        %v1465 = vld [vmem:[%s238 + $0x2148] sm:$0xff]
        %v1466 = vld [vmem:[%s238 + $0x2150] sm:$0xff]
        %v1467 = vld [vmem:[%s238 + $0x2158] sm:$0xff]
        %v1468 = vld [vmem:[%s238 + $0x2160] sm:$0xff]
        %v1469 = vld [vmem:[%s238 + $0x2168] sm:$0xff]
        %v1470 = vld [vmem:[%s238 + $0x2170] sm:$0xff]
        %v1471 = vld [vmem:[%s238 + $0x2178] sm:$0xff]
        %v1472 = vld [vmem:[%s238 + $0x2180] sm:$0xff]
        %v1473 = vld [vmem:[%s238 + $0x2188] sm:$0xff]
        %v1474 = vld [vmem:[%s238 + $0x2190] sm:$0xff]
        %v1475 = vld [vmem:[%s238 + $0x2198] sm:$0xff]
        %v1476 = vld [vmem:[%s238 + $0x21a0] sm:$0xff]
        %v1477 = vld [vmem:[%s238 + $0x21a8] sm:$0xff]
        %v1478 = vld [vmem:[%s238 + $0x21b0] sm:$0xff]
        %v1479 = vld [vmem:[%s238 + $0x21b8] sm:$0xff]
        %v1480 = vld [vmem:[%s238 + $0x21c0] sm:$0xff]
        %v1481 = vld [vmem:[%s238 + $0x21c8] sm:$0xff]
        %v1482 = vld [vmem:[%s238 + $0x21d0] sm:$0xff]
        %v1483 = vld [vmem:[%s238 + $0x21d8] sm:$0xff]
        %v1484 = vld [vmem:[%s238 + $0x21e0] sm:$0xff]
        %v1485 = vld [vmem:[%s238 + $0x21e8] sm:$0xff]
        %v1486 = vld [vmem:[%s238 + $0x21f0] sm:$0xff]
        %v1487 = vld [vmem:[%s238 + $0x21f8] sm:$0xff]
        %v1488 = vld [vmem:[%s238 + $0x2200] sm:$0xff]
        %v1489 = vld [vmem:[%s238 + $0x2208] sm:$0xff]
        %v1490 = vld [vmem:[%s238 + $0x2210] sm:$0xff]
        %v1491 = vld [vmem:[%s238 + $0x2218] sm:$0xff]
        %v1492 = vld [vmem:[%s238 + $0x2220] sm:$0xff]
        %v1493 = vld [vmem:[%s238 + $0x2228] sm:$0xff]
        %v1494 = vld [vmem:[%s238 + $0x2230] sm:$0xff]
        %v1495 = vld [vmem:[%s238 + $0x2238] sm:$0xff]
        %v1496 = vld [vmem:[%s238 + $0x2240] sm:$0xff]
        %v1497 = vld [vmem:[%s238 + $0x2248] sm:$0xff]
        %v1498 = vld [vmem:[%s238 + $0x2250] sm:$0xff]
        %v1499 = vld [vmem:[%s238 + $0x2258] sm:$0xff]
        %v1500 = vld [vmem:[%s238 + $0x2260] sm:$0xff]
        %v1501 = vld [vmem:[%s238 + $0x2268] sm:$0xff]
        %v1502 = vld [vmem:[%s238 + $0x2270] sm:$0xff]
        %v1503 = vld [vmem:[%s238 + $0x2278] sm:$0xff]
        %v1504 = vld [vmem:[%s238 + $0x2280] sm:$0xff]
        %v1505 = vld [vmem:[%s238 + $0x2288] sm:$0xff]
        %v1506 = vld [vmem:[%s238 + $0x2290] sm:$0xff]
        %v1507 = vld [vmem:[%s238 + $0x2298] sm:$0xff]
        %v1508 = vld [vmem:[%s238 + $0x22a0] sm:$0xff]
        %v1509 = vld [vmem:[%s238 + $0x22a8] sm:$0xff]
        %v1510 = vld [vmem:[%s238 + $0x22b0] sm:$0xff]
        %v1511 = vld [vmem:[%s238 + $0x22b8] sm:$0xff]
        %v1512 = vld [vmem:[%s238 + $0x22c0] sm:$0xff]
        %v1513 = vld [vmem:[%s238 + $0x22c8] sm:$0xff]
        %v1514 = vld [vmem:[%s238 + $0x22d0] sm:$0xff]
        %v1515 = vld [vmem:[%s238 + $0x22d8] sm:$0xff]
        %v1516 = vld [vmem:[%s238 + $0x22e0] sm:$0xff]
        %v1517 = vld [vmem:[%s238 + $0x22e8] sm:$0xff]
        %v1518 = vld [vmem:[%s238 + $0x22f0] sm:$0xff]
        %v1519 = vld [vmem:[%s238 + $0x22f8] sm:$0xff]
        %v1520 = vld [vmem:[%s238 + $0x2300] sm:$0xff]
        %v1521 = vld [vmem:[%s238 + $0x2308] sm:$0xff]
        %v1522 = vld [vmem:[%s238 + $0x2310] sm:$0xff]
        %v1523 = vld [vmem:[%s238 + $0x2318] sm:$0xff]
        %v1524 = vld [vmem:[%s238 + $0x2320] sm:$0xff]
        %v1525 = vld [vmem:[%s238 + $0x2328] sm:$0xff]
        %v1526 = vld [vmem:[%s238 + $0x2330] sm:$0xff]
        %v1527 = vld [vmem:[%s238 + $0x2338] sm:$0xff]
        %v1528 = vld [vmem:[%s238 + $0x2340] sm:$0xff]
        %v1529 = vld [vmem:[%s238 + $0x2348] sm:$0xff]
        %v1530 = vld [vmem:[%s238 + $0x2350] sm:$0xff]
        %v1531 = vld [vmem:[%s238 + $0x2358] sm:$0xff]
        %v1532 = vld [vmem:[%s238 + $0x2360] sm:$0xff]
        %v1533 = vld [vmem:[%s238 + $0x2368] sm:$0xff]
        %v1534 = vld [vmem:[%s238 + $0x2370] sm:$0xff]
        %v1535 = vld [vmem:[%s238 + $0x2378] sm:$0xff]
        %v1536 = vld [vmem:[%s238 + $0x2380] sm:$0xff]
        %v1537 = vld [vmem:[%s238 + $0x2388] sm:$0xff]
        %v1538 = vld [vmem:[%s238 + $0x2390] sm:$0xff]
        %v1539 = vld [vmem:[%s238 + $0x2398] sm:$0xff]
        %v1540 = vld [vmem:[%s238 + $0x23a0] sm:$0xff]
        %v1541 = vld [vmem:[%s238 + $0x23a8] sm:$0xff]
        %v1542 = vld [vmem:[%s238 + $0x23b0] sm:$0xff]
        %v1543 = vld [vmem:[%s238 + $0x23b8] sm:$0xff]
        %v1544 = vld [vmem:[%s238 + $0x23c0] sm:$0xff]
        %v1545 = vld [vmem:[%s238 + $0x23c8] sm:$0xff]
        %v1546 = vld [vmem:[%s238 + $0x23d0] sm:$0xff]
        %v1547 = vld [vmem:[%s238 + $0x23d8] sm:$0xff]
        %v1548 = vld [vmem:[%s238 + $0x23e0] sm:$0xff]
        %v1549 = vld [vmem:[%s238 + $0x23e8] sm:$0xff]
        %v1550 = vld [vmem:[%s238 + $0x23f0] sm:$0xff]
        %v1551 = vld [vmem:[%s238 + $0x23f8] sm:$0xff]
        %v1552 = vld [vmem:[%s238 + $0x2400] sm:$0xff]
        %v1553 = vld [vmem:[%s238 + $0x2408] sm:$0xff]
        %v1554 = vld [vmem:[%s238 + $0x2410] sm:$0xff]
        %v1555 = vld [vmem:[%s238 + $0x2418] sm:$0xff]
        %v1556 = vld [vmem:[%s238 + $0x2420] sm:$0xff]
        %v1557 = vld [vmem:[%s238 + $0x2428] sm:$0xff]
        %v1558 = vld [vmem:[%s238 + $0x2430] sm:$0xff]
        %v1559 = vld [vmem:[%s238 + $0x2438] sm:$0xff]
        %v1560 = vld [vmem:[%s238 + $0x2440] sm:$0xff]
        %v1561 = vld [vmem:[%s238 + $0x2448] sm:$0xff]
        %v1562 = vld [vmem:[%s238 + $0x2450] sm:$0xff]
        %v1563 = vld [vmem:[%s238 + $0x2458] sm:$0xff]
        %v1564 = vld [vmem:[%s238 + $0x2460] sm:$0xff]
        %v1565 = vld [vmem:[%s238 + $0x2468] sm:$0xff]
        %v1566 = vld [vmem:[%s238 + $0x2470] sm:$0xff]
        %v1567 = vld [vmem:[%s238 + $0x2478] sm:$0xff]
        %v1568 = vld [vmem:[%s238 + $0x2480] sm:$0xff]
        %v1569 = vld [vmem:[%s238 + $0x2488] sm:$0xff]
        %v1570 = vld [vmem:[%s238 + $0x2490] sm:$0xff]
        %v1571 = vld [vmem:[%s238 + $0x2498] sm:$0xff]
        %v1572 = vld [vmem:[%s238 + $0x24a0] sm:$0xff]
        %v1573 = vld [vmem:[%s238 + $0x24a8] sm:$0xff]
        %v1574 = vld [vmem:[%s238 + $0x24b0] sm:$0xff]
        %v1575 = vld [vmem:[%s238 + $0x24b8] sm:$0xff]
        %v1576 = vld [vmem:[%s238 + $0x24c0] sm:$0xff]
        %v1577 = vld [vmem:[%s238 + $0x24c8] sm:$0xff]
        %v1578 = vld [vmem:[%s238 + $0x24d0] sm:$0xff]
        %v1579 = vld [vmem:[%s238 + $0x24d8] sm:$0xff]
        %v1580 = vld [vmem:[%s238 + $0x24e0] sm:$0xff]
        %v1581 = vld [vmem:[%s238 + $0x24e8] sm:$0xff]
        %v1582 = vld [vmem:[%s238 + $0x24f0] sm:$0xff]
        %v1583 = vld [vmem:[%s238 + $0x24f8] sm:$0xff]
        %v1584 = vld [vmem:[%s238 + $0x2500] sm:$0xff]
        %v1585 = vld [vmem:[%s238 + $0x2508] sm:$0xff]
        %v1586 = vld [vmem:[%s238 + $0x2510] sm:$0xff]
        %v1587 = vld [vmem:[%s238 + $0x2518] sm:$0xff]
        %v1588 = vld [vmem:[%s238 + $0x2520] sm:$0xff]
        %v1589 = vld [vmem:[%s238 + $0x2528] sm:$0xff]
        %v1590 = vld [vmem:[%s238 + $0x2530] sm:$0xff]
        %v1591 = vld [vmem:[%s238 + $0x2538] sm:$0xff]
        %v1592 = vld [vmem:[%s238 + $0x2540] sm:$0xff]
        %v1593 = vld [vmem:[%s238 + $0x2548] sm:$0xff]
        %v1594 = vld [vmem:[%s238 + $0x2550] sm:$0xff]
        %v1595 = vld [vmem:[%s238 + $0x2558] sm:$0xff]
        %v1596 = vld [vmem:[%s238 + $0x2560] sm:$0xff]
        %v1597 = vld [vmem:[%s238 + $0x2568] sm:$0xff]
        %v1598 = vld [vmem:[%s238 + $0x2570] sm:$0xff]
        %v1599 = vld [vmem:[%s238 + $0x2578] sm:$0xff]
        %v1600 = vld [vmem:[%s238 + $0x2580] sm:$0xff]
        %v1601 = vld [vmem:[%s238 + $0x2588] sm:$0xff]
        %v1602 = vld [vmem:[%s238 + $0x2590] sm:$0xff]
        %v1603 = vld [vmem:[%s238 + $0x2598] sm:$0xff]
        %v1604 = vld [vmem:[%s238 + $0x25a0] sm:$0xff]
        %v1605 = vld [vmem:[%s238 + $0x25a8] sm:$0xff]
        %v1606 = vld [vmem:[%s238 + $0x25b0] sm:$0xff]
        %v1607 = vld [vmem:[%s238 + $0x25b8] sm:$0xff]
        %v1608 = vld [vmem:[%s238 + $0x25c0] sm:$0xff]
        %v1609 = vld [vmem:[%s238 + $0x25c8] sm:$0xff]
        %v1610 = vld [vmem:[%s238 + $0x25d0] sm:$0xff]
        %v1611 = vld [vmem:[%s238 + $0x25d8] sm:$0xff]
        %v1612 = vld [vmem:[%s238 + $0x25e0] sm:$0xff]
        %v1613 = vld [vmem:[%s238 + $0x25e8] sm:$0xff]
        %v1614 = vld [vmem:[%s238 + $0x25f0] sm:$0xff]
        %v1615 = vld [vmem:[%s238 + $0x25f8] sm:$0xff]
        %v1616 = vld [vmem:[%s238 + $0x2600] sm:$0xff]
        %v1617 = vld [vmem:[%s238 + $0x2608] sm:$0xff]
        %v1618 = vld [vmem:[%s238 + $0x2610] sm:$0xff]
        %v1619 = vld [vmem:[%s238 + $0x2618] sm:$0xff]
        %v1620 = vld [vmem:[%s238 + $0x2620] sm:$0xff]
        %v1621 = vld [vmem:[%s238 + $0x2628] sm:$0xff]
        %v1622 = vld [vmem:[%s238 + $0x2630] sm:$0xff]
        %v1623 = vld [vmem:[%s238 + $0x2638] sm:$0xff]
        %v1624 = vld [vmem:[%s238 + $0x2640] sm:$0xff]
        %v1625 = vld [vmem:[%s238 + $0x2648] sm:$0xff]
        %v1626 = vld [vmem:[%s238 + $0x2650] sm:$0xff]
        %v1627 = vld [vmem:[%s238 + $0x2658] sm:$0xff]
        %v1628 = vld [vmem:[%s238 + $0x2660] sm:$0xff]
        %v1629 = vld [vmem:[%s238 + $0x2668] sm:$0xff]
        %v1630 = vld [vmem:[%s238 + $0x2670] sm:$0xff]
        %v1631 = vld [vmem:[%s238 + $0x2678] sm:$0xff]
        %v1632 = vld [vmem:[%s238 + $0x2680] sm:$0xff]
        %v1633 = vld [vmem:[%s238 + $0x2688] sm:$0xff]
        %v1634 = vld [vmem:[%s238 + $0x2690] sm:$0xff]
        %v1635 = vld [vmem:[%s238 + $0x2698] sm:$0xff]
        %v1636 = vld [vmem:[%s238 + $0x26a0] sm:$0xff]
        %v1637 = vld [vmem:[%s238 + $0x26a8] sm:$0xff]
        %v1638 = vld [vmem:[%s238 + $0x26b0] sm:$0xff]
        %v1639 = vld [vmem:[%s238 + $0x26b8] sm:$0xff]
        %v1640 = vld [vmem:[%s238 + $0x26c0] sm:$0xff]
        %v1641 = vld [vmem:[%s238 + $0x26c8] sm:$0xff]
        %v1642 = vld [vmem:[%s238 + $0x26d0] sm:$0xff]
        %v1643 = vld [vmem:[%s238 + $0x26d8] sm:$0xff]
        %v1644 = vld [vmem:[%s238 + $0x26e0] sm:$0xff]
        %v1645 = vld [vmem:[%s238 + $0x26e8] sm:$0xff]
        %v1646 = vld [vmem:[%s238 + $0x26f0] sm:$0xff]
        %v1647 = vld [vmem:[%s238 + $0x26f8] sm:$0xff]
        %v1648 = vld [vmem:[%s238 + $0x2700] sm:$0xff]
        %v1649 = vld [vmem:[%s238 + $0x2708] sm:$0xff]
        %v1650 = vld [vmem:[%s238 + $0x2710] sm:$0xff]
        %v1651 = vld [vmem:[%s238 + $0x2718] sm:$0xff]
        %v1652 = vld [vmem:[%s238 + $0x2720] sm:$0xff]
        %v1653 = vld [vmem:[%s238 + $0x2728] sm:$0xff]
        %v1654 = vld [vmem:[%s238 + $0x2730] sm:$0xff]
        %v1655 = vld [vmem:[%s238 + $0x2738] sm:$0xff]
        %v1656 = vld [vmem:[%s238 + $0x2740] sm:$0xff]
        %v1657 = vld [vmem:[%s238 + $0x2748] sm:$0xff]
        %v1658 = vld [vmem:[%s238 + $0x2750] sm:$0xff]
        %v1659 = vld [vmem:[%s238 + $0x2758] sm:$0xff]
        %v1660 = vld [vmem:[%s238 + $0x2760] sm:$0xff]
        %v1661 = vld [vmem:[%s238 + $0x2768] sm:$0xff]
        %v1662 = vld [vmem:[%s238 + $0x2770] sm:$0xff]
        %v1663 = vld [vmem:[%s238 + $0x2778] sm:$0xff]
        %v1664 = vld [vmem:[%s238 + $0x2780] sm:$0xff]
        %v1665 = vld [vmem:[%s238 + $0x2788] sm:$0xff]
        %v1666 = vld [vmem:[%s238 + $0x2790] sm:$0xff]
        %v1667 = vld [vmem:[%s238 + $0x2798] sm:$0xff]
        %v1668 = vld [vmem:[%s238 + $0x27a0] sm:$0xff]
        %v1669 = vld [vmem:[%s238 + $0x27a8] sm:$0xff]
        %v1670 = vld [vmem:[%s238 + $0x27b0] sm:$0xff]
        %v1671 = vld [vmem:[%s238 + $0x27b8] sm:$0xff]
        %v1672 = vld [vmem:[%s238 + $0x27c0] sm:$0xff]
        %v1673 = vld [vmem:[%s238 + $0x27c8] sm:$0xff]
        %v1674 = vld [vmem:[%s238 + $0x27d0] sm:$0xff]
        %v1675 = vld [vmem:[%s238 + $0x27d8] sm:$0xff]
        %v1676 = vld [vmem:[%s238 + $0x27e0] sm:$0xff]
        %v1677 = vld [vmem:[%s238 + $0x27e8] sm:$0xff]
        %v1678 = vld [vmem:[%s238 + $0x27f0] sm:$0xff]
        %v1679 = vld [vmem:[%s238 + $0x27f8] sm:$0xff]
        %v1680 = vld [vmem:[%s238 + $0x2800] sm:$0xff]
        %v1681 = vld [vmem:[%s238 + $0x2808] sm:$0xff]
        %v1682 = vld [vmem:[%s238 + $0x2810] sm:$0xff]
        %v1683 = vld [vmem:[%s238 + $0x2818] sm:$0xff]
        %v1684 = vld [vmem:[%s238 + $0x2820] sm:$0xff]
        %v1685 = vld [vmem:[%s238 + $0x2828] sm:$0xff]
        %v1686 = vld [vmem:[%s238 + $0x2830] sm:$0xff]
        %v1687 = vld [vmem:[%s238 + $0x2838] sm:$0xff]
        %v1688 = vld [vmem:[%s238 + $0x2840] sm:$0xff]
        %v1689 = vld [vmem:[%s238 + $0x2848] sm:$0xff]
        %v1690 = vld [vmem:[%s238 + $0x2850] sm:$0xff]
        %v1691 = vld [vmem:[%s238 + $0x2858] sm:$0xff]
        %v1692 = vld [vmem:[%s238 + $0x2860] sm:$0xff]
        %v1693 = vld [vmem:[%s238 + $0x2868] sm:$0xff]
        %v1694 = vld [vmem:[%s238 + $0x2870] sm:$0xff]
        %v1695 = vld [vmem:[%s238 + $0x2878] sm:$0xff]
        %v1696 = vld [vmem:[%s238 + $0x2880] sm:$0xff]
        %v1697 = vld [vmem:[%s238 + $0x2888] sm:$0xff]
        %v1698 = vld [vmem:[%s238 + $0x2890] sm:$0xff]
        %v1699 = vld [vmem:[%s238 + $0x2898] sm:$0xff]
        %v1700 = vld [vmem:[%s238 + $0x28a0] sm:$0xff]
        %v1701 = vld [vmem:[%s238 + $0x28a8] sm:$0xff]
        %v1702 = vld [vmem:[%s238 + $0x28b0] sm:$0xff]
        %v1703 = vld [vmem:[%s238 + $0x28b8] sm:$0xff]
        %v1704 = vld [vmem:[%s238 + $0x28c0] sm:$0xff]
        %v1705 = vld [vmem:[%s238 + $0x28c8] sm:$0xff]
        %v1706 = vld [vmem:[%s238 + $0x28d0] sm:$0xff]
        %v1707 = vld [vmem:[%s238 + $0x28d8] sm:$0xff]
        %v1708 = vld [vmem:[%s238 + $0x28e0] sm:$0xff]
        %v1709 = vld [vmem:[%s238 + $0x28e8] sm:$0xff]
        %v1710 = vld [vmem:[%s238 + $0x28f0] sm:$0xff]
        %v1711 = vld [vmem:[%s238 + $0x28f8] sm:$0xff]
        %v1712 = vld [vmem:[%s238 + $0x2900] sm:$0xff]
        %v1713 = vld [vmem:[%s238 + $0x2908] sm:$0xff]
        %v1714 = vld [vmem:[%s238 + $0x2910] sm:$0xff]
        %v1715 = vld [vmem:[%s238 + $0x2918] sm:$0xff]
        %v1716 = vld [vmem:[%s238 + $0x2920] sm:$0xff]
        %v1717 = vld [vmem:[%s238 + $0x2928] sm:$0xff]
        %v1718 = vld [vmem:[%s238 + $0x2930] sm:$0xff]
        %v1719 = vld [vmem:[%s238 + $0x2938] sm:$0xff]
        %v1720 = vld [vmem:[%s238 + $0x2940] sm:$0xff]
        %v1721 = vld [vmem:[%s238 + $0x2948] sm:$0xff]
        %v1722 = vld [vmem:[%s238 + $0x2950] sm:$0xff]
        %v1723 = vld [vmem:[%s238 + $0x2958] sm:$0xff]
        %v1724 = vld [vmem:[%s238 + $0x2960] sm:$0xff]
        %v1725 = vld [vmem:[%s238 + $0x2968] sm:$0xff]
        %v1726 = vld [vmem:[%s238 + $0x2970] sm:$0xff]
        %v1727 = vld [vmem:[%s238 + $0x2978] sm:$0xff]
        %v1728 = vld [vmem:[%s238 + $0x2980] sm:$0xff]
        %v1729 = vld [vmem:[%s238 + $0x2988] sm:$0xff]
        %v1730 = vld [vmem:[%s238 + $0x2990] sm:$0xff]
        %v1731 = vld [vmem:[%s238 + $0x2998] sm:$0xff]
        %v1732 = vld [vmem:[%s238 + $0x29a0] sm:$0xff]
        %v1733 = vld [vmem:[%s238 + $0x29a8] sm:$0xff]
        %v1734 = vld [vmem:[%s238 + $0x29b0] sm:$0xff]
        %v1735 = vld [vmem:[%s238 + $0x29b8] sm:$0xff]
        %v1736 = vld [vmem:[%s238 + $0x29c0] sm:$0xff]
        %v1737 = vld [vmem:[%s238 + $0x29c8] sm:$0xff]
        %v1738 = vld [vmem:[%s238 + $0x29d0] sm:$0xff]
        %v1739 = vld [vmem:[%s238 + $0x29d8] sm:$0xff]
        %v1740 = vld [vmem:[%s238 + $0x29e0] sm:$0xff]
        %v1741 = vld [vmem:[%s238 + $0x29e8] sm:$0xff]
        %v1742 = vld [vmem:[%s238 + $0x29f0] sm:$0xff]
        %v1743 = vld [vmem:[%s238 + $0x29f8] sm:$0xff]
        %v1744 = vld [vmem:[%s238 + $0x2a00] sm:$0xff]
        %v1745 = vld [vmem:[%s238 + $0x2a08] sm:$0xff]
        %v1746 = vld [vmem:[%s238 + $0x2a10] sm:$0xff]
        %v1747 = vld [vmem:[%s238 + $0x2a18] sm:$0xff]
        %v1748 = vld [vmem:[%s238 + $0x2a20] sm:$0xff]
        %v1749 = vld [vmem:[%s238 + $0x2a28] sm:$0xff]
        %v1750 = vld [vmem:[%s238 + $0x2a30] sm:$0xff]
        %v1751 = vld [vmem:[%s238 + $0x2a38] sm:$0xff]
        %v1752 = vld [vmem:[%s238 + $0x2a40] sm:$0xff]
        %v1753 = vld [vmem:[%s238 + $0x2a48] sm:$0xff]
        %v1754 = vld [vmem:[%s238 + $0x2a50] sm:$0xff]
        %v1755 = vld [vmem:[%s238 + $0x2a58] sm:$0xff]
        %v1756 = vld [vmem:[%s238 + $0x2a60] sm:$0xff]
        %v1757 = vld [vmem:[%s238 + $0x2a68] sm:$0xff]
        %v1758 = vld [vmem:[%s238 + $0x2a70] sm:$0xff]
        %v1759 = vld [vmem:[%s238 + $0x2a78] sm:$0xff]
        %v1760 = vld [vmem:[%s238 + $0x2a80] sm:$0xff]
        %v1761 = vld [vmem:[%s238 + $0x2a88] sm:$0xff]
        %v1762 = vld [vmem:[%s238 + $0x2a90] sm:$0xff]
        %v1763 = vld [vmem:[%s238 + $0x2a98] sm:$0xff]
        %v1764 = vld [vmem:[%s238 + $0x2aa0] sm:$0xff]
        %v1765 = vld [vmem:[%s238 + $0x2aa8] sm:$0xff]
        %v1766 = vld [vmem:[%s238 + $0x2ab0] sm:$0xff]
        %v1767 = vld [vmem:[%s238 + $0x2ab8] sm:$0xff]
        %v1768 = vld [vmem:[%s238 + $0x2ac0] sm:$0xff]
        %v1769 = vld [vmem:[%s238 + $0x2ac8] sm:$0xff]
        %v1770 = vld [vmem:[%s238 + $0x2ad0] sm:$0xff]
        %v1771 = vld [vmem:[%s238 + $0x2ad8] sm:$0xff]
        %v1772 = vld [vmem:[%s238 + $0x2ae0] sm:$0xff]
        %v1773 = vld [vmem:[%s238 + $0x2ae8] sm:$0xff]
        %v1774 = vld [vmem:[%s238 + $0x2af0] sm:$0xff]
        %v1775 = vld [vmem:[%s238 + $0x2af8] sm:$0xff]
        %v1776 = vld [vmem:[%s238 + $0x2b00] sm:$0xff]
        %v1777 = vld [vmem:[%s238 + $0x2b08] sm:$0xff]
        %v1778 = vld [vmem:[%s238 + $0x2b10] sm:$0xff]
        %v1779 = vld [vmem:[%s238 + $0x2b18] sm:$0xff]
        %v1780 = vld [vmem:[%s238 + $0x2b20] sm:$0xff]
        %v1781 = vld [vmem:[%s238 + $0x2b28] sm:$0xff]
        %v1782 = vld [vmem:[%s238 + $0x2b30] sm:$0xff]
        %v1783 = vld [vmem:[%s238 + $0x2b38] sm:$0xff]
        %v1784 = vld [vmem:[%s238 + $0x2b40] sm:$0xff]
        %v1785 = vld [vmem:[%s238 + $0x2b48] sm:$0xff]
        %v1786 = vld [vmem:[%s238 + $0x2b50] sm:$0xff]
        %v1787 = vld [vmem:[%s238 + $0x2b58] sm:$0xff]
        %v1788 = vld [vmem:[%s238 + $0x2b60] sm:$0xff]
        %v1789 = vld [vmem:[%s238 + $0x2b68] sm:$0xff]
        %v1790 = vld [vmem:[%s238 + $0x2b70] sm:$0xff]
        %v1791 = vld [vmem:[%s238 + $0x2b78] sm:$0xff]
        %v1792 = vld [vmem:[%s238 + $0x2b80] sm:$0xff]
        %v1793 = vld [vmem:[%s238 + $0x2b88] sm:$0xff]
        %v1794 = vld [vmem:[%s238 + $0x2b90] sm:$0xff]
        %v1795 = vld [vmem:[%s238 + $0x2b98] sm:$0xff]
        %v1796 = vld [vmem:[%s238 + $0x2ba0] sm:$0xff]
        %v1797 = vld [vmem:[%s238 + $0x2ba8] sm:$0xff]
        %v1798 = vld [vmem:[%s238 + $0x2bb0] sm:$0xff]
        %v1799 = vld [vmem:[%s238 + $0x2bb8] sm:$0xff]
        %v1800 = vld [vmem:[%s238 + $0x2bc0] sm:$0xff]
        %v1801 = vld [vmem:[%s238 + $0x2bc8] sm:$0xff]
        %v1802 = vld [vmem:[%s238 + $0x2bd0] sm:$0xff]
        %v1803 = vld [vmem:[%s238 + $0x2bd8] sm:$0xff]
        %v1804 = vld [vmem:[%s238 + $0x2be0] sm:$0xff]
        %v1805 = vld [vmem:[%s238 + $0x2be8] sm:$0xff]
        %v1806 = vld [vmem:[%s238 + $0x2bf0] sm:$0xff]
        %v1807 = vld [vmem:[%s238 + $0x2bf8] sm:$0xff]
        %v1808 = vld [vmem:[%s238 + $0x2c00] sm:$0xff]
        %v1809 = vld [vmem:[%s238 + $0x2c08] sm:$0xff]
        %v1810 = vld [vmem:[%s238 + $0x2c10] sm:$0xff]
        %v1811 = vld [vmem:[%s238 + $0x2c18] sm:$0xff]
        %v1812 = vld [vmem:[%s238 + $0x2c20] sm:$0xff]
        %v1813 = vld [vmem:[%s238 + $0x2c28] sm:$0xff]
        %v1814 = vld [vmem:[%s238 + $0x2c30] sm:$0xff]
        %v1815 = vld [vmem:[%s238 + $0x2c38] sm:$0xff]
        %v1816 = vld [vmem:[%s238 + $0x2c40] sm:$0xff]
        %v1817 = vld [vmem:[%s238 + $0x2c48] sm:$0xff]
        %v1818 = vld [vmem:[%s238 + $0x2c50] sm:$0xff]
        %v1819 = vld [vmem:[%s238 + $0x2c58] sm:$0xff]
        %v1820 = vld [vmem:[%s238 + $0x2c60] sm:$0xff]
        %v1821 = vld [vmem:[%s238 + $0x2c68] sm:$0xff]
        %v1822 = vld [vmem:[%s238 + $0x2c70] sm:$0xff]
        %v1823 = vld [vmem:[%s238 + $0x2c78] sm:$0xff]
        %v1824 = vld [vmem:[%s238 + $0x2c80] sm:$0xff]
        %v1825 = vld [vmem:[%s238 + $0x2c88] sm:$0xff]
        %v1826 = vld [vmem:[%s238 + $0x2c90] sm:$0xff]
        %v1827 = vld [vmem:[%s238 + $0x2c98] sm:$0xff]
        %v1828 = vld [vmem:[%s238 + $0x2ca0] sm:$0xff]
        %v1829 = vld [vmem:[%s238 + $0x2ca8] sm:$0xff]
        %v1830 = vld [vmem:[%s238 + $0x2cb0] sm:$0xff]
        %v1831 = vld [vmem:[%s238 + $0x2cb8] sm:$0xff]
        %v1832 = vld [vmem:[%s238 + $0x2cc0] sm:$0xff]
        %v1833 = vld [vmem:[%s238 + $0x2cc8] sm:$0xff]
        %v1834 = vld [vmem:[%s238 + $0x2cd0] sm:$0xff]
        %v1835 = vld [vmem:[%s238 + $0x2cd8] sm:$0xff]
        %v1836 = vld [vmem:[%s238 + $0x2ce0] sm:$0xff]
        %v1837 = vld [vmem:[%s238 + $0x2ce8] sm:$0xff]
        %v1838 = vld [vmem:[%s238 + $0x2cf0] sm:$0xff]
        %v1839 = vld [vmem:[%s238 + $0x2cf8] sm:$0xff]
        %v1840 = vld [vmem:[%s238 + $0x2d00] sm:$0xff]
        %v1841 = vld [vmem:[%s238 + $0x2d08] sm:$0xff]
        %v1842 = vld [vmem:[%s238 + $0x2d10] sm:$0xff]
        %v1843 = vld [vmem:[%s238 + $0x2d18] sm:$0xff]
        %v1844 = vld [vmem:[%s238 + $0x2d20] sm:$0xff]
        %v1845 = vld [vmem:[%s238 + $0x2d28] sm:$0xff]
        %v1846 = vld [vmem:[%s238 + $0x2d30] sm:$0xff]
        %v1847 = vld [vmem:[%s238 + $0x2d38] sm:$0xff]
        %v1848 = vld [vmem:[%s238 + $0x2d40] sm:$0xff]
        %v1849 = vld [vmem:[%s238 + $0x2d48] sm:$0xff]
        %v1850 = vld [vmem:[%s238 + $0x2d50] sm:$0xff]
        %v1851 = vld [vmem:[%s238 + $0x2d58] sm:$0xff]
        %v1852 = vld [vmem:[%s238 + $0x2d60] sm:$0xff]
        %v1853 = vld [vmem:[%s238 + $0x2d68] sm:$0xff]
        %v1854 = vld [vmem:[%s238 + $0x2d70] sm:$0xff]
        %v1855 = vld [vmem:[%s238 + $0x2d78] sm:$0xff]
        %v1856 = vld [vmem:[%s238 + $0x2d80] sm:$0xff]
        %v1857 = vld [vmem:[%s238 + $0x2d88] sm:$0xff]
        %v1858 = vld [vmem:[%s238 + $0x2d90] sm:$0xff]
        %v1859 = vld [vmem:[%s238 + $0x2d98] sm:$0xff]
        %v1860 = vld [vmem:[%s238 + $0x2da0] sm:$0xff]
        %v1861 = vld [vmem:[%s238 + $0x2da8] sm:$0xff]
        %v1862 = vld [vmem:[%s238 + $0x2db0] sm:$0xff]
        %v1863 = vld [vmem:[%s238 + $0x2db8] sm:$0xff]
        %v1864 = vld [vmem:[%s238 + $0x2dc0] sm:$0xff]
        %v1865 = vld [vmem:[%s238 + $0x2dc8] sm:$0xff]
        %v1866 = vld [vmem:[%s238 + $0x2dd0] sm:$0xff]
        %v1867 = vld [vmem:[%s238 + $0x2dd8] sm:$0xff]
        %v1868 = vld [vmem:[%s238 + $0x2de0] sm:$0xff]
        %v1869 = vld [vmem:[%s238 + $0x2de8] sm:$0xff]
        %v1870 = vld [vmem:[%s238 + $0x2df0] sm:$0xff]
        %v1871 = vld [vmem:[%s238 + $0x2df8] sm:$0xff]
        %v1872 = vld [vmem:[%s238 + $0x2e00] sm:$0xff]
        %v1873 = vld [vmem:[%s238 + $0x2e08] sm:$0xff]
        %v1874 = vld [vmem:[%s238 + $0x2e10] sm:$0xff]
        %v1875 = vld [vmem:[%s238 + $0x2e18] sm:$0xff]
        %v1876 = vld [vmem:[%s238 + $0x2e20] sm:$0xff]
        %v1877 = vld [vmem:[%s238 + $0x2e28] sm:$0xff]
        %v1878 = vld [vmem:[%s238 + $0x2e30] sm:$0xff]
        %v1879 = vld [vmem:[%s238 + $0x2e38] sm:$0xff]
        %v1880 = vld [vmem:[%s238 + $0x2e40] sm:$0xff]
        %v1881 = vld [vmem:[%s238 + $0x2e48] sm:$0xff]
        %v1882 = vld [vmem:[%s238 + $0x2e50] sm:$0xff]
        %v1883 = vld [vmem:[%s238 + $0x2e58] sm:$0xff]
        %v1884 = vld [vmem:[%s238 + $0x2e60] sm:$0xff]
        %v1885 = vld [vmem:[%s238 + $0x2e68] sm:$0xff]
        %v1886 = vld [vmem:[%s238 + $0x2e70] sm:$0xff]
        %v1887 = vld [vmem:[%s238 + $0x2e78] sm:$0xff]
        %v1888 = vld [vmem:[%s238 + $0x2e80] sm:$0xff]
        %v1889 = vld [vmem:[%s238 + $0x2e88] sm:$0xff]
        %v1890 = vld [vmem:[%s238 + $0x2e90] sm:$0xff]
        %v1891 = vld [vmem:[%s238 + $0x2e98] sm:$0xff]
        %v1892 = vld [vmem:[%s238 + $0x2ea0] sm:$0xff]
        %v1893 = vld [vmem:[%s238 + $0x2ea8] sm:$0xff]
        %v1894 = vld [vmem:[%s238 + $0x2eb0] sm:$0xff]
        %v1895 = vld [vmem:[%s238 + $0x2eb8] sm:$0xff]
        %v1896 = vld [vmem:[%s238 + $0x2ec0] sm:$0xff]
        %v1897 = vld [vmem:[%s238 + $0x2ec8] sm:$0xff]
        %v1898 = vld [vmem:[%s238 + $0x2ed0] sm:$0xff]
        %v1899 = vld [vmem:[%s238 + $0x2ed8] sm:$0xff]
        %v1900 = vld [vmem:[%s238 + $0x2ee0] sm:$0xff]
        %v1901 = vld [vmem:[%s238 + $0x2ee8] sm:$0xff]
        %v1902 = vld [vmem:[%s238 + $0x2ef0] sm:$0xff]
        %v1903 = vld [vmem:[%s238 + $0x2ef8] sm:$0xff]
        %v1904 = vld [vmem:[%s238 + $0x2f00] sm:$0xff]
        %v1905 = vld [vmem:[%s238 + $0x2f08] sm:$0xff]
        %v1906 = vld [vmem:[%s238 + $0x2f10] sm:$0xff]
        %v1907 = vld [vmem:[%s238 + $0x2f18] sm:$0xff]
        %v1908 = vld [vmem:[%s238 + $0x2f20] sm:$0xff]
        %v1909 = vld [vmem:[%s238 + $0x2f28] sm:$0xff]
        %v1910 = vld [vmem:[%s238 + $0x2f30] sm:$0xff]
        %v1911 = vld [vmem:[%s238 + $0x2f38] sm:$0xff]
        %v1912 = vld [vmem:[%s238 + $0x2f40] sm:$0xff]
        %v1913 = vld [vmem:[%s238 + $0x2f48] sm:$0xff]
        %v1914 = vld [vmem:[%s238 + $0x2f50] sm:$0xff]
        %v1915 = vld [vmem:[%s238 + $0x2f58] sm:$0xff]
        %v1916 = vld [vmem:[%s238 + $0x2f60] sm:$0xff]
        %v1917 = vld [vmem:[%s238 + $0x2f68] sm:$0xff]
        %v1918 = vld [vmem:[%s238 + $0x2f70] sm:$0xff]
        %v1919 = vld [vmem:[%s238 + $0x2f78] sm:$0xff]
        %v1920 = vld [vmem:[%s238 + $0x2f80] sm:$0xff]
        %v1921 = vld [vmem:[%s238 + $0x2f88] sm:$0xff]
        %v1922 = vld [vmem:[%s238 + $0x2f90] sm:$0xff]
        %v1923 = vld [vmem:[%s238 + $0x2f98] sm:$0xff]
        %v1924 = vld [vmem:[%s238 + $0x2fa0] sm:$0xff]
        %v1925 = vld [vmem:[%s238 + $0x2fa8] sm:$0xff]
        %v1926 = vld [vmem:[%s238 + $0x2fb0] sm:$0xff]
        %v1927 = vld [vmem:[%s238 + $0x2fb8] sm:$0xff]
        %v1928 = vld [vmem:[%s238 + $0x2fc0] sm:$0xff]
        %v1929 = vld [vmem:[%s238 + $0x2fc8] sm:$0xff]
        %v1930 = vld [vmem:[%s238 + $0x2fd0] sm:$0xff]
        %v1931 = vld [vmem:[%s238 + $0x2fd8] sm:$0xff]
        %v1932 = vld [vmem:[%s238 + $0x2fe0] sm:$0xff]
        %v1933 = vld [vmem:[%s238 + $0x2fe8] sm:$0xff]
        %v1934 = vld [vmem:[%s238 + $0x2ff0] sm:$0xff]
        %v1935 = vld [vmem:[%s238 + $0x2ff8] sm:$0xff]
        %v1936 = vld [vmem:[%s238 + $0x3000] sm:$0xff]
        %v1937 = vld [vmem:[%s238 + $0x3008] sm:$0xff]
        %v1938 = vld [vmem:[%s238 + $0x3010] sm:$0xff]
        %v1939 = vld [vmem:[%s238 + $0x3018] sm:$0xff]
        %v1940 = vld [vmem:[%s238 + $0x3020] sm:$0xff]
        %v1941 = vld [vmem:[%s238 + $0x3028] sm:$0xff]
        %v1942 = vld [vmem:[%s238 + $0x3030] sm:$0xff]
        %v1943 = vld [vmem:[%s238 + $0x3038] sm:$0xff]
        %v1944 = vld [vmem:[%s238 + $0x3040] sm:$0xff]
        %v1945 = vld [vmem:[%s238 + $0x3048] sm:$0xff]
        %v1946 = vld [vmem:[%s238 + $0x3050] sm:$0xff]
        %v1947 = vld [vmem:[%s238 + $0x3058] sm:$0xff]
        %v1948 = vld [vmem:[%s238 + $0x3060] sm:$0xff]
        %v1949 = vld [vmem:[%s238 + $0x3068] sm:$0xff]
        %v1950 = vld [vmem:[%s238 + $0x3070] sm:$0xff]
        %v1951 = vld [vmem:[%s238 + $0x3078] sm:$0xff]
        %v1952 = vld [vmem:[%s238 + $0x3080] sm:$0xff]
        %v1953 = vld [vmem:[%s238 + $0x3088] sm:$0xff]
        %v1954 = vld [vmem:[%s238 + $0x3090] sm:$0xff]
        %v1955 = vld [vmem:[%s238 + $0x3098] sm:$0xff]
        %v1956 = vld [vmem:[%s238 + $0x30a0] sm:$0xff]
        %v1957 = vld [vmem:[%s238 + $0x30a8] sm:$0xff]
        %v1958 = vld [vmem:[%s238 + $0x30b0] sm:$0xff]
        %v1959 = vld [vmem:[%s238 + $0x30b8] sm:$0xff]
        %v1960 = vld [vmem:[%s238 + $0x30c0] sm:$0xff]
        %v1961 = vld [vmem:[%s238 + $0x30c8] sm:$0xff]
        %v1962 = vld [vmem:[%s238 + $0x30d0] sm:$0xff]
        %v1963 = vld [vmem:[%s238 + $0x30d8] sm:$0xff]
        %v1964 = vld [vmem:[%s238 + $0x30e0] sm:$0xff]
        %v1965 = vld [vmem:[%s238 + $0x30e8] sm:$0xff]
        %v1966 = vld [vmem:[%s238 + $0x30f0] sm:$0xff]
        %v1967 = vld [vmem:[%s238 + $0x30f8] sm:$0xff]
        %v1968 = vld [vmem:[%s248] sm:$0xf]
        %v1970 = vperm.slane %v1968, 0
        %v1971 = vperm.slane %v1968, 1
        %v1972 = vperm.slane %v1968, 2
        %v1973 = vperm.slane %v1968, 3
        %v3546 = vunpack.c.l.b16 %v400
        %v3547 = vunpack.c.h.b16 %v400
        %v3548 = vunpack.c.l.b16 %v401
        %v3549 = vunpack.c.h.b16 %v401
        %v3550 = vunpack.c.l.b16 %v402
        %v3551 = vunpack.c.h.b16 %v402
        %v3552 = vunpack.c.l.b16 %v403
        %v3553 = vunpack.c.h.b16 %v403
        %v3554 = vunpack.c.l.b16 %v404
        %v3555 = vunpack.c.h.b16 %v404
        %v3556 = vunpack.c.l.b16 %v405
        %v3557 = vunpack.c.h.b16 %v405
        %v3558 = vunpack.c.l.b16 %v406
        %v3559 = vunpack.c.h.b16 %v406
        %v3560 = vunpack.c.l.b16 %v407
        %v3561 = vunpack.c.h.b16 %v407
        %v3562 = vunpack.c.l.b16 %v408
        %v3563 = vunpack.c.h.b16 %v408
        %v3564 = vunpack.c.l.b16 %v409
        %v3565 = vunpack.c.h.b16 %v409
        %v3566 = vunpack.c.l.b16 %v410
        %v3567 = vunpack.c.h.b16 %v410
        %v3568 = vunpack.c.l.b16 %v411
        %v3569 = vunpack.c.h.b16 %v411
        %v3570 = vunpack.c.l.b16 %v412
        %v3571 = vunpack.c.h.b16 %v412
        %v3572 = vunpack.c.l.b16 %v413
        %v3573 = vunpack.c.h.b16 %v413
        %v3574 = vunpack.c.l.b16 %v414
        %v3575 = vunpack.c.h.b16 %v414
        %v3576 = vunpack.c.l.b16 %v415
        %v3577 = vunpack.c.h.b16 %v415
        %v3578 = vunpack.c.l.b16 %v416
        %v3579 = vunpack.c.h.b16 %v416
        %v3580 = vunpack.c.l.b16 %v417
        %v3581 = vunpack.c.h.b16 %v417
        %v3582 = vunpack.c.l.b16 %v418
        %v3583 = vunpack.c.h.b16 %v418
        %v3584 = vunpack.c.l.b16 %v419
        %v3585 = vunpack.c.h.b16 %v419
        %v3586 = vunpack.c.l.b16 %v420
        %v3587 = vunpack.c.h.b16 %v420
        %v3588 = vunpack.c.l.b16 %v421
        %v3589 = vunpack.c.h.b16 %v421
        %v3590 = vunpack.c.l.b16 %v422
        %v3591 = vunpack.c.h.b16 %v422
        %v3592 = vunpack.c.l.b16 %v423
        %v3593 = vunpack.c.h.b16 %v423
        %v3594 = vunpack.c.l.b16 %v424
        %v3595 = vunpack.c.h.b16 %v424
        %v3596 = vunpack.c.l.b16 %v425
        %v3597 = vunpack.c.h.b16 %v425
        %v3598 = vunpack.c.l.b16 %v426
        %v3599 = vunpack.c.h.b16 %v426
        %v3600 = vunpack.c.l.b16 %v427
        %v3601 = vunpack.c.h.b16 %v427
        %v3602 = vunpack.c.l.b16 %v428
        %v3603 = vunpack.c.h.b16 %v428
        %v3604 = vunpack.c.l.b16 %v429
        %v3605 = vunpack.c.h.b16 %v429
        %v3606 = vunpack.c.l.b16 %v430
        %v3607 = vunpack.c.h.b16 %v430
        %v3608 = vunpack.c.l.b16 %v431
        %v3609 = vunpack.c.h.b16 %v431
        %v3610 = vunpack.c.l.b16 %v432
        %v3611 = vunpack.c.h.b16 %v432
        %v3612 = vunpack.c.l.b16 %v433
        %v3613 = vunpack.c.h.b16 %v433
        %v3614 = vunpack.c.l.b16 %v434
        %v3615 = vunpack.c.h.b16 %v434
        %v3616 = vunpack.c.l.b16 %v435
        %v3617 = vunpack.c.h.b16 %v435
        %v3618 = vunpack.c.l.b16 %v436
        %v3619 = vunpack.c.h.b16 %v436
        %v3620 = vunpack.c.l.b16 %v437
        %v3621 = vunpack.c.h.b16 %v437
        %v3622 = vunpack.c.l.b16 %v438
        %v3623 = vunpack.c.h.b16 %v438
        %v3624 = vunpack.c.l.b16 %v439
        %v3625 = vunpack.c.h.b16 %v439
        %v3626 = vunpack.c.l.b16 %v440
        %v3627 = vunpack.c.h.b16 %v440
        %v3628 = vunpack.c.l.b16 %v441
        %v3629 = vunpack.c.h.b16 %v441
        %v3630 = vunpack.c.l.b16 %v442
        %v3631 = vunpack.c.h.b16 %v442
        %v3632 = vunpack.c.l.b16 %v443
        %v3633 = vunpack.c.h.b16 %v443
        %v3634 = vunpack.c.l.b16 %v444
        %v3635 = vunpack.c.h.b16 %v444
        %v3636 = vunpack.c.l.b16 %v445
        %v3637 = vunpack.c.h.b16 %v445
        %v3638 = vunpack.c.l.b16 %v446
        %v3639 = vunpack.c.h.b16 %v446
        %v3640 = vunpack.c.l.b16 %v447
        %v3641 = vunpack.c.h.b16 %v447
        %v3642 = vunpack.c.l.b16 %v448
        %v3643 = vunpack.c.h.b16 %v448
        %v3644 = vunpack.c.l.b16 %v449
        %v3645 = vunpack.c.h.b16 %v449
        %v3646 = vunpack.c.l.b16 %v450
        %v3647 = vunpack.c.h.b16 %v450
        %v3648 = vunpack.c.l.b16 %v451
        %v3649 = vunpack.c.h.b16 %v451
        %v3650 = vunpack.c.l.b16 %v452
        %v3651 = vunpack.c.h.b16 %v452
        %v3652 = vunpack.c.l.b16 %v453
        %v3653 = vunpack.c.h.b16 %v453
        %v3654 = vunpack.c.l.b16 %v454
        %v3655 = vunpack.c.h.b16 %v454
        %v3656 = vunpack.c.l.b16 %v455
        %v3657 = vunpack.c.h.b16 %v455
        %v3658 = vunpack.c.l.b16 %v456
        %v3659 = vunpack.c.h.b16 %v456
        %v3660 = vunpack.c.l.b16 %v457
        %v3661 = vunpack.c.h.b16 %v457
        %v3662 = vunpack.c.l.b16 %v458
        %v3663 = vunpack.c.h.b16 %v458
        %v3664 = vunpack.c.l.b16 %v459
        %v3665 = vunpack.c.h.b16 %v459
        %v3666 = vunpack.c.l.b16 %v460
        %v3667 = vunpack.c.h.b16 %v460
        %v3668 = vunpack.c.l.b16 %v461
        %v3669 = vunpack.c.h.b16 %v461
        %v3670 = vunpack.c.l.b16 %v462
        %v3671 = vunpack.c.h.b16 %v462
        %v3672 = vunpack.c.l.b16 %v463
        %v3673 = vunpack.c.h.b16 %v463
        %v3674 = vunpack.c.l.b16 %v464
        %v3675 = vunpack.c.h.b16 %v464
        %v3676 = vunpack.c.l.b16 %v465
        %v3677 = vunpack.c.h.b16 %v465
        %v3678 = vunpack.c.l.b16 %v466
        %v3679 = vunpack.c.h.b16 %v466
        %v3680 = vunpack.c.l.b16 %v467
        %v3681 = vunpack.c.h.b16 %v467
        %v3682 = vunpack.c.l.b16 %v468
        %v3683 = vunpack.c.h.b16 %v468
        %v3684 = vunpack.c.l.b16 %v469
        %v3685 = vunpack.c.h.b16 %v469
        %v3686 = vunpack.c.l.b16 %v470
        %v3687 = vunpack.c.h.b16 %v470
        %v3688 = vunpack.c.l.b16 %v471
        %v3689 = vunpack.c.h.b16 %v471
        %v3690 = vunpack.c.l.b16 %v472
        %v3691 = vunpack.c.h.b16 %v472
        %v3692 = vunpack.c.l.b16 %v473
        %v3693 = vunpack.c.h.b16 %v473
        %v3694 = vunpack.c.l.b16 %v474
        %v3695 = vunpack.c.h.b16 %v474
        %v3696 = vunpack.c.l.b16 %v475
        %v3697 = vunpack.c.h.b16 %v475
        %v3698 = vunpack.c.l.b16 %v476
        %v3699 = vunpack.c.h.b16 %v476
        %v3700 = vunpack.c.l.b16 %v477
        %v3701 = vunpack.c.h.b16 %v477
        %v3702 = vunpack.c.l.b16 %v478
        %v3703 = vunpack.c.h.b16 %v478
        %v3704 = vunpack.c.l.b16 %v479
        %v3705 = vunpack.c.h.b16 %v479
        %v3706 = vunpack.c.l.b16 %v480
        %v3707 = vunpack.c.h.b16 %v480
        %v3708 = vunpack.c.l.b16 %v481
        %v3709 = vunpack.c.h.b16 %v481
        %v3710 = vunpack.c.l.b16 %v482
        %v3711 = vunpack.c.h.b16 %v482
        %v3712 = vunpack.c.l.b16 %v483
        %v3713 = vunpack.c.h.b16 %v483
        %v3714 = vunpack.c.l.b16 %v484
        %v3715 = vunpack.c.h.b16 %v484
        %v3716 = vunpack.c.l.b16 %v485
        %v3717 = vunpack.c.h.b16 %v485
        %v3718 = vunpack.c.l.b16 %v486
        %v3719 = vunpack.c.h.b16 %v486
        %v3720 = vunpack.c.l.b16 %v487
        %v3721 = vunpack.c.h.b16 %v487
        %v3722 = vunpack.c.l.b16 %v488
        %v3723 = vunpack.c.h.b16 %v488
        %v3724 = vunpack.c.l.b16 %v489
        %v3725 = vunpack.c.h.b16 %v489
        %v3726 = vunpack.c.l.b16 %v490
        %v3727 = vunpack.c.h.b16 %v490
        %v3728 = vunpack.c.l.b16 %v491
        %v3729 = vunpack.c.h.b16 %v491
        %v3730 = vunpack.c.l.b16 %v492
        %v3731 = vunpack.c.h.b16 %v492
        %v3732 = vunpack.c.l.b16 %v493
        %v3733 = vunpack.c.h.b16 %v493
        %v3734 = vunpack.c.l.b16 %v494
        %v3735 = vunpack.c.h.b16 %v494
        %v3736 = vunpack.c.l.b16 %v495
        %v3737 = vunpack.c.h.b16 %v495
        %v3738 = vunpack.c.l.b16 %v496
        %v3739 = vunpack.c.h.b16 %v496
        %v3740 = vunpack.c.l.b16 %v497
        %v3741 = vunpack.c.h.b16 %v497
        %v3742 = vunpack.c.l.b16 %v498
        %v3743 = vunpack.c.h.b16 %v498
        %v3744 = vunpack.c.l.b16 %v499
        %v3745 = vunpack.c.h.b16 %v499
        %v3746 = vunpack.c.l.b16 %v500
        %v3747 = vunpack.c.h.b16 %v500
        %v3748 = vunpack.c.l.b16 %v501
        %v3749 = vunpack.c.h.b16 %v501
        %v3750 = vunpack.c.l.b16 %v502
        %v3751 = vunpack.c.h.b16 %v502
        %v3752 = vunpack.c.l.b16 %v503
        %v3753 = vunpack.c.h.b16 %v503
        %v3754 = vunpack.c.l.b16 %v504
        %v3755 = vunpack.c.h.b16 %v504
        %v3756 = vunpack.c.l.b16 %v505
        %v3757 = vunpack.c.h.b16 %v505
        %v3758 = vunpack.c.l.b16 %v506
        %v3759 = vunpack.c.h.b16 %v506
        %v3760 = vunpack.c.l.b16 %v507
        %v3761 = vunpack.c.h.b16 %v507
        %v3762 = vunpack.c.l.b16 %v508
        %v3763 = vunpack.c.h.b16 %v508
        %v3764 = vunpack.c.l.b16 %v509
        %v3765 = vunpack.c.h.b16 %v509
        %v3766 = vunpack.c.l.b16 %v510
        %v3767 = vunpack.c.h.b16 %v510
        %v3768 = vunpack.c.l.b16 %v511
        %v3769 = vunpack.c.h.b16 %v511
        %v3770 = vunpack.c.l.b16 %v512
        %v3771 = vunpack.c.h.b16 %v512
        %v3772 = vunpack.c.l.b16 %v513
        %v3773 = vunpack.c.h.b16 %v513
        %v3774 = vunpack.c.l.b16 %v514
        %v3775 = vunpack.c.h.b16 %v514
        %v3776 = vunpack.c.l.b16 %v515
        %v3777 = vunpack.c.h.b16 %v515
        %v3778 = vunpack.c.l.b16 %v516
        %v3779 = vunpack.c.h.b16 %v516
        %v3780 = vunpack.c.l.b16 %v517
        %v3781 = vunpack.c.h.b16 %v517
        %v3782 = vunpack.c.l.b16 %v518
        %v3783 = vunpack.c.h.b16 %v518
        %v3784 = vunpack.c.l.b16 %v519
        %v3785 = vunpack.c.h.b16 %v519
        %v3786 = vunpack.c.l.b16 %v520
        %v3787 = vunpack.c.h.b16 %v520
        %v3788 = vunpack.c.l.b16 %v521
        %v3789 = vunpack.c.h.b16 %v521
        %v3790 = vunpack.c.l.b16 %v522
        %v3791 = vunpack.c.h.b16 %v522
        %v3792 = vunpack.c.l.b16 %v523
        %v3793 = vunpack.c.h.b16 %v523
        %v3794 = vunpack.c.l.b16 %v524
        %v3795 = vunpack.c.h.b16 %v524
        %v3796 = vunpack.c.l.b16 %v525
        %v3797 = vunpack.c.h.b16 %v525
        %v3798 = vunpack.c.l.b16 %v526
        %v3799 = vunpack.c.h.b16 %v526
        %v3800 = vunpack.c.l.b16 %v527
        %v3801 = vunpack.c.h.b16 %v527
        %v3802 = vunpack.c.l.b16 %v528
        %v3803 = vunpack.c.h.b16 %v528
        %v3804 = vunpack.c.l.b16 %v529
        %v3805 = vunpack.c.h.b16 %v529
        %v3806 = vunpack.c.l.b16 %v530
        %v3807 = vunpack.c.h.b16 %v530
        %v3808 = vunpack.c.l.b16 %v531
        %v3809 = vunpack.c.h.b16 %v531
        %v3810 = vunpack.c.l.b16 %v532
        %v3811 = vunpack.c.h.b16 %v532
        %v3812 = vunpack.c.l.b16 %v533
        %v3813 = vunpack.c.h.b16 %v533
        %v3814 = vunpack.c.l.b16 %v534
        %v3815 = vunpack.c.h.b16 %v534
        %v3816 = vunpack.c.l.b16 %v535
        %v3817 = vunpack.c.h.b16 %v535
        %v3818 = vunpack.c.l.b16 %v536
        %v3819 = vunpack.c.h.b16 %v536
        %v3820 = vunpack.c.l.b16 %v537
        %v3821 = vunpack.c.h.b16 %v537
        %v3822 = vunpack.c.l.b16 %v538
        %v3823 = vunpack.c.h.b16 %v538
        %v3824 = vunpack.c.l.b16 %v539
        %v3825 = vunpack.c.h.b16 %v539
        %v3826 = vunpack.c.l.b16 %v540
        %v3827 = vunpack.c.h.b16 %v540
        %v3828 = vunpack.c.l.b16 %v541
        %v3829 = vunpack.c.h.b16 %v541
        %v3830 = vunpack.c.l.b16 %v542
        %v3831 = vunpack.c.h.b16 %v542
        %v3832 = vunpack.c.l.b16 %v543
        %v3833 = vunpack.c.h.b16 %v543
        %v3834 = vunpack.c.l.b16 %v544
        %v3835 = vunpack.c.h.b16 %v544
        %v3836 = vunpack.c.l.b16 %v545
        %v3837 = vunpack.c.h.b16 %v545
        %v3838 = vunpack.c.l.b16 %v546
        %v3839 = vunpack.c.h.b16 %v546
        %v3840 = vunpack.c.l.b16 %v547
        %v3841 = vunpack.c.h.b16 %v547
        %v3842 = vunpack.c.l.b16 %v548
        %v3843 = vunpack.c.h.b16 %v548
        %v3844 = vunpack.c.l.b16 %v549
        %v3845 = vunpack.c.h.b16 %v549
        %v3846 = vunpack.c.l.b16 %v550
        %v3847 = vunpack.c.h.b16 %v550
        %v3848 = vunpack.c.l.b16 %v551
        %v3849 = vunpack.c.h.b16 %v551
        %v3850 = vunpack.c.l.b16 %v552
        %v3851 = vunpack.c.h.b16 %v552
        %v3852 = vunpack.c.l.b16 %v553
        %v3853 = vunpack.c.h.b16 %v553
        %v3854 = vunpack.c.l.b16 %v554
        %v3855 = vunpack.c.h.b16 %v554
        %v3856 = vunpack.c.l.b16 %v555
        %v3857 = vunpack.c.h.b16 %v555
        %v3858 = vunpack.c.l.b16 %v556
        %v3859 = vunpack.c.h.b16 %v556
        %v3860 = vunpack.c.l.b16 %v557
        %v3861 = vunpack.c.h.b16 %v557
        %v3862 = vunpack.c.l.b16 %v558
        %v3863 = vunpack.c.h.b16 %v558
        %v3864 = vunpack.c.l.b16 %v559
        %v3865 = vunpack.c.h.b16 %v559
        %v3866 = vunpack.c.l.b16 %v560
        %v3867 = vunpack.c.h.b16 %v560
        %v3868 = vunpack.c.l.b16 %v561
        %v3869 = vunpack.c.h.b16 %v561
        %v3870 = vunpack.c.l.b16 %v562
        %v3871 = vunpack.c.h.b16 %v562
        %v3872 = vunpack.c.l.b16 %v563
        %v3873 = vunpack.c.h.b16 %v563
        %v3874 = vunpack.c.l.b16 %v564
        %v3875 = vunpack.c.h.b16 %v564
        %v3876 = vunpack.c.l.b16 %v565
        %v3877 = vunpack.c.h.b16 %v565
        %v3878 = vunpack.c.l.b16 %v566
        %v3879 = vunpack.c.h.b16 %v566
        %v3880 = vunpack.c.l.b16 %v567
        %v3881 = vunpack.c.h.b16 %v567
        %v3882 = vunpack.c.l.b16 %v568
        %v3883 = vunpack.c.h.b16 %v568
        %v3884 = vunpack.c.l.b16 %v569
        %v3885 = vunpack.c.h.b16 %v569
        %v3886 = vunpack.c.l.b16 %v570
        %v3887 = vunpack.c.h.b16 %v570
        %v3888 = vunpack.c.l.b16 %v571
        %v3889 = vunpack.c.h.b16 %v571
        %v3890 = vunpack.c.l.b16 %v572
        %v3891 = vunpack.c.h.b16 %v572
        %v3892 = vunpack.c.l.b16 %v573
        %v3893 = vunpack.c.h.b16 %v573
        %v3894 = vunpack.c.l.b16 %v574
        %v3895 = vunpack.c.h.b16 %v574
        %v3896 = vunpack.c.l.b16 %v575
        %v3897 = vunpack.c.h.b16 %v575
        %v3898 = vunpack.c.l.b16 %v576
        %v3899 = vunpack.c.h.b16 %v576
        %v3900 = vunpack.c.l.b16 %v577
        %v3901 = vunpack.c.h.b16 %v577
        %v3902 = vunpack.c.l.b16 %v578
        %v3903 = vunpack.c.h.b16 %v578
        %v3904 = vunpack.c.l.b16 %v579
        %v3905 = vunpack.c.h.b16 %v579
        %v3906 = vunpack.c.l.b16 %v580
        %v3907 = vunpack.c.h.b16 %v580
        %v3908 = vunpack.c.l.b16 %v581
        %v3909 = vunpack.c.h.b16 %v581
        %v3910 = vunpack.c.l.b16 %v582
        %v3911 = vunpack.c.h.b16 %v582
        %v3912 = vunpack.c.l.b16 %v583
        %v3913 = vunpack.c.h.b16 %v583
        %v3914 = vunpack.c.l.b16 %v584
        %v3915 = vunpack.c.h.b16 %v584
        %v3916 = vunpack.c.l.b16 %v585
        %v3917 = vunpack.c.h.b16 %v585
        %v3918 = vunpack.c.l.b16 %v586
        %v3919 = vunpack.c.h.b16 %v586
        %v3920 = vunpack.c.l.b16 %v587
        %v3921 = vunpack.c.h.b16 %v587
        %v3922 = vunpack.c.l.b16 %v588
        %v3923 = vunpack.c.h.b16 %v588
        %v3924 = vunpack.c.l.b16 %v589
        %v3925 = vunpack.c.h.b16 %v589
        %v3926 = vunpack.c.l.b16 %v590
        %v3927 = vunpack.c.h.b16 %v590
        %v3928 = vunpack.c.l.b16 %v591
        %v3929 = vunpack.c.h.b16 %v591
        %v3930 = vunpack.c.l.b16 %v592
        %v3931 = vunpack.c.h.b16 %v592
        %v3932 = vunpack.c.l.b16 %v593
        %v3933 = vunpack.c.h.b16 %v593
        %v3934 = vunpack.c.l.b16 %v594
        %v3935 = vunpack.c.h.b16 %v594
        %v3936 = vunpack.c.l.b16 %v595
        %v3937 = vunpack.c.h.b16 %v595
        %v3938 = vunpack.c.l.b16 %v596
        %v3939 = vunpack.c.h.b16 %v596
        %v3940 = vunpack.c.l.b16 %v597
        %v3941 = vunpack.c.h.b16 %v597
        %v3942 = vunpack.c.l.b16 %v598
        %v3943 = vunpack.c.h.b16 %v598
        %v3944 = vunpack.c.l.b16 %v599
        %v3945 = vunpack.c.h.b16 %v599
        %v3946 = vunpack.c.l.b16 %v600
        %v3947 = vunpack.c.h.b16 %v600
        %v3948 = vunpack.c.l.b16 %v601
        %v3949 = vunpack.c.h.b16 %v601
        %v3950 = vunpack.c.l.b16 %v602
        %v3951 = vunpack.c.h.b16 %v602
        %v3952 = vunpack.c.l.b16 %v603
        %v3953 = vunpack.c.h.b16 %v603
        %v3954 = vunpack.c.l.b16 %v604
        %v3955 = vunpack.c.h.b16 %v604
        %v3956 = vunpack.c.l.b16 %v605
        %v3957 = vunpack.c.h.b16 %v605
        %v3958 = vunpack.c.l.b16 %v606
        %v3959 = vunpack.c.h.b16 %v606
        %v3960 = vunpack.c.l.b16 %v607
        %v3961 = vunpack.c.h.b16 %v607
        %v3962 = vunpack.c.l.b16 %v608
        %v3963 = vunpack.c.h.b16 %v608
        %v3964 = vunpack.c.l.b16 %v609
        %v3965 = vunpack.c.h.b16 %v609
        %v3966 = vunpack.c.l.b16 %v610
        %v3967 = vunpack.c.h.b16 %v610
        %v3968 = vunpack.c.l.b16 %v611
        %v3969 = vunpack.c.h.b16 %v611
        %v3970 = vunpack.c.l.b16 %v612
        %v3971 = vunpack.c.h.b16 %v612
        %v3972 = vunpack.c.l.b16 %v613
        %v3973 = vunpack.c.h.b16 %v613
        %v3974 = vunpack.c.l.b16 %v614
        %v3975 = vunpack.c.h.b16 %v614
        %v3976 = vunpack.c.l.b16 %v615
        %v3977 = vunpack.c.h.b16 %v615
        %v3978 = vunpack.c.l.b16 %v616
        %v3979 = vunpack.c.h.b16 %v616
        %v3980 = vunpack.c.l.b16 %v617
        %v3981 = vunpack.c.h.b16 %v617
        %v3982 = vunpack.c.l.b16 %v618
        %v3983 = vunpack.c.h.b16 %v618
        %v3984 = vunpack.c.l.b16 %v619
        %v3985 = vunpack.c.h.b16 %v619
        %v3986 = vunpack.c.l.b16 %v620
        %v3987 = vunpack.c.h.b16 %v620
        %v3988 = vunpack.c.l.b16 %v621
        %v3989 = vunpack.c.h.b16 %v621
        %v3990 = vunpack.c.l.b16 %v622
        %v3991 = vunpack.c.h.b16 %v622
        %v3992 = vunpack.c.l.b16 %v623
        %v3993 = vunpack.c.h.b16 %v623
        %v3994 = vunpack.c.l.b16 %v624
        %v3995 = vunpack.c.h.b16 %v624
        %v3996 = vunpack.c.l.b16 %v625
        %v3997 = vunpack.c.h.b16 %v625
        %v3998 = vunpack.c.l.b16 %v626
        %v3999 = vunpack.c.h.b16 %v626
        %v4000 = vunpack.c.l.b16 %v627
        %v4001 = vunpack.c.h.b16 %v627
        %v4002 = vunpack.c.l.b16 %v628
        %v4003 = vunpack.c.h.b16 %v628
        %v4004 = vunpack.c.l.b16 %v629
        %v4005 = vunpack.c.h.b16 %v629
        %v4006 = vunpack.c.l.b16 %v630
        %v4007 = vunpack.c.h.b16 %v630
        %v4008 = vunpack.c.l.b16 %v631
        %v4009 = vunpack.c.h.b16 %v631
        %v4010 = vunpack.c.l.b16 %v632
        %v4011 = vunpack.c.h.b16 %v632
        %v4012 = vunpack.c.l.b16 %v633
        %v4013 = vunpack.c.h.b16 %v633
        %v4014 = vunpack.c.l.b16 %v634
        %v4015 = vunpack.c.h.b16 %v634
        %v4016 = vunpack.c.l.b16 %v635
        %v4017 = vunpack.c.h.b16 %v635
        %v4018 = vunpack.c.l.b16 %v636
        %v4019 = vunpack.c.h.b16 %v636
        %v4020 = vunpack.c.l.b16 %v637
        %v4021 = vunpack.c.h.b16 %v637
        %v4022 = vunpack.c.l.b16 %v638
        %v4023 = vunpack.c.h.b16 %v638
        %v4024 = vunpack.c.l.b16 %v639
        %v4025 = vunpack.c.h.b16 %v639
        %v4026 = vunpack.c.l.b16 %v640
        %v4027 = vunpack.c.h.b16 %v640
        %v4028 = vunpack.c.l.b16 %v641
        %v4029 = vunpack.c.h.b16 %v641
        %v4030 = vunpack.c.l.b16 %v642
        %v4031 = vunpack.c.h.b16 %v642
        %v4032 = vunpack.c.l.b16 %v643
        %v4033 = vunpack.c.h.b16 %v643
        %v4034 = vunpack.c.l.b16 %v644
        %v4035 = vunpack.c.h.b16 %v644
        %v4036 = vunpack.c.l.b16 %v645
        %v4037 = vunpack.c.h.b16 %v645
        %v4038 = vunpack.c.l.b16 %v646
        %v4039 = vunpack.c.h.b16 %v646
        %v4040 = vunpack.c.l.b16 %v647
        %v4041 = vunpack.c.h.b16 %v647
        %v4042 = vunpack.c.l.b16 %v648
        %v4043 = vunpack.c.h.b16 %v648
        %v4044 = vunpack.c.l.b16 %v649
        %v4045 = vunpack.c.h.b16 %v649
        %v4046 = vunpack.c.l.b16 %v650
        %v4047 = vunpack.c.h.b16 %v650
        %v4048 = vunpack.c.l.b16 %v651
        %v4049 = vunpack.c.h.b16 %v651
        %v4050 = vunpack.c.l.b16 %v652
        %v4051 = vunpack.c.h.b16 %v652
        %v4052 = vunpack.c.l.b16 %v653
        %v4053 = vunpack.c.h.b16 %v653
        %v4054 = vunpack.c.l.b16 %v654
        %v4055 = vunpack.c.h.b16 %v654
        %v4056 = vunpack.c.l.b16 %v655
        %v4057 = vunpack.c.h.b16 %v655
        %v4058 = vunpack.c.l.b16 %v656
        %v4059 = vunpack.c.h.b16 %v656
        %v4060 = vunpack.c.l.b16 %v657
        %v4061 = vunpack.c.h.b16 %v657
        %v4062 = vunpack.c.l.b16 %v658
        %v4063 = vunpack.c.h.b16 %v658
        %v4064 = vunpack.c.l.b16 %v659
        %v4065 = vunpack.c.h.b16 %v659
        %v4066 = vunpack.c.l.b16 %v660
        %v4067 = vunpack.c.h.b16 %v660
        %v4068 = vunpack.c.l.b16 %v661
        %v4069 = vunpack.c.h.b16 %v661
        %v4070 = vunpack.c.l.b16 %v662
        %v4071 = vunpack.c.h.b16 %v662
        %v4072 = vunpack.c.l.b16 %v663
        %v4073 = vunpack.c.h.b16 %v663
        %v4074 = vunpack.c.l.b16 %v664
        %v4075 = vunpack.c.h.b16 %v664
        %v4076 = vunpack.c.l.b16 %v665
        %v4077 = vunpack.c.h.b16 %v665
        %v4078 = vunpack.c.l.b16 %v666
        %v4079 = vunpack.c.h.b16 %v666
        %v4080 = vunpack.c.l.b16 %v667
        %v4081 = vunpack.c.h.b16 %v667
        %v4082 = vunpack.c.l.b16 %v668
        %v4083 = vunpack.c.h.b16 %v668
        %v4084 = vunpack.c.l.b16 %v669
        %v4085 = vunpack.c.h.b16 %v669
        %v4086 = vunpack.c.l.b16 %v670
        %v4087 = vunpack.c.h.b16 %v670
        %v4088 = vunpack.c.l.b16 %v671
        %v4089 = vunpack.c.h.b16 %v671
        %v4090 = vunpack.c.l.b16 %v672
        %v4091 = vunpack.c.h.b16 %v672
        %v4092 = vunpack.c.l.b16 %v673
        %v4093 = vunpack.c.h.b16 %v673
        %v4094 = vunpack.c.l.b16 %v674
        %v4095 = vunpack.c.h.b16 %v674
        %v4096 = vunpack.c.l.b16 %v675
        %v4097 = vunpack.c.h.b16 %v675
        %v4098 = vunpack.c.l.b16 %v676
        %v4099 = vunpack.c.h.b16 %v676
        %v4100 = vunpack.c.l.b16 %v677
        %v4101 = vunpack.c.h.b16 %v677
        %v4102 = vunpack.c.l.b16 %v678
        %v4103 = vunpack.c.h.b16 %v678
        %v4104 = vunpack.c.l.b16 %v679
        %v4105 = vunpack.c.h.b16 %v679
        %v4106 = vunpack.c.l.b16 %v680
        %v4107 = vunpack.c.h.b16 %v680
        %v4108 = vunpack.c.l.b16 %v681
        %v4109 = vunpack.c.h.b16 %v681
        %v4110 = vunpack.c.l.b16 %v682
        %v4111 = vunpack.c.h.b16 %v682
        %v4112 = vunpack.c.l.b16 %v683
        %v4113 = vunpack.c.h.b16 %v683
        %v4114 = vunpack.c.l.b16 %v684
        %v4115 = vunpack.c.h.b16 %v684
        %v4116 = vunpack.c.l.b16 %v685
        %v4117 = vunpack.c.h.b16 %v685
        %v4118 = vunpack.c.l.b16 %v686
        %v4119 = vunpack.c.h.b16 %v686
        %v4120 = vunpack.c.l.b16 %v687
        %v4121 = vunpack.c.h.b16 %v687
        %v4122 = vunpack.c.l.b16 %v688
        %v4123 = vunpack.c.h.b16 %v688
        %v4124 = vunpack.c.l.b16 %v689
        %v4125 = vunpack.c.h.b16 %v689
        %v4126 = vunpack.c.l.b16 %v690
        %v4127 = vunpack.c.h.b16 %v690
        %v4128 = vunpack.c.l.b16 %v691
        %v4129 = vunpack.c.h.b16 %v691
        %v4130 = vunpack.c.l.b16 %v692
        %v4131 = vunpack.c.h.b16 %v692
        %v4132 = vunpack.c.l.b16 %v693
        %v4133 = vunpack.c.h.b16 %v693
        %v4134 = vunpack.c.l.b16 %v694
        %v4135 = vunpack.c.h.b16 %v694
        %v4136 = vunpack.c.l.b16 %v695
        %v4137 = vunpack.c.h.b16 %v695
        %v4138 = vunpack.c.l.b16 %v696
        %v4139 = vunpack.c.h.b16 %v696
        %v4140 = vunpack.c.l.b16 %v697
        %v4141 = vunpack.c.h.b16 %v697
        %v4142 = vunpack.c.l.b16 %v698
        %v4143 = vunpack.c.h.b16 %v698
        %v4144 = vunpack.c.l.b16 %v699
        %v4145 = vunpack.c.h.b16 %v699
        %v4146 = vunpack.c.l.b16 %v700
        %v4147 = vunpack.c.h.b16 %v700
        %v4148 = vunpack.c.l.b16 %v701
        %v4149 = vunpack.c.h.b16 %v701
        %v4150 = vunpack.c.l.b16 %v702
        %v4151 = vunpack.c.h.b16 %v702
        %v4152 = vunpack.c.l.b16 %v703
        %v4153 = vunpack.c.h.b16 %v703
        %v4154 = vunpack.c.l.b16 %v704
        %v4155 = vunpack.c.h.b16 %v704
        %v4156 = vunpack.c.l.b16 %v705
        %v4157 = vunpack.c.h.b16 %v705
        %v4158 = vunpack.c.l.b16 %v706
        %v4159 = vunpack.c.h.b16 %v706
        %v4160 = vunpack.c.l.b16 %v707
        %v4161 = vunpack.c.h.b16 %v707
        %v4162 = vunpack.c.l.b16 %v708
        %v4163 = vunpack.c.h.b16 %v708
        %v4164 = vunpack.c.l.b16 %v709
        %v4165 = vunpack.c.h.b16 %v709
        %v4166 = vunpack.c.l.b16 %v710
        %v4167 = vunpack.c.h.b16 %v710
        %v4168 = vunpack.c.l.b16 %v711
        %v4169 = vunpack.c.h.b16 %v711
        %v4170 = vunpack.c.l.b16 %v712
        %v4171 = vunpack.c.h.b16 %v712
        %v4172 = vunpack.c.l.b16 %v713
        %v4173 = vunpack.c.h.b16 %v713
        %v4174 = vunpack.c.l.b16 %v714
        %v4175 = vunpack.c.h.b16 %v714
        %v4176 = vunpack.c.l.b16 %v715
        %v4177 = vunpack.c.h.b16 %v715
        %v4178 = vunpack.c.l.b16 %v716
        %v4179 = vunpack.c.h.b16 %v716
        %v4180 = vunpack.c.l.b16 %v717
        %v4181 = vunpack.c.h.b16 %v717
        %v4182 = vunpack.c.l.b16 %v718
        %v4183 = vunpack.c.h.b16 %v718
        %v4184 = vunpack.c.l.b16 %v719
        %v4185 = vunpack.c.h.b16 %v719
        %v4186 = vunpack.c.l.b16 %v720
        %v4187 = vunpack.c.h.b16 %v720
        %v4188 = vunpack.c.l.b16 %v721
        %v4189 = vunpack.c.h.b16 %v721
        %v4190 = vunpack.c.l.b16 %v722
        %v4191 = vunpack.c.h.b16 %v722
        %v4192 = vunpack.c.l.b16 %v723
        %v4193 = vunpack.c.h.b16 %v723
        %v4194 = vunpack.c.l.b16 %v724
        %v4195 = vunpack.c.h.b16 %v724
        %v4196 = vunpack.c.l.b16 %v725
        %v4197 = vunpack.c.h.b16 %v725
        %v4198 = vunpack.c.l.b16 %v726
        %v4199 = vunpack.c.h.b16 %v726
        %v4200 = vunpack.c.l.b16 %v727
        %v4201 = vunpack.c.h.b16 %v727
        %v4202 = vunpack.c.l.b16 %v728
        %v4203 = vunpack.c.h.b16 %v728
        %v4204 = vunpack.c.l.b16 %v729
        %v4205 = vunpack.c.h.b16 %v729
        %v4206 = vunpack.c.l.b16 %v730
        %v4207 = vunpack.c.h.b16 %v730
        %v4208 = vunpack.c.l.b16 %v731
        %v4209 = vunpack.c.h.b16 %v731
        %v4210 = vunpack.c.l.b16 %v732
        %v4211 = vunpack.c.h.b16 %v732
        %v4212 = vunpack.c.l.b16 %v733
        %v4213 = vunpack.c.h.b16 %v733
        %v4214 = vunpack.c.l.b16 %v734
        %v4215 = vunpack.c.h.b16 %v734
        %v4216 = vunpack.c.l.b16 %v735
        %v4217 = vunpack.c.h.b16 %v735
        %v4218 = vunpack.c.l.b16 %v736
        %v4219 = vunpack.c.h.b16 %v736
        %v4220 = vunpack.c.l.b16 %v737
        %v4221 = vunpack.c.h.b16 %v737
        %v4222 = vunpack.c.l.b16 %v738
        %v4223 = vunpack.c.h.b16 %v738
        %v4224 = vunpack.c.l.b16 %v739
        %v4225 = vunpack.c.h.b16 %v739
        %v4226 = vunpack.c.l.b16 %v740
        %v4227 = vunpack.c.h.b16 %v740
        %v4228 = vunpack.c.l.b16 %v741
        %v4229 = vunpack.c.h.b16 %v741
        %v4230 = vunpack.c.l.b16 %v742
        %v4231 = vunpack.c.h.b16 %v742
        %v4232 = vunpack.c.l.b16 %v743
        %v4233 = vunpack.c.h.b16 %v743
        %v4234 = vunpack.c.l.b16 %v744
        %v4235 = vunpack.c.h.b16 %v744
        %v4236 = vunpack.c.l.b16 %v745
        %v4237 = vunpack.c.h.b16 %v745
        %v4238 = vunpack.c.l.b16 %v746
        %v4239 = vunpack.c.h.b16 %v746
        %v4240 = vunpack.c.l.b16 %v747
        %v4241 = vunpack.c.h.b16 %v747
        %v4242 = vunpack.c.l.b16 %v748
        %v4243 = vunpack.c.h.b16 %v748
        %v4244 = vunpack.c.l.b16 %v749
        %v4245 = vunpack.c.h.b16 %v749
        %v4246 = vunpack.c.l.b16 %v750
        %v4247 = vunpack.c.h.b16 %v750
        %v4248 = vunpack.c.l.b16 %v751
        %v4249 = vunpack.c.h.b16 %v751
        %v4250 = vunpack.c.l.b16 %v752
        %v4251 = vunpack.c.h.b16 %v752
        %v4252 = vunpack.c.l.b16 %v753
        %v4253 = vunpack.c.h.b16 %v753
        %v4254 = vunpack.c.l.b16 %v754
        %v4255 = vunpack.c.h.b16 %v754
        %v4256 = vunpack.c.l.b16 %v755
        %v4257 = vunpack.c.h.b16 %v755
        %v4258 = vunpack.c.l.b16 %v756
        %v4259 = vunpack.c.h.b16 %v756
        %v4260 = vunpack.c.l.b16 %v757
        %v4261 = vunpack.c.h.b16 %v757
        %v4262 = vunpack.c.l.b16 %v758
        %v4263 = vunpack.c.h.b16 %v758
        %v4264 = vunpack.c.l.b16 %v759
        %v4265 = vunpack.c.h.b16 %v759
        %v4266 = vunpack.c.l.b16 %v760
        %v4267 = vunpack.c.h.b16 %v760
        %v4268 = vunpack.c.l.b16 %v761
        %v4269 = vunpack.c.h.b16 %v761
        %v4270 = vunpack.c.l.b16 %v762
        %v4271 = vunpack.c.h.b16 %v762
        %v4272 = vunpack.c.l.b16 %v763
        %v4273 = vunpack.c.h.b16 %v763
        %v4274 = vunpack.c.l.b16 %v764
        %v4275 = vunpack.c.h.b16 %v764
        %v4276 = vunpack.c.l.b16 %v765
        %v4277 = vunpack.c.h.b16 %v765
        %v4278 = vunpack.c.l.b16 %v766
        %v4279 = vunpack.c.h.b16 %v766
        %v4280 = vunpack.c.l.b16 %v767
        %v4281 = vunpack.c.h.b16 %v767
        %v4282 = vunpack.c.l.b16 %v768
        %v4283 = vunpack.c.h.b16 %v768
        %v4284 = vunpack.c.l.b16 %v769
        %v4285 = vunpack.c.h.b16 %v769
        %v4286 = vunpack.c.l.b16 %v770
        %v4287 = vunpack.c.h.b16 %v770
        %v4288 = vunpack.c.l.b16 %v771
        %v4289 = vunpack.c.h.b16 %v771
        %v4290 = vunpack.c.l.b16 %v772
        %v4291 = vunpack.c.h.b16 %v772
        %v4292 = vunpack.c.l.b16 %v773
        %v4293 = vunpack.c.h.b16 %v773
        %v4294 = vunpack.c.l.b16 %v774
        %v4295 = vunpack.c.h.b16 %v774
        %v4296 = vunpack.c.l.b16 %v775
        %v4297 = vunpack.c.h.b16 %v775
        %v4298 = vunpack.c.l.b16 %v776
        %v4299 = vunpack.c.h.b16 %v776
        %v4300 = vunpack.c.l.b16 %v777
        %v4301 = vunpack.c.h.b16 %v777
        %v4302 = vunpack.c.l.b16 %v778
        %v4303 = vunpack.c.h.b16 %v778
        %v4304 = vunpack.c.l.b16 %v779
        %v4305 = vunpack.c.h.b16 %v779
        %v4306 = vunpack.c.l.b16 %v780
        %v4307 = vunpack.c.h.b16 %v780
        %v4308 = vunpack.c.l.b16 %v781
        %v4309 = vunpack.c.h.b16 %v781
        %v4310 = vunpack.c.l.b16 %v782
        %v4311 = vunpack.c.h.b16 %v782
        %v4312 = vunpack.c.l.b16 %v783
        %v4313 = vunpack.c.h.b16 %v783
        %v4314 = vunpack.c.l.b16 %v784
        %v4315 = vunpack.c.h.b16 %v784
        %v4316 = vunpack.c.l.b16 %v785
        %v4317 = vunpack.c.h.b16 %v785
        %v4318 = vunpack.c.l.b16 %v786
        %v4319 = vunpack.c.h.b16 %v786
        %v4320 = vunpack.c.l.b16 %v787
        %v4321 = vunpack.c.h.b16 %v787
        %v4322 = vunpack.c.l.b16 %v788
        %v4323 = vunpack.c.h.b16 %v788
        %v4324 = vunpack.c.l.b16 %v789
        %v4325 = vunpack.c.h.b16 %v789
        %v4326 = vunpack.c.l.b16 %v790
        %v4327 = vunpack.c.h.b16 %v790
        %v4328 = vunpack.c.l.b16 %v791
        %v4329 = vunpack.c.h.b16 %v791
        %v4330 = vunpack.c.l.b16 %v792
        %v4331 = vunpack.c.h.b16 %v792
        %v4332 = vunpack.c.l.b16 %v793
        %v4333 = vunpack.c.h.b16 %v793
        %v4334 = vunpack.c.l.b16 %v794
        %v4335 = vunpack.c.h.b16 %v794
        %v4336 = vunpack.c.l.b16 %v795
        %v4337 = vunpack.c.h.b16 %v795
        %v4338 = vunpack.c.l.b16 %v796
        %v4339 = vunpack.c.h.b16 %v796
        %v4340 = vunpack.c.l.b16 %v797
        %v4341 = vunpack.c.h.b16 %v797
        %v4342 = vunpack.c.l.b16 %v798
        %v4343 = vunpack.c.h.b16 %v798
        %v4344 = vunpack.c.l.b16 %v799
        %v4345 = vunpack.c.h.b16 %v799
        %v4346 = vunpack.c.l.b16 %v800
        %v4347 = vunpack.c.h.b16 %v800
        %v4348 = vunpack.c.l.b16 %v801
        %v4349 = vunpack.c.h.b16 %v801
        %v4350 = vunpack.c.l.b16 %v802
        %v4351 = vunpack.c.h.b16 %v802
        %v4352 = vunpack.c.l.b16 %v803
        %v4353 = vunpack.c.h.b16 %v803
        %v4354 = vunpack.c.l.b16 %v804
        %v4355 = vunpack.c.h.b16 %v804
        %v4356 = vunpack.c.l.b16 %v805
        %v4357 = vunpack.c.h.b16 %v805
        %v4358 = vunpack.c.l.b16 %v806
        %v4359 = vunpack.c.h.b16 %v806
        %v4360 = vunpack.c.l.b16 %v807
        %v4361 = vunpack.c.h.b16 %v807
        %v4362 = vunpack.c.l.b16 %v808
        %v4363 = vunpack.c.h.b16 %v808
        %v4364 = vunpack.c.l.b16 %v809
        %v4365 = vunpack.c.h.b16 %v809
        %v4366 = vunpack.c.l.b16 %v810
        %v4367 = vunpack.c.h.b16 %v810
        %v4368 = vunpack.c.l.b16 %v811
        %v4369 = vunpack.c.h.b16 %v811
        %v4370 = vunpack.c.l.b16 %v812
        %v4371 = vunpack.c.h.b16 %v812
        %v4372 = vunpack.c.l.b16 %v813
        %v4373 = vunpack.c.h.b16 %v813
        %v4374 = vunpack.c.l.b16 %v814
        %v4375 = vunpack.c.h.b16 %v814
        %v4376 = vunpack.c.l.b16 %v815
        %v4377 = vunpack.c.h.b16 %v815
        %v4378 = vunpack.c.l.b16 %v816
        %v4379 = vunpack.c.h.b16 %v816
        %v4380 = vunpack.c.l.b16 %v817
        %v4381 = vunpack.c.h.b16 %v817
        %v4382 = vunpack.c.l.b16 %v818
        %v4383 = vunpack.c.h.b16 %v818
        %v4384 = vunpack.c.l.b16 %v819
        %v4385 = vunpack.c.h.b16 %v819
        %v4386 = vunpack.c.l.b16 %v820
        %v4387 = vunpack.c.h.b16 %v820
        %v4388 = vunpack.c.l.b16 %v821
        %v4389 = vunpack.c.h.b16 %v821
        %v4390 = vunpack.c.l.b16 %v822
        %v4391 = vunpack.c.h.b16 %v822
        %v4392 = vunpack.c.l.b16 %v823
        %v4393 = vunpack.c.h.b16 %v823
        %v4394 = vunpack.c.l.b16 %v824
        %v4395 = vunpack.c.h.b16 %v824
        %v4396 = vunpack.c.l.b16 %v825
        %v4397 = vunpack.c.h.b16 %v825
        %v4398 = vunpack.c.l.b16 %v826
        %v4399 = vunpack.c.h.b16 %v826
        %v4400 = vunpack.c.l.b16 %v827
        %v4401 = vunpack.c.h.b16 %v827
        %v4402 = vunpack.c.l.b16 %v828
        %v4403 = vunpack.c.h.b16 %v828
        %v4404 = vunpack.c.l.b16 %v829
        %v4405 = vunpack.c.h.b16 %v829
        %v4406 = vunpack.c.l.b16 %v830
        %v4407 = vunpack.c.h.b16 %v830
        %v4408 = vunpack.c.l.b16 %v831
        %v4409 = vunpack.c.h.b16 %v831
        %v4410 = vunpack.c.l.b16 %v832
        %v4411 = vunpack.c.h.b16 %v832
        %v4412 = vunpack.c.l.b16 %v833
        %v4413 = vunpack.c.h.b16 %v833
        %v4414 = vunpack.c.l.b16 %v834
        %v4415 = vunpack.c.h.b16 %v834
        %v4416 = vunpack.c.l.b16 %v835
        %v4417 = vunpack.c.h.b16 %v835
        %v4418 = vunpack.c.l.b16 %v836
        %v4419 = vunpack.c.h.b16 %v836
        %v4420 = vunpack.c.l.b16 %v837
        %v4421 = vunpack.c.h.b16 %v837
        %v4422 = vunpack.c.l.b16 %v838
        %v4423 = vunpack.c.h.b16 %v838
        %v4424 = vunpack.c.l.b16 %v839
        %v4425 = vunpack.c.h.b16 %v839
        %v4426 = vunpack.c.l.b16 %v840
        %v4427 = vunpack.c.h.b16 %v840
        %v4428 = vunpack.c.l.b16 %v841
        %v4429 = vunpack.c.h.b16 %v841
        %v4430 = vunpack.c.l.b16 %v842
        %v4431 = vunpack.c.h.b16 %v842
        %v4432 = vunpack.c.l.b16 %v843
        %v4433 = vunpack.c.h.b16 %v843
        %v4434 = vunpack.c.l.b16 %v844
        %v4435 = vunpack.c.h.b16 %v844
        %v4436 = vunpack.c.l.b16 %v845
        %v4437 = vunpack.c.h.b16 %v845
        %v4438 = vunpack.c.l.b16 %v846
        %v4439 = vunpack.c.h.b16 %v846
        %v4440 = vunpack.c.l.b16 %v847
        %v4441 = vunpack.c.h.b16 %v847
        %v4442 = vunpack.c.l.b16 %v848
        %v4443 = vunpack.c.h.b16 %v848
        %v4444 = vunpack.c.l.b16 %v849
        %v4445 = vunpack.c.h.b16 %v849
        %v4446 = vunpack.c.l.b16 %v850
        %v4447 = vunpack.c.h.b16 %v850
        %v4448 = vunpack.c.l.b16 %v851
        %v4449 = vunpack.c.h.b16 %v851
        %v4450 = vunpack.c.l.b16 %v852
        %v4451 = vunpack.c.h.b16 %v852
        %v4452 = vunpack.c.l.b16 %v853
        %v4453 = vunpack.c.h.b16 %v853
        %v4454 = vunpack.c.l.b16 %v854
        %v4455 = vunpack.c.h.b16 %v854
        %v4456 = vunpack.c.l.b16 %v855
        %v4457 = vunpack.c.h.b16 %v855
        %v4458 = vunpack.c.l.b16 %v856
        %v4459 = vunpack.c.h.b16 %v856
        %v4460 = vunpack.c.l.b16 %v857
        %v4461 = vunpack.c.h.b16 %v857
        %v4462 = vunpack.c.l.b16 %v858
        %v4463 = vunpack.c.h.b16 %v858
        %v4464 = vunpack.c.l.b16 %v859
        %v4465 = vunpack.c.h.b16 %v859
        %v4466 = vunpack.c.l.b16 %v860
        %v4467 = vunpack.c.h.b16 %v860
        %v4468 = vunpack.c.l.b16 %v861
        %v4469 = vunpack.c.h.b16 %v861
        %v4470 = vunpack.c.l.b16 %v862
        %v4471 = vunpack.c.h.b16 %v862
        %v4472 = vunpack.c.l.b16 %v863
        %v4473 = vunpack.c.h.b16 %v863
        %v4474 = vunpack.c.l.b16 %v864
        %v4475 = vunpack.c.h.b16 %v864
        %v4476 = vunpack.c.l.b16 %v865
        %v4477 = vunpack.c.h.b16 %v865
        %v4478 = vunpack.c.l.b16 %v866
        %v4479 = vunpack.c.h.b16 %v866
        %v4480 = vunpack.c.l.b16 %v867
        %v4481 = vunpack.c.h.b16 %v867
        %v4482 = vunpack.c.l.b16 %v868
        %v4483 = vunpack.c.h.b16 %v868
        %v4484 = vunpack.c.l.b16 %v869
        %v4485 = vunpack.c.h.b16 %v869
        %v4486 = vunpack.c.l.b16 %v870
        %v4487 = vunpack.c.h.b16 %v870
        %v4488 = vunpack.c.l.b16 %v871
        %v4489 = vunpack.c.h.b16 %v871
        %v4490 = vunpack.c.l.b16 %v872
        %v4491 = vunpack.c.h.b16 %v872
        %v4492 = vunpack.c.l.b16 %v873
        %v4493 = vunpack.c.h.b16 %v873
        %v4494 = vunpack.c.l.b16 %v874
        %v4495 = vunpack.c.h.b16 %v874
        %v4496 = vunpack.c.l.b16 %v875
        %v4497 = vunpack.c.h.b16 %v875
        %v4498 = vunpack.c.l.b16 %v876
        %v4499 = vunpack.c.h.b16 %v876
        %v4500 = vunpack.c.l.b16 %v877
        %v4501 = vunpack.c.h.b16 %v877
        %v4502 = vunpack.c.l.b16 %v878
        %v4503 = vunpack.c.h.b16 %v878
        %v4504 = vunpack.c.l.b16 %v879
        %v4505 = vunpack.c.h.b16 %v879
        %v4506 = vunpack.c.l.b16 %v880
        %v4507 = vunpack.c.h.b16 %v880
        %v4508 = vunpack.c.l.b16 %v881
        %v4509 = vunpack.c.h.b16 %v881
        %v4510 = vunpack.c.l.b16 %v882
        %v4511 = vunpack.c.h.b16 %v882
        %v4512 = vunpack.c.l.b16 %v883
        %v4513 = vunpack.c.h.b16 %v883
        %v4514 = vunpack.c.l.b16 %v884
        %v4515 = vunpack.c.h.b16 %v884
        %v4516 = vunpack.c.l.b16 %v885
        %v4517 = vunpack.c.h.b16 %v885
        %v4518 = vunpack.c.l.b16 %v886
        %v4519 = vunpack.c.h.b16 %v886
        %v4520 = vunpack.c.l.b16 %v887
        %v4521 = vunpack.c.h.b16 %v887
        %v4522 = vunpack.c.l.b16 %v888
        %v4523 = vunpack.c.h.b16 %v888
        %v4524 = vunpack.c.l.b16 %v889
        %v4525 = vunpack.c.h.b16 %v889
        %v4526 = vunpack.c.l.b16 %v890
        %v4527 = vunpack.c.h.b16 %v890
        %v4528 = vunpack.c.l.b16 %v891
        %v4529 = vunpack.c.h.b16 %v891
        %v4530 = vunpack.c.l.b16 %v892
        %v4531 = vunpack.c.h.b16 %v892
        %v4532 = vunpack.c.l.b16 %v893
        %v4533 = vunpack.c.h.b16 %v893
        %v4534 = vunpack.c.l.b16 %v894
        %v4535 = vunpack.c.h.b16 %v894
        %v4536 = vunpack.c.l.b16 %v895
        %v4537 = vunpack.c.h.b16 %v895
        %v4538 = vunpack.c.l.b16 %v896
        %v4539 = vunpack.c.h.b16 %v896
        %v4540 = vunpack.c.l.b16 %v897
        %v4541 = vunpack.c.h.b16 %v897
        %v4542 = vunpack.c.l.b16 %v898
        %v4543 = vunpack.c.h.b16 %v898
        %v4544 = vunpack.c.l.b16 %v899
        %v4545 = vunpack.c.h.b16 %v899
        %v4546 = vunpack.c.l.b16 %v900
        %v4547 = vunpack.c.h.b16 %v900
        %v4548 = vunpack.c.l.b16 %v901
        %v4549 = vunpack.c.h.b16 %v901
        %v4550 = vunpack.c.l.b16 %v902
        %v4551 = vunpack.c.h.b16 %v902
        %v4552 = vunpack.c.l.b16 %v903
        %v4553 = vunpack.c.h.b16 %v903
        %v4554 = vunpack.c.l.b16 %v904
        %v4555 = vunpack.c.h.b16 %v904
        %v4556 = vunpack.c.l.b16 %v905
        %v4557 = vunpack.c.h.b16 %v905
        %v4558 = vunpack.c.l.b16 %v906
        %v4559 = vunpack.c.h.b16 %v906
        %v4560 = vunpack.c.l.b16 %v907
        %v4561 = vunpack.c.h.b16 %v907
        %v4562 = vunpack.c.l.b16 %v908
        %v4563 = vunpack.c.h.b16 %v908
        %v4564 = vunpack.c.l.b16 %v909
        %v4565 = vunpack.c.h.b16 %v909
        %v4566 = vunpack.c.l.b16 %v910
        %v4567 = vunpack.c.h.b16 %v910
        %v4568 = vunpack.c.l.b16 %v911
        %v4569 = vunpack.c.h.b16 %v911
        %v4570 = vunpack.c.l.b16 %v912
        %v4571 = vunpack.c.h.b16 %v912
        %v4572 = vunpack.c.l.b16 %v913
        %v4573 = vunpack.c.h.b16 %v913
        %v4574 = vunpack.c.l.b16 %v914
        %v4575 = vunpack.c.h.b16 %v914
        %v4576 = vunpack.c.l.b16 %v915
        %v4577 = vunpack.c.h.b16 %v915
        %v4578 = vunpack.c.l.b16 %v916
        %v4579 = vunpack.c.h.b16 %v916
        %v4580 = vunpack.c.l.b16 %v917
        %v4581 = vunpack.c.h.b16 %v917
        %v4582 = vunpack.c.l.b16 %v918
        %v4583 = vunpack.c.h.b16 %v918
        %v4584 = vunpack.c.l.b16 %v919
        %v4585 = vunpack.c.h.b16 %v919
        %v4586 = vunpack.c.l.b16 %v920
        %v4587 = vunpack.c.h.b16 %v920
        %v4588 = vunpack.c.l.b16 %v921
        %v4589 = vunpack.c.h.b16 %v921
        %v4590 = vunpack.c.l.b16 %v922
        %v4591 = vunpack.c.h.b16 %v922
        %v4592 = vunpack.c.l.b16 %v923
        %v4593 = vunpack.c.h.b16 %v923
        %v4594 = vunpack.c.l.b16 %v924
        %v4595 = vunpack.c.h.b16 %v924
        %v4596 = vunpack.c.l.b16 %v925
        %v4597 = vunpack.c.h.b16 %v925
        %v4598 = vunpack.c.l.b16 %v926
        %v4599 = vunpack.c.h.b16 %v926
        %v4600 = vunpack.c.l.b16 %v927
        %v4601 = vunpack.c.h.b16 %v927
        %v4602 = vunpack.c.l.b16 %v928
        %v4603 = vunpack.c.h.b16 %v928
        %v4604 = vunpack.c.l.b16 %v929
        %v4605 = vunpack.c.h.b16 %v929
        %v4606 = vunpack.c.l.b16 %v930
        %v4607 = vunpack.c.h.b16 %v930
        %v4608 = vunpack.c.l.b16 %v931
        %v4609 = vunpack.c.h.b16 %v931
        %v4610 = vunpack.c.l.b16 %v932
        %v4611 = vunpack.c.h.b16 %v932
        %v4612 = vunpack.c.l.b16 %v933
        %v4613 = vunpack.c.h.b16 %v933
        %v4614 = vunpack.c.l.b16 %v934
        %v4615 = vunpack.c.h.b16 %v934
        %v4616 = vunpack.c.l.b16 %v935
        %v4617 = vunpack.c.h.b16 %v935
        %v4618 = vunpack.c.l.b16 %v936
        %v4619 = vunpack.c.h.b16 %v936
        %v4620 = vunpack.c.l.b16 %v937
        %v4621 = vunpack.c.h.b16 %v937
        %v4622 = vunpack.c.l.b16 %v938
        %v4623 = vunpack.c.h.b16 %v938
        %v4624 = vunpack.c.l.b16 %v939
        %v4625 = vunpack.c.h.b16 %v939
        %v4626 = vunpack.c.l.b16 %v940
        %v4627 = vunpack.c.h.b16 %v940
        %v4628 = vunpack.c.l.b16 %v941
        %v4629 = vunpack.c.h.b16 %v941
        %v4630 = vunpack.c.l.b16 %v942
        %v4631 = vunpack.c.h.b16 %v942
        %v4632 = vunpack.c.l.b16 %v943
        %v4633 = vunpack.c.h.b16 %v943
        %v4634 = vunpack.c.l.b16 %v944
        %v4635 = vunpack.c.h.b16 %v944
        %v4636 = vunpack.c.l.b16 %v945
        %v4637 = vunpack.c.h.b16 %v945
        %v4638 = vunpack.c.l.b16 %v946
        %v4639 = vunpack.c.h.b16 %v946
        %v4640 = vunpack.c.l.b16 %v947
        %v4641 = vunpack.c.h.b16 %v947
        %v4642 = vunpack.c.l.b16 %v948
        %v4643 = vunpack.c.h.b16 %v948
        %v4644 = vunpack.c.l.b16 %v949
        %v4645 = vunpack.c.h.b16 %v949
        %v4646 = vunpack.c.l.b16 %v950
        %v4647 = vunpack.c.h.b16 %v950
        %v4648 = vunpack.c.l.b16 %v951
        %v4649 = vunpack.c.h.b16 %v951
        %v4650 = vunpack.c.l.b16 %v952
        %v4651 = vunpack.c.h.b16 %v952
        %v4652 = vunpack.c.l.b16 %v953
        %v4653 = vunpack.c.h.b16 %v953
        %v4654 = vunpack.c.l.b16 %v954
        %v4655 = vunpack.c.h.b16 %v954
        %v4656 = vunpack.c.l.b16 %v955
        %v4657 = vunpack.c.h.b16 %v955
        %v4658 = vunpack.c.l.b16 %v956
        %v4659 = vunpack.c.h.b16 %v956
        %v4660 = vunpack.c.l.b16 %v957
        %v4661 = vunpack.c.h.b16 %v957
        %v4662 = vunpack.c.l.b16 %v958
        %v4663 = vunpack.c.h.b16 %v958
        %v4664 = vunpack.c.l.b16 %v959
        %v4665 = vunpack.c.h.b16 %v959
        %v4666 = vunpack.c.l.b16 %v960
        %v4667 = vunpack.c.h.b16 %v960
        %v4668 = vunpack.c.l.b16 %v961
        %v4669 = vunpack.c.h.b16 %v961
        %v4670 = vunpack.c.l.b16 %v962
        %v4671 = vunpack.c.h.b16 %v962
        %v4672 = vunpack.c.l.b16 %v963
        %v4673 = vunpack.c.h.b16 %v963
        %v4674 = vunpack.c.l.b16 %v964
        %v4675 = vunpack.c.h.b16 %v964
        %v4676 = vunpack.c.l.b16 %v965
        %v4677 = vunpack.c.h.b16 %v965
        %v4678 = vunpack.c.l.b16 %v966
        %v4679 = vunpack.c.h.b16 %v966
        %v4680 = vunpack.c.l.b16 %v967
        %v4681 = vunpack.c.h.b16 %v967
        %v4682 = vunpack.c.l.b16 %v968
        %v4683 = vunpack.c.h.b16 %v968
        %v4684 = vunpack.c.l.b16 %v969
        %v4685 = vunpack.c.h.b16 %v969
        %v4686 = vunpack.c.l.b16 %v970
        %v4687 = vunpack.c.h.b16 %v970
        %v4688 = vunpack.c.l.b16 %v971
        %v4689 = vunpack.c.h.b16 %v971
        %v4690 = vunpack.c.l.b16 %v972
        %v4691 = vunpack.c.h.b16 %v972
        %v4692 = vunpack.c.l.b16 %v973
        %v4693 = vunpack.c.h.b16 %v973
        %v4694 = vunpack.c.l.b16 %v974
        %v4695 = vunpack.c.h.b16 %v974
        %v4696 = vunpack.c.l.b16 %v975
        %v4697 = vunpack.c.h.b16 %v975
        %v4698 = vunpack.c.l.b16 %v976
        %v4699 = vunpack.c.h.b16 %v976
        %v4700 = vunpack.c.l.b16 %v977
        %v4701 = vunpack.c.h.b16 %v977
        %v4702 = vunpack.c.l.b16 %v978
        %v4703 = vunpack.c.h.b16 %v978
        %v4704 = vunpack.c.l.b16 %v979
        %v4705 = vunpack.c.h.b16 %v979
        %v4706 = vunpack.c.l.b16 %v980
        %v4707 = vunpack.c.h.b16 %v980
        %v4708 = vunpack.c.l.b16 %v981
        %v4709 = vunpack.c.h.b16 %v981
        %v4710 = vunpack.c.l.b16 %v982
        %v4711 = vunpack.c.h.b16 %v982
        %v4712 = vunpack.c.l.b16 %v983
        %v4713 = vunpack.c.h.b16 %v983
        %v4714 = vunpack.c.l.b16 %v984
        %v4715 = vunpack.c.h.b16 %v984
        %v4716 = vunpack.c.l.b16 %v985
        %v4717 = vunpack.c.h.b16 %v985
        %v4718 = vunpack.c.l.b16 %v986
        %v4719 = vunpack.c.h.b16 %v986
        %v4720 = vunpack.c.l.b16 %v987
        %v4721 = vunpack.c.h.b16 %v987
        %v4722 = vunpack.c.l.b16 %v988
        %v4723 = vunpack.c.h.b16 %v988
        %v4724 = vunpack.c.l.b16 %v989
        %v4725 = vunpack.c.h.b16 %v989
        %v4726 = vunpack.c.l.b16 %v990
        %v4727 = vunpack.c.h.b16 %v990
        %v4728 = vunpack.c.l.b16 %v991
        %v4729 = vunpack.c.h.b16 %v991
        %v4730 = vunpack.c.l.b16 %v992
        %v4731 = vunpack.c.h.b16 %v992
        %v4732 = vunpack.c.l.b16 %v993
        %v4733 = vunpack.c.h.b16 %v993
        %v4734 = vunpack.c.l.b16 %v994
        %v4735 = vunpack.c.h.b16 %v994
        %v4736 = vunpack.c.l.b16 %v995
        %v4737 = vunpack.c.h.b16 %v995
        %v4738 = vunpack.c.l.b16 %v996
        %v4739 = vunpack.c.h.b16 %v996
        %v4740 = vunpack.c.l.b16 %v997
        %v4741 = vunpack.c.h.b16 %v997
        %v4742 = vunpack.c.l.b16 %v998
        %v4743 = vunpack.c.h.b16 %v998
        %v4744 = vunpack.c.l.b16 %v999
        %v4745 = vunpack.c.h.b16 %v999
        %v4746 = vunpack.c.l.b16 %v1000
        %v4747 = vunpack.c.h.b16 %v1000
        %v4748 = vunpack.c.l.b16 %v1001
        %v4749 = vunpack.c.h.b16 %v1001
        %v4750 = vunpack.c.l.b16 %v1002
        %v4751 = vunpack.c.h.b16 %v1002
        %v4752 = vunpack.c.l.b16 %v1003
        %v4753 = vunpack.c.h.b16 %v1003
        %v4754 = vunpack.c.l.b16 %v1004
        %v4755 = vunpack.c.h.b16 %v1004
        %v4756 = vunpack.c.l.b16 %v1005
        %v4757 = vunpack.c.h.b16 %v1005
        %v4758 = vunpack.c.l.b16 %v1006
        %v4759 = vunpack.c.h.b16 %v1006
        %v4760 = vunpack.c.l.b16 %v1007
        %v4761 = vunpack.c.h.b16 %v1007
        %v4762 = vunpack.c.l.b16 %v1008
        %v4763 = vunpack.c.h.b16 %v1008
        %v4764 = vunpack.c.l.b16 %v1009
        %v4765 = vunpack.c.h.b16 %v1009
        %v4766 = vunpack.c.l.b16 %v1010
        %v4767 = vunpack.c.h.b16 %v1010
        %v4768 = vunpack.c.l.b16 %v1011
        %v4769 = vunpack.c.h.b16 %v1011
        %v4770 = vunpack.c.l.b16 %v1012
        %v4771 = vunpack.c.h.b16 %v1012
        %v4772 = vunpack.c.l.b16 %v1013
        %v4773 = vunpack.c.h.b16 %v1013
        %v4774 = vunpack.c.l.b16 %v1014
        %v4775 = vunpack.c.h.b16 %v1014
        %v4776 = vunpack.c.l.b16 %v1015
        %v4777 = vunpack.c.h.b16 %v1015
        %v4778 = vunpack.c.l.b16 %v1016
        %v4779 = vunpack.c.h.b16 %v1016
        %v4780 = vunpack.c.l.b16 %v1017
        %v4781 = vunpack.c.h.b16 %v1017
        %v4782 = vunpack.c.l.b16 %v1018
        %v4783 = vunpack.c.h.b16 %v1018
        %v4784 = vunpack.c.l.b16 %v1019
        %v4785 = vunpack.c.h.b16 %v1019
        %v4786 = vunpack.c.l.b16 %v1020
        %v4787 = vunpack.c.h.b16 %v1020
        %v4788 = vunpack.c.l.b16 %v1021
        %v4789 = vunpack.c.h.b16 %v1021
        %v4790 = vunpack.c.l.b16 %v1022
        %v4791 = vunpack.c.h.b16 %v1022
        %v4792 = vunpack.c.l.b16 %v1023
        %v4793 = vunpack.c.h.b16 %v1023
        %v4794 = vunpack.c.l.b16 %v1024
        %v4795 = vunpack.c.h.b16 %v1024
        %v4796 = vunpack.c.l.b16 %v1025
        %v4797 = vunpack.c.h.b16 %v1025
        %v4798 = vunpack.c.l.b16 %v1026
        %v4799 = vunpack.c.h.b16 %v1026
        %v4800 = vunpack.c.l.b16 %v1027
        %v4801 = vunpack.c.h.b16 %v1027
        %v4802 = vunpack.c.l.b16 %v1028
        %v4803 = vunpack.c.h.b16 %v1028
        %v4804 = vunpack.c.l.b16 %v1029
        %v4805 = vunpack.c.h.b16 %v1029
        %v4806 = vunpack.c.l.b16 %v1030
        %v4807 = vunpack.c.h.b16 %v1030
        %v4808 = vunpack.c.l.b16 %v1031
        %v4809 = vunpack.c.h.b16 %v1031
        %v4810 = vunpack.c.l.b16 %v1032
        %v4811 = vunpack.c.h.b16 %v1032
        %v4812 = vunpack.c.l.b16 %v1033
        %v4813 = vunpack.c.h.b16 %v1033
        %v4814 = vunpack.c.l.b16 %v1034
        %v4815 = vunpack.c.h.b16 %v1034
        %v4816 = vunpack.c.l.b16 %v1035
        %v4817 = vunpack.c.h.b16 %v1035
        %v4818 = vunpack.c.l.b16 %v1036
        %v4819 = vunpack.c.h.b16 %v1036
        %v4820 = vunpack.c.l.b16 %v1037
        %v4821 = vunpack.c.h.b16 %v1037
        %v4822 = vunpack.c.l.b16 %v1038
        %v4823 = vunpack.c.h.b16 %v1038
        %v4824 = vunpack.c.l.b16 %v1039
        %v4825 = vunpack.c.h.b16 %v1039
        %v4826 = vunpack.c.l.b16 %v1040
        %v4827 = vunpack.c.h.b16 %v1040
        %v4828 = vunpack.c.l.b16 %v1041
        %v4829 = vunpack.c.h.b16 %v1041
        %v4830 = vunpack.c.l.b16 %v1042
        %v4831 = vunpack.c.h.b16 %v1042
        %v4832 = vunpack.c.l.b16 %v1043
        %v4833 = vunpack.c.h.b16 %v1043
        %v4834 = vunpack.c.l.b16 %v1044
        %v4835 = vunpack.c.h.b16 %v1044
        %v4836 = vunpack.c.l.b16 %v1045
        %v4837 = vunpack.c.h.b16 %v1045
        %v4838 = vunpack.c.l.b16 %v1046
        %v4839 = vunpack.c.h.b16 %v1046
        %v4840 = vunpack.c.l.b16 %v1047
        %v4841 = vunpack.c.h.b16 %v1047
        %v4842 = vunpack.c.l.b16 %v1048
        %v4843 = vunpack.c.h.b16 %v1048
        %v4844 = vunpack.c.l.b16 %v1049
        %v4845 = vunpack.c.h.b16 %v1049
        %v4846 = vunpack.c.l.b16 %v1050
        %v4847 = vunpack.c.h.b16 %v1050
        %v4848 = vunpack.c.l.b16 %v1051
        %v4849 = vunpack.c.h.b16 %v1051
        %v4850 = vunpack.c.l.b16 %v1052
        %v4851 = vunpack.c.h.b16 %v1052
        %v4852 = vunpack.c.l.b16 %v1053
        %v4853 = vunpack.c.h.b16 %v1053
        %v4854 = vunpack.c.l.b16 %v1054
        %v4855 = vunpack.c.h.b16 %v1054
        %v4856 = vunpack.c.l.b16 %v1055
        %v4857 = vunpack.c.h.b16 %v1055
        %v4858 = vunpack.c.l.b16 %v1056
        %v4859 = vunpack.c.h.b16 %v1056
        %v4860 = vunpack.c.l.b16 %v1057
        %v4861 = vunpack.c.h.b16 %v1057
        %v4862 = vunpack.c.l.b16 %v1058
        %v4863 = vunpack.c.h.b16 %v1058
        %v4864 = vunpack.c.l.b16 %v1059
        %v4865 = vunpack.c.h.b16 %v1059
        %v4866 = vunpack.c.l.b16 %v1060
        %v4867 = vunpack.c.h.b16 %v1060
        %v4868 = vunpack.c.l.b16 %v1061
        %v4869 = vunpack.c.h.b16 %v1061
        %v4870 = vunpack.c.l.b16 %v1062
        %v4871 = vunpack.c.h.b16 %v1062
        %v4872 = vunpack.c.l.b16 %v1063
        %v4873 = vunpack.c.h.b16 %v1063
        %v4874 = vunpack.c.l.b16 %v1064
        %v4875 = vunpack.c.h.b16 %v1064
        %v4876 = vunpack.c.l.b16 %v1065
        %v4877 = vunpack.c.h.b16 %v1065
        %v4878 = vunpack.c.l.b16 %v1066
        %v4879 = vunpack.c.h.b16 %v1066
        %v4880 = vunpack.c.l.b16 %v1067
        %v4881 = vunpack.c.h.b16 %v1067
        %v4882 = vunpack.c.l.b16 %v1068
        %v4883 = vunpack.c.h.b16 %v1068
        %v4884 = vunpack.c.l.b16 %v1069
        %v4885 = vunpack.c.h.b16 %v1069
        %v4886 = vunpack.c.l.b16 %v1070
        %v4887 = vunpack.c.h.b16 %v1070
        %v4888 = vunpack.c.l.b16 %v1071
        %v4889 = vunpack.c.h.b16 %v1071
        %v4890 = vunpack.c.l.b16 %v1072
        %v4891 = vunpack.c.h.b16 %v1072
        %v4892 = vunpack.c.l.b16 %v1073
        %v4893 = vunpack.c.h.b16 %v1073
        %v4894 = vunpack.c.l.b16 %v1074
        %v4895 = vunpack.c.h.b16 %v1074
        %v4896 = vunpack.c.l.b16 %v1075
        %v4897 = vunpack.c.h.b16 %v1075
        %v4898 = vunpack.c.l.b16 %v1076
        %v4899 = vunpack.c.h.b16 %v1076
        %v4900 = vunpack.c.l.b16 %v1077
        %v4901 = vunpack.c.h.b16 %v1077
        %v4902 = vunpack.c.l.b16 %v1078
        %v4903 = vunpack.c.h.b16 %v1078
        %v4904 = vunpack.c.l.b16 %v1079
        %v4905 = vunpack.c.h.b16 %v1079
        %v4906 = vunpack.c.l.b16 %v1080
        %v4907 = vunpack.c.h.b16 %v1080
        %v4908 = vunpack.c.l.b16 %v1081
        %v4909 = vunpack.c.h.b16 %v1081
        %v4910 = vunpack.c.l.b16 %v1082
        %v4911 = vunpack.c.h.b16 %v1082
        %v4912 = vunpack.c.l.b16 %v1083
        %v4913 = vunpack.c.h.b16 %v1083
        %v4914 = vunpack.c.l.b16 %v1084
        %v4915 = vunpack.c.h.b16 %v1084
        %v4916 = vunpack.c.l.b16 %v1085
        %v4917 = vunpack.c.h.b16 %v1085
        %v4918 = vunpack.c.l.b16 %v1086
        %v4919 = vunpack.c.h.b16 %v1086
        %v4920 = vunpack.c.l.b16 %v1087
        %v4921 = vunpack.c.h.b16 %v1087
        %v4922 = vunpack.c.l.b16 %v1088
        %v4923 = vunpack.c.h.b16 %v1088
        %v4924 = vunpack.c.l.b16 %v1089
        %v4925 = vunpack.c.h.b16 %v1089
        %v4926 = vunpack.c.l.b16 %v1090
        %v4927 = vunpack.c.h.b16 %v1090
        %v4928 = vunpack.c.l.b16 %v1091
        %v4929 = vunpack.c.h.b16 %v1091
        %v4930 = vunpack.c.l.b16 %v1092
        %v4931 = vunpack.c.h.b16 %v1092
        %v4932 = vunpack.c.l.b16 %v1093
        %v4933 = vunpack.c.h.b16 %v1093
        %v4934 = vunpack.c.l.b16 %v1094
        %v4935 = vunpack.c.h.b16 %v1094
        %v4936 = vunpack.c.l.b16 %v1095
        %v4937 = vunpack.c.h.b16 %v1095
        %v4938 = vunpack.c.l.b16 %v1096
        %v4939 = vunpack.c.h.b16 %v1096
        %v4940 = vunpack.c.l.b16 %v1097
        %v4941 = vunpack.c.h.b16 %v1097
        %v4942 = vunpack.c.l.b16 %v1098
        %v4943 = vunpack.c.h.b16 %v1098
        %v4944 = vunpack.c.l.b16 %v1099
        %v4945 = vunpack.c.h.b16 %v1099
        %v4946 = vunpack.c.l.b16 %v1100
        %v4947 = vunpack.c.h.b16 %v1100
        %v4948 = vunpack.c.l.b16 %v1101
        %v4949 = vunpack.c.h.b16 %v1101
        %v4950 = vunpack.c.l.b16 %v1102
        %v4951 = vunpack.c.h.b16 %v1102
        %v4952 = vunpack.c.l.b16 %v1103
        %v4953 = vunpack.c.h.b16 %v1103
        %v4954 = vunpack.c.l.b16 %v1104
        %v4955 = vunpack.c.h.b16 %v1104
        %v4956 = vunpack.c.l.b16 %v1105
        %v4957 = vunpack.c.h.b16 %v1105
        %v4958 = vunpack.c.l.b16 %v1106
        %v4959 = vunpack.c.h.b16 %v1106
        %v4960 = vunpack.c.l.b16 %v1107
        %v4961 = vunpack.c.h.b16 %v1107
        %v4962 = vunpack.c.l.b16 %v1108
        %v4963 = vunpack.c.h.b16 %v1108
        %v4964 = vunpack.c.l.b16 %v1109
        %v4965 = vunpack.c.h.b16 %v1109
        %v4966 = vunpack.c.l.b16 %v1110
        %v4967 = vunpack.c.h.b16 %v1110
        %v4968 = vunpack.c.l.b16 %v1111
        %v4969 = vunpack.c.h.b16 %v1111
        %v4970 = vunpack.c.l.b16 %v1112
        %v4971 = vunpack.c.h.b16 %v1112
        %v4972 = vunpack.c.l.b16 %v1113
        %v4973 = vunpack.c.h.b16 %v1113
        %v4974 = vunpack.c.l.b16 %v1114
        %v4975 = vunpack.c.h.b16 %v1114
        %v4976 = vunpack.c.l.b16 %v1115
        %v4977 = vunpack.c.h.b16 %v1115
        %v4978 = vunpack.c.l.b16 %v1116
        %v4979 = vunpack.c.h.b16 %v1116
        %v4980 = vunpack.c.l.b16 %v1117
        %v4981 = vunpack.c.h.b16 %v1117
        %v4982 = vunpack.c.l.b16 %v1118
        %v4983 = vunpack.c.h.b16 %v1118
        %v4984 = vunpack.c.l.b16 %v1119
        %v4985 = vunpack.c.h.b16 %v1119
        %v4986 = vunpack.c.l.b16 %v1120
        %v4987 = vunpack.c.h.b16 %v1120
        %v4988 = vunpack.c.l.b16 %v1121
        %v4989 = vunpack.c.h.b16 %v1121
        %v4990 = vunpack.c.l.b16 %v1122
        %v4991 = vunpack.c.h.b16 %v1122
        %v4992 = vunpack.c.l.b16 %v1123
        %v4993 = vunpack.c.h.b16 %v1123
        %v4994 = vunpack.c.l.b16 %v1124
        %v4995 = vunpack.c.h.b16 %v1124
        %v4996 = vunpack.c.l.b16 %v1125
        %v4997 = vunpack.c.h.b16 %v1125
        %v4998 = vunpack.c.l.b16 %v1126
        %v4999 = vunpack.c.h.b16 %v1126
        %v5000 = vunpack.c.l.b16 %v1127
        %v5001 = vunpack.c.h.b16 %v1127
        %v5002 = vunpack.c.l.b16 %v1128
        %v5003 = vunpack.c.h.b16 %v1128
        %v5004 = vunpack.c.l.b16 %v1129
        %v5005 = vunpack.c.h.b16 %v1129
        %v5006 = vunpack.c.l.b16 %v1130
        %v5007 = vunpack.c.h.b16 %v1130
        %v5008 = vunpack.c.l.b16 %v1131
        %v5009 = vunpack.c.h.b16 %v1131
        %v5010 = vunpack.c.l.b16 %v1132
        %v5011 = vunpack.c.h.b16 %v1132
        %v5012 = vunpack.c.l.b16 %v1133
        %v5013 = vunpack.c.h.b16 %v1133
        %v5014 = vunpack.c.l.b16 %v1134
        %v5015 = vunpack.c.h.b16 %v1134
        %v5016 = vunpack.c.l.b16 %v1135
        %v5017 = vunpack.c.h.b16 %v1135
        %v5018 = vunpack.c.l.b16 %v1136
        %v5019 = vunpack.c.h.b16 %v1136
        %v5020 = vunpack.c.l.b16 %v1137
        %v5021 = vunpack.c.h.b16 %v1137
        %v5022 = vunpack.c.l.b16 %v1138
        %v5023 = vunpack.c.h.b16 %v1138
        %v5024 = vunpack.c.l.b16 %v1139
        %v5025 = vunpack.c.h.b16 %v1139
        %v5026 = vunpack.c.l.b16 %v1140
        %v5027 = vunpack.c.h.b16 %v1140
        %v5028 = vunpack.c.l.b16 %v1141
        %v5029 = vunpack.c.h.b16 %v1141
        %v5030 = vunpack.c.l.b16 %v1142
        %v5031 = vunpack.c.h.b16 %v1142
        %v5032 = vunpack.c.l.b16 %v1143
        %v5033 = vunpack.c.h.b16 %v1143
        %v5034 = vunpack.c.l.b16 %v1144
        %v5035 = vunpack.c.h.b16 %v1144
        %v5036 = vunpack.c.l.b16 %v1145
        %v5037 = vunpack.c.h.b16 %v1145
        %v5038 = vunpack.c.l.b16 %v1146
        %v5039 = vunpack.c.h.b16 %v1146
        %v5040 = vunpack.c.l.b16 %v1147
        %v5041 = vunpack.c.h.b16 %v1147
        %v5042 = vunpack.c.l.b16 %v1148
        %v5043 = vunpack.c.h.b16 %v1148
        %v5044 = vunpack.c.l.b16 %v1149
        %v5045 = vunpack.c.h.b16 %v1149
        %v5046 = vunpack.c.l.b16 %v1150
        %v5047 = vunpack.c.h.b16 %v1150
        %v5048 = vunpack.c.l.b16 %v1151
        %v5049 = vunpack.c.h.b16 %v1151
        %v5050 = vunpack.c.l.b16 %v1152
        %v5051 = vunpack.c.h.b16 %v1152
        %v5052 = vunpack.c.l.b16 %v1153
        %v5053 = vunpack.c.h.b16 %v1153
        %v5054 = vunpack.c.l.b16 %v1154
        %v5055 = vunpack.c.h.b16 %v1154
        %v5056 = vunpack.c.l.b16 %v1155
        %v5057 = vunpack.c.h.b16 %v1155
        %v5058 = vunpack.c.l.b16 %v1156
        %v5059 = vunpack.c.h.b16 %v1156
        %v5060 = vunpack.c.l.b16 %v1157
        %v5061 = vunpack.c.h.b16 %v1157
        %v5062 = vunpack.c.l.b16 %v1158
        %v5063 = vunpack.c.h.b16 %v1158
        %v5064 = vunpack.c.l.b16 %v1159
        %v5065 = vunpack.c.h.b16 %v1159
        %v5066 = vunpack.c.l.b16 %v1160
        %v5067 = vunpack.c.h.b16 %v1160
        %v5068 = vunpack.c.l.b16 %v1161
        %v5069 = vunpack.c.h.b16 %v1161
        %v5070 = vunpack.c.l.b16 %v1162
        %v5071 = vunpack.c.h.b16 %v1162
        %v5072 = vunpack.c.l.b16 %v1163
        %v5073 = vunpack.c.h.b16 %v1163
        %v5074 = vunpack.c.l.b16 %v1164
        %v5075 = vunpack.c.h.b16 %v1164
        %v5076 = vunpack.c.l.b16 %v1165
        %v5077 = vunpack.c.h.b16 %v1165
        %v5078 = vunpack.c.l.b16 %v1166
        %v5079 = vunpack.c.h.b16 %v1166
        %v5080 = vunpack.c.l.b16 %v1167
        %v5081 = vunpack.c.h.b16 %v1167
        %v5082 = vunpack.c.l.b16 %v1168
        %v5083 = vunpack.c.h.b16 %v1168
        %v5084 = vunpack.c.l.b16 %v1169
        %v5085 = vunpack.c.h.b16 %v1169
        %v5086 = vunpack.c.l.b16 %v1170
        %v5087 = vunpack.c.h.b16 %v1170
        %v5088 = vunpack.c.l.b16 %v1171
        %v5089 = vunpack.c.h.b16 %v1171
        %v5090 = vunpack.c.l.b16 %v1172
        %v5091 = vunpack.c.h.b16 %v1172
        %v5092 = vunpack.c.l.b16 %v1173
        %v5093 = vunpack.c.h.b16 %v1173
        %v5094 = vunpack.c.l.b16 %v1174
        %v5095 = vunpack.c.h.b16 %v1174
        %v5096 = vunpack.c.l.b16 %v1175
        %v5097 = vunpack.c.h.b16 %v1175
        %v5098 = vunpack.c.l.b16 %v1176
        %v5099 = vunpack.c.h.b16 %v1176
        %v5100 = vunpack.c.l.b16 %v1177
        %v5101 = vunpack.c.h.b16 %v1177
        %v5102 = vunpack.c.l.b16 %v1178
        %v5103 = vunpack.c.h.b16 %v1178
        %v5104 = vunpack.c.l.b16 %v1179
        %v5105 = vunpack.c.h.b16 %v1179
        %v5106 = vunpack.c.l.b16 %v1180
        %v5107 = vunpack.c.h.b16 %v1180
        %v5108 = vunpack.c.l.b16 %v1181
        %v5109 = vunpack.c.h.b16 %v1181
        %v5110 = vunpack.c.l.b16 %v1182
        %v5111 = vunpack.c.h.b16 %v1182
        %v5112 = vunpack.c.l.b16 %v1183
        %v5113 = vunpack.c.h.b16 %v1183
        %v5114 = vunpack.c.l.b16 %v1184
        %v5115 = vunpack.c.h.b16 %v1184
        %v5116 = vunpack.c.l.b16 %v1185
        %v5117 = vunpack.c.h.b16 %v1185
        %v5118 = vunpack.c.l.b16 %v1186
        %v5119 = vunpack.c.h.b16 %v1186
        %v5120 = vunpack.c.l.b16 %v1187
        %v5121 = vunpack.c.h.b16 %v1187
        %v5122 = vunpack.c.l.b16 %v1188
        %v5123 = vunpack.c.h.b16 %v1188
        %v5124 = vunpack.c.l.b16 %v1189
        %v5125 = vunpack.c.h.b16 %v1189
        %v5126 = vunpack.c.l.b16 %v1190
        %v5127 = vunpack.c.h.b16 %v1190
        %v5128 = vunpack.c.l.b16 %v1191
        %v5129 = vunpack.c.h.b16 %v1191
        %v5130 = vunpack.c.l.b16 %v1192
        %v5131 = vunpack.c.h.b16 %v1192
        %v5132 = vunpack.c.l.b16 %v1193
        %v5133 = vunpack.c.h.b16 %v1193
        %v5134 = vunpack.c.l.b16 %v1194
        %v5135 = vunpack.c.h.b16 %v1194
        %v5136 = vunpack.c.l.b16 %v1195
        %v5137 = vunpack.c.h.b16 %v1195
        %v5138 = vunpack.c.l.b16 %v1196
        %v5139 = vunpack.c.h.b16 %v1196
        %v5140 = vunpack.c.l.b16 %v1197
        %v5141 = vunpack.c.h.b16 %v1197
        %v5142 = vunpack.c.l.b16 %v1198
        %v5143 = vunpack.c.h.b16 %v1198
        %v5144 = vunpack.c.l.b16 %v1199
        %v5145 = vunpack.c.h.b16 %v1199
        %v5146 = vunpack.c.l.b16 %v1200
        %v5147 = vunpack.c.h.b16 %v1200
        %v5148 = vunpack.c.l.b16 %v1201
        %v5149 = vunpack.c.h.b16 %v1201
        %v5150 = vunpack.c.l.b16 %v1202
        %v5151 = vunpack.c.h.b16 %v1202
        %v5152 = vunpack.c.l.b16 %v1203
        %v5153 = vunpack.c.h.b16 %v1203
        %v5154 = vunpack.c.l.b16 %v1204
        %v5155 = vunpack.c.h.b16 %v1204
        %v5156 = vunpack.c.l.b16 %v1205
        %v5157 = vunpack.c.h.b16 %v1205
        %v5158 = vunpack.c.l.b16 %v1206
        %v5159 = vunpack.c.h.b16 %v1206
        %v5160 = vunpack.c.l.b16 %v1207
        %v5161 = vunpack.c.h.b16 %v1207
        %v5162 = vunpack.c.l.b16 %v1208
        %v5163 = vunpack.c.h.b16 %v1208
        %v5164 = vunpack.c.l.b16 %v1209
        %v5165 = vunpack.c.h.b16 %v1209
        %v5166 = vunpack.c.l.b16 %v1210
        %v5167 = vunpack.c.h.b16 %v1210
        %v5168 = vunpack.c.l.b16 %v1211
        %v5169 = vunpack.c.h.b16 %v1211
        %v5170 = vunpack.c.l.b16 %v1212
        %v5171 = vunpack.c.h.b16 %v1212
        %v5172 = vunpack.c.l.b16 %v1213
        %v5173 = vunpack.c.h.b16 %v1213
        %v5174 = vunpack.c.l.b16 %v1214
        %v5175 = vunpack.c.h.b16 %v1214
        %v5176 = vunpack.c.l.b16 %v1215
        %v5177 = vunpack.c.h.b16 %v1215
        %v5178 = vunpack.c.l.b16 %v1216
        %v5179 = vunpack.c.h.b16 %v1216
        %v5180 = vunpack.c.l.b16 %v1217
        %v5181 = vunpack.c.h.b16 %v1217
        %v5182 = vunpack.c.l.b16 %v1218
        %v5183 = vunpack.c.h.b16 %v1218
        %v5184 = vunpack.c.l.b16 %v1219
        %v5185 = vunpack.c.h.b16 %v1219
        %v5186 = vunpack.c.l.b16 %v1220
        %v5187 = vunpack.c.h.b16 %v1220
        %v5188 = vunpack.c.l.b16 %v1221
        %v5189 = vunpack.c.h.b16 %v1221
        %v5190 = vunpack.c.l.b16 %v1222
        %v5191 = vunpack.c.h.b16 %v1222
        %v5192 = vunpack.c.l.b16 %v1223
        %v5193 = vunpack.c.h.b16 %v1223
        %v5194 = vunpack.c.l.b16 %v1224
        %v5195 = vunpack.c.h.b16 %v1224
        %v5196 = vunpack.c.l.b16 %v1225
        %v5197 = vunpack.c.h.b16 %v1225
        %v5198 = vunpack.c.l.b16 %v1226
        %v5199 = vunpack.c.h.b16 %v1226
        %v5200 = vunpack.c.l.b16 %v1227
        %v5201 = vunpack.c.h.b16 %v1227
        %v5202 = vunpack.c.l.b16 %v1228
        %v5203 = vunpack.c.h.b16 %v1228
        %v5204 = vunpack.c.l.b16 %v1229
        %v5205 = vunpack.c.h.b16 %v1229
        %v5206 = vunpack.c.l.b16 %v1230
        %v5207 = vunpack.c.h.b16 %v1230
        %v5208 = vunpack.c.l.b16 %v1231
        %v5209 = vunpack.c.h.b16 %v1231
        %v5210 = vunpack.c.l.b16 %v1232
        %v5211 = vunpack.c.h.b16 %v1232
        %v5212 = vunpack.c.l.b16 %v1233
        %v5213 = vunpack.c.h.b16 %v1233
        %v5214 = vunpack.c.l.b16 %v1234
        %v5215 = vunpack.c.h.b16 %v1234
        %v5216 = vunpack.c.l.b16 %v1235
        %v5217 = vunpack.c.h.b16 %v1235
        %v5218 = vunpack.c.l.b16 %v1236
        %v5219 = vunpack.c.h.b16 %v1236
        %v5220 = vunpack.c.l.b16 %v1237
        %v5221 = vunpack.c.h.b16 %v1237
        %v5222 = vunpack.c.l.b16 %v1238
        %v5223 = vunpack.c.h.b16 %v1238
        %v5224 = vunpack.c.l.b16 %v1239
        %v5225 = vunpack.c.h.b16 %v1239
        %v5226 = vunpack.c.l.b16 %v1240
        %v5227 = vunpack.c.h.b16 %v1240
        %v5228 = vunpack.c.l.b16 %v1241
        %v5229 = vunpack.c.h.b16 %v1241
        %v5230 = vunpack.c.l.b16 %v1242
        %v5231 = vunpack.c.h.b16 %v1242
        %v5232 = vunpack.c.l.b16 %v1243
        %v5233 = vunpack.c.h.b16 %v1243
        %v5234 = vunpack.c.l.b16 %v1244
        %v5235 = vunpack.c.h.b16 %v1244
        %v5236 = vunpack.c.l.b16 %v1245
        %v5237 = vunpack.c.h.b16 %v1245
        %v5238 = vunpack.c.l.b16 %v1246
        %v5239 = vunpack.c.h.b16 %v1246
        %v5240 = vunpack.c.l.b16 %v1247
        %v5241 = vunpack.c.h.b16 %v1247
        %v5242 = vunpack.c.l.b16 %v1248
        %v5243 = vunpack.c.h.b16 %v1248
        %v5244 = vunpack.c.l.b16 %v1249
        %v5245 = vunpack.c.h.b16 %v1249
        %v5246 = vunpack.c.l.b16 %v1250
        %v5247 = vunpack.c.h.b16 %v1250
        %v5248 = vunpack.c.l.b16 %v1251
        %v5249 = vunpack.c.h.b16 %v1251
        %v5250 = vunpack.c.l.b16 %v1252
        %v5251 = vunpack.c.h.b16 %v1252
        %v5252 = vunpack.c.l.b16 %v1253
        %v5253 = vunpack.c.h.b16 %v1253
        %v5254 = vunpack.c.l.b16 %v1254
        %v5255 = vunpack.c.h.b16 %v1254
        %v5256 = vunpack.c.l.b16 %v1255
        %v5257 = vunpack.c.h.b16 %v1255
        %v5258 = vunpack.c.l.b16 %v1256
        %v5259 = vunpack.c.h.b16 %v1256
        %v5260 = vunpack.c.l.b16 %v1257
        %v5261 = vunpack.c.h.b16 %v1257
        %v5262 = vunpack.c.l.b16 %v1258
        %v5263 = vunpack.c.h.b16 %v1258
        %v5264 = vunpack.c.l.b16 %v1259
        %v5265 = vunpack.c.h.b16 %v1259
        %v5266 = vunpack.c.l.b16 %v1260
        %v5267 = vunpack.c.h.b16 %v1260
        %v5268 = vunpack.c.l.b16 %v1261
        %v5269 = vunpack.c.h.b16 %v1261
        %v5270 = vunpack.c.l.b16 %v1262
        %v5271 = vunpack.c.h.b16 %v1262
        %v5272 = vunpack.c.l.b16 %v1263
        %v5273 = vunpack.c.h.b16 %v1263
        %v5274 = vunpack.c.l.b16 %v1264
        %v5275 = vunpack.c.h.b16 %v1264
        %v5276 = vunpack.c.l.b16 %v1265
        %v5277 = vunpack.c.h.b16 %v1265
        %v5278 = vunpack.c.l.b16 %v1266
        %v5279 = vunpack.c.h.b16 %v1266
        %v5280 = vunpack.c.l.b16 %v1267
        %v5281 = vunpack.c.h.b16 %v1267
        %v5282 = vunpack.c.l.b16 %v1268
        %v5283 = vunpack.c.h.b16 %v1268
        %v5284 = vunpack.c.l.b16 %v1269
        %v5285 = vunpack.c.h.b16 %v1269
        %v5286 = vunpack.c.l.b16 %v1270
        %v5287 = vunpack.c.h.b16 %v1270
        %v5288 = vunpack.c.l.b16 %v1271
        %v5289 = vunpack.c.h.b16 %v1271
        %v5290 = vunpack.c.l.b16 %v1272
        %v5291 = vunpack.c.h.b16 %v1272
        %v5292 = vunpack.c.l.b16 %v1273
        %v5293 = vunpack.c.h.b16 %v1273
        %v5294 = vunpack.c.l.b16 %v1274
        %v5295 = vunpack.c.h.b16 %v1274
        %v5296 = vunpack.c.l.b16 %v1275
        %v5297 = vunpack.c.h.b16 %v1275
        %v5298 = vunpack.c.l.b16 %v1276
        %v5299 = vunpack.c.h.b16 %v1276
        %v5300 = vunpack.c.l.b16 %v1277
        %v5301 = vunpack.c.h.b16 %v1277
        %v5302 = vunpack.c.l.b16 %v1278
        %v5303 = vunpack.c.h.b16 %v1278
        %v5304 = vunpack.c.l.b16 %v1279
        %v5305 = vunpack.c.h.b16 %v1279
        %v5306 = vunpack.c.l.b16 %v1280
        %v5307 = vunpack.c.h.b16 %v1280
        %v5308 = vunpack.c.l.b16 %v1281
        %v5309 = vunpack.c.h.b16 %v1281
        %v5310 = vunpack.c.l.b16 %v1282
        %v5311 = vunpack.c.h.b16 %v1282
        %v5312 = vunpack.c.l.b16 %v1283
        %v5313 = vunpack.c.h.b16 %v1283
        %v5314 = vunpack.c.l.b16 %v1284
        %v5315 = vunpack.c.h.b16 %v1284
        %v5316 = vunpack.c.l.b16 %v1285
        %v5317 = vunpack.c.h.b16 %v1285
        %v5318 = vunpack.c.l.b16 %v1286
        %v5319 = vunpack.c.h.b16 %v1286
        %v5320 = vunpack.c.l.b16 %v1287
        %v5321 = vunpack.c.h.b16 %v1287
        %v5322 = vunpack.c.l.b16 %v1288
        %v5323 = vunpack.c.h.b16 %v1288
        %v5324 = vunpack.c.l.b16 %v1289
        %v5325 = vunpack.c.h.b16 %v1289
        %v5326 = vunpack.c.l.b16 %v1290
        %v5327 = vunpack.c.h.b16 %v1290
        %v5328 = vunpack.c.l.b16 %v1291
        %v5329 = vunpack.c.h.b16 %v1291
        %v5330 = vunpack.c.l.b16 %v1292
        %v5331 = vunpack.c.h.b16 %v1292
        %v5332 = vunpack.c.l.b16 %v1293
        %v5333 = vunpack.c.h.b16 %v1293
        %v5334 = vunpack.c.l.b16 %v1294
        %v5335 = vunpack.c.h.b16 %v1294
        %v5336 = vunpack.c.l.b16 %v1295
        %v5337 = vunpack.c.h.b16 %v1295
        %v5338 = vunpack.c.l.b16 %v1296
        %v5339 = vunpack.c.h.b16 %v1296
        %v5340 = vunpack.c.l.b16 %v1297
        %v5341 = vunpack.c.h.b16 %v1297
        %v5342 = vunpack.c.l.b16 %v1298
        %v5343 = vunpack.c.h.b16 %v1298
        %v5344 = vunpack.c.l.b16 %v1299
        %v5345 = vunpack.c.h.b16 %v1299
        %v5346 = vunpack.c.l.b16 %v1300
        %v5347 = vunpack.c.h.b16 %v1300
        %v5348 = vunpack.c.l.b16 %v1301
        %v5349 = vunpack.c.h.b16 %v1301
        %v5350 = vunpack.c.l.b16 %v1302
        %v5351 = vunpack.c.h.b16 %v1302
        %v5352 = vunpack.c.l.b16 %v1303
        %v5353 = vunpack.c.h.b16 %v1303
        %v5354 = vunpack.c.l.b16 %v1304
        %v5355 = vunpack.c.h.b16 %v1304
        %v5356 = vunpack.c.l.b16 %v1305
        %v5357 = vunpack.c.h.b16 %v1305
        %v5358 = vunpack.c.l.b16 %v1306
        %v5359 = vunpack.c.h.b16 %v1306
        %v5360 = vunpack.c.l.b16 %v1307
        %v5361 = vunpack.c.h.b16 %v1307
        %v5362 = vunpack.c.l.b16 %v1308
        %v5363 = vunpack.c.h.b16 %v1308
        %v5364 = vunpack.c.l.b16 %v1309
        %v5365 = vunpack.c.h.b16 %v1309
        %v5366 = vunpack.c.l.b16 %v1310
        %v5367 = vunpack.c.h.b16 %v1310
        %v5368 = vunpack.c.l.b16 %v1311
        %v5369 = vunpack.c.h.b16 %v1311
        %v5370 = vunpack.c.l.b16 %v1312
        %v5371 = vunpack.c.h.b16 %v1312
        %v5372 = vunpack.c.l.b16 %v1313
        %v5373 = vunpack.c.h.b16 %v1313
        %v5374 = vunpack.c.l.b16 %v1314
        %v5375 = vunpack.c.h.b16 %v1314
        %v5376 = vunpack.c.l.b16 %v1315
        %v5377 = vunpack.c.h.b16 %v1315
        %v5378 = vunpack.c.l.b16 %v1316
        %v5379 = vunpack.c.h.b16 %v1316
        %v5380 = vunpack.c.l.b16 %v1317
        %v5381 = vunpack.c.h.b16 %v1317
        %v5382 = vunpack.c.l.b16 %v1318
        %v5383 = vunpack.c.h.b16 %v1318
        %v5384 = vunpack.c.l.b16 %v1319
        %v5385 = vunpack.c.h.b16 %v1319
        %v5386 = vunpack.c.l.b16 %v1320
        %v5387 = vunpack.c.h.b16 %v1320
        %v5388 = vunpack.c.l.b16 %v1321
        %v5389 = vunpack.c.h.b16 %v1321
        %v5390 = vunpack.c.l.b16 %v1322
        %v5391 = vunpack.c.h.b16 %v1322
        %v5392 = vunpack.c.l.b16 %v1323
        %v5393 = vunpack.c.h.b16 %v1323
        %v5394 = vunpack.c.l.b16 %v1324
        %v5395 = vunpack.c.h.b16 %v1324
        %v5396 = vunpack.c.l.b16 %v1325
        %v5397 = vunpack.c.h.b16 %v1325
        %v5398 = vunpack.c.l.b16 %v1326
        %v5399 = vunpack.c.h.b16 %v1326
        %v5400 = vunpack.c.l.b16 %v1327
        %v5401 = vunpack.c.h.b16 %v1327
        %v5402 = vunpack.c.l.b16 %v1328
        %v5403 = vunpack.c.h.b16 %v1328
        %v5404 = vunpack.c.l.b16 %v1329
        %v5405 = vunpack.c.h.b16 %v1329
        %v5406 = vunpack.c.l.b16 %v1330
        %v5407 = vunpack.c.h.b16 %v1330
        %v5408 = vunpack.c.l.b16 %v1331
        %v5409 = vunpack.c.h.b16 %v1331
        %v5410 = vunpack.c.l.b16 %v1332
        %v5411 = vunpack.c.h.b16 %v1332
        %v5412 = vunpack.c.l.b16 %v1333
        %v5413 = vunpack.c.h.b16 %v1333
        %v5414 = vunpack.c.l.b16 %v1334
        %v5415 = vunpack.c.h.b16 %v1334
        %v5416 = vunpack.c.l.b16 %v1335
        %v5417 = vunpack.c.h.b16 %v1335
        %v5418 = vunpack.c.l.b16 %v1336
        %v5419 = vunpack.c.h.b16 %v1336
        %v5420 = vunpack.c.l.b16 %v1337
        %v5421 = vunpack.c.h.b16 %v1337
        %v5422 = vunpack.c.l.b16 %v1338
        %v5423 = vunpack.c.h.b16 %v1338
        %v5424 = vunpack.c.l.b16 %v1339
        %v5425 = vunpack.c.h.b16 %v1339
        %v5426 = vunpack.c.l.b16 %v1340
        %v5427 = vunpack.c.h.b16 %v1340
        %v5428 = vunpack.c.l.b16 %v1341
        %v5429 = vunpack.c.h.b16 %v1341
        %v5430 = vunpack.c.l.b16 %v1342
        %v5431 = vunpack.c.h.b16 %v1342
        %v5432 = vunpack.c.l.b16 %v1343
        %v5433 = vunpack.c.h.b16 %v1343
        %v5434 = vunpack.c.l.b16 %v1344
        %v5435 = vunpack.c.h.b16 %v1344
        %v5436 = vunpack.c.l.b16 %v1345
        %v5437 = vunpack.c.h.b16 %v1345
        %v5438 = vunpack.c.l.b16 %v1346
        %v5439 = vunpack.c.h.b16 %v1346
        %v5440 = vunpack.c.l.b16 %v1347
        %v5441 = vunpack.c.h.b16 %v1347
        %v5442 = vunpack.c.l.b16 %v1348
        %v5443 = vunpack.c.h.b16 %v1348
        %v5444 = vunpack.c.l.b16 %v1349
        %v5445 = vunpack.c.h.b16 %v1349
        %v5446 = vunpack.c.l.b16 %v1350
        %v5447 = vunpack.c.h.b16 %v1350
        %v5448 = vunpack.c.l.b16 %v1351
        %v5449 = vunpack.c.h.b16 %v1351
        %v5450 = vunpack.c.l.b16 %v1352
        %v5451 = vunpack.c.h.b16 %v1352
        %v5452 = vunpack.c.l.b16 %v1353
        %v5453 = vunpack.c.h.b16 %v1353
        %v5454 = vunpack.c.l.b16 %v1354
        %v5455 = vunpack.c.h.b16 %v1354
        %v5456 = vunpack.c.l.b16 %v1355
        %v5457 = vunpack.c.h.b16 %v1355
        %v5458 = vunpack.c.l.b16 %v1356
        %v5459 = vunpack.c.h.b16 %v1356
        %v5460 = vunpack.c.l.b16 %v1357
        %v5461 = vunpack.c.h.b16 %v1357
        %v5462 = vunpack.c.l.b16 %v1358
        %v5463 = vunpack.c.h.b16 %v1358
        %v5464 = vunpack.c.l.b16 %v1359
        %v5465 = vunpack.c.h.b16 %v1359
        %v5466 = vunpack.c.l.b16 %v1360
        %v5467 = vunpack.c.h.b16 %v1360
        %v5468 = vunpack.c.l.b16 %v1361
        %v5469 = vunpack.c.h.b16 %v1361
        %v5470 = vunpack.c.l.b16 %v1362
        %v5471 = vunpack.c.h.b16 %v1362
        %v5472 = vunpack.c.l.b16 %v1363
        %v5473 = vunpack.c.h.b16 %v1363
        %v5474 = vunpack.c.l.b16 %v1364
        %v5475 = vunpack.c.h.b16 %v1364
        %v5476 = vunpack.c.l.b16 %v1365
        %v5477 = vunpack.c.h.b16 %v1365
        %v5478 = vunpack.c.l.b16 %v1366
        %v5479 = vunpack.c.h.b16 %v1366
        %v5480 = vunpack.c.l.b16 %v1367
        %v5481 = vunpack.c.h.b16 %v1367
        %v5482 = vunpack.c.l.b16 %v1368
        %v5483 = vunpack.c.h.b16 %v1368
        %v5484 = vunpack.c.l.b16 %v1369
        %v5485 = vunpack.c.h.b16 %v1369
        %v5486 = vunpack.c.l.b16 %v1370
        %v5487 = vunpack.c.h.b16 %v1370
        %v5488 = vunpack.c.l.b16 %v1371
        %v5489 = vunpack.c.h.b16 %v1371
        %v5490 = vunpack.c.l.b16 %v1372
        %v5491 = vunpack.c.h.b16 %v1372
        %v5492 = vunpack.c.l.b16 %v1373
        %v5493 = vunpack.c.h.b16 %v1373
        %v5494 = vunpack.c.l.b16 %v1374
        %v5495 = vunpack.c.h.b16 %v1374
        %v5496 = vunpack.c.l.b16 %v1375
        %v5497 = vunpack.c.h.b16 %v1375
        %v5498 = vunpack.c.l.b16 %v1376
        %v5499 = vunpack.c.h.b16 %v1376
        %v5500 = vunpack.c.l.b16 %v1377
        %v5501 = vunpack.c.h.b16 %v1377
        %v5502 = vunpack.c.l.b16 %v1378
        %v5503 = vunpack.c.h.b16 %v1378
        %v5504 = vunpack.c.l.b16 %v1379
        %v5505 = vunpack.c.h.b16 %v1379
        %v5506 = vunpack.c.l.b16 %v1380
        %v5507 = vunpack.c.h.b16 %v1380
        %v5508 = vunpack.c.l.b16 %v1381
        %v5509 = vunpack.c.h.b16 %v1381
        %v5510 = vunpack.c.l.b16 %v1382
        %v5511 = vunpack.c.h.b16 %v1382
        %v5512 = vunpack.c.l.b16 %v1383
        %v5513 = vunpack.c.h.b16 %v1383
        %v5514 = vunpack.c.l.b16 %v1384
        %v5515 = vunpack.c.h.b16 %v1384
        %v5516 = vunpack.c.l.b16 %v1385
        %v5517 = vunpack.c.h.b16 %v1385
        %v5518 = vunpack.c.l.b16 %v1386
        %v5519 = vunpack.c.h.b16 %v1386
        %v5520 = vunpack.c.l.b16 %v1387
        %v5521 = vunpack.c.h.b16 %v1387
        %v5522 = vunpack.c.l.b16 %v1388
        %v5523 = vunpack.c.h.b16 %v1388
        %v5524 = vunpack.c.l.b16 %v1389
        %v5525 = vunpack.c.h.b16 %v1389
        %v5526 = vunpack.c.l.b16 %v1390
        %v5527 = vunpack.c.h.b16 %v1390
        %v5528 = vunpack.c.l.b16 %v1391
        %v5529 = vunpack.c.h.b16 %v1391
        %v5530 = vunpack.c.l.b16 %v1392
        %v5531 = vunpack.c.h.b16 %v1392
        %v5532 = vunpack.c.l.b16 %v1393
        %v5533 = vunpack.c.h.b16 %v1393
        %v5534 = vunpack.c.l.b16 %v1394
        %v5535 = vunpack.c.h.b16 %v1394
        %v5536 = vunpack.c.l.b16 %v1395
        %v5537 = vunpack.c.h.b16 %v1395
        %v5538 = vunpack.c.l.b16 %v1396
        %v5539 = vunpack.c.h.b16 %v1396
        %v5540 = vunpack.c.l.b16 %v1397
        %v5541 = vunpack.c.h.b16 %v1397
        %v5542 = vunpack.c.l.b16 %v1398
        %v5543 = vunpack.c.h.b16 %v1398
        %v5544 = vunpack.c.l.b16 %v1399
        %v5545 = vunpack.c.h.b16 %v1399
        %v5546 = vunpack.c.l.b16 %v1400
        %v5547 = vunpack.c.h.b16 %v1400
        %v5548 = vunpack.c.l.b16 %v1401
        %v5549 = vunpack.c.h.b16 %v1401
        %v5550 = vunpack.c.l.b16 %v1402
        %v5551 = vunpack.c.h.b16 %v1402
        %v5552 = vunpack.c.l.b16 %v1403
        %v5553 = vunpack.c.h.b16 %v1403
        %v5554 = vunpack.c.l.b16 %v1404
        %v5555 = vunpack.c.h.b16 %v1404
        %v5556 = vunpack.c.l.b16 %v1405
        %v5557 = vunpack.c.h.b16 %v1405
        %v5558 = vunpack.c.l.b16 %v1406
        %v5559 = vunpack.c.h.b16 %v1406
        %v5560 = vunpack.c.l.b16 %v1407
        %v5561 = vunpack.c.h.b16 %v1407
        %v5562 = vunpack.c.l.b16 %v1408
        %v5563 = vunpack.c.h.b16 %v1408
        %v5564 = vunpack.c.l.b16 %v1409
        %v5565 = vunpack.c.h.b16 %v1409
        %v5566 = vunpack.c.l.b16 %v1410
        %v5567 = vunpack.c.h.b16 %v1410
        %v5568 = vunpack.c.l.b16 %v1411
        %v5569 = vunpack.c.h.b16 %v1411
        %v5570 = vunpack.c.l.b16 %v1412
        %v5571 = vunpack.c.h.b16 %v1412
        %v5572 = vunpack.c.l.b16 %v1413
        %v5573 = vunpack.c.h.b16 %v1413
        %v5574 = vunpack.c.l.b16 %v1414
        %v5575 = vunpack.c.h.b16 %v1414
        %v5576 = vunpack.c.l.b16 %v1415
        %v5577 = vunpack.c.h.b16 %v1415
        %v5578 = vunpack.c.l.b16 %v1416
        %v5579 = vunpack.c.h.b16 %v1416
        %v5580 = vunpack.c.l.b16 %v1417
        %v5581 = vunpack.c.h.b16 %v1417
        %v5582 = vunpack.c.l.b16 %v1418
        %v5583 = vunpack.c.h.b16 %v1418
        %v5584 = vunpack.c.l.b16 %v1419
        %v5585 = vunpack.c.h.b16 %v1419
        %v5586 = vunpack.c.l.b16 %v1420
        %v5587 = vunpack.c.h.b16 %v1420
        %v5588 = vunpack.c.l.b16 %v1421
        %v5589 = vunpack.c.h.b16 %v1421
        %v5590 = vunpack.c.l.b16 %v1422
        %v5591 = vunpack.c.h.b16 %v1422
        %v5592 = vunpack.c.l.b16 %v1423
        %v5593 = vunpack.c.h.b16 %v1423
        %v5594 = vunpack.c.l.b16 %v1424
        %v5595 = vunpack.c.h.b16 %v1424
        %v5596 = vunpack.c.l.b16 %v1425
        %v5597 = vunpack.c.h.b16 %v1425
        %v5598 = vunpack.c.l.b16 %v1426
        %v5599 = vunpack.c.h.b16 %v1426
        %v5600 = vunpack.c.l.b16 %v1427
        %v5601 = vunpack.c.h.b16 %v1427
        %v5602 = vunpack.c.l.b16 %v1428
        %v5603 = vunpack.c.h.b16 %v1428
        %v5604 = vunpack.c.l.b16 %v1429
        %v5605 = vunpack.c.h.b16 %v1429
        %v5606 = vunpack.c.l.b16 %v1430
        %v5607 = vunpack.c.h.b16 %v1430
        %v5608 = vunpack.c.l.b16 %v1431
        %v5609 = vunpack.c.h.b16 %v1431
        %v5610 = vunpack.c.l.b16 %v1432
        %v5611 = vunpack.c.h.b16 %v1432
        %v5612 = vunpack.c.l.b16 %v1433
        %v5613 = vunpack.c.h.b16 %v1433
        %v5614 = vunpack.c.l.b16 %v1434
        %v5615 = vunpack.c.h.b16 %v1434
        %v5616 = vunpack.c.l.b16 %v1435
        %v5617 = vunpack.c.h.b16 %v1435
        %v5618 = vunpack.c.l.b16 %v1436
        %v5619 = vunpack.c.h.b16 %v1436
        %v5620 = vunpack.c.l.b16 %v1437
        %v5621 = vunpack.c.h.b16 %v1437
        %v5622 = vunpack.c.l.b16 %v1438
        %v5623 = vunpack.c.h.b16 %v1438
        %v5624 = vunpack.c.l.b16 %v1439
        %v5625 = vunpack.c.h.b16 %v1439
        %v5626 = vunpack.c.l.b16 %v1440
        %v5627 = vunpack.c.h.b16 %v1440
        %v5628 = vunpack.c.l.b16 %v1441
        %v5629 = vunpack.c.h.b16 %v1441
        %v5630 = vunpack.c.l.b16 %v1442
        %v5631 = vunpack.c.h.b16 %v1442
        %v5632 = vunpack.c.l.b16 %v1443
        %v5633 = vunpack.c.h.b16 %v1443
        %v5634 = vunpack.c.l.b16 %v1444
        %v5635 = vunpack.c.h.b16 %v1444
        %v5636 = vunpack.c.l.b16 %v1445
        %v5637 = vunpack.c.h.b16 %v1445
        %v5638 = vunpack.c.l.b16 %v1446
        %v5639 = vunpack.c.h.b16 %v1446
        %v5640 = vunpack.c.l.b16 %v1447
        %v5641 = vunpack.c.h.b16 %v1447
        %v5642 = vunpack.c.l.b16 %v1448
        %v5643 = vunpack.c.h.b16 %v1448
        %v5644 = vunpack.c.l.b16 %v1449
        %v5645 = vunpack.c.h.b16 %v1449
        %v5646 = vunpack.c.l.b16 %v1450
        %v5647 = vunpack.c.h.b16 %v1450
        %v5648 = vunpack.c.l.b16 %v1451
        %v5649 = vunpack.c.h.b16 %v1451
        %v5650 = vunpack.c.l.b16 %v1452
        %v5651 = vunpack.c.h.b16 %v1452
        %v5652 = vunpack.c.l.b16 %v1453
        %v5653 = vunpack.c.h.b16 %v1453
        %v5654 = vunpack.c.l.b16 %v1454
        %v5655 = vunpack.c.h.b16 %v1454
        %v5656 = vunpack.c.l.b16 %v1455
        %v5657 = vunpack.c.h.b16 %v1455
        %v5658 = vunpack.c.l.b16 %v1456
        %v5659 = vunpack.c.h.b16 %v1456
        %v5660 = vunpack.c.l.b16 %v1457
        %v5661 = vunpack.c.h.b16 %v1457
        %v5662 = vunpack.c.l.b16 %v1458
        %v5663 = vunpack.c.h.b16 %v1458
        %v5664 = vunpack.c.l.b16 %v1459
        %v5665 = vunpack.c.h.b16 %v1459
        %v5666 = vunpack.c.l.b16 %v1460
        %v5667 = vunpack.c.h.b16 %v1460
        %v5668 = vunpack.c.l.b16 %v1461
        %v5669 = vunpack.c.h.b16 %v1461
        %v5670 = vunpack.c.l.b16 %v1462
        %v5671 = vunpack.c.h.b16 %v1462
        %v5672 = vunpack.c.l.b16 %v1463
        %v5673 = vunpack.c.h.b16 %v1463
        %v5674 = vunpack.c.l.b16 %v1464
        %v5675 = vunpack.c.h.b16 %v1464
        %v5676 = vunpack.c.l.b16 %v1465
        %v5677 = vunpack.c.h.b16 %v1465
        %v5678 = vunpack.c.l.b16 %v1466
        %v5679 = vunpack.c.h.b16 %v1466
        %v5680 = vunpack.c.l.b16 %v1467
        %v5681 = vunpack.c.h.b16 %v1467
        %v5682 = vunpack.c.l.b16 %v1468
        %v5683 = vunpack.c.h.b16 %v1468
        %v5684 = vunpack.c.l.b16 %v1469
        %v5685 = vunpack.c.h.b16 %v1469
        %v5686 = vunpack.c.l.b16 %v1470
        %v5687 = vunpack.c.h.b16 %v1470
        %v5688 = vunpack.c.l.b16 %v1471
        %v5689 = vunpack.c.h.b16 %v1471
        %v5690 = vunpack.c.l.b16 %v1472
        %v5691 = vunpack.c.h.b16 %v1472
        %v5692 = vunpack.c.l.b16 %v1473
        %v5693 = vunpack.c.h.b16 %v1473
        %v5694 = vunpack.c.l.b16 %v1474
        %v5695 = vunpack.c.h.b16 %v1474
        %v5696 = vunpack.c.l.b16 %v1475
        %v5697 = vunpack.c.h.b16 %v1475
        %v5698 = vunpack.c.l.b16 %v1476
        %v5699 = vunpack.c.h.b16 %v1476
        %v5700 = vunpack.c.l.b16 %v1477
        %v5701 = vunpack.c.h.b16 %v1477
        %v5702 = vunpack.c.l.b16 %v1478
        %v5703 = vunpack.c.h.b16 %v1478
        %v5704 = vunpack.c.l.b16 %v1479
        %v5705 = vunpack.c.h.b16 %v1479
        %v5706 = vunpack.c.l.b16 %v1480
        %v5707 = vunpack.c.h.b16 %v1480
        %v5708 = vunpack.c.l.b16 %v1481
        %v5709 = vunpack.c.h.b16 %v1481
        %v5710 = vunpack.c.l.b16 %v1482
        %v5711 = vunpack.c.h.b16 %v1482
        %v5712 = vunpack.c.l.b16 %v1483
        %v5713 = vunpack.c.h.b16 %v1483
        %v5714 = vunpack.c.l.b16 %v1484
        %v5715 = vunpack.c.h.b16 %v1484
        %v5716 = vunpack.c.l.b16 %v1485
        %v5717 = vunpack.c.h.b16 %v1485
        %v5718 = vunpack.c.l.b16 %v1486
        %v5719 = vunpack.c.h.b16 %v1486
        %v5720 = vunpack.c.l.b16 %v1487
        %v5721 = vunpack.c.h.b16 %v1487
        %v5722 = vunpack.c.l.b16 %v1488
        %v5723 = vunpack.c.h.b16 %v1488
        %v5724 = vunpack.c.l.b16 %v1489
        %v5725 = vunpack.c.h.b16 %v1489
        %v5726 = vunpack.c.l.b16 %v1490
        %v5727 = vunpack.c.h.b16 %v1490
        %v5728 = vunpack.c.l.b16 %v1491
        %v5729 = vunpack.c.h.b16 %v1491
        %v5730 = vunpack.c.l.b16 %v1492
        %v5731 = vunpack.c.h.b16 %v1492
        %v5732 = vunpack.c.l.b16 %v1493
        %v5733 = vunpack.c.h.b16 %v1493
        %v5734 = vunpack.c.l.b16 %v1494
        %v5735 = vunpack.c.h.b16 %v1494
        %v5736 = vunpack.c.l.b16 %v1495
        %v5737 = vunpack.c.h.b16 %v1495
        %v5738 = vunpack.c.l.b16 %v1496
        %v5739 = vunpack.c.h.b16 %v1496
        %v5740 = vunpack.c.l.b16 %v1497
        %v5741 = vunpack.c.h.b16 %v1497
        %v5742 = vunpack.c.l.b16 %v1498
        %v5743 = vunpack.c.h.b16 %v1498
        %v5744 = vunpack.c.l.b16 %v1499
        %v5745 = vunpack.c.h.b16 %v1499
        %v5746 = vunpack.c.l.b16 %v1500
        %v5747 = vunpack.c.h.b16 %v1500
        %v5748 = vunpack.c.l.b16 %v1501
        %v5749 = vunpack.c.h.b16 %v1501
        %v5750 = vunpack.c.l.b16 %v1502
        %v5751 = vunpack.c.h.b16 %v1502
        %v5752 = vunpack.c.l.b16 %v1503
        %v5753 = vunpack.c.h.b16 %v1503
        %v5754 = vunpack.c.l.b16 %v1504
        %v5755 = vunpack.c.h.b16 %v1504
        %v5756 = vunpack.c.l.b16 %v1505
        %v5757 = vunpack.c.h.b16 %v1505
        %v5758 = vunpack.c.l.b16 %v1506
        %v5759 = vunpack.c.h.b16 %v1506
        %v5760 = vunpack.c.l.b16 %v1507
        %v5761 = vunpack.c.h.b16 %v1507
        %v5762 = vunpack.c.l.b16 %v1508
        %v5763 = vunpack.c.h.b16 %v1508
        %v5764 = vunpack.c.l.b16 %v1509
        %v5765 = vunpack.c.h.b16 %v1509
        %v5766 = vunpack.c.l.b16 %v1510
        %v5767 = vunpack.c.h.b16 %v1510
        %v5768 = vunpack.c.l.b16 %v1511
        %v5769 = vunpack.c.h.b16 %v1511
        %v5770 = vunpack.c.l.b16 %v1512
        %v5771 = vunpack.c.h.b16 %v1512
        %v5772 = vunpack.c.l.b16 %v1513
        %v5773 = vunpack.c.h.b16 %v1513
        %v5774 = vunpack.c.l.b16 %v1514
        %v5775 = vunpack.c.h.b16 %v1514
        %v5776 = vunpack.c.l.b16 %v1515
        %v5777 = vunpack.c.h.b16 %v1515
        %v5778 = vunpack.c.l.b16 %v1516
        %v5779 = vunpack.c.h.b16 %v1516
        %v5780 = vunpack.c.l.b16 %v1517
        %v5781 = vunpack.c.h.b16 %v1517
        %v5782 = vunpack.c.l.b16 %v1518
        %v5783 = vunpack.c.h.b16 %v1518
        %v5784 = vunpack.c.l.b16 %v1519
        %v5785 = vunpack.c.h.b16 %v1519
        %v5786 = vunpack.c.l.b16 %v1520
        %v5787 = vunpack.c.h.b16 %v1520
        %v5788 = vunpack.c.l.b16 %v1521
        %v5789 = vunpack.c.h.b16 %v1521
        %v5790 = vunpack.c.l.b16 %v1522
        %v5791 = vunpack.c.h.b16 %v1522
        %v5792 = vunpack.c.l.b16 %v1523
        %v5793 = vunpack.c.h.b16 %v1523
        %v5794 = vunpack.c.l.b16 %v1524
        %v5795 = vunpack.c.h.b16 %v1524
        %v5796 = vunpack.c.l.b16 %v1525
        %v5797 = vunpack.c.h.b16 %v1525
        %v5798 = vunpack.c.l.b16 %v1526
        %v5799 = vunpack.c.h.b16 %v1526
        %v5800 = vunpack.c.l.b16 %v1527
        %v5801 = vunpack.c.h.b16 %v1527
        %v5802 = vunpack.c.l.b16 %v1528
        %v5803 = vunpack.c.h.b16 %v1528
        %v5804 = vunpack.c.l.b16 %v1529
        %v5805 = vunpack.c.h.b16 %v1529
        %v5806 = vunpack.c.l.b16 %v1530
        %v5807 = vunpack.c.h.b16 %v1530
        %v5808 = vunpack.c.l.b16 %v1531
        %v5809 = vunpack.c.h.b16 %v1531
        %v5810 = vunpack.c.l.b16 %v1532
        %v5811 = vunpack.c.h.b16 %v1532
        %v5812 = vunpack.c.l.b16 %v1533
        %v5813 = vunpack.c.h.b16 %v1533
        %v5814 = vunpack.c.l.b16 %v1534
        %v5815 = vunpack.c.h.b16 %v1534
        %v5816 = vunpack.c.l.b16 %v1535
        %v5817 = vunpack.c.h.b16 %v1535
        %v5818 = vunpack.c.l.b16 %v1536
        %v5819 = vunpack.c.h.b16 %v1536
        %v5820 = vunpack.c.l.b16 %v1537
        %v5821 = vunpack.c.h.b16 %v1537
        %v5822 = vunpack.c.l.b16 %v1538
        %v5823 = vunpack.c.h.b16 %v1538
        %v5824 = vunpack.c.l.b16 %v1539
        %v5825 = vunpack.c.h.b16 %v1539
        %v5826 = vunpack.c.l.b16 %v1540
        %v5827 = vunpack.c.h.b16 %v1540
        %v5828 = vunpack.c.l.b16 %v1541
        %v5829 = vunpack.c.h.b16 %v1541
        %v5830 = vunpack.c.l.b16 %v1542
        %v5831 = vunpack.c.h.b16 %v1542
        %v5832 = vunpack.c.l.b16 %v1543
        %v5833 = vunpack.c.h.b16 %v1543
        %v5834 = vunpack.c.l.b16 %v1544
        %v5835 = vunpack.c.h.b16 %v1544
        %v5836 = vunpack.c.l.b16 %v1545
        %v5837 = vunpack.c.h.b16 %v1545
        %v5838 = vunpack.c.l.b16 %v1546
        %v5839 = vunpack.c.h.b16 %v1546
        %v5840 = vunpack.c.l.b16 %v1547
        %v5841 = vunpack.c.h.b16 %v1547
        %v5842 = vunpack.c.l.b16 %v1548
        %v5843 = vunpack.c.h.b16 %v1548
        %v5844 = vunpack.c.l.b16 %v1549
        %v5845 = vunpack.c.h.b16 %v1549
        %v5846 = vunpack.c.l.b16 %v1550
        %v5847 = vunpack.c.h.b16 %v1550
        %v5848 = vunpack.c.l.b16 %v1551
        %v5849 = vunpack.c.h.b16 %v1551
        %v5850 = vunpack.c.l.b16 %v1552
        %v5851 = vunpack.c.h.b16 %v1552
        %v5852 = vunpack.c.l.b16 %v1553
        %v5853 = vunpack.c.h.b16 %v1553
        %v5854 = vunpack.c.l.b16 %v1554
        %v5855 = vunpack.c.h.b16 %v1554
        %v5856 = vunpack.c.l.b16 %v1555
        %v5857 = vunpack.c.h.b16 %v1555
        %v5858 = vunpack.c.l.b16 %v1556
        %v5859 = vunpack.c.h.b16 %v1556
        %v5860 = vunpack.c.l.b16 %v1557
        %v5861 = vunpack.c.h.b16 %v1557
        %v5862 = vunpack.c.l.b16 %v1558
        %v5863 = vunpack.c.h.b16 %v1558
        %v5864 = vunpack.c.l.b16 %v1559
        %v5865 = vunpack.c.h.b16 %v1559
        %v5866 = vunpack.c.l.b16 %v1560
        %v5867 = vunpack.c.h.b16 %v1560
        %v5868 = vunpack.c.l.b16 %v1561
        %v5869 = vunpack.c.h.b16 %v1561
        %v5870 = vunpack.c.l.b16 %v1562
        %v5871 = vunpack.c.h.b16 %v1562
        %v5872 = vunpack.c.l.b16 %v1563
        %v5873 = vunpack.c.h.b16 %v1563
        %v5874 = vunpack.c.l.b16 %v1564
        %v5875 = vunpack.c.h.b16 %v1564
        %v5876 = vunpack.c.l.b16 %v1565
        %v5877 = vunpack.c.h.b16 %v1565
        %v5878 = vunpack.c.l.b16 %v1566
        %v5879 = vunpack.c.h.b16 %v1566
        %v5880 = vunpack.c.l.b16 %v1567
        %v5881 = vunpack.c.h.b16 %v1567
        %v5882 = vunpack.c.l.b16 %v1568
        %v5883 = vunpack.c.h.b16 %v1568
        %v5884 = vunpack.c.l.b16 %v1569
        %v5885 = vunpack.c.h.b16 %v1569
        %v5886 = vunpack.c.l.b16 %v1570
        %v5887 = vunpack.c.h.b16 %v1570
        %v5888 = vunpack.c.l.b16 %v1571
        %v5889 = vunpack.c.h.b16 %v1571
        %v5890 = vunpack.c.l.b16 %v1572
        %v5891 = vunpack.c.h.b16 %v1572
        %v5892 = vunpack.c.l.b16 %v1573
        %v5893 = vunpack.c.h.b16 %v1573
        %v5894 = vunpack.c.l.b16 %v1574
        %v5895 = vunpack.c.h.b16 %v1574
        %v5896 = vunpack.c.l.b16 %v1575
        %v5897 = vunpack.c.h.b16 %v1575
        %v5898 = vunpack.c.l.b16 %v1576
        %v5899 = vunpack.c.h.b16 %v1576
        %v5900 = vunpack.c.l.b16 %v1577
        %v5901 = vunpack.c.h.b16 %v1577
        %v5902 = vunpack.c.l.b16 %v1578
        %v5903 = vunpack.c.h.b16 %v1578
        %v5904 = vunpack.c.l.b16 %v1579
        %v5905 = vunpack.c.h.b16 %v1579
        %v5906 = vunpack.c.l.b16 %v1580
        %v5907 = vunpack.c.h.b16 %v1580
        %v5908 = vunpack.c.l.b16 %v1581
        %v5909 = vunpack.c.h.b16 %v1581
        %v5910 = vunpack.c.l.b16 %v1582
        %v5911 = vunpack.c.h.b16 %v1582
        %v5912 = vunpack.c.l.b16 %v1583
        %v5913 = vunpack.c.h.b16 %v1583
        %v5914 = vunpack.c.l.b16 %v1584
        %v5915 = vunpack.c.h.b16 %v1584
        %v5916 = vunpack.c.l.b16 %v1585
        %v5917 = vunpack.c.h.b16 %v1585
        %v5918 = vunpack.c.l.b16 %v1586
        %v5919 = vunpack.c.h.b16 %v1586
        %v5920 = vunpack.c.l.b16 %v1587
        %v5921 = vunpack.c.h.b16 %v1587
        %v5922 = vunpack.c.l.b16 %v1588
        %v5923 = vunpack.c.h.b16 %v1588
        %v5924 = vunpack.c.l.b16 %v1589
        %v5925 = vunpack.c.h.b16 %v1589
        %v5926 = vunpack.c.l.b16 %v1590
        %v5927 = vunpack.c.h.b16 %v1590
        %v5928 = vunpack.c.l.b16 %v1591
        %v5929 = vunpack.c.h.b16 %v1591
        %v5930 = vunpack.c.l.b16 %v1592
        %v5931 = vunpack.c.h.b16 %v1592
        %v5932 = vunpack.c.l.b16 %v1593
        %v5933 = vunpack.c.h.b16 %v1593
        %v5934 = vunpack.c.l.b16 %v1594
        %v5935 = vunpack.c.h.b16 %v1594
        %v5936 = vunpack.c.l.b16 %v1595
        %v5937 = vunpack.c.h.b16 %v1595
        %v5938 = vunpack.c.l.b16 %v1596
        %v5939 = vunpack.c.h.b16 %v1596
        %v5940 = vunpack.c.l.b16 %v1597
        %v5941 = vunpack.c.h.b16 %v1597
        %v5942 = vunpack.c.l.b16 %v1598
        %v5943 = vunpack.c.h.b16 %v1598
        %v5944 = vunpack.c.l.b16 %v1599
        %v5945 = vunpack.c.h.b16 %v1599
        %v5946 = vunpack.c.l.b16 %v1600
        %v5947 = vunpack.c.h.b16 %v1600
        %v5948 = vunpack.c.l.b16 %v1601
        %v5949 = vunpack.c.h.b16 %v1601
        %v5950 = vunpack.c.l.b16 %v1602
        %v5951 = vunpack.c.h.b16 %v1602
        %v5952 = vunpack.c.l.b16 %v1603
        %v5953 = vunpack.c.h.b16 %v1603
        %v5954 = vunpack.c.l.b16 %v1604
        %v5955 = vunpack.c.h.b16 %v1604
        %v5956 = vunpack.c.l.b16 %v1605
        %v5957 = vunpack.c.h.b16 %v1605
        %v5958 = vunpack.c.l.b16 %v1606
        %v5959 = vunpack.c.h.b16 %v1606
        %v5960 = vunpack.c.l.b16 %v1607
        %v5961 = vunpack.c.h.b16 %v1607
        %v5962 = vunpack.c.l.b16 %v1608
        %v5963 = vunpack.c.h.b16 %v1608
        %v5964 = vunpack.c.l.b16 %v1609
        %v5965 = vunpack.c.h.b16 %v1609
        %v5966 = vunpack.c.l.b16 %v1610
        %v5967 = vunpack.c.h.b16 %v1610
        %v5968 = vunpack.c.l.b16 %v1611
        %v5969 = vunpack.c.h.b16 %v1611
        %v5970 = vunpack.c.l.b16 %v1612
        %v5971 = vunpack.c.h.b16 %v1612
        %v5972 = vunpack.c.l.b16 %v1613
        %v5973 = vunpack.c.h.b16 %v1613
        %v5974 = vunpack.c.l.b16 %v1614
        %v5975 = vunpack.c.h.b16 %v1614
        %v5976 = vunpack.c.l.b16 %v1615
        %v5977 = vunpack.c.h.b16 %v1615
        %v5978 = vunpack.c.l.b16 %v1616
        %v5979 = vunpack.c.h.b16 %v1616
        %v5980 = vunpack.c.l.b16 %v1617
        %v5981 = vunpack.c.h.b16 %v1617
        %v5982 = vunpack.c.l.b16 %v1618
        %v5983 = vunpack.c.h.b16 %v1618
        %v5984 = vunpack.c.l.b16 %v1619
        %v5985 = vunpack.c.h.b16 %v1619
        %v5986 = vunpack.c.l.b16 %v1620
        %v5987 = vunpack.c.h.b16 %v1620
        %v5988 = vunpack.c.l.b16 %v1621
        %v5989 = vunpack.c.h.b16 %v1621
        %v5990 = vunpack.c.l.b16 %v1622
        %v5991 = vunpack.c.h.b16 %v1622
        %v5992 = vunpack.c.l.b16 %v1623
        %v5993 = vunpack.c.h.b16 %v1623
        %v5994 = vunpack.c.l.b16 %v1624
        %v5995 = vunpack.c.h.b16 %v1624
        %v5996 = vunpack.c.l.b16 %v1625
        %v5997 = vunpack.c.h.b16 %v1625
        %v5998 = vunpack.c.l.b16 %v1626
        %v5999 = vunpack.c.h.b16 %v1626
        %v6000 = vunpack.c.l.b16 %v1627
        %v6001 = vunpack.c.h.b16 %v1627
        %v6002 = vunpack.c.l.b16 %v1628
        %v6003 = vunpack.c.h.b16 %v1628
        %v6004 = vunpack.c.l.b16 %v1629
        %v6005 = vunpack.c.h.b16 %v1629
        %v6006 = vunpack.c.l.b16 %v1630
        %v6007 = vunpack.c.h.b16 %v1630
        %v6008 = vunpack.c.l.b16 %v1631
        %v6009 = vunpack.c.h.b16 %v1631
        %v6010 = vunpack.c.l.b16 %v1632
        %v6011 = vunpack.c.h.b16 %v1632
        %v6012 = vunpack.c.l.b16 %v1633
        %v6013 = vunpack.c.h.b16 %v1633
        %v6014 = vunpack.c.l.b16 %v1634
        %v6015 = vunpack.c.h.b16 %v1634
        %v6016 = vunpack.c.l.b16 %v1635
        %v6017 = vunpack.c.h.b16 %v1635
        %v6018 = vunpack.c.l.b16 %v1636
        %v6019 = vunpack.c.h.b16 %v1636
        %v6020 = vunpack.c.l.b16 %v1637
        %v6021 = vunpack.c.h.b16 %v1637
        %v6022 = vunpack.c.l.b16 %v1638
        %v6023 = vunpack.c.h.b16 %v1638
        %v6024 = vunpack.c.l.b16 %v1639
        %v6025 = vunpack.c.h.b16 %v1639
        %v6026 = vunpack.c.l.b16 %v1640
        %v6027 = vunpack.c.h.b16 %v1640
        %v6028 = vunpack.c.l.b16 %v1641
        %v6029 = vunpack.c.h.b16 %v1641
        %v6030 = vunpack.c.l.b16 %v1642
        %v6031 = vunpack.c.h.b16 %v1642
        %v6032 = vunpack.c.l.b16 %v1643
        %v6033 = vunpack.c.h.b16 %v1643
        %v6034 = vunpack.c.l.b16 %v1644
        %v6035 = vunpack.c.h.b16 %v1644
        %v6036 = vunpack.c.l.b16 %v1645
        %v6037 = vunpack.c.h.b16 %v1645
        %v6038 = vunpack.c.l.b16 %v1646
        %v6039 = vunpack.c.h.b16 %v1646
        %v6040 = vunpack.c.l.b16 %v1647
        %v6041 = vunpack.c.h.b16 %v1647
        %v6042 = vunpack.c.l.b16 %v1648
        %v6043 = vunpack.c.h.b16 %v1648
        %v6044 = vunpack.c.l.b16 %v1649
        %v6045 = vunpack.c.h.b16 %v1649
        %v6046 = vunpack.c.l.b16 %v1650
        %v6047 = vunpack.c.h.b16 %v1650
        %v6048 = vunpack.c.l.b16 %v1651
        %v6049 = vunpack.c.h.b16 %v1651
        %v6050 = vunpack.c.l.b16 %v1652
        %v6051 = vunpack.c.h.b16 %v1652
        %v6052 = vunpack.c.l.b16 %v1653
        %v6053 = vunpack.c.h.b16 %v1653
        %v6054 = vunpack.c.l.b16 %v1654
        %v6055 = vunpack.c.h.b16 %v1654
        %v6056 = vunpack.c.l.b16 %v1655
        %v6057 = vunpack.c.h.b16 %v1655
        %v6058 = vunpack.c.l.b16 %v1656
        %v6059 = vunpack.c.h.b16 %v1656
        %v6060 = vunpack.c.l.b16 %v1657
        %v6061 = vunpack.c.h.b16 %v1657
        %v6062 = vunpack.c.l.b16 %v1658
        %v6063 = vunpack.c.h.b16 %v1658
        %v6064 = vunpack.c.l.b16 %v1659
        %v6065 = vunpack.c.h.b16 %v1659
        %v6066 = vunpack.c.l.b16 %v1660
        %v6067 = vunpack.c.h.b16 %v1660
        %v6068 = vunpack.c.l.b16 %v1661
        %v6069 = vunpack.c.h.b16 %v1661
        %v6070 = vunpack.c.l.b16 %v1662
        %v6071 = vunpack.c.h.b16 %v1662
        %v6072 = vunpack.c.l.b16 %v1663
        %v6073 = vunpack.c.h.b16 %v1663
        %v6074 = vunpack.c.l.b16 %v1664
        %v6075 = vunpack.c.h.b16 %v1664
        %v6076 = vunpack.c.l.b16 %v1665
        %v6077 = vunpack.c.h.b16 %v1665
        %v6078 = vunpack.c.l.b16 %v1666
        %v6079 = vunpack.c.h.b16 %v1666
        %v6080 = vunpack.c.l.b16 %v1667
        %v6081 = vunpack.c.h.b16 %v1667
        %v6082 = vunpack.c.l.b16 %v1668
        %v6083 = vunpack.c.h.b16 %v1668
        %v6084 = vunpack.c.l.b16 %v1669
        %v6085 = vunpack.c.h.b16 %v1669
        %v6086 = vunpack.c.l.b16 %v1670
        %v6087 = vunpack.c.h.b16 %v1670
        %v6088 = vunpack.c.l.b16 %v1671
        %v6089 = vunpack.c.h.b16 %v1671
        %v6090 = vunpack.c.l.b16 %v1672
        %v6091 = vunpack.c.h.b16 %v1672
        %v6092 = vunpack.c.l.b16 %v1673
        %v6093 = vunpack.c.h.b16 %v1673
        %v6094 = vunpack.c.l.b16 %v1674
        %v6095 = vunpack.c.h.b16 %v1674
        %v6096 = vunpack.c.l.b16 %v1675
        %v6097 = vunpack.c.h.b16 %v1675
        %v6098 = vunpack.c.l.b16 %v1676
        %v6099 = vunpack.c.h.b16 %v1676
        %v6100 = vunpack.c.l.b16 %v1677
        %v6101 = vunpack.c.h.b16 %v1677
        %v6102 = vunpack.c.l.b16 %v1678
        %v6103 = vunpack.c.h.b16 %v1678
        %v6104 = vunpack.c.l.b16 %v1679
        %v6105 = vunpack.c.h.b16 %v1679
        %v6106 = vunpack.c.l.b16 %v1680
        %v6107 = vunpack.c.h.b16 %v1680
        %v6108 = vunpack.c.l.b16 %v1681
        %v6109 = vunpack.c.h.b16 %v1681
        %v6110 = vunpack.c.l.b16 %v1682
        %v6111 = vunpack.c.h.b16 %v1682
        %v6112 = vunpack.c.l.b16 %v1683
        %v6113 = vunpack.c.h.b16 %v1683
        %v6114 = vunpack.c.l.b16 %v1684
        %v6115 = vunpack.c.h.b16 %v1684
        %v6116 = vunpack.c.l.b16 %v1685
        %v6117 = vunpack.c.h.b16 %v1685
        %v6118 = vunpack.c.l.b16 %v1686
        %v6119 = vunpack.c.h.b16 %v1686
        %v6120 = vunpack.c.l.b16 %v1687
        %v6121 = vunpack.c.h.b16 %v1687
        %v6122 = vunpack.c.l.b16 %v1688
        %v6123 = vunpack.c.h.b16 %v1688
        %v6124 = vunpack.c.l.b16 %v1689
        %v6125 = vunpack.c.h.b16 %v1689
        %v6126 = vunpack.c.l.b16 %v1690
        %v6127 = vunpack.c.h.b16 %v1690
        %v6128 = vunpack.c.l.b16 %v1691
        %v6129 = vunpack.c.h.b16 %v1691
        %v6130 = vunpack.c.l.b16 %v1692
        %v6131 = vunpack.c.h.b16 %v1692
        %v6132 = vunpack.c.l.b16 %v1693
        %v6133 = vunpack.c.h.b16 %v1693
        %v6134 = vunpack.c.l.b16 %v1694
        %v6135 = vunpack.c.h.b16 %v1694
        %v6136 = vunpack.c.l.b16 %v1695
        %v6137 = vunpack.c.h.b16 %v1695
        %v6138 = vunpack.c.l.b16 %v1696
        %v6139 = vunpack.c.h.b16 %v1696
        %v6140 = vunpack.c.l.b16 %v1697
        %v6141 = vunpack.c.h.b16 %v1697
        %v6142 = vunpack.c.l.b16 %v1698
        %v6143 = vunpack.c.h.b16 %v1698
        %v6144 = vunpack.c.l.b16 %v1699
        %v6145 = vunpack.c.h.b16 %v1699
        %v6146 = vunpack.c.l.b16 %v1700
        %v6147 = vunpack.c.h.b16 %v1700
        %v6148 = vunpack.c.l.b16 %v1701
        %v6149 = vunpack.c.h.b16 %v1701
        %v6150 = vunpack.c.l.b16 %v1702
        %v6151 = vunpack.c.h.b16 %v1702
        %v6152 = vunpack.c.l.b16 %v1703
        %v6153 = vunpack.c.h.b16 %v1703
        %v6154 = vunpack.c.l.b16 %v1704
        %v6155 = vunpack.c.h.b16 %v1704
        %v6156 = vunpack.c.l.b16 %v1705
        %v6157 = vunpack.c.h.b16 %v1705
        %v6158 = vunpack.c.l.b16 %v1706
        %v6159 = vunpack.c.h.b16 %v1706
        %v6160 = vunpack.c.l.b16 %v1707
        %v6161 = vunpack.c.h.b16 %v1707
        %v6162 = vunpack.c.l.b16 %v1708
        %v6163 = vunpack.c.h.b16 %v1708
        %v6164 = vunpack.c.l.b16 %v1709
        %v6165 = vunpack.c.h.b16 %v1709
        %v6166 = vunpack.c.l.b16 %v1710
        %v6167 = vunpack.c.h.b16 %v1710
        %v6168 = vunpack.c.l.b16 %v1711
        %v6169 = vunpack.c.h.b16 %v1711
        %v6170 = vunpack.c.l.b16 %v1712
        %v6171 = vunpack.c.h.b16 %v1712
        %v6172 = vunpack.c.l.b16 %v1713
        %v6173 = vunpack.c.h.b16 %v1713
        %v6174 = vunpack.c.l.b16 %v1714
        %v6175 = vunpack.c.h.b16 %v1714
        %v6176 = vunpack.c.l.b16 %v1715
        %v6177 = vunpack.c.h.b16 %v1715
        %v6178 = vunpack.c.l.b16 %v1716
        %v6179 = vunpack.c.h.b16 %v1716
        %v6180 = vunpack.c.l.b16 %v1717
        %v6181 = vunpack.c.h.b16 %v1717
        %v6182 = vunpack.c.l.b16 %v1718
        %v6183 = vunpack.c.h.b16 %v1718
        %v6184 = vunpack.c.l.b16 %v1719
        %v6185 = vunpack.c.h.b16 %v1719
        %v6186 = vunpack.c.l.b16 %v1720
        %v6187 = vunpack.c.h.b16 %v1720
        %v6188 = vunpack.c.l.b16 %v1721
        %v6189 = vunpack.c.h.b16 %v1721
        %v6190 = vunpack.c.l.b16 %v1722
        %v6191 = vunpack.c.h.b16 %v1722
        %v6192 = vunpack.c.l.b16 %v1723
        %v6193 = vunpack.c.h.b16 %v1723
        %v6194 = vunpack.c.l.b16 %v1724
        %v6195 = vunpack.c.h.b16 %v1724
        %v6196 = vunpack.c.l.b16 %v1725
        %v6197 = vunpack.c.h.b16 %v1725
        %v6198 = vunpack.c.l.b16 %v1726
        %v6199 = vunpack.c.h.b16 %v1726
        %v6200 = vunpack.c.l.b16 %v1727
        %v6201 = vunpack.c.h.b16 %v1727
        %v6202 = vunpack.c.l.b16 %v1728
        %v6203 = vunpack.c.h.b16 %v1728
        %v6204 = vunpack.c.l.b16 %v1729
        %v6205 = vunpack.c.h.b16 %v1729
        %v6206 = vunpack.c.l.b16 %v1730
        %v6207 = vunpack.c.h.b16 %v1730
        %v6208 = vunpack.c.l.b16 %v1731
        %v6209 = vunpack.c.h.b16 %v1731
        %v6210 = vunpack.c.l.b16 %v1732
        %v6211 = vunpack.c.h.b16 %v1732
        %v6212 = vunpack.c.l.b16 %v1733
        %v6213 = vunpack.c.h.b16 %v1733
        %v6214 = vunpack.c.l.b16 %v1734
        %v6215 = vunpack.c.h.b16 %v1734
        %v6216 = vunpack.c.l.b16 %v1735
        %v6217 = vunpack.c.h.b16 %v1735
        %v6218 = vunpack.c.l.b16 %v1736
        %v6219 = vunpack.c.h.b16 %v1736
        %v6220 = vunpack.c.l.b16 %v1737
        %v6221 = vunpack.c.h.b16 %v1737
        %v6222 = vunpack.c.l.b16 %v1738
        %v6223 = vunpack.c.h.b16 %v1738
        %v6224 = vunpack.c.l.b16 %v1739
        %v6225 = vunpack.c.h.b16 %v1739
        %v6226 = vunpack.c.l.b16 %v1740
        %v6227 = vunpack.c.h.b16 %v1740
        %v6228 = vunpack.c.l.b16 %v1741
        %v6229 = vunpack.c.h.b16 %v1741
        %v6230 = vunpack.c.l.b16 %v1742
        %v6231 = vunpack.c.h.b16 %v1742
        %v6232 = vunpack.c.l.b16 %v1743
        %v6233 = vunpack.c.h.b16 %v1743
        %v6234 = vunpack.c.l.b16 %v1744
        %v6235 = vunpack.c.h.b16 %v1744
        %v6236 = vunpack.c.l.b16 %v1745
        %v6237 = vunpack.c.h.b16 %v1745
        %v6238 = vunpack.c.l.b16 %v1746
        %v6239 = vunpack.c.h.b16 %v1746
        %v6240 = vunpack.c.l.b16 %v1747
        %v6241 = vunpack.c.h.b16 %v1747
        %v6242 = vunpack.c.l.b16 %v1748
        %v6243 = vunpack.c.h.b16 %v1748
        %v6244 = vunpack.c.l.b16 %v1749
        %v6245 = vunpack.c.h.b16 %v1749
        %v6246 = vunpack.c.l.b16 %v1750
        %v6247 = vunpack.c.h.b16 %v1750
        %v6248 = vunpack.c.l.b16 %v1751
        %v6249 = vunpack.c.h.b16 %v1751
        %v6250 = vunpack.c.l.b16 %v1752
        %v6251 = vunpack.c.h.b16 %v1752
        %v6252 = vunpack.c.l.b16 %v1753
        %v6253 = vunpack.c.h.b16 %v1753
        %v6254 = vunpack.c.l.b16 %v1754
        %v6255 = vunpack.c.h.b16 %v1754
        %v6256 = vunpack.c.l.b16 %v1755
        %v6257 = vunpack.c.h.b16 %v1755
        %v6258 = vunpack.c.l.b16 %v1756
        %v6259 = vunpack.c.h.b16 %v1756
        %v6260 = vunpack.c.l.b16 %v1757
        %v6261 = vunpack.c.h.b16 %v1757
        %v6262 = vunpack.c.l.b16 %v1758
        %v6263 = vunpack.c.h.b16 %v1758
        %v6264 = vunpack.c.l.b16 %v1759
        %v6265 = vunpack.c.h.b16 %v1759
        %v6266 = vunpack.c.l.b16 %v1760
        %v6267 = vunpack.c.h.b16 %v1760
        %v6268 = vunpack.c.l.b16 %v1761
        %v6269 = vunpack.c.h.b16 %v1761
        %v6270 = vunpack.c.l.b16 %v1762
        %v6271 = vunpack.c.h.b16 %v1762
        %v6272 = vunpack.c.l.b16 %v1763
        %v6273 = vunpack.c.h.b16 %v1763
        %v6274 = vunpack.c.l.b16 %v1764
        %v6275 = vunpack.c.h.b16 %v1764
        %v6276 = vunpack.c.l.b16 %v1765
        %v6277 = vunpack.c.h.b16 %v1765
        %v6278 = vunpack.c.l.b16 %v1766
        %v6279 = vunpack.c.h.b16 %v1766
        %v6280 = vunpack.c.l.b16 %v1767
        %v6281 = vunpack.c.h.b16 %v1767
        %v6282 = vunpack.c.l.b16 %v1768
        %v6283 = vunpack.c.h.b16 %v1768
        %v6284 = vunpack.c.l.b16 %v1769
        %v6285 = vunpack.c.h.b16 %v1769
        %v6286 = vunpack.c.l.b16 %v1770
        %v6287 = vunpack.c.h.b16 %v1770
        %v6288 = vunpack.c.l.b16 %v1771
        %v6289 = vunpack.c.h.b16 %v1771
        %v6290 = vunpack.c.l.b16 %v1772
        %v6291 = vunpack.c.h.b16 %v1772
        %v6292 = vunpack.c.l.b16 %v1773
        %v6293 = vunpack.c.h.b16 %v1773
        %v6294 = vunpack.c.l.b16 %v1774
        %v6295 = vunpack.c.h.b16 %v1774
        %v6296 = vunpack.c.l.b16 %v1775
        %v6297 = vunpack.c.h.b16 %v1775
        %v6298 = vunpack.c.l.b16 %v1776
        %v6299 = vunpack.c.h.b16 %v1776
        %v6300 = vunpack.c.l.b16 %v1777
        %v6301 = vunpack.c.h.b16 %v1777
        %v6302 = vunpack.c.l.b16 %v1778
        %v6303 = vunpack.c.h.b16 %v1778
        %v6304 = vunpack.c.l.b16 %v1779
        %v6305 = vunpack.c.h.b16 %v1779
        %v6306 = vunpack.c.l.b16 %v1780
        %v6307 = vunpack.c.h.b16 %v1780
        %v6308 = vunpack.c.l.b16 %v1781
        %v6309 = vunpack.c.h.b16 %v1781
        %v6310 = vunpack.c.l.b16 %v1782
        %v6311 = vunpack.c.h.b16 %v1782
        %v6312 = vunpack.c.l.b16 %v1783
        %v6313 = vunpack.c.h.b16 %v1783
        %v6314 = vunpack.c.l.b16 %v1784
        %v6315 = vunpack.c.h.b16 %v1784
        %v6316 = vunpack.c.l.b16 %v1785
        %v6317 = vunpack.c.h.b16 %v1785
        %v6318 = vunpack.c.l.b16 %v1786
        %v6319 = vunpack.c.h.b16 %v1786
        %v6320 = vunpack.c.l.b16 %v1787
        %v6321 = vunpack.c.h.b16 %v1787
        %v6322 = vunpack.c.l.b16 %v1788
        %v6323 = vunpack.c.h.b16 %v1788
        %v6324 = vunpack.c.l.b16 %v1789
        %v6325 = vunpack.c.h.b16 %v1789
        %v6326 = vunpack.c.l.b16 %v1790
        %v6327 = vunpack.c.h.b16 %v1790
        %v6328 = vunpack.c.l.b16 %v1791
        %v6329 = vunpack.c.h.b16 %v1791
        %v6330 = vunpack.c.l.b16 %v1792
        %v6331 = vunpack.c.h.b16 %v1792
        %v6332 = vunpack.c.l.b16 %v1793
        %v6333 = vunpack.c.h.b16 %v1793
        %v6334 = vunpack.c.l.b16 %v1794
        %v6335 = vunpack.c.h.b16 %v1794
        %v6336 = vunpack.c.l.b16 %v1795
        %v6337 = vunpack.c.h.b16 %v1795
        %v6338 = vunpack.c.l.b16 %v1796
        %v6339 = vunpack.c.h.b16 %v1796
        %v6340 = vunpack.c.l.b16 %v1797
        %v6341 = vunpack.c.h.b16 %v1797
        %v6342 = vunpack.c.l.b16 %v1798
        %v6343 = vunpack.c.h.b16 %v1798
        %v6344 = vunpack.c.l.b16 %v1799
        %v6345 = vunpack.c.h.b16 %v1799
        %v6346 = vunpack.c.l.b16 %v1800
        %v6347 = vunpack.c.h.b16 %v1800
        %v6348 = vunpack.c.l.b16 %v1801
        %v6349 = vunpack.c.h.b16 %v1801
        %v6350 = vunpack.c.l.b16 %v1802
        %v6351 = vunpack.c.h.b16 %v1802
        %v6352 = vunpack.c.l.b16 %v1803
        %v6353 = vunpack.c.h.b16 %v1803
        %v6354 = vunpack.c.l.b16 %v1804
        %v6355 = vunpack.c.h.b16 %v1804
        %v6356 = vunpack.c.l.b16 %v1805
        %v6357 = vunpack.c.h.b16 %v1805
        %v6358 = vunpack.c.l.b16 %v1806
        %v6359 = vunpack.c.h.b16 %v1806
        %v6360 = vunpack.c.l.b16 %v1807
        %v6361 = vunpack.c.h.b16 %v1807
        %v6362 = vunpack.c.l.b16 %v1808
        %v6363 = vunpack.c.h.b16 %v1808
        %v6364 = vunpack.c.l.b16 %v1809
        %v6365 = vunpack.c.h.b16 %v1809
        %v6366 = vunpack.c.l.b16 %v1810
        %v6367 = vunpack.c.h.b16 %v1810
        %v6368 = vunpack.c.l.b16 %v1811
        %v6369 = vunpack.c.h.b16 %v1811
        %v6370 = vunpack.c.l.b16 %v1812
        %v6371 = vunpack.c.h.b16 %v1812
        %v6372 = vunpack.c.l.b16 %v1813
        %v6373 = vunpack.c.h.b16 %v1813
        %v6374 = vunpack.c.l.b16 %v1814
        %v6375 = vunpack.c.h.b16 %v1814
        %v6376 = vunpack.c.l.b16 %v1815
        %v6377 = vunpack.c.h.b16 %v1815
        %v6378 = vunpack.c.l.b16 %v1816
        %v6379 = vunpack.c.h.b16 %v1816
        %v6380 = vunpack.c.l.b16 %v1817
        %v6381 = vunpack.c.h.b16 %v1817
        %v6382 = vunpack.c.l.b16 %v1818
        %v6383 = vunpack.c.h.b16 %v1818
        %v6384 = vunpack.c.l.b16 %v1819
        %v6385 = vunpack.c.h.b16 %v1819
        %v6386 = vunpack.c.l.b16 %v1820
        %v6387 = vunpack.c.h.b16 %v1820
        %v6388 = vunpack.c.l.b16 %v1821
        %v6389 = vunpack.c.h.b16 %v1821
        %v6390 = vunpack.c.l.b16 %v1822
        %v6391 = vunpack.c.h.b16 %v1822
        %v6392 = vunpack.c.l.b16 %v1823
        %v6393 = vunpack.c.h.b16 %v1823
        %v6394 = vunpack.c.l.b16 %v1824
        %v6395 = vunpack.c.h.b16 %v1824
        %v6396 = vunpack.c.l.b16 %v1825
        %v6397 = vunpack.c.h.b16 %v1825
        %v6398 = vunpack.c.l.b16 %v1826
        %v6399 = vunpack.c.h.b16 %v1826
        %v6400 = vunpack.c.l.b16 %v1827
        %v6401 = vunpack.c.h.b16 %v1827
        %v6402 = vunpack.c.l.b16 %v1828
        %v6403 = vunpack.c.h.b16 %v1828
        %v6404 = vunpack.c.l.b16 %v1829
        %v6405 = vunpack.c.h.b16 %v1829
        %v6406 = vunpack.c.l.b16 %v1830
        %v6407 = vunpack.c.h.b16 %v1830
        %v6408 = vunpack.c.l.b16 %v1831
        %v6409 = vunpack.c.h.b16 %v1831
        %v6410 = vunpack.c.l.b16 %v1832
        %v6411 = vunpack.c.h.b16 %v1832
        %v6412 = vunpack.c.l.b16 %v1833
        %v6413 = vunpack.c.h.b16 %v1833
        %v6414 = vunpack.c.l.b16 %v1834
        %v6415 = vunpack.c.h.b16 %v1834
        %v6416 = vunpack.c.l.b16 %v1835
        %v6417 = vunpack.c.h.b16 %v1835
        %v6418 = vunpack.c.l.b16 %v1836
        %v6419 = vunpack.c.h.b16 %v1836
        %v6420 = vunpack.c.l.b16 %v1837
        %v6421 = vunpack.c.h.b16 %v1837
        %v6422 = vunpack.c.l.b16 %v1838
        %v6423 = vunpack.c.h.b16 %v1838
        %v6424 = vunpack.c.l.b16 %v1839
        %v6425 = vunpack.c.h.b16 %v1839
        %v6426 = vunpack.c.l.b16 %v1840
        %v6427 = vunpack.c.h.b16 %v1840
        %v6428 = vunpack.c.l.b16 %v1841
        %v6429 = vunpack.c.h.b16 %v1841
        %v6430 = vunpack.c.l.b16 %v1842
        %v6431 = vunpack.c.h.b16 %v1842
        %v6432 = vunpack.c.l.b16 %v1843
        %v6433 = vunpack.c.h.b16 %v1843
        %v6434 = vunpack.c.l.b16 %v1844
        %v6435 = vunpack.c.h.b16 %v1844
        %v6436 = vunpack.c.l.b16 %v1845
        %v6437 = vunpack.c.h.b16 %v1845
        %v6438 = vunpack.c.l.b16 %v1846
        %v6439 = vunpack.c.h.b16 %v1846
        %v6440 = vunpack.c.l.b16 %v1847
        %v6441 = vunpack.c.h.b16 %v1847
        %v6442 = vunpack.c.l.b16 %v1848
        %v6443 = vunpack.c.h.b16 %v1848
        %v6444 = vunpack.c.l.b16 %v1849
        %v6445 = vunpack.c.h.b16 %v1849
        %v6446 = vunpack.c.l.b16 %v1850
        %v6447 = vunpack.c.h.b16 %v1850
        %v6448 = vunpack.c.l.b16 %v1851
        %v6449 = vunpack.c.h.b16 %v1851
        %v6450 = vunpack.c.l.b16 %v1852
        %v6451 = vunpack.c.h.b16 %v1852
        %v6452 = vunpack.c.l.b16 %v1853
        %v6453 = vunpack.c.h.b16 %v1853
        %v6454 = vunpack.c.l.b16 %v1854
        %v6455 = vunpack.c.h.b16 %v1854
        %v6456 = vunpack.c.l.b16 %v1855
        %v6457 = vunpack.c.h.b16 %v1855
        %v6458 = vunpack.c.l.b16 %v1856
        %v6459 = vunpack.c.h.b16 %v1856
        %v6460 = vunpack.c.l.b16 %v1857
        %v6461 = vunpack.c.h.b16 %v1857
        %v6462 = vunpack.c.l.b16 %v1858
        %v6463 = vunpack.c.h.b16 %v1858
        %v6464 = vunpack.c.l.b16 %v1859
        %v6465 = vunpack.c.h.b16 %v1859
        %v6466 = vunpack.c.l.b16 %v1860
        %v6467 = vunpack.c.h.b16 %v1860
        %v6468 = vunpack.c.l.b16 %v1861
        %v6469 = vunpack.c.h.b16 %v1861
        %v6470 = vunpack.c.l.b16 %v1862
        %v6471 = vunpack.c.h.b16 %v1862
        %v6472 = vunpack.c.l.b16 %v1863
        %v6473 = vunpack.c.h.b16 %v1863
        %v6474 = vunpack.c.l.b16 %v1864
        %v6475 = vunpack.c.h.b16 %v1864
        %v6476 = vunpack.c.l.b16 %v1865
        %v6477 = vunpack.c.h.b16 %v1865
        %v6478 = vunpack.c.l.b16 %v1866
        %v6479 = vunpack.c.h.b16 %v1866
        %v6480 = vunpack.c.l.b16 %v1867
        %v6481 = vunpack.c.h.b16 %v1867
        %v6482 = vunpack.c.l.b16 %v1868
        %v6483 = vunpack.c.h.b16 %v1868
        %v6484 = vunpack.c.l.b16 %v1869
        %v6485 = vunpack.c.h.b16 %v1869
        %v6486 = vunpack.c.l.b16 %v1870
        %v6487 = vunpack.c.h.b16 %v1870
        %v6488 = vunpack.c.l.b16 %v1871
        %v6489 = vunpack.c.h.b16 %v1871
        %v6490 = vunpack.c.l.b16 %v1872
        %v6491 = vunpack.c.h.b16 %v1872
        %v6492 = vunpack.c.l.b16 %v1873
        %v6493 = vunpack.c.h.b16 %v1873
        %v6494 = vunpack.c.l.b16 %v1874
        %v6495 = vunpack.c.h.b16 %v1874
        %v6496 = vunpack.c.l.b16 %v1875
        %v6497 = vunpack.c.h.b16 %v1875
        %v6498 = vunpack.c.l.b16 %v1876
        %v6499 = vunpack.c.h.b16 %v1876
        %v6500 = vunpack.c.l.b16 %v1877
        %v6501 = vunpack.c.h.b16 %v1877
        %v6502 = vunpack.c.l.b16 %v1878
        %v6503 = vunpack.c.h.b16 %v1878
        %v6504 = vunpack.c.l.b16 %v1879
        %v6505 = vunpack.c.h.b16 %v1879
        %v6506 = vunpack.c.l.b16 %v1880
        %v6507 = vunpack.c.h.b16 %v1880
        %v6508 = vunpack.c.l.b16 %v1881
        %v6509 = vunpack.c.h.b16 %v1881
        %v6510 = vunpack.c.l.b16 %v1882
        %v6511 = vunpack.c.h.b16 %v1882
        %v6512 = vunpack.c.l.b16 %v1883
        %v6513 = vunpack.c.h.b16 %v1883
        %v6514 = vunpack.c.l.b16 %v1884
        %v6515 = vunpack.c.h.b16 %v1884
        %v6516 = vunpack.c.l.b16 %v1885
        %v6517 = vunpack.c.h.b16 %v1885
        %v6518 = vunpack.c.l.b16 %v1886
        %v6519 = vunpack.c.h.b16 %v1886
        %v6520 = vunpack.c.l.b16 %v1887
        %v6521 = vunpack.c.h.b16 %v1887
        %v6522 = vunpack.c.l.b16 %v1888
        %v6523 = vunpack.c.h.b16 %v1888
        %v6524 = vunpack.c.l.b16 %v1889
        %v6525 = vunpack.c.h.b16 %v1889
        %v6526 = vunpack.c.l.b16 %v1890
        %v6527 = vunpack.c.h.b16 %v1890
        %v6528 = vunpack.c.l.b16 %v1891
        %v6529 = vunpack.c.h.b16 %v1891
        %v6530 = vunpack.c.l.b16 %v1892
        %v6531 = vunpack.c.h.b16 %v1892
        %v6532 = vunpack.c.l.b16 %v1893
        %v6533 = vunpack.c.h.b16 %v1893
        %v6534 = vunpack.c.l.b16 %v1894
        %v6535 = vunpack.c.h.b16 %v1894
        %v6536 = vunpack.c.l.b16 %v1895
        %v6537 = vunpack.c.h.b16 %v1895
        %v6538 = vunpack.c.l.b16 %v1896
        %v6539 = vunpack.c.h.b16 %v1896
        %v6540 = vunpack.c.l.b16 %v1897
        %v6541 = vunpack.c.h.b16 %v1897
        %v6542 = vunpack.c.l.b16 %v1898
        %v6543 = vunpack.c.h.b16 %v1898
        %v6544 = vunpack.c.l.b16 %v1899
        %v6545 = vunpack.c.h.b16 %v1899
        %v6546 = vunpack.c.l.b16 %v1900
        %v6547 = vunpack.c.h.b16 %v1900
        %v6548 = vunpack.c.l.b16 %v1901
        %v6549 = vunpack.c.h.b16 %v1901
        %v6550 = vunpack.c.l.b16 %v1902
        %v6551 = vunpack.c.h.b16 %v1902
        %v6552 = vunpack.c.l.b16 %v1903
        %v6553 = vunpack.c.h.b16 %v1903
        %v6554 = vunpack.c.l.b16 %v1904
        %v6555 = vunpack.c.h.b16 %v1904
        %v6556 = vunpack.c.l.b16 %v1905
        %v6557 = vunpack.c.h.b16 %v1905
        %v6558 = vunpack.c.l.b16 %v1906
        %v6559 = vunpack.c.h.b16 %v1906
        %v6560 = vunpack.c.l.b16 %v1907
        %v6561 = vunpack.c.h.b16 %v1907
        %v6562 = vunpack.c.l.b16 %v1908
        %v6563 = vunpack.c.h.b16 %v1908
        %v6564 = vunpack.c.l.b16 %v1909
        %v6565 = vunpack.c.h.b16 %v1909
        %v6566 = vunpack.c.l.b16 %v1910
        %v6567 = vunpack.c.h.b16 %v1910
        %v6568 = vunpack.c.l.b16 %v1911
        %v6569 = vunpack.c.h.b16 %v1911
        %v6570 = vunpack.c.l.b16 %v1912
        %v6571 = vunpack.c.h.b16 %v1912
        %v6572 = vunpack.c.l.b16 %v1913
        %v6573 = vunpack.c.h.b16 %v1913
        %v6574 = vunpack.c.l.b16 %v1914
        %v6575 = vunpack.c.h.b16 %v1914
        %v6576 = vunpack.c.l.b16 %v1915
        %v6577 = vunpack.c.h.b16 %v1915
        %v6578 = vunpack.c.l.b16 %v1916
        %v6579 = vunpack.c.h.b16 %v1916
        %v6580 = vunpack.c.l.b16 %v1917
        %v6581 = vunpack.c.h.b16 %v1917
        %v6582 = vunpack.c.l.b16 %v1918
        %v6583 = vunpack.c.h.b16 %v1918
        %v6584 = vunpack.c.l.b16 %v1919
        %v6585 = vunpack.c.h.b16 %v1919
        %v6586 = vunpack.c.l.b16 %v1920
        %v6587 = vunpack.c.h.b16 %v1920
        %v6588 = vunpack.c.l.b16 %v1921
        %v6589 = vunpack.c.h.b16 %v1921
        %v6590 = vunpack.c.l.b16 %v1922
        %v6591 = vunpack.c.h.b16 %v1922
        %v6592 = vunpack.c.l.b16 %v1923
        %v6593 = vunpack.c.h.b16 %v1923
        %v6594 = vunpack.c.l.b16 %v1924
        %v6595 = vunpack.c.h.b16 %v1924
        %v6596 = vunpack.c.l.b16 %v1925
        %v6597 = vunpack.c.h.b16 %v1925
        %v6598 = vunpack.c.l.b16 %v1926
        %v6599 = vunpack.c.h.b16 %v1926
        %v6600 = vunpack.c.l.b16 %v1927
        %v6601 = vunpack.c.h.b16 %v1927
        %v6602 = vunpack.c.l.b16 %v1928
        %v6603 = vunpack.c.h.b16 %v1928
        %v6604 = vunpack.c.l.b16 %v1929
        %v6605 = vunpack.c.h.b16 %v1929
        %v6606 = vunpack.c.l.b16 %v1930
        %v6607 = vunpack.c.h.b16 %v1930
        %v6608 = vunpack.c.l.b16 %v1931
        %v6609 = vunpack.c.h.b16 %v1931
        %v6610 = vunpack.c.l.b16 %v1932
        %v6611 = vunpack.c.h.b16 %v1932
        %v6612 = vunpack.c.l.b16 %v1933
        %v6613 = vunpack.c.h.b16 %v1933
        %v6614 = vunpack.c.l.b16 %v1934
        %v6615 = vunpack.c.h.b16 %v1934
        %v6616 = vunpack.c.l.b16 %v1935
        %v6617 = vunpack.c.h.b16 %v1935
        %v6618 = vunpack.c.l.b16 %v1936
        %v6619 = vunpack.c.h.b16 %v1936
        %v6620 = vunpack.c.l.b16 %v1937
        %v6621 = vunpack.c.h.b16 %v1937
        %v6622 = vunpack.c.l.b16 %v1938
        %v6623 = vunpack.c.h.b16 %v1938
        %v6624 = vunpack.c.l.b16 %v1939
        %v6625 = vunpack.c.h.b16 %v1939
        %v6626 = vunpack.c.l.b16 %v1940
        %v6627 = vunpack.c.h.b16 %v1940
        %v6628 = vunpack.c.l.b16 %v1941
        %v6629 = vunpack.c.h.b16 %v1941
        %v6630 = vunpack.c.l.b16 %v1942
        %v6631 = vunpack.c.h.b16 %v1942
        %v6632 = vunpack.c.l.b16 %v1943
        %v6633 = vunpack.c.h.b16 %v1943
        %v6634 = vunpack.c.l.b16 %v1944
        %v6635 = vunpack.c.h.b16 %v1944
        %v6636 = vunpack.c.l.b16 %v1945
        %v6637 = vunpack.c.h.b16 %v1945
        %v6638 = vunpack.c.l.b16 %v1946
        %v6639 = vunpack.c.h.b16 %v1946
        %v6640 = vunpack.c.l.b16 %v1947
        %v6641 = vunpack.c.h.b16 %v1947
        %v6642 = vunpack.c.l.b16 %v1948
        %v6643 = vunpack.c.h.b16 %v1948
        %v6644 = vunpack.c.l.b16 %v1949
        %v6645 = vunpack.c.h.b16 %v1949
        %v6646 = vunpack.c.l.b16 %v1950
        %v6647 = vunpack.c.h.b16 %v1950
        %v6648 = vunpack.c.l.b16 %v1951
        %v6649 = vunpack.c.h.b16 %v1951
        %v6650 = vunpack.c.l.b16 %v1952
        %v6651 = vunpack.c.h.b16 %v1952
        %v6652 = vunpack.c.l.b16 %v1953
        %v6653 = vunpack.c.h.b16 %v1953
        %v6654 = vunpack.c.l.b16 %v1954
        %v6655 = vunpack.c.h.b16 %v1954
        %v6656 = vunpack.c.l.b16 %v1955
        %v6657 = vunpack.c.h.b16 %v1955
        %v6658 = vunpack.c.l.b16 %v1956
        %v6659 = vunpack.c.h.b16 %v1956
        %v6660 = vunpack.c.l.b16 %v1957
        %v6661 = vunpack.c.h.b16 %v1957
        %v6662 = vunpack.c.l.b16 %v1958
        %v6663 = vunpack.c.h.b16 %v1958
        %v6664 = vunpack.c.l.b16 %v1959
        %v6665 = vunpack.c.h.b16 %v1959
        %v6666 = vunpack.c.l.b16 %v1960
        %v6667 = vunpack.c.h.b16 %v1960
        %v6668 = vunpack.c.l.b16 %v1961
        %v6669 = vunpack.c.h.b16 %v1961
        %v6670 = vunpack.c.l.b16 %v1962
        %v6671 = vunpack.c.h.b16 %v1962
        %v6672 = vunpack.c.l.b16 %v1963
        %v6673 = vunpack.c.h.b16 %v1963
        %v6674 = vunpack.c.l.b16 %v1964
        %v6675 = vunpack.c.h.b16 %v1964
        %v6676 = vunpack.c.l.b16 %v1965
        %v6677 = vunpack.c.h.b16 %v1965
        %v6678 = vunpack.c.l.b16 %v1966
        %v6679 = vunpack.c.h.b16 %v1966
        %v6680 = vunpack.c.l.b16 %v1967
        %v6681 = vunpack.c.h.b16 %v1967
        %v6682 = vpack.c.b16 %v3550, %v3546
        %v6683 = vpack.c.b16 %v3551, %v3547
        %v6684 = vpack.c.b16 %v3552, %v3548
        %v6685 = vpack.c.b16 %v3553, %v3549
        %v6686 = vpack.c.b16 %v3558, %v3554
        %v6687 = vpack.c.b16 %v3559, %v3555
        %v6688 = vpack.c.b16 %v3560, %v3556
        %v6689 = vpack.c.b16 %v3561, %v3557
        %v6690 = vpack.c.b16 %v3566, %v3562
        %v6691 = vpack.c.b16 %v3567, %v3563
        %v6692 = vpack.c.b16 %v3568, %v3564
        %v6693 = vpack.c.b16 %v3569, %v3565
        %v6694 = vpack.c.b16 %v3574, %v3570
        %v6695 = vpack.c.b16 %v3575, %v3571
        %v6696 = vpack.c.b16 %v3576, %v3572
        %v6697 = vpack.c.b16 %v3577, %v3573
        %v6698 = vpack.c.b16 %v3582, %v3578
        %v6699 = vpack.c.b16 %v3583, %v3579
        %v6700 = vpack.c.b16 %v3584, %v3580
        %v6701 = vpack.c.b16 %v3585, %v3581
        %v6702 = vpack.c.b16 %v3590, %v3586
        %v6703 = vpack.c.b16 %v3591, %v3587
        %v6704 = vpack.c.b16 %v3592, %v3588
        %v6705 = vpack.c.b16 %v3593, %v3589
        %v6706 = vpack.c.b16 %v3598, %v3594
        %v6707 = vpack.c.b16 %v3599, %v3595
        %v6708 = vpack.c.b16 %v3600, %v3596
        %v6709 = vpack.c.b16 %v3601, %v3597
        %v6710 = vpack.c.b16 %v3606, %v3602
        %v6711 = vpack.c.b16 %v3607, %v3603
        %v6712 = vpack.c.b16 %v3608, %v3604
        %v6713 = vpack.c.b16 %v3609, %v3605
        %v6714 = vpack.c.b16 %v3614, %v3610
        %v6715 = vpack.c.b16 %v3615, %v3611
        %v6716 = vpack.c.b16 %v3616, %v3612
        %v6717 = vpack.c.b16 %v3617, %v3613
        %v6718 = vpack.c.b16 %v3622, %v3618
        %v6719 = vpack.c.b16 %v3623, %v3619
        %v6720 = vpack.c.b16 %v3624, %v3620
        %v6721 = vpack.c.b16 %v3625, %v3621
        %v6722 = vpack.c.b16 %v3630, %v3626
        %v6723 = vpack.c.b16 %v3631, %v3627
        %v6724 = vpack.c.b16 %v3632, %v3628
        %v6725 = vpack.c.b16 %v3633, %v3629
        %v6726 = vpack.c.b16 %v3638, %v3634
        %v6727 = vpack.c.b16 %v3639, %v3635
        %v6728 = vpack.c.b16 %v3640, %v3636
        %v6729 = vpack.c.b16 %v3641, %v3637
        %v6730 = vpack.c.b16 %v3646, %v3642
        %v6731 = vpack.c.b16 %v3647, %v3643
        %v6732 = vpack.c.b16 %v3648, %v3644
        %v6733 = vpack.c.b16 %v3649, %v3645
        %v6734 = vpack.c.b16 %v3654, %v3650
        %v6735 = vpack.c.b16 %v3655, %v3651
        %v6736 = vpack.c.b16 %v3656, %v3652
        %v6737 = vpack.c.b16 %v3657, %v3653
        %v6738 = vpack.c.b16 %v3662, %v3658
        %v6739 = vpack.c.b16 %v3663, %v3659
        %v6740 = vpack.c.b16 %v3664, %v3660
        %v6741 = vpack.c.b16 %v3665, %v3661
        %v6742 = vpack.c.b16 %v3670, %v3666
        %v6743 = vpack.c.b16 %v3671, %v3667
        %v6744 = vpack.c.b16 %v3672, %v3668
        %v6745 = vpack.c.b16 %v3673, %v3669
        %v6746 = vpack.c.b16 %v3678, %v3674
        %v6747 = vpack.c.b16 %v3679, %v3675
        %v6748 = vpack.c.b16 %v3680, %v3676
        %v6749 = vpack.c.b16 %v3681, %v3677
        %v6750 = vpack.c.b16 %v3686, %v3682
        %v6751 = vpack.c.b16 %v3687, %v3683
        %v6752 = vpack.c.b16 %v3688, %v3684
        %v6753 = vpack.c.b16 %v3689, %v3685
        %v6754 = vpack.c.b16 %v3694, %v3690
        %v6755 = vpack.c.b16 %v3695, %v3691
        %v6756 = vpack.c.b16 %v3696, %v3692
        %v6757 = vpack.c.b16 %v3697, %v3693
        %v6758 = vpack.c.b16 %v3702, %v3698
        %v6759 = vpack.c.b16 %v3703, %v3699
        %v6760 = vpack.c.b16 %v3704, %v3700
        %v6761 = vpack.c.b16 %v3705, %v3701
        %v6762 = vpack.c.b16 %v3710, %v3706
        %v6763 = vpack.c.b16 %v3711, %v3707
        %v6764 = vpack.c.b16 %v3712, %v3708
        %v6765 = vpack.c.b16 %v3713, %v3709
        %v6766 = vpack.c.b16 %v3718, %v3714
        %v6767 = vpack.c.b16 %v3719, %v3715
        %v6768 = vpack.c.b16 %v3720, %v3716
        %v6769 = vpack.c.b16 %v3721, %v3717
        %v6770 = vpack.c.b16 %v3726, %v3722
        %v6771 = vpack.c.b16 %v3727, %v3723
        %v6772 = vpack.c.b16 %v3728, %v3724
        %v6773 = vpack.c.b16 %v3729, %v3725
        %v6774 = vpack.c.b16 %v3734, %v3730
        %v6775 = vpack.c.b16 %v3735, %v3731
        %v6776 = vpack.c.b16 %v3736, %v3732
        %v6777 = vpack.c.b16 %v3737, %v3733
        %v6778 = vpack.c.b16 %v3742, %v3738
        %v6779 = vpack.c.b16 %v3743, %v3739
        %v6780 = vpack.c.b16 %v3744, %v3740
        %v6781 = vpack.c.b16 %v3745, %v3741
        %v6782 = vpack.c.b16 %v3750, %v3746
        %v6783 = vpack.c.b16 %v3751, %v3747
        %v6784 = vpack.c.b16 %v3752, %v3748
        %v6785 = vpack.c.b16 %v3753, %v3749
        %v6786 = vpack.c.b16 %v3758, %v3754
        %v6787 = vpack.c.b16 %v3759, %v3755
        %v6788 = vpack.c.b16 %v3760, %v3756
        %v6789 = vpack.c.b16 %v3761, %v3757
        %v6790 = vpack.c.b16 %v3766, %v3762
        %v6791 = vpack.c.b16 %v3767, %v3763
        %v6792 = vpack.c.b16 %v3768, %v3764
        %v6793 = vpack.c.b16 %v3769, %v3765
        %v6794 = vpack.c.b16 %v3774, %v3770
        %v6795 = vpack.c.b16 %v3775, %v3771
        %v6796 = vpack.c.b16 %v3776, %v3772
        %v6797 = vpack.c.b16 %v3777, %v3773
        %v6798 = vpack.c.b16 %v3782, %v3778
        %v6799 = vpack.c.b16 %v3783, %v3779
        %v6800 = vpack.c.b16 %v3784, %v3780
        %v6801 = vpack.c.b16 %v3785, %v3781
        %v6802 = vpack.c.b16 %v3790, %v3786
        %v6803 = vpack.c.b16 %v3791, %v3787
        %v6804 = vpack.c.b16 %v3792, %v3788
        %v6805 = vpack.c.b16 %v3793, %v3789
        %v6806 = vpack.c.b16 %v3798, %v3794
        %v6807 = vpack.c.b16 %v3799, %v3795
        %v6808 = vpack.c.b16 %v3800, %v3796
        %v6809 = vpack.c.b16 %v3801, %v3797
        %v6810 = vpack.c.b16 %v3806, %v3802
        %v6811 = vpack.c.b16 %v3807, %v3803
        %v6812 = vpack.c.b16 %v3808, %v3804
        %v6813 = vpack.c.b16 %v3809, %v3805
        %v6814 = vpack.c.b16 %v3814, %v3810
        %v6815 = vpack.c.b16 %v3815, %v3811
        %v6816 = vpack.c.b16 %v3816, %v3812
        %v6817 = vpack.c.b16 %v3817, %v3813
        %v6818 = vpack.c.b16 %v3822, %v3818
        %v6819 = vpack.c.b16 %v3823, %v3819
        %v6820 = vpack.c.b16 %v3824, %v3820
        %v6821 = vpack.c.b16 %v3825, %v3821
        %v6822 = vpack.c.b16 %v3830, %v3826
        %v6823 = vpack.c.b16 %v3831, %v3827
        %v6824 = vpack.c.b16 %v3832, %v3828
        %v6825 = vpack.c.b16 %v3833, %v3829
        %v6826 = vpack.c.b16 %v3838, %v3834
        %v6827 = vpack.c.b16 %v3839, %v3835
        %v6828 = vpack.c.b16 %v3840, %v3836
        %v6829 = vpack.c.b16 %v3841, %v3837
        %v6830 = vpack.c.b16 %v3846, %v3842
        %v6831 = vpack.c.b16 %v3847, %v3843
        %v6832 = vpack.c.b16 %v3848, %v3844
        %v6833 = vpack.c.b16 %v3849, %v3845
        %v6834 = vpack.c.b16 %v3854, %v3850
        %v6835 = vpack.c.b16 %v3855, %v3851
        %v6836 = vpack.c.b16 %v3856, %v3852
        %v6837 = vpack.c.b16 %v3857, %v3853
        %v6838 = vpack.c.b16 %v3862, %v3858
        %v6839 = vpack.c.b16 %v3863, %v3859
        %v6840 = vpack.c.b16 %v3864, %v3860
        %v6841 = vpack.c.b16 %v3865, %v3861
        %v6842 = vpack.c.b16 %v3870, %v3866
        %v6843 = vpack.c.b16 %v3871, %v3867
        %v6844 = vpack.c.b16 %v3872, %v3868
        %v6845 = vpack.c.b16 %v3873, %v3869
        %v6846 = vpack.c.b16 %v3878, %v3874
        %v6847 = vpack.c.b16 %v3879, %v3875
        %v6848 = vpack.c.b16 %v3880, %v3876
        %v6849 = vpack.c.b16 %v3881, %v3877
        %v6850 = vpack.c.b16 %v3886, %v3882
        %v6851 = vpack.c.b16 %v3887, %v3883
        %v6852 = vpack.c.b16 %v3888, %v3884
        %v6853 = vpack.c.b16 %v3889, %v3885
        %v6854 = vpack.c.b16 %v3894, %v3890
        %v6855 = vpack.c.b16 %v3895, %v3891
        %v6856 = vpack.c.b16 %v3896, %v3892
        %v6857 = vpack.c.b16 %v3897, %v3893
        %v6858 = vpack.c.b16 %v3902, %v3898
        %v6859 = vpack.c.b16 %v3903, %v3899
        %v6860 = vpack.c.b16 %v3904, %v3900
        %v6861 = vpack.c.b16 %v3905, %v3901
        %v6862 = vpack.c.b16 %v3910, %v3906
        %v6863 = vpack.c.b16 %v3911, %v3907
        %v6864 = vpack.c.b16 %v3912, %v3908
        %v6865 = vpack.c.b16 %v3913, %v3909
        %v6866 = vpack.c.b16 %v3918, %v3914
        %v6867 = vpack.c.b16 %v3919, %v3915
        %v6868 = vpack.c.b16 %v3920, %v3916
        %v6869 = vpack.c.b16 %v3921, %v3917
        %v6870 = vpack.c.b16 %v3926, %v3922
        %v6871 = vpack.c.b16 %v3927, %v3923
        %v6872 = vpack.c.b16 %v3928, %v3924
        %v6873 = vpack.c.b16 %v3929, %v3925
        %v6874 = vpack.c.b16 %v3934, %v3930
        %v6875 = vpack.c.b16 %v3935, %v3931
        %v6876 = vpack.c.b16 %v3936, %v3932
        %v6877 = vpack.c.b16 %v3937, %v3933
        %v6878 = vpack.c.b16 %v3942, %v3938
        %v6879 = vpack.c.b16 %v3943, %v3939
        %v6880 = vpack.c.b16 %v3944, %v3940
        %v6881 = vpack.c.b16 %v3945, %v3941
        %v6882 = vpack.c.b16 %v3950, %v3946
        %v6883 = vpack.c.b16 %v3951, %v3947
        %v6884 = vpack.c.b16 %v3952, %v3948
        %v6885 = vpack.c.b16 %v3953, %v3949
        %v6886 = vpack.c.b16 %v3958, %v3954
        %v6887 = vpack.c.b16 %v3959, %v3955
        %v6888 = vpack.c.b16 %v3960, %v3956
        %v6889 = vpack.c.b16 %v3961, %v3957
        %v6890 = vpack.c.b16 %v3966, %v3962
        %v6891 = vpack.c.b16 %v3967, %v3963
        %v6892 = vpack.c.b16 %v3968, %v3964
        %v6893 = vpack.c.b16 %v3969, %v3965
        %v6894 = vpack.c.b16 %v3974, %v3970
        %v6895 = vpack.c.b16 %v3975, %v3971
        %v6896 = vpack.c.b16 %v3976, %v3972
        %v6897 = vpack.c.b16 %v3977, %v3973
        %v6898 = vpack.c.b16 %v3982, %v3978
        %v6899 = vpack.c.b16 %v3983, %v3979
        %v6900 = vpack.c.b16 %v3984, %v3980
        %v6901 = vpack.c.b16 %v3985, %v3981
        %v6902 = vpack.c.b16 %v3990, %v3986
        %v6903 = vpack.c.b16 %v3991, %v3987
        %v6904 = vpack.c.b16 %v3992, %v3988
        %v6905 = vpack.c.b16 %v3993, %v3989
        %v6906 = vpack.c.b16 %v3998, %v3994
        %v6907 = vpack.c.b16 %v3999, %v3995
        %v6908 = vpack.c.b16 %v4000, %v3996
        %v6909 = vpack.c.b16 %v4001, %v3997
        %v6910 = vpack.c.b16 %v4006, %v4002
        %v6911 = vpack.c.b16 %v4007, %v4003
        %v6912 = vpack.c.b16 %v4008, %v4004
        %v6913 = vpack.c.b16 %v4009, %v4005
        %v6914 = vpack.c.b16 %v4014, %v4010
        %v6915 = vpack.c.b16 %v4015, %v4011
        %v6916 = vpack.c.b16 %v4016, %v4012
        %v6917 = vpack.c.b16 %v4017, %v4013
        %v6918 = vpack.c.b16 %v4022, %v4018
        %v6919 = vpack.c.b16 %v4023, %v4019
        %v6920 = vpack.c.b16 %v4024, %v4020
        %v6921 = vpack.c.b16 %v4025, %v4021
        %v6922 = vpack.c.b16 %v4030, %v4026
        %v6923 = vpack.c.b16 %v4031, %v4027
        %v6924 = vpack.c.b16 %v4032, %v4028
        %v6925 = vpack.c.b16 %v4033, %v4029
        %v6926 = vpack.c.b16 %v4038, %v4034
        %v6927 = vpack.c.b16 %v4039, %v4035
        %v6928 = vpack.c.b16 %v4040, %v4036
        %v6929 = vpack.c.b16 %v4041, %v4037
        %v6930 = vpack.c.b16 %v4046, %v4042
        %v6931 = vpack.c.b16 %v4047, %v4043
        %v6932 = vpack.c.b16 %v4048, %v4044
        %v6933 = vpack.c.b16 %v4049, %v4045
        %v6934 = vpack.c.b16 %v4054, %v4050
        %v6935 = vpack.c.b16 %v4055, %v4051
        %v6936 = vpack.c.b16 %v4056, %v4052
        %v6937 = vpack.c.b16 %v4057, %v4053
        %v6938 = vpack.c.b16 %v4062, %v4058
        %v6939 = vpack.c.b16 %v4063, %v4059
        %v6940 = vpack.c.b16 %v4064, %v4060
        %v6941 = vpack.c.b16 %v4065, %v4061
        %v6942 = vpack.c.b16 %v4070, %v4066
        %v6943 = vpack.c.b16 %v4071, %v4067
        %v6944 = vpack.c.b16 %v4072, %v4068
        %v6945 = vpack.c.b16 %v4073, %v4069
        %v6946 = vpack.c.b16 %v4078, %v4074
        %v6947 = vpack.c.b16 %v4079, %v4075
        %v6948 = vpack.c.b16 %v4080, %v4076
        %v6949 = vpack.c.b16 %v4081, %v4077
        %v6950 = vpack.c.b16 %v4086, %v4082
        %v6951 = vpack.c.b16 %v4087, %v4083
        %v6952 = vpack.c.b16 %v4088, %v4084
        %v6953 = vpack.c.b16 %v4089, %v4085
        %v6954 = vpack.c.b16 %v4094, %v4090
        %v6955 = vpack.c.b16 %v4095, %v4091
        %v6956 = vpack.c.b16 %v4096, %v4092
        %v6957 = vpack.c.b16 %v4097, %v4093
        %v6958 = vpack.c.b16 %v4102, %v4098
        %v6959 = vpack.c.b16 %v4103, %v4099
        %v6960 = vpack.c.b16 %v4104, %v4100
        %v6961 = vpack.c.b16 %v4105, %v4101
        %v6962 = vpack.c.b16 %v4110, %v4106
        %v6963 = vpack.c.b16 %v4111, %v4107
        %v6964 = vpack.c.b16 %v4112, %v4108
        %v6965 = vpack.c.b16 %v4113, %v4109
        %v6966 = vpack.c.b16 %v4118, %v4114
        %v6967 = vpack.c.b16 %v4119, %v4115
        %v6968 = vpack.c.b16 %v4120, %v4116
        %v6969 = vpack.c.b16 %v4121, %v4117
        %v6970 = vpack.c.b16 %v4126, %v4122
        %v6971 = vpack.c.b16 %v4127, %v4123
        %v6972 = vpack.c.b16 %v4128, %v4124
        %v6973 = vpack.c.b16 %v4129, %v4125
        %v6974 = vpack.c.b16 %v4134, %v4130
        %v6975 = vpack.c.b16 %v4135, %v4131
        %v6976 = vpack.c.b16 %v4136, %v4132
        %v6977 = vpack.c.b16 %v4137, %v4133
        %v6978 = vpack.c.b16 %v4142, %v4138
        %v6979 = vpack.c.b16 %v4143, %v4139
        %v6980 = vpack.c.b16 %v4144, %v4140
        %v6981 = vpack.c.b16 %v4145, %v4141
        %v6982 = vpack.c.b16 %v4150, %v4146
        %v6983 = vpack.c.b16 %v4151, %v4147
        %v6984 = vpack.c.b16 %v4152, %v4148
        %v6985 = vpack.c.b16 %v4153, %v4149
        %v6986 = vpack.c.b16 %v4158, %v4154
        %v6987 = vpack.c.b16 %v4159, %v4155
        %v6988 = vpack.c.b16 %v4160, %v4156
        %v6989 = vpack.c.b16 %v4161, %v4157
        %v6990 = vpack.c.b16 %v4166, %v4162
        %v6991 = vpack.c.b16 %v4167, %v4163
        %v6992 = vpack.c.b16 %v4168, %v4164
        %v6993 = vpack.c.b16 %v4169, %v4165
        %v6994 = vpack.c.b16 %v4174, %v4170
        %v6995 = vpack.c.b16 %v4175, %v4171
        %v6996 = vpack.c.b16 %v4176, %v4172
        %v6997 = vpack.c.b16 %v4177, %v4173
        %v6998 = vpack.c.b16 %v4182, %v4178
        %v6999 = vpack.c.b16 %v4183, %v4179
        %v7000 = vpack.c.b16 %v4184, %v4180
        %v7001 = vpack.c.b16 %v4185, %v4181
        %v7002 = vpack.c.b16 %v4190, %v4186
        %v7003 = vpack.c.b16 %v4191, %v4187
        %v7004 = vpack.c.b16 %v4192, %v4188
        %v7005 = vpack.c.b16 %v4193, %v4189
        %v7006 = vpack.c.b16 %v4198, %v4194
        %v7007 = vpack.c.b16 %v4199, %v4195
        %v7008 = vpack.c.b16 %v4200, %v4196
        %v7009 = vpack.c.b16 %v4201, %v4197
        %v7010 = vpack.c.b16 %v4206, %v4202
        %v7011 = vpack.c.b16 %v4207, %v4203
        %v7012 = vpack.c.b16 %v4208, %v4204
        %v7013 = vpack.c.b16 %v4209, %v4205
        %v7014 = vpack.c.b16 %v4214, %v4210
        %v7015 = vpack.c.b16 %v4215, %v4211
        %v7016 = vpack.c.b16 %v4216, %v4212
        %v7017 = vpack.c.b16 %v4217, %v4213
        %v7018 = vpack.c.b16 %v4222, %v4218
        %v7019 = vpack.c.b16 %v4223, %v4219
        %v7020 = vpack.c.b16 %v4224, %v4220
        %v7021 = vpack.c.b16 %v4225, %v4221
        %v7022 = vpack.c.b16 %v4230, %v4226
        %v7023 = vpack.c.b16 %v4231, %v4227
        %v7024 = vpack.c.b16 %v4232, %v4228
        %v7025 = vpack.c.b16 %v4233, %v4229
        %v7026 = vpack.c.b16 %v4238, %v4234
        %v7027 = vpack.c.b16 %v4239, %v4235
        %v7028 = vpack.c.b16 %v4240, %v4236
        %v7029 = vpack.c.b16 %v4241, %v4237
        %v7030 = vpack.c.b16 %v4246, %v4242
        %v7031 = vpack.c.b16 %v4247, %v4243
        %v7032 = vpack.c.b16 %v4248, %v4244
        %v7033 = vpack.c.b16 %v4249, %v4245
        %v7034 = vpack.c.b16 %v4254, %v4250
        %v7035 = vpack.c.b16 %v4255, %v4251
        %v7036 = vpack.c.b16 %v4256, %v4252
        %v7037 = vpack.c.b16 %v4257, %v4253
        %v7038 = vpack.c.b16 %v4262, %v4258
        %v7039 = vpack.c.b16 %v4263, %v4259
        %v7040 = vpack.c.b16 %v4264, %v4260
        %v7041 = vpack.c.b16 %v4265, %v4261
        %v7042 = vpack.c.b16 %v4270, %v4266
        %v7043 = vpack.c.b16 %v4271, %v4267
        %v7044 = vpack.c.b16 %v4272, %v4268
        %v7045 = vpack.c.b16 %v4273, %v4269
        %v7046 = vpack.c.b16 %v4278, %v4274
        %v7047 = vpack.c.b16 %v4279, %v4275
        %v7048 = vpack.c.b16 %v4280, %v4276
        %v7049 = vpack.c.b16 %v4281, %v4277
        %v7050 = vpack.c.b16 %v4286, %v4282
        %v7051 = vpack.c.b16 %v4287, %v4283
        %v7052 = vpack.c.b16 %v4288, %v4284
        %v7053 = vpack.c.b16 %v4289, %v4285
        %v7054 = vpack.c.b16 %v4294, %v4290
        %v7055 = vpack.c.b16 %v4295, %v4291
        %v7056 = vpack.c.b16 %v4296, %v4292
        %v7057 = vpack.c.b16 %v4297, %v4293
        %v7058 = vpack.c.b16 %v4302, %v4298
        %v7059 = vpack.c.b16 %v4303, %v4299
        %v7060 = vpack.c.b16 %v4304, %v4300
        %v7061 = vpack.c.b16 %v4305, %v4301
        %v7062 = vpack.c.b16 %v4310, %v4306
        %v7063 = vpack.c.b16 %v4311, %v4307
        %v7064 = vpack.c.b16 %v4312, %v4308
        %v7065 = vpack.c.b16 %v4313, %v4309
        %v7066 = vpack.c.b16 %v4318, %v4314
        %v7067 = vpack.c.b16 %v4319, %v4315
        %v7068 = vpack.c.b16 %v4320, %v4316
        %v7069 = vpack.c.b16 %v4321, %v4317
        %v7070 = vpack.c.b16 %v4326, %v4322
        %v7071 = vpack.c.b16 %v4327, %v4323
        %v7072 = vpack.c.b16 %v4328, %v4324
        %v7073 = vpack.c.b16 %v4329, %v4325
        %v7074 = vpack.c.b16 %v4334, %v4330
        %v7075 = vpack.c.b16 %v4335, %v4331
        %v7076 = vpack.c.b16 %v4336, %v4332
        %v7077 = vpack.c.b16 %v4337, %v4333
        %v7078 = vpack.c.b16 %v4342, %v4338
        %v7079 = vpack.c.b16 %v4343, %v4339
        %v7080 = vpack.c.b16 %v4344, %v4340
        %v7081 = vpack.c.b16 %v4345, %v4341
        %v7082 = vpack.c.b16 %v4350, %v4346
        %v7083 = vpack.c.b16 %v4351, %v4347
        %v7084 = vpack.c.b16 %v4352, %v4348
        %v7085 = vpack.c.b16 %v4353, %v4349
        %v7086 = vpack.c.b16 %v4358, %v4354
        %v7087 = vpack.c.b16 %v4359, %v4355
        %v7088 = vpack.c.b16 %v4360, %v4356
        %v7089 = vpack.c.b16 %v4361, %v4357
        %v7090 = vpack.c.b16 %v4366, %v4362
        %v7091 = vpack.c.b16 %v4367, %v4363
        %v7092 = vpack.c.b16 %v4368, %v4364
        %v7093 = vpack.c.b16 %v4369, %v4365
        %v7094 = vpack.c.b16 %v4374, %v4370
        %v7095 = vpack.c.b16 %v4375, %v4371
        %v7096 = vpack.c.b16 %v4376, %v4372
        %v7097 = vpack.c.b16 %v4377, %v4373
        %v7098 = vpack.c.b16 %v4382, %v4378
        %v7099 = vpack.c.b16 %v4383, %v4379
        %v7100 = vpack.c.b16 %v4384, %v4380
        %v7101 = vpack.c.b16 %v4385, %v4381
        %v7102 = vpack.c.b16 %v4390, %v4386
        %v7103 = vpack.c.b16 %v4391, %v4387
        %v7104 = vpack.c.b16 %v4392, %v4388
        %v7105 = vpack.c.b16 %v4393, %v4389
        %v7106 = vpack.c.b16 %v4398, %v4394
        %v7107 = vpack.c.b16 %v4399, %v4395
        %v7108 = vpack.c.b16 %v4400, %v4396
        %v7109 = vpack.c.b16 %v4401, %v4397
        %v7110 = vpack.c.b16 %v4406, %v4402
        %v7111 = vpack.c.b16 %v4407, %v4403
        %v7112 = vpack.c.b16 %v4408, %v4404
        %v7113 = vpack.c.b16 %v4409, %v4405
        %v7114 = vpack.c.b16 %v4414, %v4410
        %v7115 = vpack.c.b16 %v4415, %v4411
        %v7116 = vpack.c.b16 %v4416, %v4412
        %v7117 = vpack.c.b16 %v4417, %v4413
        %v7118 = vpack.c.b16 %v4422, %v4418
        %v7119 = vpack.c.b16 %v4423, %v4419
        %v7120 = vpack.c.b16 %v4424, %v4420
        %v7121 = vpack.c.b16 %v4425, %v4421
        %v7122 = vpack.c.b16 %v4430, %v4426
        %v7123 = vpack.c.b16 %v4431, %v4427
        %v7124 = vpack.c.b16 %v4432, %v4428
        %v7125 = vpack.c.b16 %v4433, %v4429
        %v7126 = vpack.c.b16 %v4438, %v4434
        %v7127 = vpack.c.b16 %v4439, %v4435
        %v7128 = vpack.c.b16 %v4440, %v4436
        %v7129 = vpack.c.b16 %v4441, %v4437
        %v7130 = vpack.c.b16 %v4446, %v4442
        %v7131 = vpack.c.b16 %v4447, %v4443
        %v7132 = vpack.c.b16 %v4448, %v4444
        %v7133 = vpack.c.b16 %v4449, %v4445
        %v7134 = vpack.c.b16 %v4454, %v4450
        %v7135 = vpack.c.b16 %v4455, %v4451
        %v7136 = vpack.c.b16 %v4456, %v4452
        %v7137 = vpack.c.b16 %v4457, %v4453
        %v7138 = vpack.c.b16 %v4462, %v4458
        %v7139 = vpack.c.b16 %v4463, %v4459
        %v7140 = vpack.c.b16 %v4464, %v4460
        %v7141 = vpack.c.b16 %v4465, %v4461
        %v7142 = vpack.c.b16 %v4470, %v4466
        %v7143 = vpack.c.b16 %v4471, %v4467
        %v7144 = vpack.c.b16 %v4472, %v4468
        %v7145 = vpack.c.b16 %v4473, %v4469
        %v7146 = vpack.c.b16 %v4478, %v4474
        %v7147 = vpack.c.b16 %v4479, %v4475
        %v7148 = vpack.c.b16 %v4480, %v4476
        %v7149 = vpack.c.b16 %v4481, %v4477
        %v7150 = vpack.c.b16 %v4486, %v4482
        %v7151 = vpack.c.b16 %v4487, %v4483
        %v7152 = vpack.c.b16 %v4488, %v4484
        %v7153 = vpack.c.b16 %v4489, %v4485
        %v7154 = vpack.c.b16 %v4494, %v4490
        %v7155 = vpack.c.b16 %v4495, %v4491
        %v7156 = vpack.c.b16 %v4496, %v4492
        %v7157 = vpack.c.b16 %v4497, %v4493
        %v7158 = vpack.c.b16 %v4502, %v4498
        %v7159 = vpack.c.b16 %v4503, %v4499
        %v7160 = vpack.c.b16 %v4504, %v4500
        %v7161 = vpack.c.b16 %v4505, %v4501
        %v7162 = vpack.c.b16 %v4510, %v4506
        %v7163 = vpack.c.b16 %v4511, %v4507
        %v7164 = vpack.c.b16 %v4512, %v4508
        %v7165 = vpack.c.b16 %v4513, %v4509
        %v7166 = vpack.c.b16 %v4518, %v4514
        %v7167 = vpack.c.b16 %v4519, %v4515
        %v7168 = vpack.c.b16 %v4520, %v4516
        %v7169 = vpack.c.b16 %v4521, %v4517
        %v7170 = vpack.c.b16 %v4526, %v4522
        %v7171 = vpack.c.b16 %v4527, %v4523
        %v7172 = vpack.c.b16 %v4528, %v4524
        %v7173 = vpack.c.b16 %v4529, %v4525
        %v7174 = vpack.c.b16 %v4534, %v4530
        %v7175 = vpack.c.b16 %v4535, %v4531
        %v7176 = vpack.c.b16 %v4536, %v4532
        %v7177 = vpack.c.b16 %v4537, %v4533
        %v7178 = vpack.c.b16 %v4542, %v4538
        %v7179 = vpack.c.b16 %v4543, %v4539
        %v7180 = vpack.c.b16 %v4544, %v4540
        %v7181 = vpack.c.b16 %v4545, %v4541
        %v7182 = vpack.c.b16 %v4550, %v4546
        %v7183 = vpack.c.b16 %v4551, %v4547
        %v7184 = vpack.c.b16 %v4552, %v4548
        %v7185 = vpack.c.b16 %v4553, %v4549
        %v7186 = vpack.c.b16 %v4558, %v4554
        %v7187 = vpack.c.b16 %v4559, %v4555
        %v7188 = vpack.c.b16 %v4560, %v4556
        %v7189 = vpack.c.b16 %v4561, %v4557
        %v7190 = vpack.c.b16 %v4566, %v4562
        %v7191 = vpack.c.b16 %v4567, %v4563
        %v7192 = vpack.c.b16 %v4568, %v4564
        %v7193 = vpack.c.b16 %v4569, %v4565
        %v7194 = vpack.c.b16 %v4574, %v4570
        %v7195 = vpack.c.b16 %v4575, %v4571
        %v7196 = vpack.c.b16 %v4576, %v4572
        %v7197 = vpack.c.b16 %v4577, %v4573
        %v7198 = vpack.c.b16 %v4582, %v4578
        %v7199 = vpack.c.b16 %v4583, %v4579
        %v7200 = vpack.c.b16 %v4584, %v4580
        %v7201 = vpack.c.b16 %v4585, %v4581
        %v7202 = vpack.c.b16 %v4590, %v4586
        %v7203 = vpack.c.b16 %v4591, %v4587
        %v7204 = vpack.c.b16 %v4592, %v4588
        %v7205 = vpack.c.b16 %v4593, %v4589
        %v7206 = vpack.c.b16 %v4598, %v4594
        %v7207 = vpack.c.b16 %v4599, %v4595
        %v7208 = vpack.c.b16 %v4600, %v4596
        %v7209 = vpack.c.b16 %v4601, %v4597
        %v7210 = vpack.c.b16 %v4606, %v4602
        %v7211 = vpack.c.b16 %v4607, %v4603
        %v7212 = vpack.c.b16 %v4608, %v4604
        %v7213 = vpack.c.b16 %v4609, %v4605
        %v7214 = vpack.c.b16 %v4614, %v4610
        %v7215 = vpack.c.b16 %v4615, %v4611
        %v7216 = vpack.c.b16 %v4616, %v4612
        %v7217 = vpack.c.b16 %v4617, %v4613
        %v7218 = vpack.c.b16 %v4622, %v4618
        %v7219 = vpack.c.b16 %v4623, %v4619
        %v7220 = vpack.c.b16 %v4624, %v4620
        %v7221 = vpack.c.b16 %v4625, %v4621
        %v7222 = vpack.c.b16 %v4630, %v4626
        %v7223 = vpack.c.b16 %v4631, %v4627
        %v7224 = vpack.c.b16 %v4632, %v4628
        %v7225 = vpack.c.b16 %v4633, %v4629
        %v7226 = vpack.c.b16 %v4638, %v4634
        %v7227 = vpack.c.b16 %v4639, %v4635
        %v7228 = vpack.c.b16 %v4640, %v4636
        %v7229 = vpack.c.b16 %v4641, %v4637
        %v7230 = vpack.c.b16 %v4646, %v4642
        %v7231 = vpack.c.b16 %v4647, %v4643
        %v7232 = vpack.c.b16 %v4648, %v4644
        %v7233 = vpack.c.b16 %v4649, %v4645
        %v7234 = vpack.c.b16 %v4654, %v4650
        %v7235 = vpack.c.b16 %v4655, %v4651
        %v7236 = vpack.c.b16 %v4656, %v4652
        %v7237 = vpack.c.b16 %v4657, %v4653
        %v7238 = vpack.c.b16 %v4662, %v4658
        %v7239 = vpack.c.b16 %v4663, %v4659
        %v7240 = vpack.c.b16 %v4664, %v4660
        %v7241 = vpack.c.b16 %v4665, %v4661
        %v7242 = vpack.c.b16 %v4670, %v4666
        %v7243 = vpack.c.b16 %v4671, %v4667
        %v7244 = vpack.c.b16 %v4672, %v4668
        %v7245 = vpack.c.b16 %v4673, %v4669
        %v7246 = vpack.c.b16 %v4678, %v4674
        %v7247 = vpack.c.b16 %v4679, %v4675
        %v7248 = vpack.c.b16 %v4680, %v4676
        %v7249 = vpack.c.b16 %v4681, %v4677
        %v7250 = vpack.c.b16 %v4686, %v4682
        %v7251 = vpack.c.b16 %v4687, %v4683
        %v7252 = vpack.c.b16 %v4688, %v4684
        %v7253 = vpack.c.b16 %v4689, %v4685
        %v7254 = vpack.c.b16 %v4694, %v4690
        %v7255 = vpack.c.b16 %v4695, %v4691
        %v7256 = vpack.c.b16 %v4696, %v4692
        %v7257 = vpack.c.b16 %v4697, %v4693
        %v7258 = vpack.c.b16 %v4702, %v4698
        %v7259 = vpack.c.b16 %v4703, %v4699
        %v7260 = vpack.c.b16 %v4704, %v4700
        %v7261 = vpack.c.b16 %v4705, %v4701
        %v7262 = vpack.c.b16 %v4710, %v4706
        %v7263 = vpack.c.b16 %v4711, %v4707
        %v7264 = vpack.c.b16 %v4712, %v4708
        %v7265 = vpack.c.b16 %v4713, %v4709
        %v7266 = vpack.c.b16 %v4718, %v4714
        %v7267 = vpack.c.b16 %v4719, %v4715
        %v7268 = vpack.c.b16 %v4720, %v4716
        %v7269 = vpack.c.b16 %v4721, %v4717
        %v7270 = vpack.c.b16 %v4726, %v4722
        %v7271 = vpack.c.b16 %v4727, %v4723
        %v7272 = vpack.c.b16 %v4728, %v4724
        %v7273 = vpack.c.b16 %v4729, %v4725
        %v7274 = vpack.c.b16 %v4734, %v4730
        %v7275 = vpack.c.b16 %v4735, %v4731
        %v7276 = vpack.c.b16 %v4736, %v4732
        %v7277 = vpack.c.b16 %v4737, %v4733
        %v7278 = vpack.c.b16 %v4742, %v4738
        %v7279 = vpack.c.b16 %v4743, %v4739
        %v7280 = vpack.c.b16 %v4744, %v4740
        %v7281 = vpack.c.b16 %v4745, %v4741
        %v7282 = vpack.c.b16 %v4750, %v4746
        %v7283 = vpack.c.b16 %v4751, %v4747
        %v7284 = vpack.c.b16 %v4752, %v4748
        %v7285 = vpack.c.b16 %v4753, %v4749
        %v7286 = vpack.c.b16 %v4758, %v4754
        %v7287 = vpack.c.b16 %v4759, %v4755
        %v7288 = vpack.c.b16 %v4760, %v4756
        %v7289 = vpack.c.b16 %v4761, %v4757
        %v7290 = vpack.c.b16 %v4766, %v4762
        %v7291 = vpack.c.b16 %v4767, %v4763
        %v7292 = vpack.c.b16 %v4768, %v4764
        %v7293 = vpack.c.b16 %v4769, %v4765
        %v7294 = vpack.c.b16 %v4774, %v4770
        %v7295 = vpack.c.b16 %v4775, %v4771
        %v7296 = vpack.c.b16 %v4776, %v4772
        %v7297 = vpack.c.b16 %v4777, %v4773
        %v7298 = vpack.c.b16 %v4782, %v4778
        %v7299 = vpack.c.b16 %v4783, %v4779
        %v7300 = vpack.c.b16 %v4784, %v4780
        %v7301 = vpack.c.b16 %v4785, %v4781
        %v7302 = vpack.c.b16 %v4790, %v4786
        %v7303 = vpack.c.b16 %v4791, %v4787
        %v7304 = vpack.c.b16 %v4792, %v4788
        %v7305 = vpack.c.b16 %v4793, %v4789
        %v7306 = vpack.c.b16 %v4798, %v4794
        %v7307 = vpack.c.b16 %v4799, %v4795
        %v7308 = vpack.c.b16 %v4800, %v4796
        %v7309 = vpack.c.b16 %v4801, %v4797
        %v7310 = vpack.c.b16 %v4806, %v4802
        %v7311 = vpack.c.b16 %v4807, %v4803
        %v7312 = vpack.c.b16 %v4808, %v4804
        %v7313 = vpack.c.b16 %v4809, %v4805
        %v7314 = vpack.c.b16 %v4814, %v4810
        %v7315 = vpack.c.b16 %v4815, %v4811
        %v7316 = vpack.c.b16 %v4816, %v4812
        %v7317 = vpack.c.b16 %v4817, %v4813
        %v7318 = vpack.c.b16 %v4822, %v4818
        %v7319 = vpack.c.b16 %v4823, %v4819
        %v7320 = vpack.c.b16 %v4824, %v4820
        %v7321 = vpack.c.b16 %v4825, %v4821
        %v7322 = vpack.c.b16 %v4830, %v4826
        %v7323 = vpack.c.b16 %v4831, %v4827
        %v7324 = vpack.c.b16 %v4832, %v4828
        %v7325 = vpack.c.b16 %v4833, %v4829
        %v7326 = vpack.c.b16 %v4838, %v4834
        %v7327 = vpack.c.b16 %v4839, %v4835
        %v7328 = vpack.c.b16 %v4840, %v4836
        %v7329 = vpack.c.b16 %v4841, %v4837
        %v7330 = vpack.c.b16 %v4846, %v4842
        %v7331 = vpack.c.b16 %v4847, %v4843
        %v7332 = vpack.c.b16 %v4848, %v4844
        %v7333 = vpack.c.b16 %v4849, %v4845
        %v7334 = vpack.c.b16 %v4854, %v4850
        %v7335 = vpack.c.b16 %v4855, %v4851
        %v7336 = vpack.c.b16 %v4856, %v4852
        %v7337 = vpack.c.b16 %v4857, %v4853
        %v7338 = vpack.c.b16 %v4862, %v4858
        %v7339 = vpack.c.b16 %v4863, %v4859
        %v7340 = vpack.c.b16 %v4864, %v4860
        %v7341 = vpack.c.b16 %v4865, %v4861
        %v7342 = vpack.c.b16 %v4870, %v4866
        %v7343 = vpack.c.b16 %v4871, %v4867
        %v7344 = vpack.c.b16 %v4872, %v4868
        %v7345 = vpack.c.b16 %v4873, %v4869
        %v7346 = vpack.c.b16 %v4878, %v4874
        %v7347 = vpack.c.b16 %v4879, %v4875
        %v7348 = vpack.c.b16 %v4880, %v4876
        %v7349 = vpack.c.b16 %v4881, %v4877
        %v7350 = vpack.c.b16 %v4886, %v4882
        %v7351 = vpack.c.b16 %v4887, %v4883
        %v7352 = vpack.c.b16 %v4888, %v4884
        %v7353 = vpack.c.b16 %v4889, %v4885
        %v7354 = vpack.c.b16 %v4894, %v4890
        %v7355 = vpack.c.b16 %v4895, %v4891
        %v7356 = vpack.c.b16 %v4896, %v4892
        %v7357 = vpack.c.b16 %v4897, %v4893
        %v7358 = vpack.c.b16 %v4902, %v4898
        %v7359 = vpack.c.b16 %v4903, %v4899
        %v7360 = vpack.c.b16 %v4904, %v4900
        %v7361 = vpack.c.b16 %v4905, %v4901
        %v7362 = vpack.c.b16 %v4910, %v4906
        %v7363 = vpack.c.b16 %v4911, %v4907
        %v7364 = vpack.c.b16 %v4912, %v4908
        %v7365 = vpack.c.b16 %v4913, %v4909
        %v7366 = vpack.c.b16 %v4918, %v4914
        %v7367 = vpack.c.b16 %v4919, %v4915
        %v7368 = vpack.c.b16 %v4920, %v4916
        %v7369 = vpack.c.b16 %v4921, %v4917
        %v7370 = vpack.c.b16 %v4926, %v4922
        %v7371 = vpack.c.b16 %v4927, %v4923
        %v7372 = vpack.c.b16 %v4928, %v4924
        %v7373 = vpack.c.b16 %v4929, %v4925
        %v7374 = vpack.c.b16 %v4934, %v4930
        %v7375 = vpack.c.b16 %v4935, %v4931
        %v7376 = vpack.c.b16 %v4936, %v4932
        %v7377 = vpack.c.b16 %v4937, %v4933
        %v7378 = vpack.c.b16 %v4942, %v4938
        %v7379 = vpack.c.b16 %v4943, %v4939
        %v7380 = vpack.c.b16 %v4944, %v4940
        %v7381 = vpack.c.b16 %v4945, %v4941
        %v7382 = vpack.c.b16 %v4950, %v4946
        %v7383 = vpack.c.b16 %v4951, %v4947
        %v7384 = vpack.c.b16 %v4952, %v4948
        %v7385 = vpack.c.b16 %v4953, %v4949
        %v7386 = vpack.c.b16 %v4958, %v4954
        %v7387 = vpack.c.b16 %v4959, %v4955
        %v7388 = vpack.c.b16 %v4960, %v4956
        %v7389 = vpack.c.b16 %v4961, %v4957
        %v7390 = vpack.c.b16 %v4966, %v4962
        %v7391 = vpack.c.b16 %v4967, %v4963
        %v7392 = vpack.c.b16 %v4968, %v4964
        %v7393 = vpack.c.b16 %v4969, %v4965
        %v7394 = vpack.c.b16 %v4974, %v4970
        %v7395 = vpack.c.b16 %v4975, %v4971
        %v7396 = vpack.c.b16 %v4976, %v4972
        %v7397 = vpack.c.b16 %v4977, %v4973
        %v7398 = vpack.c.b16 %v4982, %v4978
        %v7399 = vpack.c.b16 %v4983, %v4979
        %v7400 = vpack.c.b16 %v4984, %v4980
        %v7401 = vpack.c.b16 %v4985, %v4981
        %v7402 = vpack.c.b16 %v4990, %v4986
        %v7403 = vpack.c.b16 %v4991, %v4987
        %v7404 = vpack.c.b16 %v4992, %v4988
        %v7405 = vpack.c.b16 %v4993, %v4989
        %v7406 = vpack.c.b16 %v4998, %v4994
        %v7407 = vpack.c.b16 %v4999, %v4995
        %v7408 = vpack.c.b16 %v5000, %v4996
        %v7409 = vpack.c.b16 %v5001, %v4997
        %v7410 = vpack.c.b16 %v5006, %v5002
        %v7411 = vpack.c.b16 %v5007, %v5003
        %v7412 = vpack.c.b16 %v5008, %v5004
        %v7413 = vpack.c.b16 %v5009, %v5005
        %v7414 = vpack.c.b16 %v5014, %v5010
        %v7415 = vpack.c.b16 %v5015, %v5011
        %v7416 = vpack.c.b16 %v5016, %v5012
        %v7417 = vpack.c.b16 %v5017, %v5013
        %v7418 = vpack.c.b16 %v5022, %v5018
        %v7419 = vpack.c.b16 %v5023, %v5019
        %v7420 = vpack.c.b16 %v5024, %v5020
        %v7421 = vpack.c.b16 %v5025, %v5021
        %v7422 = vpack.c.b16 %v5030, %v5026
        %v7423 = vpack.c.b16 %v5031, %v5027
        %v7424 = vpack.c.b16 %v5032, %v5028
        %v7425 = vpack.c.b16 %v5033, %v5029
        %v7426 = vpack.c.b16 %v5038, %v5034
        %v7427 = vpack.c.b16 %v5039, %v5035
        %v7428 = vpack.c.b16 %v5040, %v5036
        %v7429 = vpack.c.b16 %v5041, %v5037
        %v7430 = vpack.c.b16 %v5046, %v5042
        %v7431 = vpack.c.b16 %v5047, %v5043
        %v7432 = vpack.c.b16 %v5048, %v5044
        %v7433 = vpack.c.b16 %v5049, %v5045
        %v7434 = vpack.c.b16 %v5054, %v5050
        %v7435 = vpack.c.b16 %v5055, %v5051
        %v7436 = vpack.c.b16 %v5056, %v5052
        %v7437 = vpack.c.b16 %v5057, %v5053
        %v7438 = vpack.c.b16 %v5062, %v5058
        %v7439 = vpack.c.b16 %v5063, %v5059
        %v7440 = vpack.c.b16 %v5064, %v5060
        %v7441 = vpack.c.b16 %v5065, %v5061
        %v7442 = vpack.c.b16 %v5070, %v5066
        %v7443 = vpack.c.b16 %v5071, %v5067
        %v7444 = vpack.c.b16 %v5072, %v5068
        %v7445 = vpack.c.b16 %v5073, %v5069
        %v7446 = vpack.c.b16 %v5078, %v5074
        %v7447 = vpack.c.b16 %v5079, %v5075
        %v7448 = vpack.c.b16 %v5080, %v5076
        %v7449 = vpack.c.b16 %v5081, %v5077
        %v7450 = vpack.c.b16 %v5086, %v5082
        %v7451 = vpack.c.b16 %v5087, %v5083
        %v7452 = vpack.c.b16 %v5088, %v5084
        %v7453 = vpack.c.b16 %v5089, %v5085
        %v7454 = vpack.c.b16 %v5094, %v5090
        %v7455 = vpack.c.b16 %v5095, %v5091
        %v7456 = vpack.c.b16 %v5096, %v5092
        %v7457 = vpack.c.b16 %v5097, %v5093
        %v7458 = vpack.c.b16 %v5102, %v5098
        %v7459 = vpack.c.b16 %v5103, %v5099
        %v7460 = vpack.c.b16 %v5104, %v5100
        %v7461 = vpack.c.b16 %v5105, %v5101
        %v7462 = vpack.c.b16 %v5110, %v5106
        %v7463 = vpack.c.b16 %v5111, %v5107
        %v7464 = vpack.c.b16 %v5112, %v5108
        %v7465 = vpack.c.b16 %v5113, %v5109
        %v7466 = vpack.c.b16 %v5118, %v5114
        %v7467 = vpack.c.b16 %v5119, %v5115
        %v7468 = vpack.c.b16 %v5120, %v5116
        %v7469 = vpack.c.b16 %v5121, %v5117
        %v7470 = vpack.c.b16 %v5126, %v5122
        %v7471 = vpack.c.b16 %v5127, %v5123
        %v7472 = vpack.c.b16 %v5128, %v5124
        %v7473 = vpack.c.b16 %v5129, %v5125
        %v7474 = vpack.c.b16 %v5134, %v5130
        %v7475 = vpack.c.b16 %v5135, %v5131
        %v7476 = vpack.c.b16 %v5136, %v5132
        %v7477 = vpack.c.b16 %v5137, %v5133
        %v7478 = vpack.c.b16 %v5142, %v5138
        %v7479 = vpack.c.b16 %v5143, %v5139
        %v7480 = vpack.c.b16 %v5144, %v5140
        %v7481 = vpack.c.b16 %v5145, %v5141
        %v7482 = vpack.c.b16 %v5150, %v5146
        %v7483 = vpack.c.b16 %v5151, %v5147
        %v7484 = vpack.c.b16 %v5152, %v5148
        %v7485 = vpack.c.b16 %v5153, %v5149
        %v7486 = vpack.c.b16 %v5158, %v5154
        %v7487 = vpack.c.b16 %v5159, %v5155
        %v7488 = vpack.c.b16 %v5160, %v5156
        %v7489 = vpack.c.b16 %v5161, %v5157
        %v7490 = vpack.c.b16 %v5166, %v5162
        %v7491 = vpack.c.b16 %v5167, %v5163
        %v7492 = vpack.c.b16 %v5168, %v5164
        %v7493 = vpack.c.b16 %v5169, %v5165
        %v7494 = vpack.c.b16 %v5174, %v5170
        %v7495 = vpack.c.b16 %v5175, %v5171
        %v7496 = vpack.c.b16 %v5176, %v5172
        %v7497 = vpack.c.b16 %v5177, %v5173
        %v7498 = vpack.c.b16 %v5182, %v5178
        %v7499 = vpack.c.b16 %v5183, %v5179
        %v7500 = vpack.c.b16 %v5184, %v5180
        %v7501 = vpack.c.b16 %v5185, %v5181
        %v7502 = vpack.c.b16 %v5190, %v5186
        %v7503 = vpack.c.b16 %v5191, %v5187
        %v7504 = vpack.c.b16 %v5192, %v5188
        %v7505 = vpack.c.b16 %v5193, %v5189
        %v7506 = vpack.c.b16 %v5198, %v5194
        %v7507 = vpack.c.b16 %v5199, %v5195
        %v7508 = vpack.c.b16 %v5200, %v5196
        %v7509 = vpack.c.b16 %v5201, %v5197
        %v7510 = vpack.c.b16 %v5206, %v5202
        %v7511 = vpack.c.b16 %v5207, %v5203
        %v7512 = vpack.c.b16 %v5208, %v5204
        %v7513 = vpack.c.b16 %v5209, %v5205
        %v7514 = vpack.c.b16 %v5214, %v5210
        %v7515 = vpack.c.b16 %v5215, %v5211
        %v7516 = vpack.c.b16 %v5216, %v5212
        %v7517 = vpack.c.b16 %v5217, %v5213
        %v7518 = vpack.c.b16 %v5222, %v5218
        %v7519 = vpack.c.b16 %v5223, %v5219
        %v7520 = vpack.c.b16 %v5224, %v5220
        %v7521 = vpack.c.b16 %v5225, %v5221
        %v7522 = vpack.c.b16 %v5230, %v5226
        %v7523 = vpack.c.b16 %v5231, %v5227
        %v7524 = vpack.c.b16 %v5232, %v5228
        %v7525 = vpack.c.b16 %v5233, %v5229
        %v7526 = vpack.c.b16 %v5238, %v5234
        %v7527 = vpack.c.b16 %v5239, %v5235
        %v7528 = vpack.c.b16 %v5240, %v5236
        %v7529 = vpack.c.b16 %v5241, %v5237
        %v7530 = vpack.c.b16 %v5246, %v5242
        %v7531 = vpack.c.b16 %v5247, %v5243
        %v7532 = vpack.c.b16 %v5248, %v5244
        %v7533 = vpack.c.b16 %v5249, %v5245
        %v7534 = vpack.c.b16 %v5254, %v5250
        %v7535 = vpack.c.b16 %v5255, %v5251
        %v7536 = vpack.c.b16 %v5256, %v5252
        %v7537 = vpack.c.b16 %v5257, %v5253
        %v7538 = vpack.c.b16 %v5262, %v5258
        %v7539 = vpack.c.b16 %v5263, %v5259
        %v7540 = vpack.c.b16 %v5264, %v5260
        %v7541 = vpack.c.b16 %v5265, %v5261
        %v7542 = vpack.c.b16 %v5270, %v5266
        %v7543 = vpack.c.b16 %v5271, %v5267
        %v7544 = vpack.c.b16 %v5272, %v5268
        %v7545 = vpack.c.b16 %v5273, %v5269
        %v7546 = vpack.c.b16 %v5278, %v5274
        %v7547 = vpack.c.b16 %v5279, %v5275
        %v7548 = vpack.c.b16 %v5280, %v5276
        %v7549 = vpack.c.b16 %v5281, %v5277
        %v7550 = vpack.c.b16 %v5286, %v5282
        %v7551 = vpack.c.b16 %v5287, %v5283
        %v7552 = vpack.c.b16 %v5288, %v5284
        %v7553 = vpack.c.b16 %v5289, %v5285
        %v7554 = vpack.c.b16 %v5294, %v5290
        %v7555 = vpack.c.b16 %v5295, %v5291
        %v7556 = vpack.c.b16 %v5296, %v5292
        %v7557 = vpack.c.b16 %v5297, %v5293
        %v7558 = vpack.c.b16 %v5302, %v5298
        %v7559 = vpack.c.b16 %v5303, %v5299
        %v7560 = vpack.c.b16 %v5304, %v5300
        %v7561 = vpack.c.b16 %v5305, %v5301
        %v7562 = vpack.c.b16 %v5310, %v5306
        %v7563 = vpack.c.b16 %v5311, %v5307
        %v7564 = vpack.c.b16 %v5312, %v5308
        %v7565 = vpack.c.b16 %v5313, %v5309
        %v7566 = vpack.c.b16 %v5318, %v5314
        %v7567 = vpack.c.b16 %v5319, %v5315
        %v7568 = vpack.c.b16 %v5320, %v5316
        %v7569 = vpack.c.b16 %v5321, %v5317
        %v7570 = vpack.c.b16 %v5326, %v5322
        %v7571 = vpack.c.b16 %v5327, %v5323
        %v7572 = vpack.c.b16 %v5328, %v5324
        %v7573 = vpack.c.b16 %v5329, %v5325
        %v7574 = vpack.c.b16 %v5334, %v5330
        %v7575 = vpack.c.b16 %v5335, %v5331
        %v7576 = vpack.c.b16 %v5336, %v5332
        %v7577 = vpack.c.b16 %v5337, %v5333
        %v7578 = vpack.c.b16 %v5342, %v5338
        %v7579 = vpack.c.b16 %v5343, %v5339
        %v7580 = vpack.c.b16 %v5344, %v5340
        %v7581 = vpack.c.b16 %v5345, %v5341
        %v7582 = vpack.c.b16 %v5350, %v5346
        %v7583 = vpack.c.b16 %v5351, %v5347
        %v7584 = vpack.c.b16 %v5352, %v5348
        %v7585 = vpack.c.b16 %v5353, %v5349
        %v7586 = vpack.c.b16 %v5358, %v5354
        %v7587 = vpack.c.b16 %v5359, %v5355
        %v7588 = vpack.c.b16 %v5360, %v5356
        %v7589 = vpack.c.b16 %v5361, %v5357
        %v7590 = vpack.c.b16 %v5366, %v5362
        %v7591 = vpack.c.b16 %v5367, %v5363
        %v7592 = vpack.c.b16 %v5368, %v5364
        %v7593 = vpack.c.b16 %v5369, %v5365
        %v7594 = vpack.c.b16 %v5374, %v5370
        %v7595 = vpack.c.b16 %v5375, %v5371
        %v7596 = vpack.c.b16 %v5376, %v5372
        %v7597 = vpack.c.b16 %v5377, %v5373
        %v7598 = vpack.c.b16 %v5382, %v5378
        %v7599 = vpack.c.b16 %v5383, %v5379
        %v7600 = vpack.c.b16 %v5384, %v5380
        %v7601 = vpack.c.b16 %v5385, %v5381
        %v7602 = vpack.c.b16 %v5390, %v5386
        %v7603 = vpack.c.b16 %v5391, %v5387
        %v7604 = vpack.c.b16 %v5392, %v5388
        %v7605 = vpack.c.b16 %v5393, %v5389
        %v7606 = vpack.c.b16 %v5398, %v5394
        %v7607 = vpack.c.b16 %v5399, %v5395
        %v7608 = vpack.c.b16 %v5400, %v5396
        %v7609 = vpack.c.b16 %v5401, %v5397
        %v7610 = vpack.c.b16 %v5406, %v5402
        %v7611 = vpack.c.b16 %v5407, %v5403
        %v7612 = vpack.c.b16 %v5408, %v5404
        %v7613 = vpack.c.b16 %v5409, %v5405
        %v7614 = vpack.c.b16 %v5414, %v5410
        %v7615 = vpack.c.b16 %v5415, %v5411
        %v7616 = vpack.c.b16 %v5416, %v5412
        %v7617 = vpack.c.b16 %v5417, %v5413
        %v7618 = vpack.c.b16 %v5422, %v5418
        %v7619 = vpack.c.b16 %v5423, %v5419
        %v7620 = vpack.c.b16 %v5424, %v5420
        %v7621 = vpack.c.b16 %v5425, %v5421
        %v7622 = vpack.c.b16 %v5430, %v5426
        %v7623 = vpack.c.b16 %v5431, %v5427
        %v7624 = vpack.c.b16 %v5432, %v5428
        %v7625 = vpack.c.b16 %v5433, %v5429
        %v7626 = vpack.c.b16 %v5438, %v5434
        %v7627 = vpack.c.b16 %v5439, %v5435
        %v7628 = vpack.c.b16 %v5440, %v5436
        %v7629 = vpack.c.b16 %v5441, %v5437
        %v7630 = vpack.c.b16 %v5446, %v5442
        %v7631 = vpack.c.b16 %v5447, %v5443
        %v7632 = vpack.c.b16 %v5448, %v5444
        %v7633 = vpack.c.b16 %v5449, %v5445
        %v7634 = vpack.c.b16 %v5454, %v5450
        %v7635 = vpack.c.b16 %v5455, %v5451
        %v7636 = vpack.c.b16 %v5456, %v5452
        %v7637 = vpack.c.b16 %v5457, %v5453
        %v7638 = vpack.c.b16 %v5462, %v5458
        %v7639 = vpack.c.b16 %v5463, %v5459
        %v7640 = vpack.c.b16 %v5464, %v5460
        %v7641 = vpack.c.b16 %v5465, %v5461
        %v7642 = vpack.c.b16 %v5470, %v5466
        %v7643 = vpack.c.b16 %v5471, %v5467
        %v7644 = vpack.c.b16 %v5472, %v5468
        %v7645 = vpack.c.b16 %v5473, %v5469
        %v7646 = vpack.c.b16 %v5478, %v5474
        %v7647 = vpack.c.b16 %v5479, %v5475
        %v7648 = vpack.c.b16 %v5480, %v5476
        %v7649 = vpack.c.b16 %v5481, %v5477
        %v7650 = vpack.c.b16 %v5486, %v5482
        %v7651 = vpack.c.b16 %v5487, %v5483
        %v7652 = vpack.c.b16 %v5488, %v5484
        %v7653 = vpack.c.b16 %v5489, %v5485
        %v7654 = vpack.c.b16 %v5494, %v5490
        %v7655 = vpack.c.b16 %v5495, %v5491
        %v7656 = vpack.c.b16 %v5496, %v5492
        %v7657 = vpack.c.b16 %v5497, %v5493
        %v7658 = vpack.c.b16 %v5502, %v5498
        %v7659 = vpack.c.b16 %v5503, %v5499
        %v7660 = vpack.c.b16 %v5504, %v5500
        %v7661 = vpack.c.b16 %v5505, %v5501
        %v7662 = vpack.c.b16 %v5510, %v5506
        %v7663 = vpack.c.b16 %v5511, %v5507
        %v7664 = vpack.c.b16 %v5512, %v5508
        %v7665 = vpack.c.b16 %v5513, %v5509
        %v7666 = vpack.c.b16 %v5518, %v5514
        %v7667 = vpack.c.b16 %v5519, %v5515
        %v7668 = vpack.c.b16 %v5520, %v5516
        %v7669 = vpack.c.b16 %v5521, %v5517
        %v7670 = vpack.c.b16 %v5526, %v5522
        %v7671 = vpack.c.b16 %v5527, %v5523
        %v7672 = vpack.c.b16 %v5528, %v5524
        %v7673 = vpack.c.b16 %v5529, %v5525
        %v7674 = vpack.c.b16 %v5534, %v5530
        %v7675 = vpack.c.b16 %v5535, %v5531
        %v7676 = vpack.c.b16 %v5536, %v5532
        %v7677 = vpack.c.b16 %v5537, %v5533
        %v7678 = vpack.c.b16 %v5542, %v5538
        %v7679 = vpack.c.b16 %v5543, %v5539
        %v7680 = vpack.c.b16 %v5544, %v5540
        %v7681 = vpack.c.b16 %v5545, %v5541
        %v7682 = vpack.c.b16 %v5550, %v5546
        %v7683 = vpack.c.b16 %v5551, %v5547
        %v7684 = vpack.c.b16 %v5552, %v5548
        %v7685 = vpack.c.b16 %v5553, %v5549
        %v7686 = vpack.c.b16 %v5558, %v5554
        %v7687 = vpack.c.b16 %v5559, %v5555
        %v7688 = vpack.c.b16 %v5560, %v5556
        %v7689 = vpack.c.b16 %v5561, %v5557
        %v7690 = vpack.c.b16 %v5566, %v5562
        %v7691 = vpack.c.b16 %v5567, %v5563
        %v7692 = vpack.c.b16 %v5568, %v5564
        %v7693 = vpack.c.b16 %v5569, %v5565
        %v7694 = vpack.c.b16 %v5574, %v5570
        %v7695 = vpack.c.b16 %v5575, %v5571
        %v7696 = vpack.c.b16 %v5576, %v5572
        %v7697 = vpack.c.b16 %v5577, %v5573
        %v7698 = vpack.c.b16 %v5582, %v5578
        %v7699 = vpack.c.b16 %v5583, %v5579
        %v7700 = vpack.c.b16 %v5584, %v5580
        %v7701 = vpack.c.b16 %v5585, %v5581
        %v7702 = vpack.c.b16 %v5590, %v5586
        %v7703 = vpack.c.b16 %v5591, %v5587
        %v7704 = vpack.c.b16 %v5592, %v5588
        %v7705 = vpack.c.b16 %v5593, %v5589
        %v7706 = vpack.c.b16 %v5598, %v5594
        %v7707 = vpack.c.b16 %v5599, %v5595
        %v7708 = vpack.c.b16 %v5600, %v5596
        %v7709 = vpack.c.b16 %v5601, %v5597
        %v7710 = vpack.c.b16 %v5606, %v5602
        %v7711 = vpack.c.b16 %v5607, %v5603
        %v7712 = vpack.c.b16 %v5608, %v5604
        %v7713 = vpack.c.b16 %v5609, %v5605
        %v7714 = vpack.c.b16 %v5614, %v5610
        %v7715 = vpack.c.b16 %v5615, %v5611
        %v7716 = vpack.c.b16 %v5616, %v5612
        %v7717 = vpack.c.b16 %v5617, %v5613
        %v7718 = vpack.c.b16 %v5622, %v5618
        %v7719 = vpack.c.b16 %v5623, %v5619
        %v7720 = vpack.c.b16 %v5624, %v5620
        %v7721 = vpack.c.b16 %v5625, %v5621
        %v7722 = vpack.c.b16 %v5630, %v5626
        %v7723 = vpack.c.b16 %v5631, %v5627
        %v7724 = vpack.c.b16 %v5632, %v5628
        %v7725 = vpack.c.b16 %v5633, %v5629
        %v7726 = vpack.c.b16 %v5638, %v5634
        %v7727 = vpack.c.b16 %v5639, %v5635
        %v7728 = vpack.c.b16 %v5640, %v5636
        %v7729 = vpack.c.b16 %v5641, %v5637
        %v7730 = vpack.c.b16 %v5646, %v5642
        %v7731 = vpack.c.b16 %v5647, %v5643
        %v7732 = vpack.c.b16 %v5648, %v5644
        %v7733 = vpack.c.b16 %v5649, %v5645
        %v7734 = vpack.c.b16 %v5654, %v5650
        %v7735 = vpack.c.b16 %v5655, %v5651
        %v7736 = vpack.c.b16 %v5656, %v5652
        %v7737 = vpack.c.b16 %v5657, %v5653
        %v7738 = vpack.c.b16 %v5662, %v5658
        %v7739 = vpack.c.b16 %v5663, %v5659
        %v7740 = vpack.c.b16 %v5664, %v5660
        %v7741 = vpack.c.b16 %v5665, %v5661
        %v7742 = vpack.c.b16 %v5670, %v5666
        %v7743 = vpack.c.b16 %v5671, %v5667
        %v7744 = vpack.c.b16 %v5672, %v5668
        %v7745 = vpack.c.b16 %v5673, %v5669
        %v7746 = vpack.c.b16 %v5678, %v5674
        %v7747 = vpack.c.b16 %v5679, %v5675
        %v7748 = vpack.c.b16 %v5680, %v5676
        %v7749 = vpack.c.b16 %v5681, %v5677
        %v7750 = vpack.c.b16 %v5686, %v5682
        %v7751 = vpack.c.b16 %v5687, %v5683
        %v7752 = vpack.c.b16 %v5688, %v5684
        %v7753 = vpack.c.b16 %v5689, %v5685
        %v7754 = vpack.c.b16 %v5694, %v5690
        %v7755 = vpack.c.b16 %v5695, %v5691
        %v7756 = vpack.c.b16 %v5696, %v5692
        %v7757 = vpack.c.b16 %v5697, %v5693
        %v7758 = vpack.c.b16 %v5702, %v5698
        %v7759 = vpack.c.b16 %v5703, %v5699
        %v7760 = vpack.c.b16 %v5704, %v5700
        %v7761 = vpack.c.b16 %v5705, %v5701
        %v7762 = vpack.c.b16 %v5710, %v5706
        %v7763 = vpack.c.b16 %v5711, %v5707
        %v7764 = vpack.c.b16 %v5712, %v5708
        %v7765 = vpack.c.b16 %v5713, %v5709
        %v7766 = vpack.c.b16 %v5718, %v5714
        %v7767 = vpack.c.b16 %v5719, %v5715
        %v7768 = vpack.c.b16 %v5720, %v5716
        %v7769 = vpack.c.b16 %v5721, %v5717
        %v7770 = vpack.c.b16 %v5726, %v5722
        %v7771 = vpack.c.b16 %v5727, %v5723
        %v7772 = vpack.c.b16 %v5728, %v5724
        %v7773 = vpack.c.b16 %v5729, %v5725
        %v7774 = vpack.c.b16 %v5734, %v5730
        %v7775 = vpack.c.b16 %v5735, %v5731
        %v7776 = vpack.c.b16 %v5736, %v5732
        %v7777 = vpack.c.b16 %v5737, %v5733
        %v7778 = vpack.c.b16 %v5742, %v5738
        %v7779 = vpack.c.b16 %v5743, %v5739
        %v7780 = vpack.c.b16 %v5744, %v5740
        %v7781 = vpack.c.b16 %v5745, %v5741
        %v7782 = vpack.c.b16 %v5750, %v5746
        %v7783 = vpack.c.b16 %v5751, %v5747
        %v7784 = vpack.c.b16 %v5752, %v5748
        %v7785 = vpack.c.b16 %v5753, %v5749
        %v7786 = vpack.c.b16 %v5758, %v5754
        %v7787 = vpack.c.b16 %v5759, %v5755
        %v7788 = vpack.c.b16 %v5760, %v5756
        %v7789 = vpack.c.b16 %v5761, %v5757
        %v7790 = vpack.c.b16 %v5766, %v5762
        %v7791 = vpack.c.b16 %v5767, %v5763
        %v7792 = vpack.c.b16 %v5768, %v5764
        %v7793 = vpack.c.b16 %v5769, %v5765
        %v7794 = vpack.c.b16 %v5774, %v5770
        %v7795 = vpack.c.b16 %v5775, %v5771
        %v7796 = vpack.c.b16 %v5776, %v5772
        %v7797 = vpack.c.b16 %v5777, %v5773
        %v7798 = vpack.c.b16 %v5782, %v5778
        %v7799 = vpack.c.b16 %v5783, %v5779
        %v7800 = vpack.c.b16 %v5784, %v5780
        %v7801 = vpack.c.b16 %v5785, %v5781
        %v7802 = vpack.c.b16 %v5790, %v5786
        %v7803 = vpack.c.b16 %v5791, %v5787
        %v7804 = vpack.c.b16 %v5792, %v5788
        %v7805 = vpack.c.b16 %v5793, %v5789
        %v7806 = vpack.c.b16 %v5798, %v5794
        %v7807 = vpack.c.b16 %v5799, %v5795
        %v7808 = vpack.c.b16 %v5800, %v5796
        %v7809 = vpack.c.b16 %v5801, %v5797
        %v7810 = vpack.c.b16 %v5806, %v5802
        %v7811 = vpack.c.b16 %v5807, %v5803
        %v7812 = vpack.c.b16 %v5808, %v5804
        %v7813 = vpack.c.b16 %v5809, %v5805
        %v7814 = vpack.c.b16 %v5814, %v5810
        %v7815 = vpack.c.b16 %v5815, %v5811
        %v7816 = vpack.c.b16 %v5816, %v5812
        %v7817 = vpack.c.b16 %v5817, %v5813
        %v7818 = vpack.c.b16 %v5822, %v5818
        %v7819 = vpack.c.b16 %v5823, %v5819
        %v7820 = vpack.c.b16 %v5824, %v5820
        %v7821 = vpack.c.b16 %v5825, %v5821
        %v7822 = vpack.c.b16 %v5830, %v5826
        %v7823 = vpack.c.b16 %v5831, %v5827
        %v7824 = vpack.c.b16 %v5832, %v5828
        %v7825 = vpack.c.b16 %v5833, %v5829
        %v7826 = vpack.c.b16 %v5838, %v5834
        %v7827 = vpack.c.b16 %v5839, %v5835
        %v7828 = vpack.c.b16 %v5840, %v5836
        %v7829 = vpack.c.b16 %v5841, %v5837
        %v7830 = vpack.c.b16 %v5846, %v5842
        %v7831 = vpack.c.b16 %v5847, %v5843
        %v7832 = vpack.c.b16 %v5848, %v5844
        %v7833 = vpack.c.b16 %v5849, %v5845
        %v7834 = vpack.c.b16 %v5854, %v5850
        %v7835 = vpack.c.b16 %v5855, %v5851
        %v7836 = vpack.c.b16 %v5856, %v5852
        %v7837 = vpack.c.b16 %v5857, %v5853
        %v7838 = vpack.c.b16 %v5862, %v5858
        %v7839 = vpack.c.b16 %v5863, %v5859
        %v7840 = vpack.c.b16 %v5864, %v5860
        %v7841 = vpack.c.b16 %v5865, %v5861
        %v7842 = vpack.c.b16 %v5870, %v5866
        %v7843 = vpack.c.b16 %v5871, %v5867
        %v7844 = vpack.c.b16 %v5872, %v5868
        %v7845 = vpack.c.b16 %v5873, %v5869
        %v7846 = vpack.c.b16 %v5878, %v5874
        %v7847 = vpack.c.b16 %v5879, %v5875
        %v7848 = vpack.c.b16 %v5880, %v5876
        %v7849 = vpack.c.b16 %v5881, %v5877
        %v7850 = vpack.c.b16 %v5886, %v5882
        %v7851 = vpack.c.b16 %v5887, %v5883
        %v7852 = vpack.c.b16 %v5888, %v5884
        %v7853 = vpack.c.b16 %v5889, %v5885
        %v7854 = vpack.c.b16 %v5894, %v5890
        %v7855 = vpack.c.b16 %v5895, %v5891
        %v7856 = vpack.c.b16 %v5896, %v5892
        %v7857 = vpack.c.b16 %v5897, %v5893
        %v7858 = vpack.c.b16 %v5902, %v5898
        %v7859 = vpack.c.b16 %v5903, %v5899
        %v7860 = vpack.c.b16 %v5904, %v5900
        %v7861 = vpack.c.b16 %v5905, %v5901
        %v7862 = vpack.c.b16 %v5910, %v5906
        %v7863 = vpack.c.b16 %v5911, %v5907
        %v7864 = vpack.c.b16 %v5912, %v5908
        %v7865 = vpack.c.b16 %v5913, %v5909
        %v7866 = vpack.c.b16 %v5918, %v5914
        %v7867 = vpack.c.b16 %v5919, %v5915
        %v7868 = vpack.c.b16 %v5920, %v5916
        %v7869 = vpack.c.b16 %v5921, %v5917
        %v7870 = vpack.c.b16 %v5926, %v5922
        %v7871 = vpack.c.b16 %v5927, %v5923
        %v7872 = vpack.c.b16 %v5928, %v5924
        %v7873 = vpack.c.b16 %v5929, %v5925
        %v7874 = vpack.c.b16 %v5934, %v5930
        %v7875 = vpack.c.b16 %v5935, %v5931
        %v7876 = vpack.c.b16 %v5936, %v5932
        %v7877 = vpack.c.b16 %v5937, %v5933
        %v7878 = vpack.c.b16 %v5942, %v5938
        %v7879 = vpack.c.b16 %v5943, %v5939
        %v7880 = vpack.c.b16 %v5944, %v5940
        %v7881 = vpack.c.b16 %v5945, %v5941
        %v7882 = vpack.c.b16 %v5950, %v5946
        %v7883 = vpack.c.b16 %v5951, %v5947
        %v7884 = vpack.c.b16 %v5952, %v5948
        %v7885 = vpack.c.b16 %v5953, %v5949
        %v7886 = vpack.c.b16 %v5958, %v5954
        %v7887 = vpack.c.b16 %v5959, %v5955
        %v7888 = vpack.c.b16 %v5960, %v5956
        %v7889 = vpack.c.b16 %v5961, %v5957
        %v7890 = vpack.c.b16 %v5966, %v5962
        %v7891 = vpack.c.b16 %v5967, %v5963
        %v7892 = vpack.c.b16 %v5968, %v5964
        %v7893 = vpack.c.b16 %v5969, %v5965
        %v7894 = vpack.c.b16 %v5974, %v5970
        %v7895 = vpack.c.b16 %v5975, %v5971
        %v7896 = vpack.c.b16 %v5976, %v5972
        %v7897 = vpack.c.b16 %v5977, %v5973
        %v7898 = vpack.c.b16 %v5982, %v5978
        %v7899 = vpack.c.b16 %v5983, %v5979
        %v7900 = vpack.c.b16 %v5984, %v5980
        %v7901 = vpack.c.b16 %v5985, %v5981
        %v7902 = vpack.c.b16 %v5990, %v5986
        %v7903 = vpack.c.b16 %v5991, %v5987
        %v7904 = vpack.c.b16 %v5992, %v5988
        %v7905 = vpack.c.b16 %v5993, %v5989
        %v7906 = vpack.c.b16 %v5998, %v5994
        %v7907 = vpack.c.b16 %v5999, %v5995
        %v7908 = vpack.c.b16 %v6000, %v5996
        %v7909 = vpack.c.b16 %v6001, %v5997
        %v7910 = vpack.c.b16 %v6006, %v6002
        %v7911 = vpack.c.b16 %v6007, %v6003
        %v7912 = vpack.c.b16 %v6008, %v6004
        %v7913 = vpack.c.b16 %v6009, %v6005
        %v7914 = vpack.c.b16 %v6014, %v6010
        %v7915 = vpack.c.b16 %v6015, %v6011
        %v7916 = vpack.c.b16 %v6016, %v6012
        %v7917 = vpack.c.b16 %v6017, %v6013
        %v7918 = vpack.c.b16 %v6022, %v6018
        %v7919 = vpack.c.b16 %v6023, %v6019
        %v7920 = vpack.c.b16 %v6024, %v6020
        %v7921 = vpack.c.b16 %v6025, %v6021
        %v7922 = vpack.c.b16 %v6030, %v6026
        %v7923 = vpack.c.b16 %v6031, %v6027
        %v7924 = vpack.c.b16 %v6032, %v6028
        %v7925 = vpack.c.b16 %v6033, %v6029
        %v7926 = vpack.c.b16 %v6038, %v6034
        %v7927 = vpack.c.b16 %v6039, %v6035
        %v7928 = vpack.c.b16 %v6040, %v6036
        %v7929 = vpack.c.b16 %v6041, %v6037
        %v7930 = vpack.c.b16 %v6046, %v6042
        %v7931 = vpack.c.b16 %v6047, %v6043
        %v7932 = vpack.c.b16 %v6048, %v6044
        %v7933 = vpack.c.b16 %v6049, %v6045
        %v7934 = vpack.c.b16 %v6054, %v6050
        %v7935 = vpack.c.b16 %v6055, %v6051
        %v7936 = vpack.c.b16 %v6056, %v6052
        %v7937 = vpack.c.b16 %v6057, %v6053
        %v7938 = vpack.c.b16 %v6062, %v6058
        %v7939 = vpack.c.b16 %v6063, %v6059
        %v7940 = vpack.c.b16 %v6064, %v6060
        %v7941 = vpack.c.b16 %v6065, %v6061
        %v7942 = vpack.c.b16 %v6070, %v6066
        %v7943 = vpack.c.b16 %v6071, %v6067
        %v7944 = vpack.c.b16 %v6072, %v6068
        %v7945 = vpack.c.b16 %v6073, %v6069
        %v7946 = vpack.c.b16 %v6078, %v6074
        %v7947 = vpack.c.b16 %v6079, %v6075
        %v7948 = vpack.c.b16 %v6080, %v6076
        %v7949 = vpack.c.b16 %v6081, %v6077
        %v7950 = vpack.c.b16 %v6086, %v6082
        %v7951 = vpack.c.b16 %v6087, %v6083
        %v7952 = vpack.c.b16 %v6088, %v6084
        %v7953 = vpack.c.b16 %v6089, %v6085
        %v7954 = vpack.c.b16 %v6094, %v6090
        %v7955 = vpack.c.b16 %v6095, %v6091
        %v7956 = vpack.c.b16 %v6096, %v6092
        %v7957 = vpack.c.b16 %v6097, %v6093
        %v7958 = vpack.c.b16 %v6102, %v6098
        %v7959 = vpack.c.b16 %v6103, %v6099
        %v7960 = vpack.c.b16 %v6104, %v6100
        %v7961 = vpack.c.b16 %v6105, %v6101
        %v7962 = vpack.c.b16 %v6110, %v6106
        %v7963 = vpack.c.b16 %v6111, %v6107
        %v7964 = vpack.c.b16 %v6112, %v6108
        %v7965 = vpack.c.b16 %v6113, %v6109
        %v7966 = vpack.c.b16 %v6118, %v6114
        %v7967 = vpack.c.b16 %v6119, %v6115
        %v7968 = vpack.c.b16 %v6120, %v6116
        %v7969 = vpack.c.b16 %v6121, %v6117
        %v7970 = vpack.c.b16 %v6126, %v6122
        %v7971 = vpack.c.b16 %v6127, %v6123
        %v7972 = vpack.c.b16 %v6128, %v6124
        %v7973 = vpack.c.b16 %v6129, %v6125
        %v7974 = vpack.c.b16 %v6134, %v6130
        %v7975 = vpack.c.b16 %v6135, %v6131
        %v7976 = vpack.c.b16 %v6136, %v6132
        %v7977 = vpack.c.b16 %v6137, %v6133
        %v7978 = vpack.c.b16 %v6142, %v6138
        %v7979 = vpack.c.b16 %v6143, %v6139
        %v7980 = vpack.c.b16 %v6144, %v6140
        %v7981 = vpack.c.b16 %v6145, %v6141
        %v7982 = vpack.c.b16 %v6150, %v6146
        %v7983 = vpack.c.b16 %v6151, %v6147
        %v7984 = vpack.c.b16 %v6152, %v6148
        %v7985 = vpack.c.b16 %v6153, %v6149
        %v7986 = vpack.c.b16 %v6158, %v6154
        %v7987 = vpack.c.b16 %v6159, %v6155
        %v7988 = vpack.c.b16 %v6160, %v6156
        %v7989 = vpack.c.b16 %v6161, %v6157
        %v7990 = vpack.c.b16 %v6166, %v6162
        %v7991 = vpack.c.b16 %v6167, %v6163
        %v7992 = vpack.c.b16 %v6168, %v6164
        %v7993 = vpack.c.b16 %v6169, %v6165
        %v7994 = vpack.c.b16 %v6174, %v6170
        %v7995 = vpack.c.b16 %v6175, %v6171
        %v7996 = vpack.c.b16 %v6176, %v6172
        %v7997 = vpack.c.b16 %v6177, %v6173
        %v7998 = vpack.c.b16 %v6182, %v6178
        %v7999 = vpack.c.b16 %v6183, %v6179
        %v8000 = vpack.c.b16 %v6184, %v6180
        %v8001 = vpack.c.b16 %v6185, %v6181
        %v8002 = vpack.c.b16 %v6190, %v6186
        %v8003 = vpack.c.b16 %v6191, %v6187
        %v8004 = vpack.c.b16 %v6192, %v6188
        %v8005 = vpack.c.b16 %v6193, %v6189
        %v8006 = vpack.c.b16 %v6198, %v6194
        %v8007 = vpack.c.b16 %v6199, %v6195
        %v8008 = vpack.c.b16 %v6200, %v6196
        %v8009 = vpack.c.b16 %v6201, %v6197
        %v8010 = vpack.c.b16 %v6206, %v6202
        %v8011 = vpack.c.b16 %v6207, %v6203
        %v8012 = vpack.c.b16 %v6208, %v6204
        %v8013 = vpack.c.b16 %v6209, %v6205
        %v8014 = vpack.c.b16 %v6214, %v6210
        %v8015 = vpack.c.b16 %v6215, %v6211
        %v8016 = vpack.c.b16 %v6216, %v6212
        %v8017 = vpack.c.b16 %v6217, %v6213
        %v8018 = vpack.c.b16 %v6222, %v6218
        %v8019 = vpack.c.b16 %v6223, %v6219
        %v8020 = vpack.c.b16 %v6224, %v6220
        %v8021 = vpack.c.b16 %v6225, %v6221
        %v8022 = vpack.c.b16 %v6230, %v6226
        %v8023 = vpack.c.b16 %v6231, %v6227
        %v8024 = vpack.c.b16 %v6232, %v6228
        %v8025 = vpack.c.b16 %v6233, %v6229
        %v8026 = vpack.c.b16 %v6238, %v6234
        %v8027 = vpack.c.b16 %v6239, %v6235
        %v8028 = vpack.c.b16 %v6240, %v6236
        %v8029 = vpack.c.b16 %v6241, %v6237
        %v8030 = vpack.c.b16 %v6246, %v6242
        %v8031 = vpack.c.b16 %v6247, %v6243
        %v8032 = vpack.c.b16 %v6248, %v6244
        %v8033 = vpack.c.b16 %v6249, %v6245
        %v8034 = vpack.c.b16 %v6254, %v6250
        %v8035 = vpack.c.b16 %v6255, %v6251
        %v8036 = vpack.c.b16 %v6256, %v6252
        %v8037 = vpack.c.b16 %v6257, %v6253
        %v8038 = vpack.c.b16 %v6262, %v6258
        %v8039 = vpack.c.b16 %v6263, %v6259
        %v8040 = vpack.c.b16 %v6264, %v6260
        %v8041 = vpack.c.b16 %v6265, %v6261
        %v8042 = vpack.c.b16 %v6270, %v6266
        %v8043 = vpack.c.b16 %v6271, %v6267
        %v8044 = vpack.c.b16 %v6272, %v6268
        %v8045 = vpack.c.b16 %v6273, %v6269
        %v8046 = vpack.c.b16 %v6278, %v6274
        %v8047 = vpack.c.b16 %v6279, %v6275
        %v8048 = vpack.c.b16 %v6280, %v6276
        %v8049 = vpack.c.b16 %v6281, %v6277
        %v8050 = vpack.c.b16 %v6286, %v6282
        %v8051 = vpack.c.b16 %v6287, %v6283
        %v8052 = vpack.c.b16 %v6288, %v6284
        %v8053 = vpack.c.b16 %v6289, %v6285
        %v8054 = vpack.c.b16 %v6294, %v6290
        %v8055 = vpack.c.b16 %v6295, %v6291
        %v8056 = vpack.c.b16 %v6296, %v6292
        %v8057 = vpack.c.b16 %v6297, %v6293
        %v8058 = vpack.c.b16 %v6302, %v6298
        %v8059 = vpack.c.b16 %v6303, %v6299
        %v8060 = vpack.c.b16 %v6304, %v6300
        %v8061 = vpack.c.b16 %v6305, %v6301
        %v8062 = vpack.c.b16 %v6310, %v6306
        %v8063 = vpack.c.b16 %v6311, %v6307
        %v8064 = vpack.c.b16 %v6312, %v6308
        %v8065 = vpack.c.b16 %v6313, %v6309
        %v8066 = vpack.c.b16 %v6318, %v6314
        %v8067 = vpack.c.b16 %v6319, %v6315
        %v8068 = vpack.c.b16 %v6320, %v6316
        %v8069 = vpack.c.b16 %v6321, %v6317
        %v8070 = vpack.c.b16 %v6326, %v6322
        %v8071 = vpack.c.b16 %v6327, %v6323
        %v8072 = vpack.c.b16 %v6328, %v6324
        %v8073 = vpack.c.b16 %v6329, %v6325
        %v8074 = vpack.c.b16 %v6334, %v6330
        %v8075 = vpack.c.b16 %v6335, %v6331
        %v8076 = vpack.c.b16 %v6336, %v6332
        %v8077 = vpack.c.b16 %v6337, %v6333
        %v8078 = vpack.c.b16 %v6342, %v6338
        %v8079 = vpack.c.b16 %v6343, %v6339
        %v8080 = vpack.c.b16 %v6344, %v6340
        %v8081 = vpack.c.b16 %v6345, %v6341
        %v8082 = vpack.c.b16 %v6350, %v6346
        %v8083 = vpack.c.b16 %v6351, %v6347
        %v8084 = vpack.c.b16 %v6352, %v6348
        %v8085 = vpack.c.b16 %v6353, %v6349
        %v8086 = vpack.c.b16 %v6358, %v6354
        %v8087 = vpack.c.b16 %v6359, %v6355
        %v8088 = vpack.c.b16 %v6360, %v6356
        %v8089 = vpack.c.b16 %v6361, %v6357
        %v8090 = vpack.c.b16 %v6366, %v6362
        %v8091 = vpack.c.b16 %v6367, %v6363
        %v8092 = vpack.c.b16 %v6368, %v6364
        %v8093 = vpack.c.b16 %v6369, %v6365
        %v8094 = vpack.c.b16 %v6374, %v6370
        %v8095 = vpack.c.b16 %v6375, %v6371
        %v8096 = vpack.c.b16 %v6376, %v6372
        %v8097 = vpack.c.b16 %v6377, %v6373
        %v8098 = vpack.c.b16 %v6382, %v6378
        %v8099 = vpack.c.b16 %v6383, %v6379
        %v8100 = vpack.c.b16 %v6384, %v6380
        %v8101 = vpack.c.b16 %v6385, %v6381
        %v8102 = vpack.c.b16 %v6390, %v6386
        %v8103 = vpack.c.b16 %v6391, %v6387
        %v8104 = vpack.c.b16 %v6392, %v6388
        %v8105 = vpack.c.b16 %v6393, %v6389
        %v8106 = vpack.c.b16 %v6398, %v6394
        %v8107 = vpack.c.b16 %v6399, %v6395
        %v8108 = vpack.c.b16 %v6400, %v6396
        %v8109 = vpack.c.b16 %v6401, %v6397
        %v8110 = vpack.c.b16 %v6406, %v6402
        %v8111 = vpack.c.b16 %v6407, %v6403
        %v8112 = vpack.c.b16 %v6408, %v6404
        %v8113 = vpack.c.b16 %v6409, %v6405
        %v8114 = vpack.c.b16 %v6414, %v6410
        %v8115 = vpack.c.b16 %v6415, %v6411
        %v8116 = vpack.c.b16 %v6416, %v6412
        %v8117 = vpack.c.b16 %v6417, %v6413
        %v8118 = vpack.c.b16 %v6422, %v6418
        %v8119 = vpack.c.b16 %v6423, %v6419
        %v8120 = vpack.c.b16 %v6424, %v6420
        %v8121 = vpack.c.b16 %v6425, %v6421
        %v8122 = vpack.c.b16 %v6430, %v6426
        %v8123 = vpack.c.b16 %v6431, %v6427
        %v8124 = vpack.c.b16 %v6432, %v6428
        %v8125 = vpack.c.b16 %v6433, %v6429
        %v8126 = vpack.c.b16 %v6438, %v6434
        %v8127 = vpack.c.b16 %v6439, %v6435
        %v8128 = vpack.c.b16 %v6440, %v6436
        %v8129 = vpack.c.b16 %v6441, %v6437
        %v8130 = vpack.c.b16 %v6446, %v6442
        %v8131 = vpack.c.b16 %v6447, %v6443
        %v8132 = vpack.c.b16 %v6448, %v6444
        %v8133 = vpack.c.b16 %v6449, %v6445
        %v8134 = vpack.c.b16 %v6454, %v6450
        %v8135 = vpack.c.b16 %v6455, %v6451
        %v8136 = vpack.c.b16 %v6456, %v6452
        %v8137 = vpack.c.b16 %v6457, %v6453
        %v8138 = vpack.c.b16 %v6462, %v6458
        %v8139 = vpack.c.b16 %v6463, %v6459
        %v8140 = vpack.c.b16 %v6464, %v6460
        %v8141 = vpack.c.b16 %v6465, %v6461
        %v8142 = vpack.c.b16 %v6470, %v6466
        %v8143 = vpack.c.b16 %v6471, %v6467
        %v8144 = vpack.c.b16 %v6472, %v6468
        %v8145 = vpack.c.b16 %v6473, %v6469
        %v8146 = vpack.c.b16 %v6478, %v6474
        %v8147 = vpack.c.b16 %v6479, %v6475
        %v8148 = vpack.c.b16 %v6480, %v6476
        %v8149 = vpack.c.b16 %v6481, %v6477
        %v8150 = vpack.c.b16 %v6486, %v6482
        %v8151 = vpack.c.b16 %v6487, %v6483
        %v8152 = vpack.c.b16 %v6488, %v6484
        %v8153 = vpack.c.b16 %v6489, %v6485
        %v8154 = vpack.c.b16 %v6494, %v6490
        %v8155 = vpack.c.b16 %v6495, %v6491
        %v8156 = vpack.c.b16 %v6496, %v6492
        %v8157 = vpack.c.b16 %v6497, %v6493
        %v8158 = vpack.c.b16 %v6502, %v6498
        %v8159 = vpack.c.b16 %v6503, %v6499
        %v8160 = vpack.c.b16 %v6504, %v6500
        %v8161 = vpack.c.b16 %v6505, %v6501
        %v8162 = vpack.c.b16 %v6510, %v6506
        %v8163 = vpack.c.b16 %v6511, %v6507
        %v8164 = vpack.c.b16 %v6512, %v6508
        %v8165 = vpack.c.b16 %v6513, %v6509
        %v8166 = vpack.c.b16 %v6518, %v6514
        %v8167 = vpack.c.b16 %v6519, %v6515
        %v8168 = vpack.c.b16 %v6520, %v6516
        %v8169 = vpack.c.b16 %v6521, %v6517
        %v8170 = vpack.c.b16 %v6526, %v6522
        %v8171 = vpack.c.b16 %v6527, %v6523
        %v8172 = vpack.c.b16 %v6528, %v6524
        %v8173 = vpack.c.b16 %v6529, %v6525
        %v8174 = vpack.c.b16 %v6534, %v6530
        %v8175 = vpack.c.b16 %v6535, %v6531
        %v8176 = vpack.c.b16 %v6536, %v6532
        %v8177 = vpack.c.b16 %v6537, %v6533
        %v8178 = vpack.c.b16 %v6542, %v6538
        %v8179 = vpack.c.b16 %v6543, %v6539
        %v8180 = vpack.c.b16 %v6544, %v6540
        %v8181 = vpack.c.b16 %v6545, %v6541
        %v8182 = vpack.c.b16 %v6550, %v6546
        %v8183 = vpack.c.b16 %v6551, %v6547
        %v8184 = vpack.c.b16 %v6552, %v6548
        %v8185 = vpack.c.b16 %v6553, %v6549
        %v8186 = vpack.c.b16 %v6558, %v6554
        %v8187 = vpack.c.b16 %v6559, %v6555
        %v8188 = vpack.c.b16 %v6560, %v6556
        %v8189 = vpack.c.b16 %v6561, %v6557
        %v8190 = vpack.c.b16 %v6566, %v6562
        %v8191 = vpack.c.b16 %v6567, %v6563
        %v8192 = vpack.c.b16 %v6568, %v6564
        %v8193 = vpack.c.b16 %v6569, %v6565
        %v8194 = vpack.c.b16 %v6574, %v6570
        %v8195 = vpack.c.b16 %v6575, %v6571
        %v8196 = vpack.c.b16 %v6576, %v6572
        %v8197 = vpack.c.b16 %v6577, %v6573
        %v8198 = vpack.c.b16 %v6582, %v6578
        %v8199 = vpack.c.b16 %v6583, %v6579
        %v8200 = vpack.c.b16 %v6584, %v6580
        %v8201 = vpack.c.b16 %v6585, %v6581
        %v8202 = vpack.c.b16 %v6590, %v6586
        %v8203 = vpack.c.b16 %v6591, %v6587
        %v8204 = vpack.c.b16 %v6592, %v6588
        %v8205 = vpack.c.b16 %v6593, %v6589
        %v8206 = vpack.c.b16 %v6598, %v6594
        %v8207 = vpack.c.b16 %v6599, %v6595
        %v8208 = vpack.c.b16 %v6600, %v6596
        %v8209 = vpack.c.b16 %v6601, %v6597
        %v8210 = vpack.c.b16 %v6606, %v6602
        %v8211 = vpack.c.b16 %v6607, %v6603
        %v8212 = vpack.c.b16 %v6608, %v6604
        %v8213 = vpack.c.b16 %v6609, %v6605
        %v8214 = vpack.c.b16 %v6614, %v6610
        %v8215 = vpack.c.b16 %v6615, %v6611
        %v8216 = vpack.c.b16 %v6616, %v6612
        %v8217 = vpack.c.b16 %v6617, %v6613
        %v8218 = vpack.c.b16 %v6622, %v6618
        %v8219 = vpack.c.b16 %v6623, %v6619
        %v8220 = vpack.c.b16 %v6624, %v6620
        %v8221 = vpack.c.b16 %v6625, %v6621
        %v8222 = vpack.c.b16 %v6630, %v6626
        %v8223 = vpack.c.b16 %v6631, %v6627
        %v8224 = vpack.c.b16 %v6632, %v6628
        %v8225 = vpack.c.b16 %v6633, %v6629
        %v8226 = vpack.c.b16 %v6638, %v6634
        %v8227 = vpack.c.b16 %v6639, %v6635
        %v8228 = vpack.c.b16 %v6640, %v6636
        %v8229 = vpack.c.b16 %v6641, %v6637
        %v8230 = vpack.c.b16 %v6646, %v6642
        %v8231 = vpack.c.b16 %v6647, %v6643
        %v8232 = vpack.c.b16 %v6648, %v6644
        %v8233 = vpack.c.b16 %v6649, %v6645
        %v8234 = vpack.c.b16 %v6654, %v6650
        %v8235 = vpack.c.b16 %v6655, %v6651
        %v8236 = vpack.c.b16 %v6656, %v6652
        %v8237 = vpack.c.b16 %v6657, %v6653
        %v8238 = vpack.c.b16 %v6662, %v6658
        %v8239 = vpack.c.b16 %v6663, %v6659
        %v8240 = vpack.c.b16 %v6664, %v6660
        %v8241 = vpack.c.b16 %v6665, %v6661
        %v8242 = vpack.c.b16 %v6670, %v6666
        %v8243 = vpack.c.b16 %v6671, %v6667
        %v8244 = vpack.c.b16 %v6672, %v6668
        %v8245 = vpack.c.b16 %v6673, %v6669
        %v8246 = vpack.c.b16 %v6678, %v6674
        %v8247 = vpack.c.b16 %v6679, %v6675
        %v8248 = vpack.c.b16 %v6680, %v6676
        %v8249 = vpack.c.b16 %v6681, %v6677
        %9818 = vmatpush.bf16.msra.mxu0 %v6710
        %9819 = vmatpush.bf16.msra.mxu0 %v6706
        %9820 = vmatpush.bf16.msra.mxu0 %v6702
        %9821 = vmatpush.bf16.msra.mxu0 %v6698
        %9822 = vmatpush.bf16.msra.mxu0 %v6694
        %9823 = vmatpush.bf16.msra.mxu0 %v6690
        %9824 = vmatpush.bf16.msra.mxu0 %v6686
        %9825 = vmatpush.bf16.msra.mxu0 %v6682
        %9826 = vmatmul.bf16.gmra.mxu0 %v351
        %v9827 = vpop.f32.mrf.mxu0
        %v9828 = vadd.f32 %v1970, %v9827
        %v9829 = vpop.f32.mrf.mxu0
        %9830 = vdwg.mxu0
        %9831 = vmatpush.bf16.msra.mxu0 %v6742
        %9832 = vmatpush.bf16.msra.mxu0 %v6738
        %9833 = vmatpush.bf16.msra.mxu0 %v6734
        %9834 = vmatpush.bf16.msra.mxu0 %v6730
        %9835 = vmatpush.bf16.msra.mxu0 %v6726
        %9836 = vmatpush.bf16.msra.mxu0 %v6722
        %9837 = vmatpush.bf16.msra.mxu0 %v6718
        %9838 = vmatpush.bf16.msra.mxu0 %v6714
        %9839 = vmatmul.bf16.gmra.mxu0 %v352
        %v9840 = vpop.f32.mrf.mxu0
        %v9841 = vadd.f32 %v9828, %v9840
        %v9842 = vpop.f32.mrf.mxu0
        %9843 = vdwg.mxu0
        %9844 = vmatpush.bf16.msra.mxu0 %v6774
        %9845 = vmatpush.bf16.msra.mxu0 %v6770
        %9846 = vmatpush.bf16.msra.mxu0 %v6766
        %9847 = vmatpush.bf16.msra.mxu0 %v6762
        %9848 = vmatpush.bf16.msra.mxu0 %v6758
        %9849 = vmatpush.bf16.msra.mxu0 %v6754
        %9850 = vmatpush.bf16.msra.mxu0 %v6750
        %9851 = vmatpush.bf16.msra.mxu0 %v6746
        %9852 = vmatmul.bf16.gmra.mxu0 %v353
        %v9853 = vpop.f32.mrf.mxu0
        %v9854 = vadd.f32 %v9841, %v9853
        %v9855 = vpop.f32.mrf.mxu0
        %9856 = vdwg.mxu0
        %9857 = vmatpush.bf16.msra.mxu0 %v6806
        %9858 = vmatpush.bf16.msra.mxu0 %v6802
        %9859 = vmatpush.bf16.msra.mxu0 %v6798
        %9860 = vmatpush.bf16.msra.mxu0 %v6794
        %9861 = vmatpush.bf16.msra.mxu0 %v6790
        %9862 = vmatpush.bf16.msra.mxu0 %v6786
        %9863 = vmatpush.bf16.msra.mxu0 %v6782
        %9864 = vmatpush.bf16.msra.mxu0 %v6778
        %9865 = vmatmul.bf16.gmra.mxu0 %v354
        %v9866 = vpop.f32.mrf.mxu0
        %v9867 = vadd.f32 %v9854, %v9866
        %v9868 = vpop.f32.mrf.mxu0
        %9869 = vdwg.mxu0
        %9870 = vmatpush.bf16.msra.mxu0 %v6838
        %9871 = vmatpush.bf16.msra.mxu0 %v6834
        %9872 = vmatpush.bf16.msra.mxu0 %v6830
        %9873 = vmatpush.bf16.msra.mxu0 %v6826
        %9874 = vmatpush.bf16.msra.mxu0 %v6822
        %9875 = vmatpush.bf16.msra.mxu0 %v6818
        %9876 = vmatpush.bf16.msra.mxu0 %v6814
        %9877 = vmatpush.bf16.msra.mxu0 %v6810
        %9878 = vmatmul.bf16.gmra.mxu0 %v355
        %v9879 = vpop.f32.mrf.mxu0
        %v9880 = vadd.f32 %v9867, %v9879
        %v9881 = vpop.f32.mrf.mxu0
        %9882 = vdwg.mxu0
        %9883 = vmatpush.bf16.msra.mxu0 %v6870
        %9884 = vmatpush.bf16.msra.mxu0 %v6866
        %9885 = vmatpush.bf16.msra.mxu0 %v6862
        %9886 = vmatpush.bf16.msra.mxu0 %v6858
        %9887 = vmatpush.bf16.msra.mxu0 %v6854
        %9888 = vmatpush.bf16.msra.mxu0 %v6850
        %9889 = vmatpush.bf16.msra.mxu0 %v6846
        %9890 = vmatpush.bf16.msra.mxu0 %v6842
        %9891 = vmatmul.bf16.gmra.mxu0 %v356
        %v9892 = vpop.f32.mrf.mxu0
        %v9893 = vadd.f32 %v9880, %v9892
        %v9894 = vpop.f32.mrf.mxu0
        %9895 = vdwg.mxu0
        %9896 = vmatpush.bf16.msra.mxu0 %v6902
        %9897 = vmatpush.bf16.msra.mxu0 %v6898
        %9898 = vmatpush.bf16.msra.mxu0 %v6894
        %9899 = vmatpush.bf16.msra.mxu0 %v6890
        %9900 = vmatpush.bf16.msra.mxu0 %v6886
        %9901 = vmatpush.bf16.msra.mxu0 %v6882
        %9902 = vmatpush.bf16.msra.mxu0 %v6878
        %9903 = vmatpush.bf16.msra.mxu0 %v6874
        %9904 = vmatmul.bf16.gmra.mxu0 %v357
        %v9905 = vpop.f32.mrf.mxu0
        %v9906 = vadd.f32 %v9893, %v9905
        %v9907 = vpop.f32.mrf.mxu0
        %9908 = vdwg.mxu0
        %9909 = vmatpush.bf16.msra.mxu0 %v6934
        %9910 = vmatpush.bf16.msra.mxu0 %v6930
        %9911 = vmatpush.bf16.msra.mxu0 %v6926
        %9912 = vmatpush.bf16.msra.mxu0 %v6922
        %9913 = vmatpush.bf16.msra.mxu0 %v6918
        %9914 = vmatpush.bf16.msra.mxu0 %v6914
        %9915 = vmatpush.bf16.msra.mxu0 %v6910
        %9916 = vmatpush.bf16.msra.mxu0 %v6906
        %9917 = vmatmul.bf16.gmra.mxu0 %v358
        %v9918 = vpop.f32.mrf.mxu0
        %v9919 = vadd.f32 %v9906, %v9918
        %v9920 = vpop.f32.mrf.mxu0
        %9921 = vdwg.mxu0
        %9922 = vmatpush.bf16.msra.mxu0 %v6966
        %9923 = vmatpush.bf16.msra.mxu0 %v6962
        %9924 = vmatpush.bf16.msra.mxu0 %v6958
        %9925 = vmatpush.bf16.msra.mxu0 %v6954
        %9926 = vmatpush.bf16.msra.mxu0 %v6950
        %9927 = vmatpush.bf16.msra.mxu0 %v6946
        %9928 = vmatpush.bf16.msra.mxu0 %v6942
        %9929 = vmatpush.bf16.msra.mxu0 %v6938
        %9930 = vmatmul.bf16.gmra.mxu0 %v359
        %v9931 = vpop.f32.mrf.mxu0
        %v9932 = vadd.f32 %v9919, %v9931
        %v9933 = vpop.f32.mrf.mxu0
        %9934 = vdwg.mxu0
        %9935 = vmatpush.bf16.msra.mxu0 %v6998
        %9936 = vmatpush.bf16.msra.mxu0 %v6994
        %9937 = vmatpush.bf16.msra.mxu0 %v6990
        %9938 = vmatpush.bf16.msra.mxu0 %v6986
        %9939 = vmatpush.bf16.msra.mxu0 %v6982
        %9940 = vmatpush.bf16.msra.mxu0 %v6978
        %9941 = vmatpush.bf16.msra.mxu0 %v6974
        %9942 = vmatpush.bf16.msra.mxu0 %v6970
        %9943 = vmatmul.bf16.gmra.mxu0 %v360
        %v9944 = vpop.f32.mrf.mxu0
        %v9945 = vadd.f32 %v9932, %v9944
        %v9946 = vpop.f32.mrf.mxu0
        %9947 = vdwg.mxu0
        %9948 = vmatpush.bf16.msra.mxu0 %v7030
        %9949 = vmatpush.bf16.msra.mxu0 %v7026
        %9950 = vmatpush.bf16.msra.mxu0 %v7022
        %9951 = vmatpush.bf16.msra.mxu0 %v7018
        %9952 = vmatpush.bf16.msra.mxu0 %v7014
        %9953 = vmatpush.bf16.msra.mxu0 %v7010
        %9954 = vmatpush.bf16.msra.mxu0 %v7006
        %9955 = vmatpush.bf16.msra.mxu0 %v7002
        %9956 = vmatmul.bf16.gmra.mxu0 %v361
        %v9957 = vpop.f32.mrf.mxu0
        %v9958 = vadd.f32 %v9945, %v9957
        %v9959 = vpop.f32.mrf.mxu0
        %9960 = vdwg.mxu0
        %9961 = vmatpush.bf16.msra.mxu0 %v7062
        %9962 = vmatpush.bf16.msra.mxu0 %v7058
        %9963 = vmatpush.bf16.msra.mxu0 %v7054
        %9964 = vmatpush.bf16.msra.mxu0 %v7050
        %9965 = vmatpush.bf16.msra.mxu0 %v7046
        %9966 = vmatpush.bf16.msra.mxu0 %v7042
        %9967 = vmatpush.bf16.msra.mxu0 %v7038
        %9968 = vmatpush.bf16.msra.mxu0 %v7034
        %9969 = vmatmul.bf16.gmra.mxu0 %v362
        %v9970 = vpop.f32.mrf.mxu0
        %v9971 = vadd.f32 %v9958, %v9970
        %v9972 = vpop.f32.mrf.mxu0
        %9973 = vdwg.mxu0
        %9974 = vmatpush.bf16.msra.mxu0 %v7094
        %9975 = vmatpush.bf16.msra.mxu0 %v7090
        %9976 = vmatpush.bf16.msra.mxu0 %v7086
        %9977 = vmatpush.bf16.msra.mxu0 %v7082
        %9978 = vmatpush.bf16.msra.mxu0 %v7078
        %9979 = vmatpush.bf16.msra.mxu0 %v7074
        %9980 = vmatpush.bf16.msra.mxu0 %v7070
        %9981 = vmatpush.bf16.msra.mxu0 %v7066
        %9982 = vmatmul.bf16.gmra.mxu0 %v363
        %v9983 = vpop.f32.mrf.mxu0
        %v9984 = vadd.f32 %v9971, %v9983
        %v9985 = vpop.f32.mrf.mxu0
        %9986 = vdwg.mxu0
        %9987 = vmatpush.bf16.msra.mxu0 %v7126
        %9988 = vmatpush.bf16.msra.mxu0 %v7122
        %9989 = vmatpush.bf16.msra.mxu0 %v7118
        %9990 = vmatpush.bf16.msra.mxu0 %v7114
        %9991 = vmatpush.bf16.msra.mxu0 %v7110
        %9992 = vmatpush.bf16.msra.mxu0 %v7106
        %9993 = vmatpush.bf16.msra.mxu0 %v7102
        %9994 = vmatpush.bf16.msra.mxu0 %v7098
        %9995 = vmatmul.bf16.gmra.mxu0 %v364
        %v9996 = vpop.f32.mrf.mxu0
        %v9997 = vadd.f32 %v9984, %v9996
        %v9998 = vpop.f32.mrf.mxu0
        %9999 = vdwg.mxu0
        %10000 = vmatpush.bf16.msra.mxu0 %v7158
        %10001 = vmatpush.bf16.msra.mxu0 %v7154
        %10002 = vmatpush.bf16.msra.mxu0 %v7150
        %10003 = vmatpush.bf16.msra.mxu0 %v7146
        %10004 = vmatpush.bf16.msra.mxu0 %v7142
        %10005 = vmatpush.bf16.msra.mxu0 %v7138
        %10006 = vmatpush.bf16.msra.mxu0 %v7134
        %10007 = vmatpush.bf16.msra.mxu0 %v7130
        %10008 = vmatmul.bf16.gmra.mxu0 %v365
        %v10009 = vpop.f32.mrf.mxu0
        %v10010 = vadd.f32 %v9997, %v10009
        %v10011 = vpop.f32.mrf.mxu0
        %10012 = vdwg.mxu0
        %10013 = vmatpush.bf16.msra.mxu0 %v7190
        %10014 = vmatpush.bf16.msra.mxu0 %v7186
        %10015 = vmatpush.bf16.msra.mxu0 %v7182
        %10016 = vmatpush.bf16.msra.mxu0 %v7178
        %10017 = vmatpush.bf16.msra.mxu0 %v7174
        %10018 = vmatpush.bf16.msra.mxu0 %v7170
        %10019 = vmatpush.bf16.msra.mxu0 %v7166
        %10020 = vmatpush.bf16.msra.mxu0 %v7162
        %10021 = vmatmul.bf16.gmra.mxu0 %v366
        %v10022 = vpop.f32.mrf.mxu0
        %v10023 = vadd.f32 %v10010, %v10022
        %v10024 = vpop.f32.mrf.mxu0
        %10025 = vdwg.mxu0
        %10026 = vmatpush.bf16.msra.mxu0 %v7222
        %10027 = vmatpush.bf16.msra.mxu0 %v7218
        %10028 = vmatpush.bf16.msra.mxu0 %v7214
        %10029 = vmatpush.bf16.msra.mxu0 %v7210
        %10030 = vmatpush.bf16.msra.mxu0 %v7206
        %10031 = vmatpush.bf16.msra.mxu0 %v7202
        %10032 = vmatpush.bf16.msra.mxu0 %v7198
        %10033 = vmatpush.bf16.msra.mxu0 %v7194
        %10034 = vmatmul.bf16.gmra.mxu0 %v367
        %v10035 = vpop.f32.mrf.mxu0
        %v10036 = vadd.f32 %v10023, %v10035
        %v10037 = vpop.f32.mrf.mxu0
        %10038 = vdwg.mxu0
        %10039 = vmatpush.bf16.msra.mxu0 %v7254
        %10040 = vmatpush.bf16.msra.mxu0 %v7250
        %10041 = vmatpush.bf16.msra.mxu0 %v7246
        %10042 = vmatpush.bf16.msra.mxu0 %v7242
        %10043 = vmatpush.bf16.msra.mxu0 %v7238
        %10044 = vmatpush.bf16.msra.mxu0 %v7234
        %10045 = vmatpush.bf16.msra.mxu0 %v7230
        %10046 = vmatpush.bf16.msra.mxu0 %v7226
        %10047 = vmatmul.bf16.gmra.mxu0 %v368
        %v10048 = vpop.f32.mrf.mxu0
        %v10049 = vadd.f32 %v10036, %v10048
        %v10050 = vpop.f32.mrf.mxu0
        %10051 = vdwg.mxu0
        %10052 = vmatpush.bf16.msra.mxu0 %v7286
        %10053 = vmatpush.bf16.msra.mxu0 %v7282
        %10054 = vmatpush.bf16.msra.mxu0 %v7278
        %10055 = vmatpush.bf16.msra.mxu0 %v7274
        %10056 = vmatpush.bf16.msra.mxu0 %v7270
        %10057 = vmatpush.bf16.msra.mxu0 %v7266
        %10058 = vmatpush.bf16.msra.mxu0 %v7262
        %10059 = vmatpush.bf16.msra.mxu0 %v7258
        %10060 = vmatmul.bf16.gmra.mxu0 %v369
        %v10061 = vpop.f32.mrf.mxu0
        %v10062 = vadd.f32 %v10049, %v10061
        %v10063 = vpop.f32.mrf.mxu0
        %10064 = vdwg.mxu0
        %10065 = vmatpush.bf16.msra.mxu0 %v7318
        %10066 = vmatpush.bf16.msra.mxu0 %v7314
        %10067 = vmatpush.bf16.msra.mxu0 %v7310
        %10068 = vmatpush.bf16.msra.mxu0 %v7306
        %10069 = vmatpush.bf16.msra.mxu0 %v7302
        %10070 = vmatpush.bf16.msra.mxu0 %v7298
        %10071 = vmatpush.bf16.msra.mxu0 %v7294
        %10072 = vmatpush.bf16.msra.mxu0 %v7290
        %10073 = vmatmul.bf16.gmra.mxu0 %v370
        %v10074 = vpop.f32.mrf.mxu0
        %v10075 = vadd.f32 %v10062, %v10074
        %v10076 = vpop.f32.mrf.mxu0
        %10077 = vdwg.mxu0
        %10078 = vmatpush.bf16.msra.mxu0 %v7350
        %10079 = vmatpush.bf16.msra.mxu0 %v7346
        %10080 = vmatpush.bf16.msra.mxu0 %v7342
        %10081 = vmatpush.bf16.msra.mxu0 %v7338
        %10082 = vmatpush.bf16.msra.mxu0 %v7334
        %10083 = vmatpush.bf16.msra.mxu0 %v7330
        %10084 = vmatpush.bf16.msra.mxu0 %v7326
        %10085 = vmatpush.bf16.msra.mxu0 %v7322
        %10086 = vmatmul.bf16.gmra.mxu0 %v371
        %v10087 = vpop.f32.mrf.mxu0
        %v10088 = vadd.f32 %v10075, %v10087
        %v10089 = vpop.f32.mrf.mxu0
        %10090 = vdwg.mxu0
        %10091 = vmatpush.bf16.msra.mxu0 %v7382
        %10092 = vmatpush.bf16.msra.mxu0 %v7378
        %10093 = vmatpush.bf16.msra.mxu0 %v7374
        %10094 = vmatpush.bf16.msra.mxu0 %v7370
        %10095 = vmatpush.bf16.msra.mxu0 %v7366
        %10096 = vmatpush.bf16.msra.mxu0 %v7362
        %10097 = vmatpush.bf16.msra.mxu0 %v7358
        %10098 = vmatpush.bf16.msra.mxu0 %v7354
        %10099 = vmatmul.bf16.gmra.mxu0 %v372
        %v10100 = vpop.f32.mrf.mxu0
        %v10101 = vadd.f32 %v10088, %v10100
        %v10102 = vpop.f32.mrf.mxu0
        %10103 = vdwg.mxu0
        %10104 = vmatpush.bf16.msra.mxu0 %v7414
        %10105 = vmatpush.bf16.msra.mxu0 %v7410
        %10106 = vmatpush.bf16.msra.mxu0 %v7406
        %10107 = vmatpush.bf16.msra.mxu0 %v7402
        %10108 = vmatpush.bf16.msra.mxu0 %v7398
        %10109 = vmatpush.bf16.msra.mxu0 %v7394
        %10110 = vmatpush.bf16.msra.mxu0 %v7390
        %10111 = vmatpush.bf16.msra.mxu0 %v7386
        %10112 = vmatmul.bf16.gmra.mxu0 %v373
        %v10113 = vpop.f32.mrf.mxu0
        %v10114 = vadd.f32 %v10101, %v10113
        %v10115 = vpop.f32.mrf.mxu0
        %10116 = vdwg.mxu0
        %10117 = vmatpush.bf16.msra.mxu0 %v7446
        %10118 = vmatpush.bf16.msra.mxu0 %v7442
        %10119 = vmatpush.bf16.msra.mxu0 %v7438
        %10120 = vmatpush.bf16.msra.mxu0 %v7434
        %10121 = vmatpush.bf16.msra.mxu0 %v7430
        %10122 = vmatpush.bf16.msra.mxu0 %v7426
        %10123 = vmatpush.bf16.msra.mxu0 %v7422
        %10124 = vmatpush.bf16.msra.mxu0 %v7418
        %10125 = vmatmul.bf16.gmra.mxu0 %v374
        %v10126 = vpop.f32.mrf.mxu0
        %v10127 = vadd.f32 %v10114, %v10126
        %v10128 = vpop.f32.mrf.mxu0
        %10129 = vdwg.mxu0
        %10130 = vmatpush.bf16.msra.mxu0 %v7478
        %10131 = vmatpush.bf16.msra.mxu0 %v7474
        %10132 = vmatpush.bf16.msra.mxu0 %v7470
        %10133 = vmatpush.bf16.msra.mxu0 %v7466
        %10134 = vmatpush.bf16.msra.mxu0 %v7462
        %10135 = vmatpush.bf16.msra.mxu0 %v7458
        %10136 = vmatpush.bf16.msra.mxu0 %v7454
        %10137 = vmatpush.bf16.msra.mxu0 %v7450
        %10138 = vmatmul.bf16.gmra.mxu0 %v375
        %v10139 = vpop.f32.mrf.mxu0
        %v10140 = vadd.f32 %v10127, %v10139
        %v10141 = vpop.f32.mrf.mxu0
        %10142 = vdwg.mxu0
        %10143 = vmatpush.bf16.msra.mxu0 %v7510
        %10144 = vmatpush.bf16.msra.mxu0 %v7506
        %10145 = vmatpush.bf16.msra.mxu0 %v7502
        %10146 = vmatpush.bf16.msra.mxu0 %v7498
        %10147 = vmatpush.bf16.msra.mxu0 %v7494
        %10148 = vmatpush.bf16.msra.mxu0 %v7490
        %10149 = vmatpush.bf16.msra.mxu0 %v7486
        %10150 = vmatpush.bf16.msra.mxu0 %v7482
        %10151 = vmatmul.bf16.gmra.mxu0 %v376
        %v10152 = vpop.f32.mrf.mxu0
        %v10153 = vadd.f32 %v10140, %v10152
        %v10154 = vpop.f32.mrf.mxu0
        %10155 = vdwg.mxu0
        %10156 = vmatpush.bf16.msra.mxu0 %v7542
        %10157 = vmatpush.bf16.msra.mxu0 %v7538
        %10158 = vmatpush.bf16.msra.mxu0 %v7534
        %10159 = vmatpush.bf16.msra.mxu0 %v7530
        %10160 = vmatpush.bf16.msra.mxu0 %v7526
        %10161 = vmatpush.bf16.msra.mxu0 %v7522
        %10162 = vmatpush.bf16.msra.mxu0 %v7518
        %10163 = vmatpush.bf16.msra.mxu0 %v7514
        %10164 = vmatmul.bf16.gmra.mxu0 %v377
        %v10165 = vpop.f32.mrf.mxu0
        %v10166 = vadd.f32 %v10153, %v10165
        %v10167 = vpop.f32.mrf.mxu0
        %10168 = vdwg.mxu0
        %10169 = vmatpush.bf16.msra.mxu0 %v7574
        %10170 = vmatpush.bf16.msra.mxu0 %v7570
        %10171 = vmatpush.bf16.msra.mxu0 %v7566
        %10172 = vmatpush.bf16.msra.mxu0 %v7562
        %10173 = vmatpush.bf16.msra.mxu0 %v7558
        %10174 = vmatpush.bf16.msra.mxu0 %v7554
        %10175 = vmatpush.bf16.msra.mxu0 %v7550
        %10176 = vmatpush.bf16.msra.mxu0 %v7546
        %10177 = vmatmul.bf16.gmra.mxu0 %v378
        %v10178 = vpop.f32.mrf.mxu0
        %v10179 = vadd.f32 %v10166, %v10178
        %v10180 = vpop.f32.mrf.mxu0
        %10181 = vdwg.mxu0
        %10182 = vmatpush.bf16.msra.mxu0 %v7606
        %10183 = vmatpush.bf16.msra.mxu0 %v7602
        %10184 = vmatpush.bf16.msra.mxu0 %v7598
        %10185 = vmatpush.bf16.msra.mxu0 %v7594
        %10186 = vmatpush.bf16.msra.mxu0 %v7590
        %10187 = vmatpush.bf16.msra.mxu0 %v7586
        %10188 = vmatpush.bf16.msra.mxu0 %v7582
        %10189 = vmatpush.bf16.msra.mxu0 %v7578
        %10190 = vmatmul.bf16.gmra.mxu0 %v379
        %v10191 = vpop.f32.mrf.mxu0
        %v10192 = vadd.f32 %v10179, %v10191
        %v10193 = vpop.f32.mrf.mxu0
        %10194 = vdwg.mxu0
        %10195 = vmatpush.bf16.msra.mxu0 %v7638
        %10196 = vmatpush.bf16.msra.mxu0 %v7634
        %10197 = vmatpush.bf16.msra.mxu0 %v7630
        %10198 = vmatpush.bf16.msra.mxu0 %v7626
        %10199 = vmatpush.bf16.msra.mxu0 %v7622
        %10200 = vmatpush.bf16.msra.mxu0 %v7618
        %10201 = vmatpush.bf16.msra.mxu0 %v7614
        %10202 = vmatpush.bf16.msra.mxu0 %v7610
        %10203 = vmatmul.bf16.gmra.mxu0 %v380
        %v10204 = vpop.f32.mrf.mxu0
        %v10205 = vadd.f32 %v10192, %v10204
        %v10206 = vpop.f32.mrf.mxu0
        %10207 = vdwg.mxu0
        %10208 = vmatpush.bf16.msra.mxu0 %v7670
        %10209 = vmatpush.bf16.msra.mxu0 %v7666
        %10210 = vmatpush.bf16.msra.mxu0 %v7662
        %10211 = vmatpush.bf16.msra.mxu0 %v7658
        %10212 = vmatpush.bf16.msra.mxu0 %v7654
        %10213 = vmatpush.bf16.msra.mxu0 %v7650
        %10214 = vmatpush.bf16.msra.mxu0 %v7646
        %10215 = vmatpush.bf16.msra.mxu0 %v7642
        %10216 = vmatmul.bf16.gmra.mxu0 %v381
        %v10217 = vpop.f32.mrf.mxu0
        %v10218 = vadd.f32 %v10205, %v10217
        %v10219 = vpop.f32.mrf.mxu0
        %10220 = vdwg.mxu0
        %10221 = vmatpush.bf16.msra.mxu0 %v7702
        %10222 = vmatpush.bf16.msra.mxu0 %v7698
        %10223 = vmatpush.bf16.msra.mxu0 %v7694
        %10224 = vmatpush.bf16.msra.mxu0 %v7690
        %10225 = vmatpush.bf16.msra.mxu0 %v7686
        %10226 = vmatpush.bf16.msra.mxu0 %v7682
        %10227 = vmatpush.bf16.msra.mxu0 %v7678
        %10228 = vmatpush.bf16.msra.mxu0 %v7674
        %10229 = vmatmul.bf16.gmra.mxu0 %v382
        %v10230 = vpop.f32.mrf.mxu0
        %v10231 = vadd.f32 %v10218, %v10230
        %v10232 = vpop.f32.mrf.mxu0
        %10233 = vdwg.mxu0
        %10234 = vmatpush.bf16.msra.mxu0 %v7734
        %10235 = vmatpush.bf16.msra.mxu0 %v7730
        %10236 = vmatpush.bf16.msra.mxu0 %v7726
        %10237 = vmatpush.bf16.msra.mxu0 %v7722
        %10238 = vmatpush.bf16.msra.mxu0 %v7718
        %10239 = vmatpush.bf16.msra.mxu0 %v7714
        %10240 = vmatpush.bf16.msra.mxu0 %v7710
        %10241 = vmatpush.bf16.msra.mxu0 %v7706
        %10242 = vmatmul.bf16.gmra.mxu0 %v383
        %v10243 = vpop.f32.mrf.mxu0
        %v10244 = vadd.f32 %v10231, %v10243
        %v10245 = vpop.f32.mrf.mxu0
        %10246 = vdwg.mxu0
        %10247 = vmatpush.bf16.msra.mxu0 %v7766
        %10248 = vmatpush.bf16.msra.mxu0 %v7762
        %10249 = vmatpush.bf16.msra.mxu0 %v7758
        %10250 = vmatpush.bf16.msra.mxu0 %v7754
        %10251 = vmatpush.bf16.msra.mxu0 %v7750
        %10252 = vmatpush.bf16.msra.mxu0 %v7746
        %10253 = vmatpush.bf16.msra.mxu0 %v7742
        %10254 = vmatpush.bf16.msra.mxu0 %v7738
        %10255 = vmatmul.bf16.gmra.mxu0 %v384
        %v10256 = vpop.f32.mrf.mxu0
        %v10257 = vadd.f32 %v10244, %v10256
        %v10258 = vpop.f32.mrf.mxu0
        %10259 = vdwg.mxu0
        %10260 = vmatpush.bf16.msra.mxu0 %v7798
        %10261 = vmatpush.bf16.msra.mxu0 %v7794
        %10262 = vmatpush.bf16.msra.mxu0 %v7790
        %10263 = vmatpush.bf16.msra.mxu0 %v7786
        %10264 = vmatpush.bf16.msra.mxu0 %v7782
        %10265 = vmatpush.bf16.msra.mxu0 %v7778
        %10266 = vmatpush.bf16.msra.mxu0 %v7774
        %10267 = vmatpush.bf16.msra.mxu0 %v7770
        %10268 = vmatmul.bf16.gmra.mxu0 %v385
        %v10269 = vpop.f32.mrf.mxu0
        %v10270 = vadd.f32 %v10257, %v10269
        %v10271 = vpop.f32.mrf.mxu0
        %10272 = vdwg.mxu0
        %10273 = vmatpush.bf16.msra.mxu0 %v7830
        %10274 = vmatpush.bf16.msra.mxu0 %v7826
        %10275 = vmatpush.bf16.msra.mxu0 %v7822
        %10276 = vmatpush.bf16.msra.mxu0 %v7818
        %10277 = vmatpush.bf16.msra.mxu0 %v7814
        %10278 = vmatpush.bf16.msra.mxu0 %v7810
        %10279 = vmatpush.bf16.msra.mxu0 %v7806
        %10280 = vmatpush.bf16.msra.mxu0 %v7802
        %10281 = vmatmul.bf16.gmra.mxu0 %v386
        %v10282 = vpop.f32.mrf.mxu0
        %v10283 = vadd.f32 %v10270, %v10282
        %v10284 = vpop.f32.mrf.mxu0
        %10285 = vdwg.mxu0
        %10286 = vmatpush.bf16.msra.mxu0 %v7862
        %10287 = vmatpush.bf16.msra.mxu0 %v7858
        %10288 = vmatpush.bf16.msra.mxu0 %v7854
        %10289 = vmatpush.bf16.msra.mxu0 %v7850
        %10290 = vmatpush.bf16.msra.mxu0 %v7846
        %10291 = vmatpush.bf16.msra.mxu0 %v7842
        %10292 = vmatpush.bf16.msra.mxu0 %v7838
        %10293 = vmatpush.bf16.msra.mxu0 %v7834
        %10294 = vmatmul.bf16.gmra.mxu0 %v387
        %v10295 = vpop.f32.mrf.mxu0
        %v10296 = vadd.f32 %v10283, %v10295
        %v10297 = vpop.f32.mrf.mxu0
        %10298 = vdwg.mxu0
        %10299 = vmatpush.bf16.msra.mxu0 %v7894
        %10300 = vmatpush.bf16.msra.mxu0 %v7890
        %10301 = vmatpush.bf16.msra.mxu0 %v7886
        %10302 = vmatpush.bf16.msra.mxu0 %v7882
        %10303 = vmatpush.bf16.msra.mxu0 %v7878
        %10304 = vmatpush.bf16.msra.mxu0 %v7874
        %10305 = vmatpush.bf16.msra.mxu0 %v7870
        %10306 = vmatpush.bf16.msra.mxu0 %v7866
        %10307 = vmatmul.bf16.gmra.mxu0 %v388
        %v10308 = vpop.f32.mrf.mxu0
        %v10309 = vadd.f32 %v10296, %v10308
        %v10310 = vpop.f32.mrf.mxu0
        %10311 = vdwg.mxu0
        %10312 = vmatpush.bf16.msra.mxu0 %v7926
        %10313 = vmatpush.bf16.msra.mxu0 %v7922
        %10314 = vmatpush.bf16.msra.mxu0 %v7918
        %10315 = vmatpush.bf16.msra.mxu0 %v7914
        %10316 = vmatpush.bf16.msra.mxu0 %v7910
        %10317 = vmatpush.bf16.msra.mxu0 %v7906
        %10318 = vmatpush.bf16.msra.mxu0 %v7902
        %10319 = vmatpush.bf16.msra.mxu0 %v7898
        %10320 = vmatmul.bf16.gmra.mxu0 %v389
        %v10321 = vpop.f32.mrf.mxu0
        %v10322 = vadd.f32 %v10309, %v10321
        %v10323 = vpop.f32.mrf.mxu0
        %10324 = vdwg.mxu0
        %10325 = vmatpush.bf16.msra.mxu0 %v7958
        %10326 = vmatpush.bf16.msra.mxu0 %v7954
        %10327 = vmatpush.bf16.msra.mxu0 %v7950
        %10328 = vmatpush.bf16.msra.mxu0 %v7946
        %10329 = vmatpush.bf16.msra.mxu0 %v7942
        %10330 = vmatpush.bf16.msra.mxu0 %v7938
        %10331 = vmatpush.bf16.msra.mxu0 %v7934
        %10332 = vmatpush.bf16.msra.mxu0 %v7930
        %10333 = vmatmul.bf16.gmra.mxu0 %v390
        %v10334 = vpop.f32.mrf.mxu0
        %v10335 = vadd.f32 %v10322, %v10334
        %v10336 = vpop.f32.mrf.mxu0
        %10337 = vdwg.mxu0
        %10338 = vmatpush.bf16.msra.mxu0 %v7990
        %10339 = vmatpush.bf16.msra.mxu0 %v7986
        %10340 = vmatpush.bf16.msra.mxu0 %v7982
        %10341 = vmatpush.bf16.msra.mxu0 %v7978
        %10342 = vmatpush.bf16.msra.mxu0 %v7974
        %10343 = vmatpush.bf16.msra.mxu0 %v7970
        %10344 = vmatpush.bf16.msra.mxu0 %v7966
        %10345 = vmatpush.bf16.msra.mxu0 %v7962
        %10346 = vmatmul.bf16.gmra.mxu0 %v391
        %v10347 = vpop.f32.mrf.mxu0
        %v10348 = vadd.f32 %v10335, %v10347
        %v10349 = vpop.f32.mrf.mxu0
        %10350 = vdwg.mxu0
        %10351 = vmatpush.bf16.msra.mxu0 %v8022
        %10352 = vmatpush.bf16.msra.mxu0 %v8018
        %10353 = vmatpush.bf16.msra.mxu0 %v8014
        %10354 = vmatpush.bf16.msra.mxu0 %v8010
        %10355 = vmatpush.bf16.msra.mxu0 %v8006
        %10356 = vmatpush.bf16.msra.mxu0 %v8002
        %10357 = vmatpush.bf16.msra.mxu0 %v7998
        %10358 = vmatpush.bf16.msra.mxu0 %v7994
        %10359 = vmatmul.bf16.gmra.mxu0 %v392
        %v10360 = vpop.f32.mrf.mxu0
        %v10361 = vadd.f32 %v10348, %v10360
        %v10362 = vpop.f32.mrf.mxu0
        %10363 = vdwg.mxu0
        %10364 = vmatpush.bf16.msra.mxu0 %v8054
        %10365 = vmatpush.bf16.msra.mxu0 %v8050
        %10366 = vmatpush.bf16.msra.mxu0 %v8046
        %10367 = vmatpush.bf16.msra.mxu0 %v8042
        %10368 = vmatpush.bf16.msra.mxu0 %v8038
        %10369 = vmatpush.bf16.msra.mxu0 %v8034
        %10370 = vmatpush.bf16.msra.mxu0 %v8030
        %10371 = vmatpush.bf16.msra.mxu0 %v8026
        %10372 = vmatmul.bf16.gmra.mxu0 %v393
        %v10373 = vpop.f32.mrf.mxu0
        %v10374 = vadd.f32 %v10361, %v10373
        %v10375 = vpop.f32.mrf.mxu0
        %10376 = vdwg.mxu0
        %10377 = vmatpush.bf16.msra.mxu0 %v8086
        %10378 = vmatpush.bf16.msra.mxu0 %v8082
        %10379 = vmatpush.bf16.msra.mxu0 %v8078
        %10380 = vmatpush.bf16.msra.mxu0 %v8074
        %10381 = vmatpush.bf16.msra.mxu0 %v8070
        %10382 = vmatpush.bf16.msra.mxu0 %v8066
        %10383 = vmatpush.bf16.msra.mxu0 %v8062
        %10384 = vmatpush.bf16.msra.mxu0 %v8058
        %10385 = vmatmul.bf16.gmra.mxu0 %v394
        %v10386 = vpop.f32.mrf.mxu0
        %v10387 = vadd.f32 %v10374, %v10386
        %v10388 = vpop.f32.mrf.mxu0
        %10389 = vdwg.mxu0
        %10390 = vmatpush.bf16.msra.mxu0 %v8118
        %10391 = vmatpush.bf16.msra.mxu0 %v8114
        %10392 = vmatpush.bf16.msra.mxu0 %v8110
        %10393 = vmatpush.bf16.msra.mxu0 %v8106
        %10394 = vmatpush.bf16.msra.mxu0 %v8102
        %10395 = vmatpush.bf16.msra.mxu0 %v8098
        %10396 = vmatpush.bf16.msra.mxu0 %v8094
        %10397 = vmatpush.bf16.msra.mxu0 %v8090
        %10398 = vmatmul.bf16.gmra.mxu0 %v395
        %v10399 = vpop.f32.mrf.mxu0
        %v10400 = vadd.f32 %v10387, %v10399
        %v10401 = vpop.f32.mrf.mxu0
        %10402 = vdwg.mxu0
        %10403 = vmatpush.bf16.msra.mxu0 %v8150
        %10404 = vmatpush.bf16.msra.mxu0 %v8146
        %10405 = vmatpush.bf16.msra.mxu0 %v8142
        %10406 = vmatpush.bf16.msra.mxu0 %v8138
        %10407 = vmatpush.bf16.msra.mxu0 %v8134
        %10408 = vmatpush.bf16.msra.mxu0 %v8130
        %10409 = vmatpush.bf16.msra.mxu0 %v8126
        %10410 = vmatpush.bf16.msra.mxu0 %v8122
        %10411 = vmatmul.bf16.gmra.mxu0 %v396
        %v10412 = vpop.f32.mrf.mxu0
        %v10413 = vadd.f32 %v10400, %v10412
        %v10414 = vpop.f32.mrf.mxu0
        %10415 = vdwg.mxu0
        %10416 = vmatpush.bf16.msra.mxu0 %v8182
        %10417 = vmatpush.bf16.msra.mxu0 %v8178
        %10418 = vmatpush.bf16.msra.mxu0 %v8174
        %10419 = vmatpush.bf16.msra.mxu0 %v8170
        %10420 = vmatpush.bf16.msra.mxu0 %v8166
        %10421 = vmatpush.bf16.msra.mxu0 %v8162
        %10422 = vmatpush.bf16.msra.mxu0 %v8158
        %10423 = vmatpush.bf16.msra.mxu0 %v8154
        %10424 = vmatmul.bf16.gmra.mxu0 %v397
        %v10425 = vpop.f32.mrf.mxu0
        %v10426 = vadd.f32 %v10413, %v10425
        %v10427 = vpop.f32.mrf.mxu0
        %10428 = vdwg.mxu0
        %10429 = vmatpush.bf16.msra.mxu0 %v8214
        %10430 = vmatpush.bf16.msra.mxu0 %v8210
        %10431 = vmatpush.bf16.msra.mxu0 %v8206
        %10432 = vmatpush.bf16.msra.mxu0 %v8202
        %10433 = vmatpush.bf16.msra.mxu0 %v8198
        %10434 = vmatpush.bf16.msra.mxu0 %v8194
        %10435 = vmatpush.bf16.msra.mxu0 %v8190
        %10436 = vmatpush.bf16.msra.mxu0 %v8186
        %10437 = vmatmul.bf16.gmra.mxu0 %v398
        %v10438 = vpop.f32.mrf.mxu0
        %v10439 = vadd.f32 %v10426, %v10438
        %v10440 = vpop.f32.mrf.mxu0
        %10441 = vdwg.mxu0
        %10442 = vmatpush.bf16.msra.mxu0 %v8246
        %10443 = vmatpush.bf16.msra.mxu0 %v8242
        %10444 = vmatpush.bf16.msra.mxu0 %v8238
        %10445 = vmatpush.bf16.msra.mxu0 %v8234
        %10446 = vmatpush.bf16.msra.mxu0 %v8230
        %10447 = vmatpush.bf16.msra.mxu0 %v8226
        %10448 = vmatpush.bf16.msra.mxu0 %v8222
        %10449 = vmatpush.bf16.msra.mxu0 %v8218
        %10450 = vmatmul.bf16.gmra.mxu0 %v399
        %v10451 = vpop.f32.mrf.mxu0
        %v10452 = vadd.f32 %v10439, %v10451
        %v10453 = vpop.f32.mrf.mxu0
        %10454 = vdwg.mxu0
        %10455 = vmatpush.bf16.msra.mxu0 %v6711
        %10456 = vmatpush.bf16.msra.mxu0 %v6707
        %10457 = vmatpush.bf16.msra.mxu0 %v6703
        %10458 = vmatpush.bf16.msra.mxu0 %v6699
        %10459 = vmatpush.bf16.msra.mxu0 %v6695
        %10460 = vmatpush.bf16.msra.mxu0 %v6691
        %10461 = vmatpush.bf16.msra.mxu0 %v6687
        %10462 = vmatpush.bf16.msra.mxu0 %v6683
        %10463 = vmatmul.bf16.gmra.mxu0 %v351
        %v10464 = vpop.f32.mrf.mxu0
        %v10465 = vadd.f32 %v1971, %v10464
        %v10466 = vpop.f32.mrf.mxu0
        %10467 = vdwg.mxu0
        %10468 = vmatpush.bf16.msra.mxu0 %v6743
        %10469 = vmatpush.bf16.msra.mxu0 %v6739
        %10470 = vmatpush.bf16.msra.mxu0 %v6735
        %10471 = vmatpush.bf16.msra.mxu0 %v6731
        %10472 = vmatpush.bf16.msra.mxu0 %v6727
        %10473 = vmatpush.bf16.msra.mxu0 %v6723
        %10474 = vmatpush.bf16.msra.mxu0 %v6719
        %10475 = vmatpush.bf16.msra.mxu0 %v6715
        %10476 = vmatmul.bf16.gmra.mxu0 %v352
        %v10477 = vpop.f32.mrf.mxu0
        %v10478 = vadd.f32 %v10465, %v10477
        %v10479 = vpop.f32.mrf.mxu0
        %10480 = vdwg.mxu0
        %10481 = vmatpush.bf16.msra.mxu0 %v6775
        %10482 = vmatpush.bf16.msra.mxu0 %v6771
        %10483 = vmatpush.bf16.msra.mxu0 %v6767
        %10484 = vmatpush.bf16.msra.mxu0 %v6763
        %10485 = vmatpush.bf16.msra.mxu0 %v6759
        %10486 = vmatpush.bf16.msra.mxu0 %v6755
        %10487 = vmatpush.bf16.msra.mxu0 %v6751
        %10488 = vmatpush.bf16.msra.mxu0 %v6747
        %10489 = vmatmul.bf16.gmra.mxu0 %v353
        %v10490 = vpop.f32.mrf.mxu0
        %v10491 = vadd.f32 %v10478, %v10490
        %v10492 = vpop.f32.mrf.mxu0
        %10493 = vdwg.mxu0
        %10494 = vmatpush.bf16.msra.mxu0 %v6807
        %10495 = vmatpush.bf16.msra.mxu0 %v6803
        %10496 = vmatpush.bf16.msra.mxu0 %v6799
        %10497 = vmatpush.bf16.msra.mxu0 %v6795
        %10498 = vmatpush.bf16.msra.mxu0 %v6791
        %10499 = vmatpush.bf16.msra.mxu0 %v6787
        %10500 = vmatpush.bf16.msra.mxu0 %v6783
        %10501 = vmatpush.bf16.msra.mxu0 %v6779
        %10502 = vmatmul.bf16.gmra.mxu0 %v354
        %v10503 = vpop.f32.mrf.mxu0
        %v10504 = vadd.f32 %v10491, %v10503
        %v10505 = vpop.f32.mrf.mxu0
        %10506 = vdwg.mxu0
        %10507 = vmatpush.bf16.msra.mxu0 %v6839
        %10508 = vmatpush.bf16.msra.mxu0 %v6835
        %10509 = vmatpush.bf16.msra.mxu0 %v6831
        %10510 = vmatpush.bf16.msra.mxu0 %v6827
        %10511 = vmatpush.bf16.msra.mxu0 %v6823
        %10512 = vmatpush.bf16.msra.mxu0 %v6819
        %10513 = vmatpush.bf16.msra.mxu0 %v6815
        %10514 = vmatpush.bf16.msra.mxu0 %v6811
        %10515 = vmatmul.bf16.gmra.mxu0 %v355
        %v10516 = vpop.f32.mrf.mxu0
        %v10517 = vadd.f32 %v10504, %v10516
        %v10518 = vpop.f32.mrf.mxu0
        %10519 = vdwg.mxu0
        %10520 = vmatpush.bf16.msra.mxu0 %v6871
        %10521 = vmatpush.bf16.msra.mxu0 %v6867
        %10522 = vmatpush.bf16.msra.mxu0 %v6863
        %10523 = vmatpush.bf16.msra.mxu0 %v6859
        %10524 = vmatpush.bf16.msra.mxu0 %v6855
        %10525 = vmatpush.bf16.msra.mxu0 %v6851
        %10526 = vmatpush.bf16.msra.mxu0 %v6847
        %10527 = vmatpush.bf16.msra.mxu0 %v6843
        %10528 = vmatmul.bf16.gmra.mxu0 %v356
        %v10529 = vpop.f32.mrf.mxu0
        %v10530 = vadd.f32 %v10517, %v10529
        %v10531 = vpop.f32.mrf.mxu0
        %10532 = vdwg.mxu0
        %10533 = vmatpush.bf16.msra.mxu0 %v6903
        %10534 = vmatpush.bf16.msra.mxu0 %v6899
        %10535 = vmatpush.bf16.msra.mxu0 %v6895
        %10536 = vmatpush.bf16.msra.mxu0 %v6891
        %10537 = vmatpush.bf16.msra.mxu0 %v6887
        %10538 = vmatpush.bf16.msra.mxu0 %v6883
        %10539 = vmatpush.bf16.msra.mxu0 %v6879
        %10540 = vmatpush.bf16.msra.mxu0 %v6875
        %10541 = vmatmul.bf16.gmra.mxu0 %v357
        %v10542 = vpop.f32.mrf.mxu0
        %v10543 = vadd.f32 %v10530, %v10542
        %v10544 = vpop.f32.mrf.mxu0
        %10545 = vdwg.mxu0
        %10546 = vmatpush.bf16.msra.mxu0 %v6935
        %10547 = vmatpush.bf16.msra.mxu0 %v6931
        %10548 = vmatpush.bf16.msra.mxu0 %v6927
        %10549 = vmatpush.bf16.msra.mxu0 %v6923
        %10550 = vmatpush.bf16.msra.mxu0 %v6919
        %10551 = vmatpush.bf16.msra.mxu0 %v6915
        %10552 = vmatpush.bf16.msra.mxu0 %v6911
        %10553 = vmatpush.bf16.msra.mxu0 %v6907
        %10554 = vmatmul.bf16.gmra.mxu0 %v358
        %v10555 = vpop.f32.mrf.mxu0
        %v10556 = vadd.f32 %v10543, %v10555
        %v10557 = vpop.f32.mrf.mxu0
        %10558 = vdwg.mxu0
        %10559 = vmatpush.bf16.msra.mxu0 %v6967
        %10560 = vmatpush.bf16.msra.mxu0 %v6963
        %10561 = vmatpush.bf16.msra.mxu0 %v6959
        %10562 = vmatpush.bf16.msra.mxu0 %v6955
        %10563 = vmatpush.bf16.msra.mxu0 %v6951
        %10564 = vmatpush.bf16.msra.mxu0 %v6947
        %10565 = vmatpush.bf16.msra.mxu0 %v6943
        %10566 = vmatpush.bf16.msra.mxu0 %v6939
        %10567 = vmatmul.bf16.gmra.mxu0 %v359
        %v10568 = vpop.f32.mrf.mxu0
        %v10569 = vadd.f32 %v10556, %v10568
        %v10570 = vpop.f32.mrf.mxu0
        %10571 = vdwg.mxu0
        %10572 = vmatpush.bf16.msra.mxu0 %v6999
        %10573 = vmatpush.bf16.msra.mxu0 %v6995
        %10574 = vmatpush.bf16.msra.mxu0 %v6991
        %10575 = vmatpush.bf16.msra.mxu0 %v6987
        %10576 = vmatpush.bf16.msra.mxu0 %v6983
        %10577 = vmatpush.bf16.msra.mxu0 %v6979
        %10578 = vmatpush.bf16.msra.mxu0 %v6975
        %10579 = vmatpush.bf16.msra.mxu0 %v6971
        %10580 = vmatmul.bf16.gmra.mxu0 %v360
        %v10581 = vpop.f32.mrf.mxu0
        %v10582 = vadd.f32 %v10569, %v10581
        %v10583 = vpop.f32.mrf.mxu0
        %10584 = vdwg.mxu0
        %10585 = vmatpush.bf16.msra.mxu0 %v7031
        %10586 = vmatpush.bf16.msra.mxu0 %v7027
        %10587 = vmatpush.bf16.msra.mxu0 %v7023
        %10588 = vmatpush.bf16.msra.mxu0 %v7019
        %10589 = vmatpush.bf16.msra.mxu0 %v7015
        %10590 = vmatpush.bf16.msra.mxu0 %v7011
        %10591 = vmatpush.bf16.msra.mxu0 %v7007
        %10592 = vmatpush.bf16.msra.mxu0 %v7003
        %10593 = vmatmul.bf16.gmra.mxu0 %v361
        %v10594 = vpop.f32.mrf.mxu0
        %v10595 = vadd.f32 %v10582, %v10594
        %v10596 = vpop.f32.mrf.mxu0
        %10597 = vdwg.mxu0
        %10598 = vmatpush.bf16.msra.mxu0 %v7063
        %10599 = vmatpush.bf16.msra.mxu0 %v7059
        %10600 = vmatpush.bf16.msra.mxu0 %v7055
        %10601 = vmatpush.bf16.msra.mxu0 %v7051
        %10602 = vmatpush.bf16.msra.mxu0 %v7047
        %10603 = vmatpush.bf16.msra.mxu0 %v7043
        %10604 = vmatpush.bf16.msra.mxu0 %v7039
        %10605 = vmatpush.bf16.msra.mxu0 %v7035
        %10606 = vmatmul.bf16.gmra.mxu0 %v362
        %v10607 = vpop.f32.mrf.mxu0
        %v10608 = vadd.f32 %v10595, %v10607
        %v10609 = vpop.f32.mrf.mxu0
        %10610 = vdwg.mxu0
        %10611 = vmatpush.bf16.msra.mxu0 %v7095
        %10612 = vmatpush.bf16.msra.mxu0 %v7091
        %10613 = vmatpush.bf16.msra.mxu0 %v7087
        %10614 = vmatpush.bf16.msra.mxu0 %v7083
        %10615 = vmatpush.bf16.msra.mxu0 %v7079
        %10616 = vmatpush.bf16.msra.mxu0 %v7075
        %10617 = vmatpush.bf16.msra.mxu0 %v7071
        %10618 = vmatpush.bf16.msra.mxu0 %v7067
        %10619 = vmatmul.bf16.gmra.mxu0 %v363
        %v10620 = vpop.f32.mrf.mxu0
        %v10621 = vadd.f32 %v10608, %v10620
        %v10622 = vpop.f32.mrf.mxu0
        %10623 = vdwg.mxu0
        %10624 = vmatpush.bf16.msra.mxu0 %v7127
        %10625 = vmatpush.bf16.msra.mxu0 %v7123
        %10626 = vmatpush.bf16.msra.mxu0 %v7119
        %10627 = vmatpush.bf16.msra.mxu0 %v7115
        %10628 = vmatpush.bf16.msra.mxu0 %v7111
        %10629 = vmatpush.bf16.msra.mxu0 %v7107
        %10630 = vmatpush.bf16.msra.mxu0 %v7103
        %10631 = vmatpush.bf16.msra.mxu0 %v7099
        %10632 = vmatmul.bf16.gmra.mxu0 %v364
        %v10633 = vpop.f32.mrf.mxu0
        %v10634 = vadd.f32 %v10621, %v10633
        %v10635 = vpop.f32.mrf.mxu0
        %10636 = vdwg.mxu0
        %10637 = vmatpush.bf16.msra.mxu0 %v7159
        %10638 = vmatpush.bf16.msra.mxu0 %v7155
        %10639 = vmatpush.bf16.msra.mxu0 %v7151
        %10640 = vmatpush.bf16.msra.mxu0 %v7147
        %10641 = vmatpush.bf16.msra.mxu0 %v7143
        %10642 = vmatpush.bf16.msra.mxu0 %v7139
        %10643 = vmatpush.bf16.msra.mxu0 %v7135
        %10644 = vmatpush.bf16.msra.mxu0 %v7131
        %10645 = vmatmul.bf16.gmra.mxu0 %v365
        %v10646 = vpop.f32.mrf.mxu0
        %v10647 = vadd.f32 %v10634, %v10646
        %v10648 = vpop.f32.mrf.mxu0
        %10649 = vdwg.mxu0
        %10650 = vmatpush.bf16.msra.mxu0 %v7191
        %10651 = vmatpush.bf16.msra.mxu0 %v7187
        %10652 = vmatpush.bf16.msra.mxu0 %v7183
        %10653 = vmatpush.bf16.msra.mxu0 %v7179
        %10654 = vmatpush.bf16.msra.mxu0 %v7175
        %10655 = vmatpush.bf16.msra.mxu0 %v7171
        %10656 = vmatpush.bf16.msra.mxu0 %v7167
        %10657 = vmatpush.bf16.msra.mxu0 %v7163
        %10658 = vmatmul.bf16.gmra.mxu0 %v366
        %v10659 = vpop.f32.mrf.mxu0
        %v10660 = vadd.f32 %v10647, %v10659
        %v10661 = vpop.f32.mrf.mxu0
        %10662 = vdwg.mxu0
        %10663 = vmatpush.bf16.msra.mxu0 %v7223
        %10664 = vmatpush.bf16.msra.mxu0 %v7219
        %10665 = vmatpush.bf16.msra.mxu0 %v7215
        %10666 = vmatpush.bf16.msra.mxu0 %v7211
        %10667 = vmatpush.bf16.msra.mxu0 %v7207
        %10668 = vmatpush.bf16.msra.mxu0 %v7203
        %10669 = vmatpush.bf16.msra.mxu0 %v7199
        %10670 = vmatpush.bf16.msra.mxu0 %v7195
        %10671 = vmatmul.bf16.gmra.mxu0 %v367
        %v10672 = vpop.f32.mrf.mxu0
        %v10673 = vadd.f32 %v10660, %v10672
        %v10674 = vpop.f32.mrf.mxu0
        %10675 = vdwg.mxu0
        %10676 = vmatpush.bf16.msra.mxu0 %v7255
        %10677 = vmatpush.bf16.msra.mxu0 %v7251
        %10678 = vmatpush.bf16.msra.mxu0 %v7247
        %10679 = vmatpush.bf16.msra.mxu0 %v7243
        %10680 = vmatpush.bf16.msra.mxu0 %v7239
        %10681 = vmatpush.bf16.msra.mxu0 %v7235
        %10682 = vmatpush.bf16.msra.mxu0 %v7231
        %10683 = vmatpush.bf16.msra.mxu0 %v7227
        %10684 = vmatmul.bf16.gmra.mxu0 %v368
        %v10685 = vpop.f32.mrf.mxu0
        %v10686 = vadd.f32 %v10673, %v10685
        %v10687 = vpop.f32.mrf.mxu0
        %10688 = vdwg.mxu0
        %10689 = vmatpush.bf16.msra.mxu0 %v7287
        %10690 = vmatpush.bf16.msra.mxu0 %v7283
        %10691 = vmatpush.bf16.msra.mxu0 %v7279
        %10692 = vmatpush.bf16.msra.mxu0 %v7275
        %10693 = vmatpush.bf16.msra.mxu0 %v7271
        %10694 = vmatpush.bf16.msra.mxu0 %v7267
        %10695 = vmatpush.bf16.msra.mxu0 %v7263
        %10696 = vmatpush.bf16.msra.mxu0 %v7259
        %10697 = vmatmul.bf16.gmra.mxu0 %v369
        %v10698 = vpop.f32.mrf.mxu0
        %v10699 = vadd.f32 %v10686, %v10698
        %v10700 = vpop.f32.mrf.mxu0
        %10701 = vdwg.mxu0
        %10702 = vmatpush.bf16.msra.mxu0 %v7319
        %10703 = vmatpush.bf16.msra.mxu0 %v7315
        %10704 = vmatpush.bf16.msra.mxu0 %v7311
        %10705 = vmatpush.bf16.msra.mxu0 %v7307
        %10706 = vmatpush.bf16.msra.mxu0 %v7303
        %10707 = vmatpush.bf16.msra.mxu0 %v7299
        %10708 = vmatpush.bf16.msra.mxu0 %v7295
        %10709 = vmatpush.bf16.msra.mxu0 %v7291
        %10710 = vmatmul.bf16.gmra.mxu0 %v370
        %v10711 = vpop.f32.mrf.mxu0
        %v10712 = vadd.f32 %v10699, %v10711
        %v10713 = vpop.f32.mrf.mxu0
        %10714 = vdwg.mxu0
        %10715 = vmatpush.bf16.msra.mxu0 %v7351
        %10716 = vmatpush.bf16.msra.mxu0 %v7347
        %10717 = vmatpush.bf16.msra.mxu0 %v7343
        %10718 = vmatpush.bf16.msra.mxu0 %v7339
        %10719 = vmatpush.bf16.msra.mxu0 %v7335
        %10720 = vmatpush.bf16.msra.mxu0 %v7331
        %10721 = vmatpush.bf16.msra.mxu0 %v7327
        %10722 = vmatpush.bf16.msra.mxu0 %v7323
        %10723 = vmatmul.bf16.gmra.mxu0 %v371
        %v10724 = vpop.f32.mrf.mxu0
        %v10725 = vadd.f32 %v10712, %v10724
        %v10726 = vpop.f32.mrf.mxu0
        %10727 = vdwg.mxu0
        %10728 = vmatpush.bf16.msra.mxu0 %v7383
        %10729 = vmatpush.bf16.msra.mxu0 %v7379
        %10730 = vmatpush.bf16.msra.mxu0 %v7375
        %10731 = vmatpush.bf16.msra.mxu0 %v7371
        %10732 = vmatpush.bf16.msra.mxu0 %v7367
        %10733 = vmatpush.bf16.msra.mxu0 %v7363
        %10734 = vmatpush.bf16.msra.mxu0 %v7359
        %10735 = vmatpush.bf16.msra.mxu0 %v7355
        %10736 = vmatmul.bf16.gmra.mxu0 %v372
        %v10737 = vpop.f32.mrf.mxu0
        %v10738 = vadd.f32 %v10725, %v10737
        %v10739 = vpop.f32.mrf.mxu0
        %10740 = vdwg.mxu0
        %10741 = vmatpush.bf16.msra.mxu0 %v7415
        %10742 = vmatpush.bf16.msra.mxu0 %v7411
        %10743 = vmatpush.bf16.msra.mxu0 %v7407
        %10744 = vmatpush.bf16.msra.mxu0 %v7403
        %10745 = vmatpush.bf16.msra.mxu0 %v7399
        %10746 = vmatpush.bf16.msra.mxu0 %v7395
        %10747 = vmatpush.bf16.msra.mxu0 %v7391
        %10748 = vmatpush.bf16.msra.mxu0 %v7387
        %10749 = vmatmul.bf16.gmra.mxu0 %v373
        %v10750 = vpop.f32.mrf.mxu0
        %v10751 = vadd.f32 %v10738, %v10750
        %v10752 = vpop.f32.mrf.mxu0
        %10753 = vdwg.mxu0
        %10754 = vmatpush.bf16.msra.mxu0 %v7447
        %10755 = vmatpush.bf16.msra.mxu0 %v7443
        %10756 = vmatpush.bf16.msra.mxu0 %v7439
        %10757 = vmatpush.bf16.msra.mxu0 %v7435
        %10758 = vmatpush.bf16.msra.mxu0 %v7431
        %10759 = vmatpush.bf16.msra.mxu0 %v7427
        %10760 = vmatpush.bf16.msra.mxu0 %v7423
        %10761 = vmatpush.bf16.msra.mxu0 %v7419
        %10762 = vmatmul.bf16.gmra.mxu0 %v374
        %v10763 = vpop.f32.mrf.mxu0
        %v10764 = vadd.f32 %v10751, %v10763
        %v10765 = vpop.f32.mrf.mxu0
        %10766 = vdwg.mxu0
        %10767 = vmatpush.bf16.msra.mxu0 %v7479
        %10768 = vmatpush.bf16.msra.mxu0 %v7475
        %10769 = vmatpush.bf16.msra.mxu0 %v7471
        %10770 = vmatpush.bf16.msra.mxu0 %v7467
        %10771 = vmatpush.bf16.msra.mxu0 %v7463
        %10772 = vmatpush.bf16.msra.mxu0 %v7459
        %10773 = vmatpush.bf16.msra.mxu0 %v7455
        %10774 = vmatpush.bf16.msra.mxu0 %v7451
        %10775 = vmatmul.bf16.gmra.mxu0 %v375
        %v10776 = vpop.f32.mrf.mxu0
        %v10777 = vadd.f32 %v10764, %v10776
        %v10778 = vpop.f32.mrf.mxu0
        %10779 = vdwg.mxu0
        %10780 = vmatpush.bf16.msra.mxu0 %v7511
        %10781 = vmatpush.bf16.msra.mxu0 %v7507
        %10782 = vmatpush.bf16.msra.mxu0 %v7503
        %10783 = vmatpush.bf16.msra.mxu0 %v7499
        %10784 = vmatpush.bf16.msra.mxu0 %v7495
        %10785 = vmatpush.bf16.msra.mxu0 %v7491
        %10786 = vmatpush.bf16.msra.mxu0 %v7487
        %10787 = vmatpush.bf16.msra.mxu0 %v7483
        %10788 = vmatmul.bf16.gmra.mxu0 %v376
        %v10789 = vpop.f32.mrf.mxu0
        %v10790 = vadd.f32 %v10777, %v10789
        %v10791 = vpop.f32.mrf.mxu0
        %10792 = vdwg.mxu0
        %10793 = vmatpush.bf16.msra.mxu0 %v7543
        %10794 = vmatpush.bf16.msra.mxu0 %v7539
        %10795 = vmatpush.bf16.msra.mxu0 %v7535
        %10796 = vmatpush.bf16.msra.mxu0 %v7531
        %10797 = vmatpush.bf16.msra.mxu0 %v7527
        %10798 = vmatpush.bf16.msra.mxu0 %v7523
        %10799 = vmatpush.bf16.msra.mxu0 %v7519
        %10800 = vmatpush.bf16.msra.mxu0 %v7515
        %10801 = vmatmul.bf16.gmra.mxu0 %v377
        %v10802 = vpop.f32.mrf.mxu0
        %v10803 = vadd.f32 %v10790, %v10802
        %v10804 = vpop.f32.mrf.mxu0
        %10805 = vdwg.mxu0
        %10806 = vmatpush.bf16.msra.mxu0 %v7575
        %10807 = vmatpush.bf16.msra.mxu0 %v7571
        %10808 = vmatpush.bf16.msra.mxu0 %v7567
        %10809 = vmatpush.bf16.msra.mxu0 %v7563
        %10810 = vmatpush.bf16.msra.mxu0 %v7559
        %10811 = vmatpush.bf16.msra.mxu0 %v7555
        %10812 = vmatpush.bf16.msra.mxu0 %v7551
        %10813 = vmatpush.bf16.msra.mxu0 %v7547
        %10814 = vmatmul.bf16.gmra.mxu0 %v378
        %v10815 = vpop.f32.mrf.mxu0
        %v10816 = vadd.f32 %v10803, %v10815
        %v10817 = vpop.f32.mrf.mxu0
        %10818 = vdwg.mxu0
        %10819 = vmatpush.bf16.msra.mxu0 %v7607
        %10820 = vmatpush.bf16.msra.mxu0 %v7603
        %10821 = vmatpush.bf16.msra.mxu0 %v7599
        %10822 = vmatpush.bf16.msra.mxu0 %v7595
        %10823 = vmatpush.bf16.msra.mxu0 %v7591
        %10824 = vmatpush.bf16.msra.mxu0 %v7587
        %10825 = vmatpush.bf16.msra.mxu0 %v7583
        %10826 = vmatpush.bf16.msra.mxu0 %v7579
        %10827 = vmatmul.bf16.gmra.mxu0 %v379
        %v10828 = vpop.f32.mrf.mxu0
        %v10829 = vadd.f32 %v10816, %v10828
        %v10830 = vpop.f32.mrf.mxu0
        %10831 = vdwg.mxu0
        %10832 = vmatpush.bf16.msra.mxu0 %v7639
        %10833 = vmatpush.bf16.msra.mxu0 %v7635
        %10834 = vmatpush.bf16.msra.mxu0 %v7631
        %10835 = vmatpush.bf16.msra.mxu0 %v7627
        %10836 = vmatpush.bf16.msra.mxu0 %v7623
        %10837 = vmatpush.bf16.msra.mxu0 %v7619
        %10838 = vmatpush.bf16.msra.mxu0 %v7615
        %10839 = vmatpush.bf16.msra.mxu0 %v7611
        %10840 = vmatmul.bf16.gmra.mxu0 %v380
        %v10841 = vpop.f32.mrf.mxu0
        %v10842 = vadd.f32 %v10829, %v10841
        %v10843 = vpop.f32.mrf.mxu0
        %10844 = vdwg.mxu0
        %10845 = vmatpush.bf16.msra.mxu0 %v7671
        %10846 = vmatpush.bf16.msra.mxu0 %v7667
        %10847 = vmatpush.bf16.msra.mxu0 %v7663
        %10848 = vmatpush.bf16.msra.mxu0 %v7659
        %10849 = vmatpush.bf16.msra.mxu0 %v7655
        %10850 = vmatpush.bf16.msra.mxu0 %v7651
        %10851 = vmatpush.bf16.msra.mxu0 %v7647
        %10852 = vmatpush.bf16.msra.mxu0 %v7643
        %10853 = vmatmul.bf16.gmra.mxu0 %v381
        %v10854 = vpop.f32.mrf.mxu0
        %v10855 = vadd.f32 %v10842, %v10854
        %v10856 = vpop.f32.mrf.mxu0
        %10857 = vdwg.mxu0
        %10858 = vmatpush.bf16.msra.mxu0 %v7703
        %10859 = vmatpush.bf16.msra.mxu0 %v7699
        %10860 = vmatpush.bf16.msra.mxu0 %v7695
        %10861 = vmatpush.bf16.msra.mxu0 %v7691
        %10862 = vmatpush.bf16.msra.mxu0 %v7687
        %10863 = vmatpush.bf16.msra.mxu0 %v7683
        %10864 = vmatpush.bf16.msra.mxu0 %v7679
        %10865 = vmatpush.bf16.msra.mxu0 %v7675
        %10866 = vmatmul.bf16.gmra.mxu0 %v382
        %v10867 = vpop.f32.mrf.mxu0
        %v10868 = vadd.f32 %v10855, %v10867
        %v10869 = vpop.f32.mrf.mxu0
        %10870 = vdwg.mxu0
        %10871 = vmatpush.bf16.msra.mxu0 %v7735
        %10872 = vmatpush.bf16.msra.mxu0 %v7731
        %10873 = vmatpush.bf16.msra.mxu0 %v7727
        %10874 = vmatpush.bf16.msra.mxu0 %v7723
        %10875 = vmatpush.bf16.msra.mxu0 %v7719
        %10876 = vmatpush.bf16.msra.mxu0 %v7715
        %10877 = vmatpush.bf16.msra.mxu0 %v7711
        %10878 = vmatpush.bf16.msra.mxu0 %v7707
        %10879 = vmatmul.bf16.gmra.mxu0 %v383
        %v10880 = vpop.f32.mrf.mxu0
        %v10881 = vadd.f32 %v10868, %v10880
        %v10882 = vpop.f32.mrf.mxu0
        %10883 = vdwg.mxu0
        %10884 = vmatpush.bf16.msra.mxu0 %v7767
        %10885 = vmatpush.bf16.msra.mxu0 %v7763
        %10886 = vmatpush.bf16.msra.mxu0 %v7759
        %10887 = vmatpush.bf16.msra.mxu0 %v7755
        %10888 = vmatpush.bf16.msra.mxu0 %v7751
        %10889 = vmatpush.bf16.msra.mxu0 %v7747
        %10890 = vmatpush.bf16.msra.mxu0 %v7743
        %10891 = vmatpush.bf16.msra.mxu0 %v7739
        %10892 = vmatmul.bf16.gmra.mxu0 %v384
        %v10893 = vpop.f32.mrf.mxu0
        %v10894 = vadd.f32 %v10881, %v10893
        %v10895 = vpop.f32.mrf.mxu0
        %10896 = vdwg.mxu0
        %10897 = vmatpush.bf16.msra.mxu0 %v7799
        %10898 = vmatpush.bf16.msra.mxu0 %v7795
        %10899 = vmatpush.bf16.msra.mxu0 %v7791
        %10900 = vmatpush.bf16.msra.mxu0 %v7787
        %10901 = vmatpush.bf16.msra.mxu0 %v7783
        %10902 = vmatpush.bf16.msra.mxu0 %v7779
        %10903 = vmatpush.bf16.msra.mxu0 %v7775
        %10904 = vmatpush.bf16.msra.mxu0 %v7771
        %10905 = vmatmul.bf16.gmra.mxu0 %v385
        %v10906 = vpop.f32.mrf.mxu0
        %v10907 = vadd.f32 %v10894, %v10906
        %v10908 = vpop.f32.mrf.mxu0
        %10909 = vdwg.mxu0
        %10910 = vmatpush.bf16.msra.mxu0 %v7831
        %10911 = vmatpush.bf16.msra.mxu0 %v7827
        %10912 = vmatpush.bf16.msra.mxu0 %v7823
        %10913 = vmatpush.bf16.msra.mxu0 %v7819
        %10914 = vmatpush.bf16.msra.mxu0 %v7815
        %10915 = vmatpush.bf16.msra.mxu0 %v7811
        %10916 = vmatpush.bf16.msra.mxu0 %v7807
        %10917 = vmatpush.bf16.msra.mxu0 %v7803
        %10918 = vmatmul.bf16.gmra.mxu0 %v386
        %v10919 = vpop.f32.mrf.mxu0
        %v10920 = vadd.f32 %v10907, %v10919
        %v10921 = vpop.f32.mrf.mxu0
        %10922 = vdwg.mxu0
        %10923 = vmatpush.bf16.msra.mxu0 %v7863
        %10924 = vmatpush.bf16.msra.mxu0 %v7859
        %10925 = vmatpush.bf16.msra.mxu0 %v7855
        %10926 = vmatpush.bf16.msra.mxu0 %v7851
        %10927 = vmatpush.bf16.msra.mxu0 %v7847
        %10928 = vmatpush.bf16.msra.mxu0 %v7843
        %10929 = vmatpush.bf16.msra.mxu0 %v7839
        %10930 = vmatpush.bf16.msra.mxu0 %v7835
        %10931 = vmatmul.bf16.gmra.mxu0 %v387
        %v10932 = vpop.f32.mrf.mxu0
        %v10933 = vadd.f32 %v10920, %v10932
        %v10934 = vpop.f32.mrf.mxu0
        %10935 = vdwg.mxu0
        %10936 = vmatpush.bf16.msra.mxu0 %v7895
        %10937 = vmatpush.bf16.msra.mxu0 %v7891
        %10938 = vmatpush.bf16.msra.mxu0 %v7887
        %10939 = vmatpush.bf16.msra.mxu0 %v7883
        %10940 = vmatpush.bf16.msra.mxu0 %v7879
        %10941 = vmatpush.bf16.msra.mxu0 %v7875
        %10942 = vmatpush.bf16.msra.mxu0 %v7871
        %10943 = vmatpush.bf16.msra.mxu0 %v7867
        %10944 = vmatmul.bf16.gmra.mxu0 %v388
        %v10945 = vpop.f32.mrf.mxu0
        %v10946 = vadd.f32 %v10933, %v10945
        %v10947 = vpop.f32.mrf.mxu0
        %10948 = vdwg.mxu0
        %10949 = vmatpush.bf16.msra.mxu0 %v7927
        %10950 = vmatpush.bf16.msra.mxu0 %v7923
        %10951 = vmatpush.bf16.msra.mxu0 %v7919
        %10952 = vmatpush.bf16.msra.mxu0 %v7915
        %10953 = vmatpush.bf16.msra.mxu0 %v7911
        %10954 = vmatpush.bf16.msra.mxu0 %v7907
        %10955 = vmatpush.bf16.msra.mxu0 %v7903
        %10956 = vmatpush.bf16.msra.mxu0 %v7899
        %10957 = vmatmul.bf16.gmra.mxu0 %v389
        %v10958 = vpop.f32.mrf.mxu0
        %v10959 = vadd.f32 %v10946, %v10958
        %v10960 = vpop.f32.mrf.mxu0
        %10961 = vdwg.mxu0
        %10962 = vmatpush.bf16.msra.mxu0 %v7959
        %10963 = vmatpush.bf16.msra.mxu0 %v7955
        %10964 = vmatpush.bf16.msra.mxu0 %v7951
        %10965 = vmatpush.bf16.msra.mxu0 %v7947
        %10966 = vmatpush.bf16.msra.mxu0 %v7943
        %10967 = vmatpush.bf16.msra.mxu0 %v7939
        %10968 = vmatpush.bf16.msra.mxu0 %v7935
        %10969 = vmatpush.bf16.msra.mxu0 %v7931
        %10970 = vmatmul.bf16.gmra.mxu0 %v390
        %v10971 = vpop.f32.mrf.mxu0
        %v10972 = vadd.f32 %v10959, %v10971
        %v10973 = vpop.f32.mrf.mxu0
        %10974 = vdwg.mxu0
        %10975 = vmatpush.bf16.msra.mxu0 %v7991
        %10976 = vmatpush.bf16.msra.mxu0 %v7987
        %10977 = vmatpush.bf16.msra.mxu0 %v7983
        %10978 = vmatpush.bf16.msra.mxu0 %v7979
        %10979 = vmatpush.bf16.msra.mxu0 %v7975
        %10980 = vmatpush.bf16.msra.mxu0 %v7971
        %10981 = vmatpush.bf16.msra.mxu0 %v7967
        %10982 = vmatpush.bf16.msra.mxu0 %v7963
        %10983 = vmatmul.bf16.gmra.mxu0 %v391
        %v10984 = vpop.f32.mrf.mxu0
        %v10985 = vadd.f32 %v10972, %v10984
        %v10986 = vpop.f32.mrf.mxu0
        %10987 = vdwg.mxu0
        %10988 = vmatpush.bf16.msra.mxu0 %v8023
        %10989 = vmatpush.bf16.msra.mxu0 %v8019
        %10990 = vmatpush.bf16.msra.mxu0 %v8015
        %10991 = vmatpush.bf16.msra.mxu0 %v8011
        %10992 = vmatpush.bf16.msra.mxu0 %v8007
        %10993 = vmatpush.bf16.msra.mxu0 %v8003
        %10994 = vmatpush.bf16.msra.mxu0 %v7999
        %10995 = vmatpush.bf16.msra.mxu0 %v7995
        %10996 = vmatmul.bf16.gmra.mxu0 %v392
        %v10997 = vpop.f32.mrf.mxu0
        %v10998 = vadd.f32 %v10985, %v10997
        %v10999 = vpop.f32.mrf.mxu0
        %11000 = vdwg.mxu0
        %11001 = vmatpush.bf16.msra.mxu0 %v8055
        %11002 = vmatpush.bf16.msra.mxu0 %v8051
        %11003 = vmatpush.bf16.msra.mxu0 %v8047
        %11004 = vmatpush.bf16.msra.mxu0 %v8043
        %11005 = vmatpush.bf16.msra.mxu0 %v8039
        %11006 = vmatpush.bf16.msra.mxu0 %v8035
        %11007 = vmatpush.bf16.msra.mxu0 %v8031
        %11008 = vmatpush.bf16.msra.mxu0 %v8027
        %11009 = vmatmul.bf16.gmra.mxu0 %v393
        %v11010 = vpop.f32.mrf.mxu0
        %v11011 = vadd.f32 %v10998, %v11010
        %v11012 = vpop.f32.mrf.mxu0
        %11013 = vdwg.mxu0
        %11014 = vmatpush.bf16.msra.mxu0 %v8087
        %11015 = vmatpush.bf16.msra.mxu0 %v8083
        %11016 = vmatpush.bf16.msra.mxu0 %v8079
        %11017 = vmatpush.bf16.msra.mxu0 %v8075
        %11018 = vmatpush.bf16.msra.mxu0 %v8071
        %11019 = vmatpush.bf16.msra.mxu0 %v8067
        %11020 = vmatpush.bf16.msra.mxu0 %v8063
        %11021 = vmatpush.bf16.msra.mxu0 %v8059
        %11022 = vmatmul.bf16.gmra.mxu0 %v394
        %v11023 = vpop.f32.mrf.mxu0
        %v11024 = vadd.f32 %v11011, %v11023
        %v11025 = vpop.f32.mrf.mxu0
        %11026 = vdwg.mxu0
        %11027 = vmatpush.bf16.msra.mxu0 %v8119
        %11028 = vmatpush.bf16.msra.mxu0 %v8115
        %11029 = vmatpush.bf16.msra.mxu0 %v8111
        %11030 = vmatpush.bf16.msra.mxu0 %v8107
        %11031 = vmatpush.bf16.msra.mxu0 %v8103
        %11032 = vmatpush.bf16.msra.mxu0 %v8099
        %11033 = vmatpush.bf16.msra.mxu0 %v8095
        %11034 = vmatpush.bf16.msra.mxu0 %v8091
        %11035 = vmatmul.bf16.gmra.mxu0 %v395
        %v11036 = vpop.f32.mrf.mxu0
        %v11037 = vadd.f32 %v11024, %v11036
        %v11038 = vpop.f32.mrf.mxu0
        %11039 = vdwg.mxu0
        %11040 = vmatpush.bf16.msra.mxu0 %v8151
        %11041 = vmatpush.bf16.msra.mxu0 %v8147
        %11042 = vmatpush.bf16.msra.mxu0 %v8143
        %11043 = vmatpush.bf16.msra.mxu0 %v8139
        %11044 = vmatpush.bf16.msra.mxu0 %v8135
        %11045 = vmatpush.bf16.msra.mxu0 %v8131
        %11046 = vmatpush.bf16.msra.mxu0 %v8127
        %11047 = vmatpush.bf16.msra.mxu0 %v8123
        %11048 = vmatmul.bf16.gmra.mxu0 %v396
        %v11049 = vpop.f32.mrf.mxu0
        %v11050 = vadd.f32 %v11037, %v11049
        %v11051 = vpop.f32.mrf.mxu0
        %11052 = vdwg.mxu0
        %11053 = vmatpush.bf16.msra.mxu0 %v8183
        %11054 = vmatpush.bf16.msra.mxu0 %v8179
        %11055 = vmatpush.bf16.msra.mxu0 %v8175
        %11056 = vmatpush.bf16.msra.mxu0 %v8171
        %11057 = vmatpush.bf16.msra.mxu0 %v8167
        %11058 = vmatpush.bf16.msra.mxu0 %v8163
        %11059 = vmatpush.bf16.msra.mxu0 %v8159
        %11060 = vmatpush.bf16.msra.mxu0 %v8155
        %11061 = vmatmul.bf16.gmra.mxu0 %v397
        %v11062 = vpop.f32.mrf.mxu0
        %v11063 = vadd.f32 %v11050, %v11062
        %v11064 = vpop.f32.mrf.mxu0
        %11065 = vdwg.mxu0
        %11066 = vmatpush.bf16.msra.mxu0 %v8215
        %11067 = vmatpush.bf16.msra.mxu0 %v8211
        %11068 = vmatpush.bf16.msra.mxu0 %v8207
        %11069 = vmatpush.bf16.msra.mxu0 %v8203
        %11070 = vmatpush.bf16.msra.mxu0 %v8199
        %11071 = vmatpush.bf16.msra.mxu0 %v8195
        %11072 = vmatpush.bf16.msra.mxu0 %v8191
        %11073 = vmatpush.bf16.msra.mxu0 %v8187
        %11074 = vmatmul.bf16.gmra.mxu0 %v398
        %v11075 = vpop.f32.mrf.mxu0
        %v11076 = vadd.f32 %v11063, %v11075
        %v11077 = vpop.f32.mrf.mxu0
        %11078 = vdwg.mxu0
        %11079 = vmatpush.bf16.msra.mxu0 %v8247
        %11080 = vmatpush.bf16.msra.mxu0 %v8243
        %11081 = vmatpush.bf16.msra.mxu0 %v8239
        %11082 = vmatpush.bf16.msra.mxu0 %v8235
        %11083 = vmatpush.bf16.msra.mxu0 %v8231
        %11084 = vmatpush.bf16.msra.mxu0 %v8227
        %11085 = vmatpush.bf16.msra.mxu0 %v8223
        %11086 = vmatpush.bf16.msra.mxu0 %v8219
        %11087 = vmatmul.bf16.gmra.mxu0 %v399
        %v11088 = vpop.f32.mrf.mxu0
        %v11089 = vadd.f32 %v11076, %v11088
        %v11090 = vpop.f32.mrf.mxu0
        %11091 = vdwg.mxu0
        %11092 = vmatpush.bf16.msra.mxu0 %v6712
        %11093 = vmatpush.bf16.msra.mxu0 %v6708
        %11094 = vmatpush.bf16.msra.mxu0 %v6704
        %11095 = vmatpush.bf16.msra.mxu0 %v6700
        %11096 = vmatpush.bf16.msra.mxu0 %v6696
        %11097 = vmatpush.bf16.msra.mxu0 %v6692
        %11098 = vmatpush.bf16.msra.mxu0 %v6688
        %11099 = vmatpush.bf16.msra.mxu0 %v6684
        %11100 = vmatmul.bf16.gmra.mxu0 %v351
        %v11101 = vpop.f32.mrf.mxu0
        %v11102 = vadd.f32 %v1972, %v11101
        %v11103 = vpop.f32.mrf.mxu0
        %11104 = vdwg.mxu0
        %11105 = vmatpush.bf16.msra.mxu0 %v6744
        %11106 = vmatpush.bf16.msra.mxu0 %v6740
        %11107 = vmatpush.bf16.msra.mxu0 %v6736
        %11108 = vmatpush.bf16.msra.mxu0 %v6732
        %11109 = vmatpush.bf16.msra.mxu0 %v6728
        %11110 = vmatpush.bf16.msra.mxu0 %v6724
        %11111 = vmatpush.bf16.msra.mxu0 %v6720
        %11112 = vmatpush.bf16.msra.mxu0 %v6716
        %11113 = vmatmul.bf16.gmra.mxu0 %v352
        %v11114 = vpop.f32.mrf.mxu0
        %v11115 = vadd.f32 %v11102, %v11114
        %v11116 = vpop.f32.mrf.mxu0
        %11117 = vdwg.mxu0
        %11118 = vmatpush.bf16.msra.mxu0 %v6776
        %11119 = vmatpush.bf16.msra.mxu0 %v6772
        %11120 = vmatpush.bf16.msra.mxu0 %v6768
        %11121 = vmatpush.bf16.msra.mxu0 %v6764
        %11122 = vmatpush.bf16.msra.mxu0 %v6760
        %11123 = vmatpush.bf16.msra.mxu0 %v6756
        %11124 = vmatpush.bf16.msra.mxu0 %v6752
        %11125 = vmatpush.bf16.msra.mxu0 %v6748
        %11126 = vmatmul.bf16.gmra.mxu0 %v353
        %v11127 = vpop.f32.mrf.mxu0
        %v11128 = vadd.f32 %v11115, %v11127
        %v11129 = vpop.f32.mrf.mxu0
        %11130 = vdwg.mxu0
        %11131 = vmatpush.bf16.msra.mxu0 %v6808
        %11132 = vmatpush.bf16.msra.mxu0 %v6804
        %11133 = vmatpush.bf16.msra.mxu0 %v6800
        %11134 = vmatpush.bf16.msra.mxu0 %v6796
        %11135 = vmatpush.bf16.msra.mxu0 %v6792
        %11136 = vmatpush.bf16.msra.mxu0 %v6788
        %11137 = vmatpush.bf16.msra.mxu0 %v6784
        %11138 = vmatpush.bf16.msra.mxu0 %v6780
        %11139 = vmatmul.bf16.gmra.mxu0 %v354
        %v11140 = vpop.f32.mrf.mxu0
        %v11141 = vadd.f32 %v11128, %v11140
        %v11142 = vpop.f32.mrf.mxu0
        %11143 = vdwg.mxu0
        %11144 = vmatpush.bf16.msra.mxu0 %v6840
        %11145 = vmatpush.bf16.msra.mxu0 %v6836
        %11146 = vmatpush.bf16.msra.mxu0 %v6832
        %11147 = vmatpush.bf16.msra.mxu0 %v6828
        %11148 = vmatpush.bf16.msra.mxu0 %v6824
        %11149 = vmatpush.bf16.msra.mxu0 %v6820
        %11150 = vmatpush.bf16.msra.mxu0 %v6816
        %11151 = vmatpush.bf16.msra.mxu0 %v6812
        %11152 = vmatmul.bf16.gmra.mxu0 %v355
        %v11153 = vpop.f32.mrf.mxu0
        %v11154 = vadd.f32 %v11141, %v11153
        %v11155 = vpop.f32.mrf.mxu0
        %11156 = vdwg.mxu0
        %11157 = vmatpush.bf16.msra.mxu0 %v6872
        %11158 = vmatpush.bf16.msra.mxu0 %v6868
        %11159 = vmatpush.bf16.msra.mxu0 %v6864
        %11160 = vmatpush.bf16.msra.mxu0 %v6860
        %11161 = vmatpush.bf16.msra.mxu0 %v6856
        %11162 = vmatpush.bf16.msra.mxu0 %v6852
        %11163 = vmatpush.bf16.msra.mxu0 %v6848
        %11164 = vmatpush.bf16.msra.mxu0 %v6844
        %11165 = vmatmul.bf16.gmra.mxu0 %v356
        %v11166 = vpop.f32.mrf.mxu0
        %v11167 = vadd.f32 %v11154, %v11166
        %v11168 = vpop.f32.mrf.mxu0
        %11169 = vdwg.mxu0
        %11170 = vmatpush.bf16.msra.mxu0 %v6904
        %11171 = vmatpush.bf16.msra.mxu0 %v6900
        %11172 = vmatpush.bf16.msra.mxu0 %v6896
        %11173 = vmatpush.bf16.msra.mxu0 %v6892
        %11174 = vmatpush.bf16.msra.mxu0 %v6888
        %11175 = vmatpush.bf16.msra.mxu0 %v6884
        %11176 = vmatpush.bf16.msra.mxu0 %v6880
        %11177 = vmatpush.bf16.msra.mxu0 %v6876
        %11178 = vmatmul.bf16.gmra.mxu0 %v357
        %v11179 = vpop.f32.mrf.mxu0
        %v11180 = vadd.f32 %v11167, %v11179
        %v11181 = vpop.f32.mrf.mxu0
        %11182 = vdwg.mxu0
        %11183 = vmatpush.bf16.msra.mxu0 %v6936
        %11184 = vmatpush.bf16.msra.mxu0 %v6932
        %11185 = vmatpush.bf16.msra.mxu0 %v6928
        %11186 = vmatpush.bf16.msra.mxu0 %v6924
        %11187 = vmatpush.bf16.msra.mxu0 %v6920
        %11188 = vmatpush.bf16.msra.mxu0 %v6916
        %11189 = vmatpush.bf16.msra.mxu0 %v6912
        %11190 = vmatpush.bf16.msra.mxu0 %v6908
        %11191 = vmatmul.bf16.gmra.mxu0 %v358
        %v11192 = vpop.f32.mrf.mxu0
        %v11193 = vadd.f32 %v11180, %v11192
        %v11194 = vpop.f32.mrf.mxu0
        %11195 = vdwg.mxu0
        %11196 = vmatpush.bf16.msra.mxu0 %v6968
        %11197 = vmatpush.bf16.msra.mxu0 %v6964
        %11198 = vmatpush.bf16.msra.mxu0 %v6960
        %11199 = vmatpush.bf16.msra.mxu0 %v6956
        %11200 = vmatpush.bf16.msra.mxu0 %v6952
        %11201 = vmatpush.bf16.msra.mxu0 %v6948
        %11202 = vmatpush.bf16.msra.mxu0 %v6944
        %11203 = vmatpush.bf16.msra.mxu0 %v6940
        %11204 = vmatmul.bf16.gmra.mxu0 %v359
        %v11205 = vpop.f32.mrf.mxu0
        %v11206 = vadd.f32 %v11193, %v11205
        %v11207 = vpop.f32.mrf.mxu0
        %11208 = vdwg.mxu0
        %11209 = vmatpush.bf16.msra.mxu0 %v7000
        %11210 = vmatpush.bf16.msra.mxu0 %v6996
        %11211 = vmatpush.bf16.msra.mxu0 %v6992
        %11212 = vmatpush.bf16.msra.mxu0 %v6988
        %11213 = vmatpush.bf16.msra.mxu0 %v6984
        %11214 = vmatpush.bf16.msra.mxu0 %v6980
        %11215 = vmatpush.bf16.msra.mxu0 %v6976
        %11216 = vmatpush.bf16.msra.mxu0 %v6972
        %11217 = vmatmul.bf16.gmra.mxu0 %v360
        %v11218 = vpop.f32.mrf.mxu0
        %v11219 = vadd.f32 %v11206, %v11218
        %v11220 = vpop.f32.mrf.mxu0
        %11221 = vdwg.mxu0
        %11222 = vmatpush.bf16.msra.mxu0 %v7032
        %11223 = vmatpush.bf16.msra.mxu0 %v7028
        %11224 = vmatpush.bf16.msra.mxu0 %v7024
        %11225 = vmatpush.bf16.msra.mxu0 %v7020
        %11226 = vmatpush.bf16.msra.mxu0 %v7016
        %11227 = vmatpush.bf16.msra.mxu0 %v7012
        %11228 = vmatpush.bf16.msra.mxu0 %v7008
        %11229 = vmatpush.bf16.msra.mxu0 %v7004
        %11230 = vmatmul.bf16.gmra.mxu0 %v361
        %v11231 = vpop.f32.mrf.mxu0
        %v11232 = vadd.f32 %v11219, %v11231
        %v11233 = vpop.f32.mrf.mxu0
        %11234 = vdwg.mxu0
        %11235 = vmatpush.bf16.msra.mxu0 %v7064
        %11236 = vmatpush.bf16.msra.mxu0 %v7060
        %11237 = vmatpush.bf16.msra.mxu0 %v7056
        %11238 = vmatpush.bf16.msra.mxu0 %v7052
        %11239 = vmatpush.bf16.msra.mxu0 %v7048
        %11240 = vmatpush.bf16.msra.mxu0 %v7044
        %11241 = vmatpush.bf16.msra.mxu0 %v7040
        %11242 = vmatpush.bf16.msra.mxu0 %v7036
        %11243 = vmatmul.bf16.gmra.mxu0 %v362
        %v11244 = vpop.f32.mrf.mxu0
        %v11245 = vadd.f32 %v11232, %v11244
        %v11246 = vpop.f32.mrf.mxu0
        %11247 = vdwg.mxu0
        %11248 = vmatpush.bf16.msra.mxu0 %v7096
        %11249 = vmatpush.bf16.msra.mxu0 %v7092
        %11250 = vmatpush.bf16.msra.mxu0 %v7088
        %11251 = vmatpush.bf16.msra.mxu0 %v7084
        %11252 = vmatpush.bf16.msra.mxu0 %v7080
        %11253 = vmatpush.bf16.msra.mxu0 %v7076
        %11254 = vmatpush.bf16.msra.mxu0 %v7072
        %11255 = vmatpush.bf16.msra.mxu0 %v7068
        %11256 = vmatmul.bf16.gmra.mxu0 %v363
        %v11257 = vpop.f32.mrf.mxu0
        %v11258 = vadd.f32 %v11245, %v11257
        %v11259 = vpop.f32.mrf.mxu0
        %11260 = vdwg.mxu0
        %11261 = vmatpush.bf16.msra.mxu0 %v7128
        %11262 = vmatpush.bf16.msra.mxu0 %v7124
        %11263 = vmatpush.bf16.msra.mxu0 %v7120
        %11264 = vmatpush.bf16.msra.mxu0 %v7116
        %11265 = vmatpush.bf16.msra.mxu0 %v7112
        %11266 = vmatpush.bf16.msra.mxu0 %v7108
        %11267 = vmatpush.bf16.msra.mxu0 %v7104
        %11268 = vmatpush.bf16.msra.mxu0 %v7100
        %11269 = vmatmul.bf16.gmra.mxu0 %v364
        %v11270 = vpop.f32.mrf.mxu0
        %v11271 = vadd.f32 %v11258, %v11270
        %v11272 = vpop.f32.mrf.mxu0
        %11273 = vdwg.mxu0
        %11274 = vmatpush.bf16.msra.mxu0 %v7160
        %11275 = vmatpush.bf16.msra.mxu0 %v7156
        %11276 = vmatpush.bf16.msra.mxu0 %v7152
        %11277 = vmatpush.bf16.msra.mxu0 %v7148
        %11278 = vmatpush.bf16.msra.mxu0 %v7144
        %11279 = vmatpush.bf16.msra.mxu0 %v7140
        %11280 = vmatpush.bf16.msra.mxu0 %v7136
        %11281 = vmatpush.bf16.msra.mxu0 %v7132
        %11282 = vmatmul.bf16.gmra.mxu0 %v365
        %v11283 = vpop.f32.mrf.mxu0
        %v11284 = vadd.f32 %v11271, %v11283
        %v11285 = vpop.f32.mrf.mxu0
        %11286 = vdwg.mxu0
        %11287 = vmatpush.bf16.msra.mxu0 %v7192
        %11288 = vmatpush.bf16.msra.mxu0 %v7188
        %11289 = vmatpush.bf16.msra.mxu0 %v7184
        %11290 = vmatpush.bf16.msra.mxu0 %v7180
        %11291 = vmatpush.bf16.msra.mxu0 %v7176
        %11292 = vmatpush.bf16.msra.mxu0 %v7172
        %11293 = vmatpush.bf16.msra.mxu0 %v7168
        %11294 = vmatpush.bf16.msra.mxu0 %v7164
        %11295 = vmatmul.bf16.gmra.mxu0 %v366
        %v11296 = vpop.f32.mrf.mxu0
        %v11297 = vadd.f32 %v11284, %v11296
        %v11298 = vpop.f32.mrf.mxu0
        %11299 = vdwg.mxu0
        %11300 = vmatpush.bf16.msra.mxu0 %v7224
        %11301 = vmatpush.bf16.msra.mxu0 %v7220
        %11302 = vmatpush.bf16.msra.mxu0 %v7216
        %11303 = vmatpush.bf16.msra.mxu0 %v7212
        %11304 = vmatpush.bf16.msra.mxu0 %v7208
        %11305 = vmatpush.bf16.msra.mxu0 %v7204
        %11306 = vmatpush.bf16.msra.mxu0 %v7200
        %11307 = vmatpush.bf16.msra.mxu0 %v7196
        %11308 = vmatmul.bf16.gmra.mxu0 %v367
        %v11309 = vpop.f32.mrf.mxu0
        %v11310 = vadd.f32 %v11297, %v11309
        %v11311 = vpop.f32.mrf.mxu0
        %11312 = vdwg.mxu0
        %11313 = vmatpush.bf16.msra.mxu0 %v7256
        %11314 = vmatpush.bf16.msra.mxu0 %v7252
        %11315 = vmatpush.bf16.msra.mxu0 %v7248
        %11316 = vmatpush.bf16.msra.mxu0 %v7244
        %11317 = vmatpush.bf16.msra.mxu0 %v7240
        %11318 = vmatpush.bf16.msra.mxu0 %v7236
        %11319 = vmatpush.bf16.msra.mxu0 %v7232
        %11320 = vmatpush.bf16.msra.mxu0 %v7228
        %11321 = vmatmul.bf16.gmra.mxu0 %v368
        %v11322 = vpop.f32.mrf.mxu0
        %v11323 = vadd.f32 %v11310, %v11322
        %v11324 = vpop.f32.mrf.mxu0
        %11325 = vdwg.mxu0
        %11326 = vmatpush.bf16.msra.mxu0 %v7288
        %11327 = vmatpush.bf16.msra.mxu0 %v7284
        %11328 = vmatpush.bf16.msra.mxu0 %v7280
        %11329 = vmatpush.bf16.msra.mxu0 %v7276
        %11330 = vmatpush.bf16.msra.mxu0 %v7272
        %11331 = vmatpush.bf16.msra.mxu0 %v7268
        %11332 = vmatpush.bf16.msra.mxu0 %v7264
        %11333 = vmatpush.bf16.msra.mxu0 %v7260
        %11334 = vmatmul.bf16.gmra.mxu0 %v369
        %v11335 = vpop.f32.mrf.mxu0
        %v11336 = vadd.f32 %v11323, %v11335
        %v11337 = vpop.f32.mrf.mxu0
        %11338 = vdwg.mxu0
        %11339 = vmatpush.bf16.msra.mxu0 %v7320
        %11340 = vmatpush.bf16.msra.mxu0 %v7316
        %11341 = vmatpush.bf16.msra.mxu0 %v7312
        %11342 = vmatpush.bf16.msra.mxu0 %v7308
        %11343 = vmatpush.bf16.msra.mxu0 %v7304
        %11344 = vmatpush.bf16.msra.mxu0 %v7300
        %11345 = vmatpush.bf16.msra.mxu0 %v7296
        %11346 = vmatpush.bf16.msra.mxu0 %v7292
        %11347 = vmatmul.bf16.gmra.mxu0 %v370
        %v11348 = vpop.f32.mrf.mxu0
        %v11349 = vadd.f32 %v11336, %v11348
        %v11350 = vpop.f32.mrf.mxu0
        %11351 = vdwg.mxu0
        %11352 = vmatpush.bf16.msra.mxu0 %v7352
        %11353 = vmatpush.bf16.msra.mxu0 %v7348
        %11354 = vmatpush.bf16.msra.mxu0 %v7344
        %11355 = vmatpush.bf16.msra.mxu0 %v7340
        %11356 = vmatpush.bf16.msra.mxu0 %v7336
        %11357 = vmatpush.bf16.msra.mxu0 %v7332
        %11358 = vmatpush.bf16.msra.mxu0 %v7328
        %11359 = vmatpush.bf16.msra.mxu0 %v7324
        %11360 = vmatmul.bf16.gmra.mxu0 %v371
        %v11361 = vpop.f32.mrf.mxu0
        %v11362 = vadd.f32 %v11349, %v11361
        %v11363 = vpop.f32.mrf.mxu0
        %11364 = vdwg.mxu0
        %11365 = vmatpush.bf16.msra.mxu0 %v7384
        %11366 = vmatpush.bf16.msra.mxu0 %v7380
        %11367 = vmatpush.bf16.msra.mxu0 %v7376
        %11368 = vmatpush.bf16.msra.mxu0 %v7372
        %11369 = vmatpush.bf16.msra.mxu0 %v7368
        %11370 = vmatpush.bf16.msra.mxu0 %v7364
        %11371 = vmatpush.bf16.msra.mxu0 %v7360
        %11372 = vmatpush.bf16.msra.mxu0 %v7356
        %11373 = vmatmul.bf16.gmra.mxu0 %v372
        %v11374 = vpop.f32.mrf.mxu0
        %v11375 = vadd.f32 %v11362, %v11374
        %v11376 = vpop.f32.mrf.mxu0
        %11377 = vdwg.mxu0
        %11378 = vmatpush.bf16.msra.mxu0 %v7416
        %11379 = vmatpush.bf16.msra.mxu0 %v7412
        %11380 = vmatpush.bf16.msra.mxu0 %v7408
        %11381 = vmatpush.bf16.msra.mxu0 %v7404
        %11382 = vmatpush.bf16.msra.mxu0 %v7400
        %11383 = vmatpush.bf16.msra.mxu0 %v7396
        %11384 = vmatpush.bf16.msra.mxu0 %v7392
        %11385 = vmatpush.bf16.msra.mxu0 %v7388
        %11386 = vmatmul.bf16.gmra.mxu0 %v373
        %v11387 = vpop.f32.mrf.mxu0
        %v11388 = vadd.f32 %v11375, %v11387
        %v11389 = vpop.f32.mrf.mxu0
        %11390 = vdwg.mxu0
        %11391 = vmatpush.bf16.msra.mxu0 %v7448
        %11392 = vmatpush.bf16.msra.mxu0 %v7444
        %11393 = vmatpush.bf16.msra.mxu0 %v7440
        %11394 = vmatpush.bf16.msra.mxu0 %v7436
        %11395 = vmatpush.bf16.msra.mxu0 %v7432
        %11396 = vmatpush.bf16.msra.mxu0 %v7428
        %11397 = vmatpush.bf16.msra.mxu0 %v7424
        %11398 = vmatpush.bf16.msra.mxu0 %v7420
        %11399 = vmatmul.bf16.gmra.mxu0 %v374
        %v11400 = vpop.f32.mrf.mxu0
        %v11401 = vadd.f32 %v11388, %v11400
        %v11402 = vpop.f32.mrf.mxu0
        %11403 = vdwg.mxu0
        %11404 = vmatpush.bf16.msra.mxu0 %v7480
        %11405 = vmatpush.bf16.msra.mxu0 %v7476
        %11406 = vmatpush.bf16.msra.mxu0 %v7472
        %11407 = vmatpush.bf16.msra.mxu0 %v7468
        %11408 = vmatpush.bf16.msra.mxu0 %v7464
        %11409 = vmatpush.bf16.msra.mxu0 %v7460
        %11410 = vmatpush.bf16.msra.mxu0 %v7456
        %11411 = vmatpush.bf16.msra.mxu0 %v7452
        %11412 = vmatmul.bf16.gmra.mxu0 %v375
        %v11413 = vpop.f32.mrf.mxu0
        %v11414 = vadd.f32 %v11401, %v11413
        %v11415 = vpop.f32.mrf.mxu0
        %11416 = vdwg.mxu0
        %11417 = vmatpush.bf16.msra.mxu0 %v7512
        %11418 = vmatpush.bf16.msra.mxu0 %v7508
        %11419 = vmatpush.bf16.msra.mxu0 %v7504
        %11420 = vmatpush.bf16.msra.mxu0 %v7500
        %11421 = vmatpush.bf16.msra.mxu0 %v7496
        %11422 = vmatpush.bf16.msra.mxu0 %v7492
        %11423 = vmatpush.bf16.msra.mxu0 %v7488
        %11424 = vmatpush.bf16.msra.mxu0 %v7484
        %11425 = vmatmul.bf16.gmra.mxu0 %v376
        %v11426 = vpop.f32.mrf.mxu0
        %v11427 = vadd.f32 %v11414, %v11426
        %v11428 = vpop.f32.mrf.mxu0
        %11429 = vdwg.mxu0
        %11430 = vmatpush.bf16.msra.mxu0 %v7544
        %11431 = vmatpush.bf16.msra.mxu0 %v7540
        %11432 = vmatpush.bf16.msra.mxu0 %v7536
        %11433 = vmatpush.bf16.msra.mxu0 %v7532
        %11434 = vmatpush.bf16.msra.mxu0 %v7528
        %11435 = vmatpush.bf16.msra.mxu0 %v7524
        %11436 = vmatpush.bf16.msra.mxu0 %v7520
        %11437 = vmatpush.bf16.msra.mxu0 %v7516
        %11438 = vmatmul.bf16.gmra.mxu0 %v377
        %v11439 = vpop.f32.mrf.mxu0
        %v11440 = vadd.f32 %v11427, %v11439
        %v11441 = vpop.f32.mrf.mxu0
        %11442 = vdwg.mxu0
        %11443 = vmatpush.bf16.msra.mxu0 %v7576
        %11444 = vmatpush.bf16.msra.mxu0 %v7572
        %11445 = vmatpush.bf16.msra.mxu0 %v7568
        %11446 = vmatpush.bf16.msra.mxu0 %v7564
        %11447 = vmatpush.bf16.msra.mxu0 %v7560
        %11448 = vmatpush.bf16.msra.mxu0 %v7556
        %11449 = vmatpush.bf16.msra.mxu0 %v7552
        %11450 = vmatpush.bf16.msra.mxu0 %v7548
        %11451 = vmatmul.bf16.gmra.mxu0 %v378
        %v11452 = vpop.f32.mrf.mxu0
        %v11453 = vadd.f32 %v11440, %v11452
        %v11454 = vpop.f32.mrf.mxu0
        %11455 = vdwg.mxu0
        %11456 = vmatpush.bf16.msra.mxu0 %v7608
        %11457 = vmatpush.bf16.msra.mxu0 %v7604
        %11458 = vmatpush.bf16.msra.mxu0 %v7600
        %11459 = vmatpush.bf16.msra.mxu0 %v7596
        %11460 = vmatpush.bf16.msra.mxu0 %v7592
        %11461 = vmatpush.bf16.msra.mxu0 %v7588
        %11462 = vmatpush.bf16.msra.mxu0 %v7584
        %11463 = vmatpush.bf16.msra.mxu0 %v7580
        %11464 = vmatmul.bf16.gmra.mxu0 %v379
        %v11465 = vpop.f32.mrf.mxu0
        %v11466 = vadd.f32 %v11453, %v11465
        %v11467 = vpop.f32.mrf.mxu0
        %11468 = vdwg.mxu0
        %11469 = vmatpush.bf16.msra.mxu0 %v7640
        %11470 = vmatpush.bf16.msra.mxu0 %v7636
        %11471 = vmatpush.bf16.msra.mxu0 %v7632
        %11472 = vmatpush.bf16.msra.mxu0 %v7628
        %11473 = vmatpush.bf16.msra.mxu0 %v7624
        %11474 = vmatpush.bf16.msra.mxu0 %v7620
        %11475 = vmatpush.bf16.msra.mxu0 %v7616
        %11476 = vmatpush.bf16.msra.mxu0 %v7612
        %11477 = vmatmul.bf16.gmra.mxu0 %v380
        %v11478 = vpop.f32.mrf.mxu0
        %v11479 = vadd.f32 %v11466, %v11478
        %v11480 = vpop.f32.mrf.mxu0
        %11481 = vdwg.mxu0
        %11482 = vmatpush.bf16.msra.mxu0 %v7672
        %11483 = vmatpush.bf16.msra.mxu0 %v7668
        %11484 = vmatpush.bf16.msra.mxu0 %v7664
        %11485 = vmatpush.bf16.msra.mxu0 %v7660
        %11486 = vmatpush.bf16.msra.mxu0 %v7656
        %11487 = vmatpush.bf16.msra.mxu0 %v7652
        %11488 = vmatpush.bf16.msra.mxu0 %v7648
        %11489 = vmatpush.bf16.msra.mxu0 %v7644
        %11490 = vmatmul.bf16.gmra.mxu0 %v381
        %v11491 = vpop.f32.mrf.mxu0
        %v11492 = vadd.f32 %v11479, %v11491
        %v11493 = vpop.f32.mrf.mxu0
        %11494 = vdwg.mxu0
        %11495 = vmatpush.bf16.msra.mxu0 %v7704
        %11496 = vmatpush.bf16.msra.mxu0 %v7700
        %11497 = vmatpush.bf16.msra.mxu0 %v7696
        %11498 = vmatpush.bf16.msra.mxu0 %v7692
        %11499 = vmatpush.bf16.msra.mxu0 %v7688
        %11500 = vmatpush.bf16.msra.mxu0 %v7684
        %11501 = vmatpush.bf16.msra.mxu0 %v7680
        %11502 = vmatpush.bf16.msra.mxu0 %v7676
        %11503 = vmatmul.bf16.gmra.mxu0 %v382
        %v11504 = vpop.f32.mrf.mxu0
        %v11505 = vadd.f32 %v11492, %v11504
        %v11506 = vpop.f32.mrf.mxu0
        %11507 = vdwg.mxu0
        %11508 = vmatpush.bf16.msra.mxu0 %v7736
        %11509 = vmatpush.bf16.msra.mxu0 %v7732
        %11510 = vmatpush.bf16.msra.mxu0 %v7728
        %11511 = vmatpush.bf16.msra.mxu0 %v7724
        %11512 = vmatpush.bf16.msra.mxu0 %v7720
        %11513 = vmatpush.bf16.msra.mxu0 %v7716
        %11514 = vmatpush.bf16.msra.mxu0 %v7712
        %11515 = vmatpush.bf16.msra.mxu0 %v7708
        %11516 = vmatmul.bf16.gmra.mxu0 %v383
        %v11517 = vpop.f32.mrf.mxu0
        %v11518 = vadd.f32 %v11505, %v11517
        %v11519 = vpop.f32.mrf.mxu0
        %11520 = vdwg.mxu0
        %11521 = vmatpush.bf16.msra.mxu0 %v7768
        %11522 = vmatpush.bf16.msra.mxu0 %v7764
        %11523 = vmatpush.bf16.msra.mxu0 %v7760
        %11524 = vmatpush.bf16.msra.mxu0 %v7756
        %11525 = vmatpush.bf16.msra.mxu0 %v7752
        %11526 = vmatpush.bf16.msra.mxu0 %v7748
        %11527 = vmatpush.bf16.msra.mxu0 %v7744
        %11528 = vmatpush.bf16.msra.mxu0 %v7740
        %11529 = vmatmul.bf16.gmra.mxu0 %v384
        %v11530 = vpop.f32.mrf.mxu0
        %v11531 = vadd.f32 %v11518, %v11530
        %v11532 = vpop.f32.mrf.mxu0
        %11533 = vdwg.mxu0
        %11534 = vmatpush.bf16.msra.mxu0 %v7800
        %11535 = vmatpush.bf16.msra.mxu0 %v7796
        %11536 = vmatpush.bf16.msra.mxu0 %v7792
        %11537 = vmatpush.bf16.msra.mxu0 %v7788
        %11538 = vmatpush.bf16.msra.mxu0 %v7784
        %11539 = vmatpush.bf16.msra.mxu0 %v7780
        %11540 = vmatpush.bf16.msra.mxu0 %v7776
        %11541 = vmatpush.bf16.msra.mxu0 %v7772
        %11542 = vmatmul.bf16.gmra.mxu0 %v385
        %v11543 = vpop.f32.mrf.mxu0
        %v11544 = vadd.f32 %v11531, %v11543
        %v11545 = vpop.f32.mrf.mxu0
        %11546 = vdwg.mxu0
        %11547 = vmatpush.bf16.msra.mxu0 %v7832
        %11548 = vmatpush.bf16.msra.mxu0 %v7828
        %11549 = vmatpush.bf16.msra.mxu0 %v7824
        %11550 = vmatpush.bf16.msra.mxu0 %v7820
        %11551 = vmatpush.bf16.msra.mxu0 %v7816
        %11552 = vmatpush.bf16.msra.mxu0 %v7812
        %11553 = vmatpush.bf16.msra.mxu0 %v7808
        %11554 = vmatpush.bf16.msra.mxu0 %v7804
        %11555 = vmatmul.bf16.gmra.mxu0 %v386
        %v11556 = vpop.f32.mrf.mxu0
        %v11557 = vadd.f32 %v11544, %v11556
        %v11558 = vpop.f32.mrf.mxu0
        %11559 = vdwg.mxu0
        %11560 = vmatpush.bf16.msra.mxu0 %v7864
        %11561 = vmatpush.bf16.msra.mxu0 %v7860
        %11562 = vmatpush.bf16.msra.mxu0 %v7856
        %11563 = vmatpush.bf16.msra.mxu0 %v7852
        %11564 = vmatpush.bf16.msra.mxu0 %v7848
        %11565 = vmatpush.bf16.msra.mxu0 %v7844
        %11566 = vmatpush.bf16.msra.mxu0 %v7840
        %11567 = vmatpush.bf16.msra.mxu0 %v7836
        %11568 = vmatmul.bf16.gmra.mxu0 %v387
        %v11569 = vpop.f32.mrf.mxu0
        %v11570 = vadd.f32 %v11557, %v11569
        %v11571 = vpop.f32.mrf.mxu0
        %11572 = vdwg.mxu0
        %11573 = vmatpush.bf16.msra.mxu0 %v7896
        %11574 = vmatpush.bf16.msra.mxu0 %v7892
        %11575 = vmatpush.bf16.msra.mxu0 %v7888
        %11576 = vmatpush.bf16.msra.mxu0 %v7884
        %11577 = vmatpush.bf16.msra.mxu0 %v7880
        %11578 = vmatpush.bf16.msra.mxu0 %v7876
        %11579 = vmatpush.bf16.msra.mxu0 %v7872
        %11580 = vmatpush.bf16.msra.mxu0 %v7868
        %11581 = vmatmul.bf16.gmra.mxu0 %v388
        %v11582 = vpop.f32.mrf.mxu0
        %v11583 = vadd.f32 %v11570, %v11582
        %v11584 = vpop.f32.mrf.mxu0
        %11585 = vdwg.mxu0
        %11586 = vmatpush.bf16.msra.mxu0 %v7928
        %11587 = vmatpush.bf16.msra.mxu0 %v7924
        %11588 = vmatpush.bf16.msra.mxu0 %v7920
        %11589 = vmatpush.bf16.msra.mxu0 %v7916
        %11590 = vmatpush.bf16.msra.mxu0 %v7912
        %11591 = vmatpush.bf16.msra.mxu0 %v7908
        %11592 = vmatpush.bf16.msra.mxu0 %v7904
        %11593 = vmatpush.bf16.msra.mxu0 %v7900
        %11594 = vmatmul.bf16.gmra.mxu0 %v389
        %v11595 = vpop.f32.mrf.mxu0
        %v11596 = vadd.f32 %v11583, %v11595
        %v11597 = vpop.f32.mrf.mxu0
        %11598 = vdwg.mxu0
        %11599 = vmatpush.bf16.msra.mxu0 %v7960
        %11600 = vmatpush.bf16.msra.mxu0 %v7956
        %11601 = vmatpush.bf16.msra.mxu0 %v7952
        %11602 = vmatpush.bf16.msra.mxu0 %v7948
        %11603 = vmatpush.bf16.msra.mxu0 %v7944
        %11604 = vmatpush.bf16.msra.mxu0 %v7940
        %11605 = vmatpush.bf16.msra.mxu0 %v7936
        %11606 = vmatpush.bf16.msra.mxu0 %v7932
        %11607 = vmatmul.bf16.gmra.mxu0 %v390
        %v11608 = vpop.f32.mrf.mxu0
        %v11609 = vadd.f32 %v11596, %v11608
        %v11610 = vpop.f32.mrf.mxu0
        %11611 = vdwg.mxu0
        %11612 = vmatpush.bf16.msra.mxu0 %v7992
        %11613 = vmatpush.bf16.msra.mxu0 %v7988
        %11614 = vmatpush.bf16.msra.mxu0 %v7984
        %11615 = vmatpush.bf16.msra.mxu0 %v7980
        %11616 = vmatpush.bf16.msra.mxu0 %v7976
        %11617 = vmatpush.bf16.msra.mxu0 %v7972
        %11618 = vmatpush.bf16.msra.mxu0 %v7968
        %11619 = vmatpush.bf16.msra.mxu0 %v7964
        %11620 = vmatmul.bf16.gmra.mxu0 %v391
        %v11621 = vpop.f32.mrf.mxu0
        %v11622 = vadd.f32 %v11609, %v11621
        %v11623 = vpop.f32.mrf.mxu0
        %11624 = vdwg.mxu0
        %11625 = vmatpush.bf16.msra.mxu0 %v8024
        %11626 = vmatpush.bf16.msra.mxu0 %v8020
        %11627 = vmatpush.bf16.msra.mxu0 %v8016
        %11628 = vmatpush.bf16.msra.mxu0 %v8012
        %11629 = vmatpush.bf16.msra.mxu0 %v8008
        %11630 = vmatpush.bf16.msra.mxu0 %v8004
        %11631 = vmatpush.bf16.msra.mxu0 %v8000
        %11632 = vmatpush.bf16.msra.mxu0 %v7996
        %11633 = vmatmul.bf16.gmra.mxu0 %v392
        %v11634 = vpop.f32.mrf.mxu0
        %v11635 = vadd.f32 %v11622, %v11634
        %v11636 = vpop.f32.mrf.mxu0
        %11637 = vdwg.mxu0
        %11638 = vmatpush.bf16.msra.mxu0 %v8056
        %11639 = vmatpush.bf16.msra.mxu0 %v8052
        %11640 = vmatpush.bf16.msra.mxu0 %v8048
        %11641 = vmatpush.bf16.msra.mxu0 %v8044
        %11642 = vmatpush.bf16.msra.mxu0 %v8040
        %11643 = vmatpush.bf16.msra.mxu0 %v8036
        %11644 = vmatpush.bf16.msra.mxu0 %v8032
        %11645 = vmatpush.bf16.msra.mxu0 %v8028
        %11646 = vmatmul.bf16.gmra.mxu0 %v393
        %v11647 = vpop.f32.mrf.mxu0
        %v11648 = vadd.f32 %v11635, %v11647
        %v11649 = vpop.f32.mrf.mxu0
        %11650 = vdwg.mxu0
        %11651 = vmatpush.bf16.msra.mxu0 %v8088
        %11652 = vmatpush.bf16.msra.mxu0 %v8084
        %11653 = vmatpush.bf16.msra.mxu0 %v8080
        %11654 = vmatpush.bf16.msra.mxu0 %v8076
        %11655 = vmatpush.bf16.msra.mxu0 %v8072
        %11656 = vmatpush.bf16.msra.mxu0 %v8068
        %11657 = vmatpush.bf16.msra.mxu0 %v8064
        %11658 = vmatpush.bf16.msra.mxu0 %v8060
        %11659 = vmatmul.bf16.gmra.mxu0 %v394
        %v11660 = vpop.f32.mrf.mxu0
        %v11661 = vadd.f32 %v11648, %v11660
        %v11662 = vpop.f32.mrf.mxu0
        %11663 = vdwg.mxu0
        %11664 = vmatpush.bf16.msra.mxu0 %v8120
        %11665 = vmatpush.bf16.msra.mxu0 %v8116
        %11666 = vmatpush.bf16.msra.mxu0 %v8112
        %11667 = vmatpush.bf16.msra.mxu0 %v8108
        %11668 = vmatpush.bf16.msra.mxu0 %v8104
        %11669 = vmatpush.bf16.msra.mxu0 %v8100
        %11670 = vmatpush.bf16.msra.mxu0 %v8096
        %11671 = vmatpush.bf16.msra.mxu0 %v8092
        %11672 = vmatmul.bf16.gmra.mxu0 %v395
        %v11673 = vpop.f32.mrf.mxu0
        %v11674 = vadd.f32 %v11661, %v11673
        %v11675 = vpop.f32.mrf.mxu0
        %11676 = vdwg.mxu0
        %11677 = vmatpush.bf16.msra.mxu0 %v8152
        %11678 = vmatpush.bf16.msra.mxu0 %v8148
        %11679 = vmatpush.bf16.msra.mxu0 %v8144
        %11680 = vmatpush.bf16.msra.mxu0 %v8140
        %11681 = vmatpush.bf16.msra.mxu0 %v8136
        %11682 = vmatpush.bf16.msra.mxu0 %v8132
        %11683 = vmatpush.bf16.msra.mxu0 %v8128
        %11684 = vmatpush.bf16.msra.mxu0 %v8124
        %11685 = vmatmul.bf16.gmra.mxu0 %v396
        %v11686 = vpop.f32.mrf.mxu0
        %v11687 = vadd.f32 %v11674, %v11686
        %v11688 = vpop.f32.mrf.mxu0
        %11689 = vdwg.mxu0
        %11690 = vmatpush.bf16.msra.mxu0 %v8184
        %11691 = vmatpush.bf16.msra.mxu0 %v8180
        %11692 = vmatpush.bf16.msra.mxu0 %v8176
        %11693 = vmatpush.bf16.msra.mxu0 %v8172
        %11694 = vmatpush.bf16.msra.mxu0 %v8168
        %11695 = vmatpush.bf16.msra.mxu0 %v8164
        %11696 = vmatpush.bf16.msra.mxu0 %v8160
        %11697 = vmatpush.bf16.msra.mxu0 %v8156
        %11698 = vmatmul.bf16.gmra.mxu0 %v397
        %v11699 = vpop.f32.mrf.mxu0
        %v11700 = vadd.f32 %v11687, %v11699
        %v11701 = vpop.f32.mrf.mxu0
        %11702 = vdwg.mxu0
        %11703 = vmatpush.bf16.msra.mxu0 %v8216
        %11704 = vmatpush.bf16.msra.mxu0 %v8212
        %11705 = vmatpush.bf16.msra.mxu0 %v8208
        %11706 = vmatpush.bf16.msra.mxu0 %v8204
        %11707 = vmatpush.bf16.msra.mxu0 %v8200
        %11708 = vmatpush.bf16.msra.mxu0 %v8196
        %11709 = vmatpush.bf16.msra.mxu0 %v8192
        %11710 = vmatpush.bf16.msra.mxu0 %v8188
        %11711 = vmatmul.bf16.gmra.mxu0 %v398
        %v11712 = vpop.f32.mrf.mxu0
        %v11713 = vadd.f32 %v11700, %v11712
        %v11714 = vpop.f32.mrf.mxu0
        %11715 = vdwg.mxu0
        %11716 = vmatpush.bf16.msra.mxu0 %v8248
        %11717 = vmatpush.bf16.msra.mxu0 %v8244
        %11718 = vmatpush.bf16.msra.mxu0 %v8240
        %11719 = vmatpush.bf16.msra.mxu0 %v8236
        %11720 = vmatpush.bf16.msra.mxu0 %v8232
        %11721 = vmatpush.bf16.msra.mxu0 %v8228
        %11722 = vmatpush.bf16.msra.mxu0 %v8224
        %11723 = vmatpush.bf16.msra.mxu0 %v8220
        %11724 = vmatmul.bf16.gmra.mxu0 %v399
        %v11725 = vpop.f32.mrf.mxu0
        %v11726 = vadd.f32 %v11713, %v11725
        %v11727 = vpop.f32.mrf.mxu0
        %11728 = vdwg.mxu0
        %11729 = vmatpush.bf16.msra.mxu0 %v6713
        %11730 = vmatpush.bf16.msra.mxu0 %v6709
        %11731 = vmatpush.bf16.msra.mxu0 %v6705
        %11732 = vmatpush.bf16.msra.mxu0 %v6701
        %11733 = vmatpush.bf16.msra.mxu0 %v6697
        %11734 = vmatpush.bf16.msra.mxu0 %v6693
        %11735 = vmatpush.bf16.msra.mxu0 %v6689
        %11736 = vmatpush.bf16.msra.mxu0 %v6685
        %11737 = vmatmul.bf16.gmra.mxu0 %v351
        %v11738 = vpop.f32.mrf.mxu0
        %v11739 = vadd.f32 %v1973, %v11738
        %v11740 = vpop.f32.mrf.mxu0
        %11741 = vdwg.mxu0
        %11742 = vmatpush.bf16.msra.mxu0 %v6745
        %11743 = vmatpush.bf16.msra.mxu0 %v6741
        %11744 = vmatpush.bf16.msra.mxu0 %v6737
        %11745 = vmatpush.bf16.msra.mxu0 %v6733
        %11746 = vmatpush.bf16.msra.mxu0 %v6729
        %11747 = vmatpush.bf16.msra.mxu0 %v6725
        %11748 = vmatpush.bf16.msra.mxu0 %v6721
        %11749 = vmatpush.bf16.msra.mxu0 %v6717
        %11750 = vmatmul.bf16.gmra.mxu0 %v352
        %v11751 = vpop.f32.mrf.mxu0
        %v11752 = vadd.f32 %v11739, %v11751
        %v11753 = vpop.f32.mrf.mxu0
        %11754 = vdwg.mxu0
        %11755 = vmatpush.bf16.msra.mxu0 %v6777
        %11756 = vmatpush.bf16.msra.mxu0 %v6773
        %11757 = vmatpush.bf16.msra.mxu0 %v6769
        %11758 = vmatpush.bf16.msra.mxu0 %v6765
        %11759 = vmatpush.bf16.msra.mxu0 %v6761
        %11760 = vmatpush.bf16.msra.mxu0 %v6757
        %11761 = vmatpush.bf16.msra.mxu0 %v6753
        %11762 = vmatpush.bf16.msra.mxu0 %v6749
        %11763 = vmatmul.bf16.gmra.mxu0 %v353
        %v11764 = vpop.f32.mrf.mxu0
        %v11765 = vadd.f32 %v11752, %v11764
        %v11766 = vpop.f32.mrf.mxu0
        %11767 = vdwg.mxu0
        %11768 = vmatpush.bf16.msra.mxu0 %v6809
        %11769 = vmatpush.bf16.msra.mxu0 %v6805
        %11770 = vmatpush.bf16.msra.mxu0 %v6801
        %11771 = vmatpush.bf16.msra.mxu0 %v6797
        %11772 = vmatpush.bf16.msra.mxu0 %v6793
        %11773 = vmatpush.bf16.msra.mxu0 %v6789
        %11774 = vmatpush.bf16.msra.mxu0 %v6785
        %11775 = vmatpush.bf16.msra.mxu0 %v6781
        %11776 = vmatmul.bf16.gmra.mxu0 %v354
        %v11777 = vpop.f32.mrf.mxu0
        %v11778 = vadd.f32 %v11765, %v11777
        %v11779 = vpop.f32.mrf.mxu0
        %11780 = vdwg.mxu0
        %11781 = vmatpush.bf16.msra.mxu0 %v6841
        %11782 = vmatpush.bf16.msra.mxu0 %v6837
        %11783 = vmatpush.bf16.msra.mxu0 %v6833
        %11784 = vmatpush.bf16.msra.mxu0 %v6829
        %11785 = vmatpush.bf16.msra.mxu0 %v6825
        %11786 = vmatpush.bf16.msra.mxu0 %v6821
        %11787 = vmatpush.bf16.msra.mxu0 %v6817
        %11788 = vmatpush.bf16.msra.mxu0 %v6813
        %11789 = vmatmul.bf16.gmra.mxu0 %v355
        %v11790 = vpop.f32.mrf.mxu0
        %v11791 = vadd.f32 %v11778, %v11790
        %v11792 = vpop.f32.mrf.mxu0
        %11793 = vdwg.mxu0
        %11794 = vmatpush.bf16.msra.mxu0 %v6873
        %11795 = vmatpush.bf16.msra.mxu0 %v6869
        %11796 = vmatpush.bf16.msra.mxu0 %v6865
        %11797 = vmatpush.bf16.msra.mxu0 %v6861
        %11798 = vmatpush.bf16.msra.mxu0 %v6857
        %11799 = vmatpush.bf16.msra.mxu0 %v6853
        %11800 = vmatpush.bf16.msra.mxu0 %v6849
        %11801 = vmatpush.bf16.msra.mxu0 %v6845
        %11802 = vmatmul.bf16.gmra.mxu0 %v356
        %v11803 = vpop.f32.mrf.mxu0
        %v11804 = vadd.f32 %v11791, %v11803
        %v11805 = vpop.f32.mrf.mxu0
        %11806 = vdwg.mxu0
        %11807 = vmatpush.bf16.msra.mxu0 %v6905
        %11808 = vmatpush.bf16.msra.mxu0 %v6901
        %11809 = vmatpush.bf16.msra.mxu0 %v6897
        %11810 = vmatpush.bf16.msra.mxu0 %v6893
        %11811 = vmatpush.bf16.msra.mxu0 %v6889
        %11812 = vmatpush.bf16.msra.mxu0 %v6885
        %11813 = vmatpush.bf16.msra.mxu0 %v6881
        %11814 = vmatpush.bf16.msra.mxu0 %v6877
        %11815 = vmatmul.bf16.gmra.mxu0 %v357
        %v11816 = vpop.f32.mrf.mxu0
        %v11817 = vadd.f32 %v11804, %v11816
        %v11818 = vpop.f32.mrf.mxu0
        %11819 = vdwg.mxu0
        %11820 = vmatpush.bf16.msra.mxu0 %v6937
        %11821 = vmatpush.bf16.msra.mxu0 %v6933
        %11822 = vmatpush.bf16.msra.mxu0 %v6929
        %11823 = vmatpush.bf16.msra.mxu0 %v6925
        %11824 = vmatpush.bf16.msra.mxu0 %v6921
        %11825 = vmatpush.bf16.msra.mxu0 %v6917
        %11826 = vmatpush.bf16.msra.mxu0 %v6913
        %11827 = vmatpush.bf16.msra.mxu0 %v6909
        %11828 = vmatmul.bf16.gmra.mxu0 %v358
        %v11829 = vpop.f32.mrf.mxu0
        %v11830 = vadd.f32 %v11817, %v11829
        %v11831 = vpop.f32.mrf.mxu0
        %11832 = vdwg.mxu0
        %11833 = vmatpush.bf16.msra.mxu0 %v6969
        %11834 = vmatpush.bf16.msra.mxu0 %v6965
        %11835 = vmatpush.bf16.msra.mxu0 %v6961
        %11836 = vmatpush.bf16.msra.mxu0 %v6957
        %11837 = vmatpush.bf16.msra.mxu0 %v6953
        %11838 = vmatpush.bf16.msra.mxu0 %v6949
        %11839 = vmatpush.bf16.msra.mxu0 %v6945
        %11840 = vmatpush.bf16.msra.mxu0 %v6941
        %11841 = vmatmul.bf16.gmra.mxu0 %v359
        %v11842 = vpop.f32.mrf.mxu0
        %v11843 = vadd.f32 %v11830, %v11842
        %v11844 = vpop.f32.mrf.mxu0
        %11845 = vdwg.mxu0
        %11846 = vmatpush.bf16.msra.mxu0 %v7001
        %11847 = vmatpush.bf16.msra.mxu0 %v6997
        %11848 = vmatpush.bf16.msra.mxu0 %v6993
        %11849 = vmatpush.bf16.msra.mxu0 %v6989
        %11850 = vmatpush.bf16.msra.mxu0 %v6985
        %11851 = vmatpush.bf16.msra.mxu0 %v6981
        %11852 = vmatpush.bf16.msra.mxu0 %v6977
        %11853 = vmatpush.bf16.msra.mxu0 %v6973
        %11854 = vmatmul.bf16.gmra.mxu0 %v360
        %v11855 = vpop.f32.mrf.mxu0
        %v11856 = vadd.f32 %v11843, %v11855
        %v11857 = vpop.f32.mrf.mxu0
        %11858 = vdwg.mxu0
        %11859 = vmatpush.bf16.msra.mxu0 %v7033
        %11860 = vmatpush.bf16.msra.mxu0 %v7029
        %11861 = vmatpush.bf16.msra.mxu0 %v7025
        %11862 = vmatpush.bf16.msra.mxu0 %v7021
        %11863 = vmatpush.bf16.msra.mxu0 %v7017
        %11864 = vmatpush.bf16.msra.mxu0 %v7013
        %11865 = vmatpush.bf16.msra.mxu0 %v7009
        %11866 = vmatpush.bf16.msra.mxu0 %v7005
        %11867 = vmatmul.bf16.gmra.mxu0 %v361
        %v11868 = vpop.f32.mrf.mxu0
        %v11869 = vadd.f32 %v11856, %v11868
        %v11870 = vpop.f32.mrf.mxu0
        %11871 = vdwg.mxu0
        %11872 = vmatpush.bf16.msra.mxu0 %v7065
        %11873 = vmatpush.bf16.msra.mxu0 %v7061
        %11874 = vmatpush.bf16.msra.mxu0 %v7057
        %11875 = vmatpush.bf16.msra.mxu0 %v7053
        %11876 = vmatpush.bf16.msra.mxu0 %v7049
        %11877 = vmatpush.bf16.msra.mxu0 %v7045
        %11878 = vmatpush.bf16.msra.mxu0 %v7041
        %11879 = vmatpush.bf16.msra.mxu0 %v7037
        %11880 = vmatmul.bf16.gmra.mxu0 %v362
        %v11881 = vpop.f32.mrf.mxu0
        %v11882 = vadd.f32 %v11869, %v11881
        %v11883 = vpop.f32.mrf.mxu0
        %11884 = vdwg.mxu0
        %11885 = vmatpush.bf16.msra.mxu0 %v7097
        %11886 = vmatpush.bf16.msra.mxu0 %v7093
        %11887 = vmatpush.bf16.msra.mxu0 %v7089
        %11888 = vmatpush.bf16.msra.mxu0 %v7085
        %11889 = vmatpush.bf16.msra.mxu0 %v7081
        %11890 = vmatpush.bf16.msra.mxu0 %v7077
        %11891 = vmatpush.bf16.msra.mxu0 %v7073
        %11892 = vmatpush.bf16.msra.mxu0 %v7069
        %11893 = vmatmul.bf16.gmra.mxu0 %v363
        %v11894 = vpop.f32.mrf.mxu0
        %v11895 = vadd.f32 %v11882, %v11894
        %v11896 = vpop.f32.mrf.mxu0
        %11897 = vdwg.mxu0
        %11898 = vmatpush.bf16.msra.mxu0 %v7129
        %11899 = vmatpush.bf16.msra.mxu0 %v7125
        %11900 = vmatpush.bf16.msra.mxu0 %v7121
        %11901 = vmatpush.bf16.msra.mxu0 %v7117
        %11902 = vmatpush.bf16.msra.mxu0 %v7113
        %11903 = vmatpush.bf16.msra.mxu0 %v7109
        %11904 = vmatpush.bf16.msra.mxu0 %v7105
        %11905 = vmatpush.bf16.msra.mxu0 %v7101
        %11906 = vmatmul.bf16.gmra.mxu0 %v364
        %v11907 = vpop.f32.mrf.mxu0
        %v11908 = vadd.f32 %v11895, %v11907
        %v11909 = vpop.f32.mrf.mxu0
        %11910 = vdwg.mxu0
        %11911 = vmatpush.bf16.msra.mxu0 %v7161
        %11912 = vmatpush.bf16.msra.mxu0 %v7157
        %11913 = vmatpush.bf16.msra.mxu0 %v7153
        %11914 = vmatpush.bf16.msra.mxu0 %v7149
        %11915 = vmatpush.bf16.msra.mxu0 %v7145
        %11916 = vmatpush.bf16.msra.mxu0 %v7141
        %11917 = vmatpush.bf16.msra.mxu0 %v7137
        %11918 = vmatpush.bf16.msra.mxu0 %v7133
        %11919 = vmatmul.bf16.gmra.mxu0 %v365
        %v11920 = vpop.f32.mrf.mxu0
        %v11921 = vadd.f32 %v11908, %v11920
        %v11922 = vpop.f32.mrf.mxu0
        %11923 = vdwg.mxu0
        %11924 = vmatpush.bf16.msra.mxu0 %v7193
        %11925 = vmatpush.bf16.msra.mxu0 %v7189
        %11926 = vmatpush.bf16.msra.mxu0 %v7185
        %11927 = vmatpush.bf16.msra.mxu0 %v7181
        %11928 = vmatpush.bf16.msra.mxu0 %v7177
        %11929 = vmatpush.bf16.msra.mxu0 %v7173
        %11930 = vmatpush.bf16.msra.mxu0 %v7169
        %11931 = vmatpush.bf16.msra.mxu0 %v7165
        %11932 = vmatmul.bf16.gmra.mxu0 %v366
        %v11933 = vpop.f32.mrf.mxu0
        %v11934 = vadd.f32 %v11921, %v11933
        %v11935 = vpop.f32.mrf.mxu0
        %11936 = vdwg.mxu0
        %11937 = vmatpush.bf16.msra.mxu0 %v7225
        %11938 = vmatpush.bf16.msra.mxu0 %v7221
        %11939 = vmatpush.bf16.msra.mxu0 %v7217
        %11940 = vmatpush.bf16.msra.mxu0 %v7213
        %11941 = vmatpush.bf16.msra.mxu0 %v7209
        %11942 = vmatpush.bf16.msra.mxu0 %v7205
        %11943 = vmatpush.bf16.msra.mxu0 %v7201
        %11944 = vmatpush.bf16.msra.mxu0 %v7197
        %11945 = vmatmul.bf16.gmra.mxu0 %v367
        %v11946 = vpop.f32.mrf.mxu0
        %v11947 = vadd.f32 %v11934, %v11946
        %v11948 = vpop.f32.mrf.mxu0
        %11949 = vdwg.mxu0
        %11950 = vmatpush.bf16.msra.mxu0 %v7257
        %11951 = vmatpush.bf16.msra.mxu0 %v7253
        %11952 = vmatpush.bf16.msra.mxu0 %v7249
        %11953 = vmatpush.bf16.msra.mxu0 %v7245
        %11954 = vmatpush.bf16.msra.mxu0 %v7241
        %11955 = vmatpush.bf16.msra.mxu0 %v7237
        %11956 = vmatpush.bf16.msra.mxu0 %v7233
        %11957 = vmatpush.bf16.msra.mxu0 %v7229
        %11958 = vmatmul.bf16.gmra.mxu0 %v368
        %v11959 = vpop.f32.mrf.mxu0
        %v11960 = vadd.f32 %v11947, %v11959
        %v11961 = vpop.f32.mrf.mxu0
        %11962 = vdwg.mxu0
        %11963 = vmatpush.bf16.msra.mxu0 %v7289
        %11964 = vmatpush.bf16.msra.mxu0 %v7285
        %11965 = vmatpush.bf16.msra.mxu0 %v7281
        %11966 = vmatpush.bf16.msra.mxu0 %v7277
        %11967 = vmatpush.bf16.msra.mxu0 %v7273
        %11968 = vmatpush.bf16.msra.mxu0 %v7269
        %11969 = vmatpush.bf16.msra.mxu0 %v7265
        %11970 = vmatpush.bf16.msra.mxu0 %v7261
        %11971 = vmatmul.bf16.gmra.mxu0 %v369
        %v11972 = vpop.f32.mrf.mxu0
        %v11973 = vadd.f32 %v11960, %v11972
        %v11974 = vpop.f32.mrf.mxu0
        %11975 = vdwg.mxu0
        %11976 = vmatpush.bf16.msra.mxu0 %v7321
        %11977 = vmatpush.bf16.msra.mxu0 %v7317
        %11978 = vmatpush.bf16.msra.mxu0 %v7313
        %11979 = vmatpush.bf16.msra.mxu0 %v7309
        %11980 = vmatpush.bf16.msra.mxu0 %v7305
        %11981 = vmatpush.bf16.msra.mxu0 %v7301
        %11982 = vmatpush.bf16.msra.mxu0 %v7297
        %11983 = vmatpush.bf16.msra.mxu0 %v7293
        %11984 = vmatmul.bf16.gmra.mxu0 %v370
        %v11985 = vpop.f32.mrf.mxu0
        %v11986 = vadd.f32 %v11973, %v11985
        %v11987 = vpop.f32.mrf.mxu0
        %11988 = vdwg.mxu0
        %11989 = vmatpush.bf16.msra.mxu0 %v7353
        %11990 = vmatpush.bf16.msra.mxu0 %v7349
        %11991 = vmatpush.bf16.msra.mxu0 %v7345
        %11992 = vmatpush.bf16.msra.mxu0 %v7341
        %11993 = vmatpush.bf16.msra.mxu0 %v7337
        %11994 = vmatpush.bf16.msra.mxu0 %v7333
        %11995 = vmatpush.bf16.msra.mxu0 %v7329
        %11996 = vmatpush.bf16.msra.mxu0 %v7325
        %11997 = vmatmul.bf16.gmra.mxu0 %v371
        %v11998 = vpop.f32.mrf.mxu0
        %v11999 = vadd.f32 %v11986, %v11998
        %v12000 = vpop.f32.mrf.mxu0
        %12001 = vdwg.mxu0
        %12002 = vmatpush.bf16.msra.mxu0 %v7385
        %12003 = vmatpush.bf16.msra.mxu0 %v7381
        %12004 = vmatpush.bf16.msra.mxu0 %v7377
        %12005 = vmatpush.bf16.msra.mxu0 %v7373
        %12006 = vmatpush.bf16.msra.mxu0 %v7369
        %12007 = vmatpush.bf16.msra.mxu0 %v7365
        %12008 = vmatpush.bf16.msra.mxu0 %v7361
        %12009 = vmatpush.bf16.msra.mxu0 %v7357
        %12010 = vmatmul.bf16.gmra.mxu0 %v372
        %v12011 = vpop.f32.mrf.mxu0
        %v12012 = vadd.f32 %v11999, %v12011
        %v12013 = vpop.f32.mrf.mxu0
        %12014 = vdwg.mxu0
        %12015 = vmatpush.bf16.msra.mxu0 %v7417
        %12016 = vmatpush.bf16.msra.mxu0 %v7413
        %12017 = vmatpush.bf16.msra.mxu0 %v7409
        %12018 = vmatpush.bf16.msra.mxu0 %v7405
        %12019 = vmatpush.bf16.msra.mxu0 %v7401
        %12020 = vmatpush.bf16.msra.mxu0 %v7397
        %12021 = vmatpush.bf16.msra.mxu0 %v7393
        %12022 = vmatpush.bf16.msra.mxu0 %v7389
        %12023 = vmatmul.bf16.gmra.mxu0 %v373
        %v12024 = vpop.f32.mrf.mxu0
        %v12025 = vadd.f32 %v12012, %v12024
        %v12026 = vpop.f32.mrf.mxu0
        %12027 = vdwg.mxu0
        %12028 = vmatpush.bf16.msra.mxu0 %v7449
        %12029 = vmatpush.bf16.msra.mxu0 %v7445
        %12030 = vmatpush.bf16.msra.mxu0 %v7441
        %12031 = vmatpush.bf16.msra.mxu0 %v7437
        %12032 = vmatpush.bf16.msra.mxu0 %v7433
        %12033 = vmatpush.bf16.msra.mxu0 %v7429
        %12034 = vmatpush.bf16.msra.mxu0 %v7425
        %12035 = vmatpush.bf16.msra.mxu0 %v7421
        %12036 = vmatmul.bf16.gmra.mxu0 %v374
        %v12037 = vpop.f32.mrf.mxu0
        %v12038 = vadd.f32 %v12025, %v12037
        %v12039 = vpop.f32.mrf.mxu0
        %12040 = vdwg.mxu0
        %12041 = vmatpush.bf16.msra.mxu0 %v7481
        %12042 = vmatpush.bf16.msra.mxu0 %v7477
        %12043 = vmatpush.bf16.msra.mxu0 %v7473
        %12044 = vmatpush.bf16.msra.mxu0 %v7469
        %12045 = vmatpush.bf16.msra.mxu0 %v7465
        %12046 = vmatpush.bf16.msra.mxu0 %v7461
        %12047 = vmatpush.bf16.msra.mxu0 %v7457
        %12048 = vmatpush.bf16.msra.mxu0 %v7453
        %12049 = vmatmul.bf16.gmra.mxu0 %v375
        %v12050 = vpop.f32.mrf.mxu0
        %v12051 = vadd.f32 %v12038, %v12050
        %v12052 = vpop.f32.mrf.mxu0
        %12053 = vdwg.mxu0
        %12054 = vmatpush.bf16.msra.mxu0 %v7513
        %12055 = vmatpush.bf16.msra.mxu0 %v7509
        %12056 = vmatpush.bf16.msra.mxu0 %v7505
        %12057 = vmatpush.bf16.msra.mxu0 %v7501
        %12058 = vmatpush.bf16.msra.mxu0 %v7497
        %12059 = vmatpush.bf16.msra.mxu0 %v7493
        %12060 = vmatpush.bf16.msra.mxu0 %v7489
        %12061 = vmatpush.bf16.msra.mxu0 %v7485
        %12062 = vmatmul.bf16.gmra.mxu0 %v376
        %v12063 = vpop.f32.mrf.mxu0
        %v12064 = vadd.f32 %v12051, %v12063
        %v12065 = vpop.f32.mrf.mxu0
        %12066 = vdwg.mxu0
        %12067 = vmatpush.bf16.msra.mxu0 %v7545
        %12068 = vmatpush.bf16.msra.mxu0 %v7541
        %12069 = vmatpush.bf16.msra.mxu0 %v7537
        %12070 = vmatpush.bf16.msra.mxu0 %v7533
        %12071 = vmatpush.bf16.msra.mxu0 %v7529
        %12072 = vmatpush.bf16.msra.mxu0 %v7525
        %12073 = vmatpush.bf16.msra.mxu0 %v7521
        %12074 = vmatpush.bf16.msra.mxu0 %v7517
        %12075 = vmatmul.bf16.gmra.mxu0 %v377
        %v12076 = vpop.f32.mrf.mxu0
        %v12077 = vadd.f32 %v12064, %v12076
        %v12078 = vpop.f32.mrf.mxu0
        %12079 = vdwg.mxu0
        %12080 = vmatpush.bf16.msra.mxu0 %v7577
        %12081 = vmatpush.bf16.msra.mxu0 %v7573
        %12082 = vmatpush.bf16.msra.mxu0 %v7569
        %12083 = vmatpush.bf16.msra.mxu0 %v7565
        %12084 = vmatpush.bf16.msra.mxu0 %v7561
        %12085 = vmatpush.bf16.msra.mxu0 %v7557
        %12086 = vmatpush.bf16.msra.mxu0 %v7553
        %12087 = vmatpush.bf16.msra.mxu0 %v7549
        %12088 = vmatmul.bf16.gmra.mxu0 %v378
        %v12089 = vpop.f32.mrf.mxu0
        %v12090 = vadd.f32 %v12077, %v12089
        %v12091 = vpop.f32.mrf.mxu0
        %12092 = vdwg.mxu0
        %12093 = vmatpush.bf16.msra.mxu0 %v7609
        %12094 = vmatpush.bf16.msra.mxu0 %v7605
        %12095 = vmatpush.bf16.msra.mxu0 %v7601
        %12096 = vmatpush.bf16.msra.mxu0 %v7597
        %12097 = vmatpush.bf16.msra.mxu0 %v7593
        %12098 = vmatpush.bf16.msra.mxu0 %v7589
        %12099 = vmatpush.bf16.msra.mxu0 %v7585
        %12100 = vmatpush.bf16.msra.mxu0 %v7581
        %12101 = vmatmul.bf16.gmra.mxu0 %v379
        %v12102 = vpop.f32.mrf.mxu0
        %v12103 = vadd.f32 %v12090, %v12102
        %v12104 = vpop.f32.mrf.mxu0
        %12105 = vdwg.mxu0
        %12106 = vmatpush.bf16.msra.mxu0 %v7641
        %12107 = vmatpush.bf16.msra.mxu0 %v7637
        %12108 = vmatpush.bf16.msra.mxu0 %v7633
        %12109 = vmatpush.bf16.msra.mxu0 %v7629
        %12110 = vmatpush.bf16.msra.mxu0 %v7625
        %12111 = vmatpush.bf16.msra.mxu0 %v7621
        %12112 = vmatpush.bf16.msra.mxu0 %v7617
        %12113 = vmatpush.bf16.msra.mxu0 %v7613
        %12114 = vmatmul.bf16.gmra.mxu0 %v380
        %v12115 = vpop.f32.mrf.mxu0
        %v12116 = vadd.f32 %v12103, %v12115
        %v12117 = vpop.f32.mrf.mxu0
        %12118 = vdwg.mxu0
        %12119 = vmatpush.bf16.msra.mxu0 %v7673
        %12120 = vmatpush.bf16.msra.mxu0 %v7669
        %12121 = vmatpush.bf16.msra.mxu0 %v7665
        %12122 = vmatpush.bf16.msra.mxu0 %v7661
        %12123 = vmatpush.bf16.msra.mxu0 %v7657
        %12124 = vmatpush.bf16.msra.mxu0 %v7653
        %12125 = vmatpush.bf16.msra.mxu0 %v7649
        %12126 = vmatpush.bf16.msra.mxu0 %v7645
        %12127 = vmatmul.bf16.gmra.mxu0 %v381
        %v12128 = vpop.f32.mrf.mxu0
        %v12129 = vadd.f32 %v12116, %v12128
        %v12130 = vpop.f32.mrf.mxu0
        %12131 = vdwg.mxu0
        %12132 = vmatpush.bf16.msra.mxu0 %v7705
        %12133 = vmatpush.bf16.msra.mxu0 %v7701
        %12134 = vmatpush.bf16.msra.mxu0 %v7697
        %12135 = vmatpush.bf16.msra.mxu0 %v7693
        %12136 = vmatpush.bf16.msra.mxu0 %v7689
        %12137 = vmatpush.bf16.msra.mxu0 %v7685
        %12138 = vmatpush.bf16.msra.mxu0 %v7681
        %12139 = vmatpush.bf16.msra.mxu0 %v7677
        %12140 = vmatmul.bf16.gmra.mxu0 %v382
        %v12141 = vpop.f32.mrf.mxu0
        %v12142 = vadd.f32 %v12129, %v12141
        %v12143 = vpop.f32.mrf.mxu0
        %12144 = vdwg.mxu0
        %12145 = vmatpush.bf16.msra.mxu0 %v7737
        %12146 = vmatpush.bf16.msra.mxu0 %v7733
        %12147 = vmatpush.bf16.msra.mxu0 %v7729
        %12148 = vmatpush.bf16.msra.mxu0 %v7725
        %12149 = vmatpush.bf16.msra.mxu0 %v7721
        %12150 = vmatpush.bf16.msra.mxu0 %v7717
        %12151 = vmatpush.bf16.msra.mxu0 %v7713
        %12152 = vmatpush.bf16.msra.mxu0 %v7709
        %12153 = vmatmul.bf16.gmra.mxu0 %v383
        %v12154 = vpop.f32.mrf.mxu0
        %v12155 = vadd.f32 %v12142, %v12154
        %v12156 = vpop.f32.mrf.mxu0
        %12157 = vdwg.mxu0
        %12158 = vmatpush.bf16.msra.mxu0 %v7769
        %12159 = vmatpush.bf16.msra.mxu0 %v7765
        %12160 = vmatpush.bf16.msra.mxu0 %v7761
        %12161 = vmatpush.bf16.msra.mxu0 %v7757
        %12162 = vmatpush.bf16.msra.mxu0 %v7753
        %12163 = vmatpush.bf16.msra.mxu0 %v7749
        %12164 = vmatpush.bf16.msra.mxu0 %v7745
        %12165 = vmatpush.bf16.msra.mxu0 %v7741
        %12166 = vmatmul.bf16.gmra.mxu0 %v384
        %v12167 = vpop.f32.mrf.mxu0
        %v12168 = vadd.f32 %v12155, %v12167
        %v12169 = vpop.f32.mrf.mxu0
        %12170 = vdwg.mxu0
        %12171 = vmatpush.bf16.msra.mxu0 %v7801
        %12172 = vmatpush.bf16.msra.mxu0 %v7797
        %12173 = vmatpush.bf16.msra.mxu0 %v7793
        %12174 = vmatpush.bf16.msra.mxu0 %v7789
        %12175 = vmatpush.bf16.msra.mxu0 %v7785
        %12176 = vmatpush.bf16.msra.mxu0 %v7781
        %12177 = vmatpush.bf16.msra.mxu0 %v7777
        %12178 = vmatpush.bf16.msra.mxu0 %v7773
        %12179 = vmatmul.bf16.gmra.mxu0 %v385
        %v12180 = vpop.f32.mrf.mxu0
        %v12181 = vadd.f32 %v12168, %v12180
        %v12182 = vpop.f32.mrf.mxu0
        %12183 = vdwg.mxu0
        %12184 = vmatpush.bf16.msra.mxu0 %v7833
        %12185 = vmatpush.bf16.msra.mxu0 %v7829
        %12186 = vmatpush.bf16.msra.mxu0 %v7825
        %12187 = vmatpush.bf16.msra.mxu0 %v7821
        %12188 = vmatpush.bf16.msra.mxu0 %v7817
        %12189 = vmatpush.bf16.msra.mxu0 %v7813
        %12190 = vmatpush.bf16.msra.mxu0 %v7809
        %12191 = vmatpush.bf16.msra.mxu0 %v7805
        %12192 = vmatmul.bf16.gmra.mxu0 %v386
        %v12193 = vpop.f32.mrf.mxu0
        %v12194 = vadd.f32 %v12181, %v12193
        %v12195 = vpop.f32.mrf.mxu0
        %12196 = vdwg.mxu0
        %12197 = vmatpush.bf16.msra.mxu0 %v7865
        %12198 = vmatpush.bf16.msra.mxu0 %v7861
        %12199 = vmatpush.bf16.msra.mxu0 %v7857
        %12200 = vmatpush.bf16.msra.mxu0 %v7853
        %12201 = vmatpush.bf16.msra.mxu0 %v7849
        %12202 = vmatpush.bf16.msra.mxu0 %v7845
        %12203 = vmatpush.bf16.msra.mxu0 %v7841
        %12204 = vmatpush.bf16.msra.mxu0 %v7837
        %12205 = vmatmul.bf16.gmra.mxu0 %v387
        %v12206 = vpop.f32.mrf.mxu0
        %v12207 = vadd.f32 %v12194, %v12206
        %v12208 = vpop.f32.mrf.mxu0
        %12209 = vdwg.mxu0
        %12210 = vmatpush.bf16.msra.mxu0 %v7897
        %12211 = vmatpush.bf16.msra.mxu0 %v7893
        %12212 = vmatpush.bf16.msra.mxu0 %v7889
        %12213 = vmatpush.bf16.msra.mxu0 %v7885
        %12214 = vmatpush.bf16.msra.mxu0 %v7881
        %12215 = vmatpush.bf16.msra.mxu0 %v7877
        %12216 = vmatpush.bf16.msra.mxu0 %v7873
        %12217 = vmatpush.bf16.msra.mxu0 %v7869
        %12218 = vmatmul.bf16.gmra.mxu0 %v388
        %v12219 = vpop.f32.mrf.mxu0
        %v12220 = vadd.f32 %v12207, %v12219
        %v12221 = vpop.f32.mrf.mxu0
        %12222 = vdwg.mxu0
        %12223 = vmatpush.bf16.msra.mxu0 %v7929
        %12224 = vmatpush.bf16.msra.mxu0 %v7925
        %12225 = vmatpush.bf16.msra.mxu0 %v7921
        %12226 = vmatpush.bf16.msra.mxu0 %v7917
        %12227 = vmatpush.bf16.msra.mxu0 %v7913
        %12228 = vmatpush.bf16.msra.mxu0 %v7909
        %12229 = vmatpush.bf16.msra.mxu0 %v7905
        %12230 = vmatpush.bf16.msra.mxu0 %v7901
        %12231 = vmatmul.bf16.gmra.mxu0 %v389
        %v12232 = vpop.f32.mrf.mxu0
        %v12233 = vadd.f32 %v12220, %v12232
        %v12234 = vpop.f32.mrf.mxu0
        %12235 = vdwg.mxu0
        %12236 = vmatpush.bf16.msra.mxu0 %v7961
        %12237 = vmatpush.bf16.msra.mxu0 %v7957
        %12238 = vmatpush.bf16.msra.mxu0 %v7953
        %12239 = vmatpush.bf16.msra.mxu0 %v7949
        %12240 = vmatpush.bf16.msra.mxu0 %v7945
        %12241 = vmatpush.bf16.msra.mxu0 %v7941
        %12242 = vmatpush.bf16.msra.mxu0 %v7937
        %12243 = vmatpush.bf16.msra.mxu0 %v7933
        %12244 = vmatmul.bf16.gmra.mxu0 %v390
        %v12245 = vpop.f32.mrf.mxu0
        %v12246 = vadd.f32 %v12233, %v12245
        %v12247 = vpop.f32.mrf.mxu0
        %12248 = vdwg.mxu0
        %12249 = vmatpush.bf16.msra.mxu0 %v7993
        %12250 = vmatpush.bf16.msra.mxu0 %v7989
        %12251 = vmatpush.bf16.msra.mxu0 %v7985
        %12252 = vmatpush.bf16.msra.mxu0 %v7981
        %12253 = vmatpush.bf16.msra.mxu0 %v7977
        %12254 = vmatpush.bf16.msra.mxu0 %v7973
        %12255 = vmatpush.bf16.msra.mxu0 %v7969
        %12256 = vmatpush.bf16.msra.mxu0 %v7965
        %12257 = vmatmul.bf16.gmra.mxu0 %v391
        %v12258 = vpop.f32.mrf.mxu0
        %v12259 = vadd.f32 %v12246, %v12258
        %v12260 = vpop.f32.mrf.mxu0
        %12261 = vdwg.mxu0
        %12262 = vmatpush.bf16.msra.mxu0 %v8025
        %12263 = vmatpush.bf16.msra.mxu0 %v8021
        %12264 = vmatpush.bf16.msra.mxu0 %v8017
        %12265 = vmatpush.bf16.msra.mxu0 %v8013
        %12266 = vmatpush.bf16.msra.mxu0 %v8009
        %12267 = vmatpush.bf16.msra.mxu0 %v8005
        %12268 = vmatpush.bf16.msra.mxu0 %v8001
        %12269 = vmatpush.bf16.msra.mxu0 %v7997
        %12270 = vmatmul.bf16.gmra.mxu0 %v392
        %v12271 = vpop.f32.mrf.mxu0
        %v12272 = vadd.f32 %v12259, %v12271
        %v12273 = vpop.f32.mrf.mxu0
        %12274 = vdwg.mxu0
        %12275 = vmatpush.bf16.msra.mxu0 %v8057
        %12276 = vmatpush.bf16.msra.mxu0 %v8053
        %12277 = vmatpush.bf16.msra.mxu0 %v8049
        %12278 = vmatpush.bf16.msra.mxu0 %v8045
        %12279 = vmatpush.bf16.msra.mxu0 %v8041
        %12280 = vmatpush.bf16.msra.mxu0 %v8037
        %12281 = vmatpush.bf16.msra.mxu0 %v8033
        %12282 = vmatpush.bf16.msra.mxu0 %v8029
        %12283 = vmatmul.bf16.gmra.mxu0 %v393
        %v12284 = vpop.f32.mrf.mxu0
        %v12285 = vadd.f32 %v12272, %v12284
        %v12286 = vpop.f32.mrf.mxu0
        %12287 = vdwg.mxu0
        %12288 = vmatpush.bf16.msra.mxu0 %v8089
        %12289 = vmatpush.bf16.msra.mxu0 %v8085
        %12290 = vmatpush.bf16.msra.mxu0 %v8081
        %12291 = vmatpush.bf16.msra.mxu0 %v8077
        %12292 = vmatpush.bf16.msra.mxu0 %v8073
        %12293 = vmatpush.bf16.msra.mxu0 %v8069
        %12294 = vmatpush.bf16.msra.mxu0 %v8065
        %12295 = vmatpush.bf16.msra.mxu0 %v8061
        %12296 = vmatmul.bf16.gmra.mxu0 %v394
        %v12297 = vpop.f32.mrf.mxu0
        %v12298 = vadd.f32 %v12285, %v12297
        %v12299 = vpop.f32.mrf.mxu0
        %12300 = vdwg.mxu0
        %12301 = vmatpush.bf16.msra.mxu0 %v8121
        %12302 = vmatpush.bf16.msra.mxu0 %v8117
        %12303 = vmatpush.bf16.msra.mxu0 %v8113
        %12304 = vmatpush.bf16.msra.mxu0 %v8109
        %12305 = vmatpush.bf16.msra.mxu0 %v8105
        %12306 = vmatpush.bf16.msra.mxu0 %v8101
        %12307 = vmatpush.bf16.msra.mxu0 %v8097
        %12308 = vmatpush.bf16.msra.mxu0 %v8093
        %12309 = vmatmul.bf16.gmra.mxu0 %v395
        %v12310 = vpop.f32.mrf.mxu0
        %v12311 = vadd.f32 %v12298, %v12310
        %v12312 = vpop.f32.mrf.mxu0
        %12313 = vdwg.mxu0
        %12314 = vmatpush.bf16.msra.mxu0 %v8153
        %12315 = vmatpush.bf16.msra.mxu0 %v8149
        %12316 = vmatpush.bf16.msra.mxu0 %v8145
        %12317 = vmatpush.bf16.msra.mxu0 %v8141
        %12318 = vmatpush.bf16.msra.mxu0 %v8137
        %12319 = vmatpush.bf16.msra.mxu0 %v8133
        %12320 = vmatpush.bf16.msra.mxu0 %v8129
        %12321 = vmatpush.bf16.msra.mxu0 %v8125
        %12322 = vmatmul.bf16.gmra.mxu0 %v396
        %v12323 = vpop.f32.mrf.mxu0
        %v12324 = vadd.f32 %v12311, %v12323
        %v12325 = vpop.f32.mrf.mxu0
        %12326 = vdwg.mxu0
        %12327 = vmatpush.bf16.msra.mxu0 %v8185
        %12328 = vmatpush.bf16.msra.mxu0 %v8181
        %12329 = vmatpush.bf16.msra.mxu0 %v8177
        %12330 = vmatpush.bf16.msra.mxu0 %v8173
        %12331 = vmatpush.bf16.msra.mxu0 %v8169
        %12332 = vmatpush.bf16.msra.mxu0 %v8165
        %12333 = vmatpush.bf16.msra.mxu0 %v8161
        %12334 = vmatpush.bf16.msra.mxu0 %v8157
        %12335 = vmatmul.bf16.gmra.mxu0 %v397
        %v12336 = vpop.f32.mrf.mxu0
        %v12337 = vadd.f32 %v12324, %v12336
        %v12338 = vpop.f32.mrf.mxu0
        %12339 = vdwg.mxu0
        %12340 = vmatpush.bf16.msra.mxu0 %v8217
        %12341 = vmatpush.bf16.msra.mxu0 %v8213
        %12342 = vmatpush.bf16.msra.mxu0 %v8209
        %12343 = vmatpush.bf16.msra.mxu0 %v8205
        %12344 = vmatpush.bf16.msra.mxu0 %v8201
        %12345 = vmatpush.bf16.msra.mxu0 %v8197
        %12346 = vmatpush.bf16.msra.mxu0 %v8193
        %12347 = vmatpush.bf16.msra.mxu0 %v8189
        %12348 = vmatmul.bf16.gmra.mxu0 %v398
        %v12349 = vpop.f32.mrf.mxu0
        %v12350 = vadd.f32 %v12337, %v12349
        %v12351 = vpop.f32.mrf.mxu0
        %12352 = vdwg.mxu0
        %12353 = vmatpush.bf16.msra.mxu0 %v8249
        %12354 = vmatpush.bf16.msra.mxu0 %v8245
        %12355 = vmatpush.bf16.msra.mxu0 %v8241
        %12356 = vmatpush.bf16.msra.mxu0 %v8237
        %12357 = vmatpush.bf16.msra.mxu0 %v8233
        %12358 = vmatpush.bf16.msra.mxu0 %v8229
        %12359 = vmatpush.bf16.msra.mxu0 %v8225
        %12360 = vmatpush.bf16.msra.mxu0 %v8221
        %12361 = vmatmul.bf16.gmra.mxu0 %v399
        %v12362 = vpop.f32.mrf.mxu0
        %v12363 = vadd.f32 %v12350, %v12362
        %v12364 = vpop.f32.mrf.mxu0
        %12365 = vdwg.mxu0
        %v12366 = vtanh.pop %v10452
        %v12367 = vtanh.pop %v11089
        %v12368 = vtanh.pop %v11726
        %v12369 = vtanh.pop %v12363
        %v12370 = vpack.c.bf16 %v12366, %v12366
        %v12371 = vpack.c.bf16 %v12367, %v12367
        %v12372 = vpack.c.bf16 %v12368, %v12368
        %v12373 = vpack.c.bf16 %v12369, %v12369
        %v12374 = vld [vmem:[%s258] sm:$0xff]
        %v12375 = vld [vmem:[%s258 + $0x8] sm:$0xff]
        %v12376 = vld [vmem:[%s258 + $0x10] sm:$0xff]
        %v12377 = vld [vmem:[%s258 + $0x18] sm:$0xff]
        %v12378 = vld [vmem:[%s258 + $0x20] sm:$0xff]
        %v12379 = vld [vmem:[%s258 + $0x28] sm:$0xff]
        %v12380 = vld [vmem:[%s258 + $0x30] sm:$0xff]
        %v12381 = vld [vmem:[%s258 + $0x38] sm:$0xff]
        %v12382 = vld [vmem:[%s258 + $0x40] sm:$0xff]
        %v12383 = vld [vmem:[%s258 + $0x48] sm:$0xff]
        %v12384 = vld [vmem:[%s258 + $0x50] sm:$0xff]
        %v12385 = vld [vmem:[%s258 + $0x58] sm:$0xff]
        %v12386 = vld [vmem:[%s258 + $0x60] sm:$0xff]
        %v12387 = vld [vmem:[%s258 + $0x68] sm:$0xff]
        %v12388 = vld [vmem:[%s258 + $0x70] sm:$0xff]
        %v12389 = vld [vmem:[%s258 + $0x78] sm:$0xff]
        %v12390 = vld [vmem:[%s258 + $0x80] sm:$0xff]
        %v12391 = vld [vmem:[%s258 + $0x88] sm:$0xff]
        %v12392 = vld [vmem:[%s258 + $0x90] sm:$0xff]
        %v12393 = vld [vmem:[%s258 + $0x98] sm:$0xff]
        %v12394 = vld [vmem:[%s258 + $0xa0] sm:$0xff]
        %v12395 = vld [vmem:[%s258 + $0xa8] sm:$0xff]
        %v12396 = vld [vmem:[%s258 + $0xb0] sm:$0xff]
        %v12397 = vld [vmem:[%s258 + $0xb8] sm:$0xff]
        %v12398 = vld [vmem:[%s258 + $0xc0] sm:$0xff]
        %v12399 = vld [vmem:[%s258 + $0xc8] sm:$0xff]
        %v12400 = vld [vmem:[%s258 + $0xd0] sm:$0xff]
        %v12401 = vld [vmem:[%s258 + $0xd8] sm:$0xff]
        %v12402 = vld [vmem:[%s258 + $0xe0] sm:$0xff]
        %v12403 = vld [vmem:[%s258 + $0xe8] sm:$0xff]
        %v12404 = vld [vmem:[%s258 + $0xf0] sm:$0xff]
        %v12405 = vld [vmem:[%s258 + $0xf8] sm:$0xff]
        %v12406 = vld [vmem:[%s258 + $0x100] sm:$0xff]
        %v12407 = vld [vmem:[%s258 + $0x108] sm:$0xff]
        %v12408 = vld [vmem:[%s258 + $0x110] sm:$0xff]
        %v12409 = vld [vmem:[%s258 + $0x118] sm:$0xff]
        %v12410 = vld [vmem:[%s258 + $0x120] sm:$0xff]
        %v12411 = vld [vmem:[%s258 + $0x128] sm:$0xff]
        %v12412 = vld [vmem:[%s258 + $0x130] sm:$0xff]
        %v12413 = vld [vmem:[%s258 + $0x138] sm:$0xff]
        %v12414 = vld [vmem:[%s258 + $0x140] sm:$0xff]
        %v12415 = vld [vmem:[%s258 + $0x148] sm:$0xff]
        %v12416 = vld [vmem:[%s258 + $0x150] sm:$0xff]
        %v12417 = vld [vmem:[%s258 + $0x158] sm:$0xff]
        %v12418 = vld [vmem:[%s258 + $0x160] sm:$0xff]
        %v12419 = vld [vmem:[%s258 + $0x168] sm:$0xff]
        %v12420 = vld [vmem:[%s258 + $0x170] sm:$0xff]
        %v12421 = vld [vmem:[%s258 + $0x178] sm:$0xff]
        %v12422 = vld [vmem:[%s258 + $0x180] sm:$0xff]
        %v12423 = vld [vmem:[%s258 + $0x188] sm:$0xff]
        %v12424 = vld [vmem:[%s258 + $0x190] sm:$0xff]
        %v12425 = vld [vmem:[%s258 + $0x198] sm:$0xff]
        %v12426 = vld [vmem:[%s258 + $0x1a0] sm:$0xff]
        %v12427 = vld [vmem:[%s258 + $0x1a8] sm:$0xff]
        %v12428 = vld [vmem:[%s258 + $0x1b0] sm:$0xff]
        %v12429 = vld [vmem:[%s258 + $0x1b8] sm:$0xff]
        %v12430 = vld [vmem:[%s258 + $0x1c0] sm:$0xff]
        %v12431 = vld [vmem:[%s258 + $0x1c8] sm:$0xff]
        %v12432 = vld [vmem:[%s258 + $0x1d0] sm:$0xff]
        %v12433 = vld [vmem:[%s258 + $0x1d8] sm:$0xff]
        %v12434 = vld [vmem:[%s258 + $0x1e0] sm:$0xff]
        %v12435 = vld [vmem:[%s258 + $0x1e8] sm:$0xff]
        %v12436 = vld [vmem:[%s258 + $0x1f0] sm:$0xff]
        %v12437 = vld [vmem:[%s258 + $0x1f8] sm:$0xff]
        %v12438 = vld [vmem:[%s258 + $0x200] sm:$0xff]
        %v12439 = vld [vmem:[%s258 + $0x208] sm:$0xff]
        %v12440 = vld [vmem:[%s258 + $0x210] sm:$0xff]
        %v12441 = vld [vmem:[%s258 + $0x218] sm:$0xff]
        %v12442 = vld [vmem:[%s258 + $0x220] sm:$0xff]
        %v12443 = vld [vmem:[%s258 + $0x228] sm:$0xff]
        %v12444 = vld [vmem:[%s258 + $0x230] sm:$0xff]
        %v12445 = vld [vmem:[%s258 + $0x238] sm:$0xff]
        %v12446 = vld [vmem:[%s258 + $0x240] sm:$0xff]
        %v12447 = vld [vmem:[%s258 + $0x248] sm:$0xff]
        %v12448 = vld [vmem:[%s258 + $0x250] sm:$0xff]
        %v12449 = vld [vmem:[%s258 + $0x258] sm:$0xff]
        %v12450 = vld [vmem:[%s258 + $0x260] sm:$0xff]
        %v12451 = vld [vmem:[%s258 + $0x268] sm:$0xff]
        %v12452 = vld [vmem:[%s258 + $0x270] sm:$0xff]
        %v12453 = vld [vmem:[%s258 + $0x278] sm:$0xff]
        %v12454 = vld [vmem:[%s258 + $0x280] sm:$0xff]
        %v12455 = vld [vmem:[%s258 + $0x288] sm:$0xff]
        %v12456 = vld [vmem:[%s258 + $0x290] sm:$0xff]
        %v12457 = vld [vmem:[%s258 + $0x298] sm:$0xff]
        %v12458 = vld [vmem:[%s258 + $0x2a0] sm:$0xff]
        %v12459 = vld [vmem:[%s258 + $0x2a8] sm:$0xff]
        %v12460 = vld [vmem:[%s258 + $0x2b0] sm:$0xff]
        %v12461 = vld [vmem:[%s258 + $0x2b8] sm:$0xff]
        %v12462 = vld [vmem:[%s258 + $0x2c0] sm:$0xff]
        %v12463 = vld [vmem:[%s258 + $0x2c8] sm:$0xff]
        %v12464 = vld [vmem:[%s258 + $0x2d0] sm:$0xff]
        %v12465 = vld [vmem:[%s258 + $0x2d8] sm:$0xff]
        %v12466 = vld [vmem:[%s258 + $0x2e0] sm:$0xff]
        %v12467 = vld [vmem:[%s258 + $0x2e8] sm:$0xff]
        %v12468 = vld [vmem:[%s258 + $0x2f0] sm:$0xff]
        %v12469 = vld [vmem:[%s258 + $0x2f8] sm:$0xff]
        %v12470 = vld [vmem:[%s258 + $0x300] sm:$0xff]
        %v12471 = vld [vmem:[%s258 + $0x308] sm:$0xff]
        %v12472 = vld [vmem:[%s258 + $0x310] sm:$0xff]
        %v12473 = vld [vmem:[%s258 + $0x318] sm:$0xff]
        %v12474 = vld [vmem:[%s258 + $0x320] sm:$0xff]
        %v12475 = vld [vmem:[%s258 + $0x328] sm:$0xff]
        %v12476 = vld [vmem:[%s258 + $0x330] sm:$0xff]
        %v12477 = vld [vmem:[%s258 + $0x338] sm:$0xff]
        %v12478 = vld [vmem:[%s258 + $0x340] sm:$0xff]
        %v12479 = vld [vmem:[%s258 + $0x348] sm:$0xff]
        %v12480 = vld [vmem:[%s258 + $0x350] sm:$0xff]
        %v12481 = vld [vmem:[%s258 + $0x358] sm:$0xff]
        %v12482 = vld [vmem:[%s258 + $0x360] sm:$0xff]
        %v12483 = vld [vmem:[%s258 + $0x368] sm:$0xff]
        %v12484 = vld [vmem:[%s258 + $0x370] sm:$0xff]
        %v12485 = vld [vmem:[%s258 + $0x378] sm:$0xff]
        %v12486 = vld [vmem:[%s258 + $0x380] sm:$0xff]
        %v12487 = vld [vmem:[%s258 + $0x388] sm:$0xff]
        %v12488 = vld [vmem:[%s258 + $0x390] sm:$0xff]
        %v12489 = vld [vmem:[%s258 + $0x398] sm:$0xff]
        %v12490 = vld [vmem:[%s258 + $0x3a0] sm:$0xff]
        %v12491 = vld [vmem:[%s258 + $0x3a8] sm:$0xff]
        %v12492 = vld [vmem:[%s258 + $0x3b0] sm:$0xff]
        %v12493 = vld [vmem:[%s258 + $0x3b8] sm:$0xff]
        %v12494 = vld [vmem:[%s258 + $0x3c0] sm:$0xff]
        %v12495 = vld [vmem:[%s258 + $0x3c8] sm:$0xff]
        %v12496 = vld [vmem:[%s258 + $0x3d0] sm:$0xff]
        %v12497 = vld [vmem:[%s258 + $0x3d8] sm:$0xff]
        %v12498 = vld [vmem:[%s258 + $0x3e0] sm:$0xff]
        %v12499 = vld [vmem:[%s258 + $0x3e8] sm:$0xff]
        %v12500 = vld [vmem:[%s258 + $0x3f0] sm:$0xff]
        %v12501 = vld [vmem:[%s258 + $0x3f8] sm:$0xff]
        %v12630 = vunpack.c.l.b16 %v12374
        %v12631 = vunpack.c.h.b16 %v12374
        %v12632 = vunpack.c.l.b16 %v12375
        %v12633 = vunpack.c.h.b16 %v12375
        %v12634 = vunpack.c.l.b16 %v12376
        %v12635 = vunpack.c.h.b16 %v12376
        %v12636 = vunpack.c.l.b16 %v12377
        %v12637 = vunpack.c.h.b16 %v12377
        %v12638 = vunpack.c.l.b16 %v12378
        %v12639 = vunpack.c.h.b16 %v12378
        %v12640 = vunpack.c.l.b16 %v12379
        %v12641 = vunpack.c.h.b16 %v12379
        %v12642 = vunpack.c.l.b16 %v12380
        %v12643 = vunpack.c.h.b16 %v12380
        %v12644 = vunpack.c.l.b16 %v12381
        %v12645 = vunpack.c.h.b16 %v12381
        %v12646 = vunpack.c.l.b16 %v12382
        %v12647 = vunpack.c.h.b16 %v12382
        %v12648 = vunpack.c.l.b16 %v12383
        %v12649 = vunpack.c.h.b16 %v12383
        %v12650 = vunpack.c.l.b16 %v12384
        %v12651 = vunpack.c.h.b16 %v12384
        %v12652 = vunpack.c.l.b16 %v12385
        %v12653 = vunpack.c.h.b16 %v12385
        %v12654 = vunpack.c.l.b16 %v12386
        %v12655 = vunpack.c.h.b16 %v12386
        %v12656 = vunpack.c.l.b16 %v12387
        %v12657 = vunpack.c.h.b16 %v12387
        %v12658 = vunpack.c.l.b16 %v12388
        %v12659 = vunpack.c.h.b16 %v12388
        %v12660 = vunpack.c.l.b16 %v12389
        %v12661 = vunpack.c.h.b16 %v12389
        %v12662 = vunpack.c.l.b16 %v12390
        %v12663 = vunpack.c.h.b16 %v12390
        %v12664 = vunpack.c.l.b16 %v12391
        %v12665 = vunpack.c.h.b16 %v12391
        %v12666 = vunpack.c.l.b16 %v12392
        %v12667 = vunpack.c.h.b16 %v12392
        %v12668 = vunpack.c.l.b16 %v12393
        %v12669 = vunpack.c.h.b16 %v12393
        %v12670 = vunpack.c.l.b16 %v12394
        %v12671 = vunpack.c.h.b16 %v12394
        %v12672 = vunpack.c.l.b16 %v12395
        %v12673 = vunpack.c.h.b16 %v12395
        %v12674 = vunpack.c.l.b16 %v12396
        %v12675 = vunpack.c.h.b16 %v12396
        %v12676 = vunpack.c.l.b16 %v12397
        %v12677 = vunpack.c.h.b16 %v12397
        %v12678 = vunpack.c.l.b16 %v12398
        %v12679 = vunpack.c.h.b16 %v12398
        %v12680 = vunpack.c.l.b16 %v12399
        %v12681 = vunpack.c.h.b16 %v12399
        %v12682 = vunpack.c.l.b16 %v12400
        %v12683 = vunpack.c.h.b16 %v12400
        %v12684 = vunpack.c.l.b16 %v12401
        %v12685 = vunpack.c.h.b16 %v12401
        %v12686 = vunpack.c.l.b16 %v12402
        %v12687 = vunpack.c.h.b16 %v12402
        %v12688 = vunpack.c.l.b16 %v12403
        %v12689 = vunpack.c.h.b16 %v12403
        %v12690 = vunpack.c.l.b16 %v12404
        %v12691 = vunpack.c.h.b16 %v12404
        %v12692 = vunpack.c.l.b16 %v12405
        %v12693 = vunpack.c.h.b16 %v12405
        %v12694 = vunpack.c.l.b16 %v12406
        %v12695 = vunpack.c.h.b16 %v12406
        %v12696 = vunpack.c.l.b16 %v12407
        %v12697 = vunpack.c.h.b16 %v12407
        %v12698 = vunpack.c.l.b16 %v12408
        %v12699 = vunpack.c.h.b16 %v12408
        %v12700 = vunpack.c.l.b16 %v12409
        %v12701 = vunpack.c.h.b16 %v12409
        %v12702 = vunpack.c.l.b16 %v12410
        %v12703 = vunpack.c.h.b16 %v12410
        %v12704 = vunpack.c.l.b16 %v12411
        %v12705 = vunpack.c.h.b16 %v12411
        %v12706 = vunpack.c.l.b16 %v12412
        %v12707 = vunpack.c.h.b16 %v12412
        %v12708 = vunpack.c.l.b16 %v12413
        %v12709 = vunpack.c.h.b16 %v12413
        %v12710 = vunpack.c.l.b16 %v12414
        %v12711 = vunpack.c.h.b16 %v12414
        %v12712 = vunpack.c.l.b16 %v12415
        %v12713 = vunpack.c.h.b16 %v12415
        %v12714 = vunpack.c.l.b16 %v12416
        %v12715 = vunpack.c.h.b16 %v12416
        %v12716 = vunpack.c.l.b16 %v12417
        %v12717 = vunpack.c.h.b16 %v12417
        %v12718 = vunpack.c.l.b16 %v12418
        %v12719 = vunpack.c.h.b16 %v12418
        %v12720 = vunpack.c.l.b16 %v12419
        %v12721 = vunpack.c.h.b16 %v12419
        %v12722 = vunpack.c.l.b16 %v12420
        %v12723 = vunpack.c.h.b16 %v12420
        %v12724 = vunpack.c.l.b16 %v12421
        %v12725 = vunpack.c.h.b16 %v12421
        %v12726 = vunpack.c.l.b16 %v12422
        %v12727 = vunpack.c.h.b16 %v12422
        %v12728 = vunpack.c.l.b16 %v12423
        %v12729 = vunpack.c.h.b16 %v12423
        %v12730 = vunpack.c.l.b16 %v12424
        %v12731 = vunpack.c.h.b16 %v12424
        %v12732 = vunpack.c.l.b16 %v12425
        %v12733 = vunpack.c.h.b16 %v12425
        %v12734 = vunpack.c.l.b16 %v12426
        %v12735 = vunpack.c.h.b16 %v12426
        %v12736 = vunpack.c.l.b16 %v12427
        %v12737 = vunpack.c.h.b16 %v12427
        %v12738 = vunpack.c.l.b16 %v12428
        %v12739 = vunpack.c.h.b16 %v12428
        %v12740 = vunpack.c.l.b16 %v12429
        %v12741 = vunpack.c.h.b16 %v12429
        %v12742 = vunpack.c.l.b16 %v12430
        %v12743 = vunpack.c.h.b16 %v12430
        %v12744 = vunpack.c.l.b16 %v12431
        %v12745 = vunpack.c.h.b16 %v12431
        %v12746 = vunpack.c.l.b16 %v12432
        %v12747 = vunpack.c.h.b16 %v12432
        %v12748 = vunpack.c.l.b16 %v12433
        %v12749 = vunpack.c.h.b16 %v12433
        %v12750 = vunpack.c.l.b16 %v12434
        %v12751 = vunpack.c.h.b16 %v12434
        %v12752 = vunpack.c.l.b16 %v12435
        %v12753 = vunpack.c.h.b16 %v12435
        %v12754 = vunpack.c.l.b16 %v12436
        %v12755 = vunpack.c.h.b16 %v12436
        %v12756 = vunpack.c.l.b16 %v12437
        %v12757 = vunpack.c.h.b16 %v12437
        %v12758 = vunpack.c.l.b16 %v12438
        %v12759 = vunpack.c.h.b16 %v12438
        %v12760 = vunpack.c.l.b16 %v12439
        %v12761 = vunpack.c.h.b16 %v12439
        %v12762 = vunpack.c.l.b16 %v12440
        %v12763 = vunpack.c.h.b16 %v12440
        %v12764 = vunpack.c.l.b16 %v12441
        %v12765 = vunpack.c.h.b16 %v12441
        %v12766 = vunpack.c.l.b16 %v12442
        %v12767 = vunpack.c.h.b16 %v12442
        %v12768 = vunpack.c.l.b16 %v12443
        %v12769 = vunpack.c.h.b16 %v12443
        %v12770 = vunpack.c.l.b16 %v12444
        %v12771 = vunpack.c.h.b16 %v12444
        %v12772 = vunpack.c.l.b16 %v12445
        %v12773 = vunpack.c.h.b16 %v12445
        %v12774 = vunpack.c.l.b16 %v12446
        %v12775 = vunpack.c.h.b16 %v12446
        %v12776 = vunpack.c.l.b16 %v12447
        %v12777 = vunpack.c.h.b16 %v12447
        %v12778 = vunpack.c.l.b16 %v12448
        %v12779 = vunpack.c.h.b16 %v12448
        %v12780 = vunpack.c.l.b16 %v12449
        %v12781 = vunpack.c.h.b16 %v12449
        %v12782 = vunpack.c.l.b16 %v12450
        %v12783 = vunpack.c.h.b16 %v12450
        %v12784 = vunpack.c.l.b16 %v12451
        %v12785 = vunpack.c.h.b16 %v12451
        %v12786 = vunpack.c.l.b16 %v12452
        %v12787 = vunpack.c.h.b16 %v12452
        %v12788 = vunpack.c.l.b16 %v12453
        %v12789 = vunpack.c.h.b16 %v12453
        %v12790 = vunpack.c.l.b16 %v12454
        %v12791 = vunpack.c.h.b16 %v12454
        %v12792 = vunpack.c.l.b16 %v12455
        %v12793 = vunpack.c.h.b16 %v12455
        %v12794 = vunpack.c.l.b16 %v12456
        %v12795 = vunpack.c.h.b16 %v12456
        %v12796 = vunpack.c.l.b16 %v12457
        %v12797 = vunpack.c.h.b16 %v12457
        %v12798 = vunpack.c.l.b16 %v12458
        %v12799 = vunpack.c.h.b16 %v12458
        %v12800 = vunpack.c.l.b16 %v12459
        %v12801 = vunpack.c.h.b16 %v12459
        %v12802 = vunpack.c.l.b16 %v12460
        %v12803 = vunpack.c.h.b16 %v12460
        %v12804 = vunpack.c.l.b16 %v12461
        %v12805 = vunpack.c.h.b16 %v12461
        %v12806 = vunpack.c.l.b16 %v12462
        %v12807 = vunpack.c.h.b16 %v12462
        %v12808 = vunpack.c.l.b16 %v12463
        %v12809 = vunpack.c.h.b16 %v12463
        %v12810 = vunpack.c.l.b16 %v12464
        %v12811 = vunpack.c.h.b16 %v12464
        %v12812 = vunpack.c.l.b16 %v12465
        %v12813 = vunpack.c.h.b16 %v12465
        %v12814 = vunpack.c.l.b16 %v12466
        %v12815 = vunpack.c.h.b16 %v12466
        %v12816 = vunpack.c.l.b16 %v12467
        %v12817 = vunpack.c.h.b16 %v12467
        %v12818 = vunpack.c.l.b16 %v12468
        %v12819 = vunpack.c.h.b16 %v12468
        %v12820 = vunpack.c.l.b16 %v12469
        %v12821 = vunpack.c.h.b16 %v12469
        %v12822 = vunpack.c.l.b16 %v12470
        %v12823 = vunpack.c.h.b16 %v12470
        %v12824 = vunpack.c.l.b16 %v12471
        %v12825 = vunpack.c.h.b16 %v12471
        %v12826 = vunpack.c.l.b16 %v12472
        %v12827 = vunpack.c.h.b16 %v12472
        %v12828 = vunpack.c.l.b16 %v12473
        %v12829 = vunpack.c.h.b16 %v12473
        %v12830 = vunpack.c.l.b16 %v12474
        %v12831 = vunpack.c.h.b16 %v12474
        %v12832 = vunpack.c.l.b16 %v12475
        %v12833 = vunpack.c.h.b16 %v12475
        %v12834 = vunpack.c.l.b16 %v12476
        %v12835 = vunpack.c.h.b16 %v12476
        %v12836 = vunpack.c.l.b16 %v12477
        %v12837 = vunpack.c.h.b16 %v12477
        %v12838 = vunpack.c.l.b16 %v12478
        %v12839 = vunpack.c.h.b16 %v12478
        %v12840 = vunpack.c.l.b16 %v12479
        %v12841 = vunpack.c.h.b16 %v12479
        %v12842 = vunpack.c.l.b16 %v12480
        %v12843 = vunpack.c.h.b16 %v12480
        %v12844 = vunpack.c.l.b16 %v12481
        %v12845 = vunpack.c.h.b16 %v12481
        %v12846 = vunpack.c.l.b16 %v12482
        %v12847 = vunpack.c.h.b16 %v12482
        %v12848 = vunpack.c.l.b16 %v12483
        %v12849 = vunpack.c.h.b16 %v12483
        %v12850 = vunpack.c.l.b16 %v12484
        %v12851 = vunpack.c.h.b16 %v12484
        %v12852 = vunpack.c.l.b16 %v12485
        %v12853 = vunpack.c.h.b16 %v12485
        %v12854 = vunpack.c.l.b16 %v12486
        %v12855 = vunpack.c.h.b16 %v12486
        %v12856 = vunpack.c.l.b16 %v12487
        %v12857 = vunpack.c.h.b16 %v12487
        %v12858 = vunpack.c.l.b16 %v12488
        %v12859 = vunpack.c.h.b16 %v12488
        %v12860 = vunpack.c.l.b16 %v12489
        %v12861 = vunpack.c.h.b16 %v12489
        %v12862 = vunpack.c.l.b16 %v12490
        %v12863 = vunpack.c.h.b16 %v12490
        %v12864 = vunpack.c.l.b16 %v12491
        %v12865 = vunpack.c.h.b16 %v12491
        %v12866 = vunpack.c.l.b16 %v12492
        %v12867 = vunpack.c.h.b16 %v12492
        %v12868 = vunpack.c.l.b16 %v12493
        %v12869 = vunpack.c.h.b16 %v12493
        %v12870 = vunpack.c.l.b16 %v12494
        %v12871 = vunpack.c.h.b16 %v12494
        %v12872 = vunpack.c.l.b16 %v12495
        %v12873 = vunpack.c.h.b16 %v12495
        %v12874 = vunpack.c.l.b16 %v12496
        %v12875 = vunpack.c.h.b16 %v12496
        %v12876 = vunpack.c.l.b16 %v12497
        %v12877 = vunpack.c.h.b16 %v12497
        %v12878 = vunpack.c.l.b16 %v12498
        %v12879 = vunpack.c.h.b16 %v12498
        %v12880 = vunpack.c.l.b16 %v12499
        %v12881 = vunpack.c.h.b16 %v12499
        %v12882 = vunpack.c.l.b16 %v12500
        %v12883 = vunpack.c.h.b16 %v12500
        %v12884 = vunpack.c.l.b16 %v12501
        %v12885 = vunpack.c.h.b16 %v12501
        %v12886 = vpack.c.b16 %v12634, %v12630
        %v12887 = vpack.c.b16 %v12635, %v12631
        %v12888 = vpack.c.b16 %v12636, %v12632
        %v12889 = vpack.c.b16 %v12637, %v12633
        %v12890 = vpack.c.b16 %v12642, %v12638
        %v12891 = vpack.c.b16 %v12643, %v12639
        %v12892 = vpack.c.b16 %v12644, %v12640
        %v12893 = vpack.c.b16 %v12645, %v12641
        %v12894 = vpack.c.b16 %v12650, %v12646
        %v12895 = vpack.c.b16 %v12651, %v12647
        %v12896 = vpack.c.b16 %v12652, %v12648
        %v12897 = vpack.c.b16 %v12653, %v12649
        %v12898 = vpack.c.b16 %v12658, %v12654
        %v12899 = vpack.c.b16 %v12659, %v12655
        %v12900 = vpack.c.b16 %v12660, %v12656
        %v12901 = vpack.c.b16 %v12661, %v12657
        %v12902 = vpack.c.b16 %v12666, %v12662
        %v12903 = vpack.c.b16 %v12667, %v12663
        %v12904 = vpack.c.b16 %v12668, %v12664
        %v12905 = vpack.c.b16 %v12669, %v12665
        %v12906 = vpack.c.b16 %v12674, %v12670
        %v12907 = vpack.c.b16 %v12675, %v12671
        %v12908 = vpack.c.b16 %v12676, %v12672
        %v12909 = vpack.c.b16 %v12677, %v12673
        %v12910 = vpack.c.b16 %v12682, %v12678
        %v12911 = vpack.c.b16 %v12683, %v12679
        %v12912 = vpack.c.b16 %v12684, %v12680
        %v12913 = vpack.c.b16 %v12685, %v12681
        %v12914 = vpack.c.b16 %v12690, %v12686
        %v12915 = vpack.c.b16 %v12691, %v12687
        %v12916 = vpack.c.b16 %v12692, %v12688
        %v12917 = vpack.c.b16 %v12693, %v12689
        %v12918 = vpack.c.b16 %v12698, %v12694
        %v12919 = vpack.c.b16 %v12699, %v12695
        %v12920 = vpack.c.b16 %v12700, %v12696
        %v12921 = vpack.c.b16 %v12701, %v12697
        %v12922 = vpack.c.b16 %v12706, %v12702
        %v12923 = vpack.c.b16 %v12707, %v12703
        %v12924 = vpack.c.b16 %v12708, %v12704
        %v12925 = vpack.c.b16 %v12709, %v12705
        %v12926 = vpack.c.b16 %v12714, %v12710
        %v12927 = vpack.c.b16 %v12715, %v12711
        %v12928 = vpack.c.b16 %v12716, %v12712
        %v12929 = vpack.c.b16 %v12717, %v12713
        %v12930 = vpack.c.b16 %v12722, %v12718
        %v12931 = vpack.c.b16 %v12723, %v12719
        %v12932 = vpack.c.b16 %v12724, %v12720
        %v12933 = vpack.c.b16 %v12725, %v12721
        %v12934 = vpack.c.b16 %v12730, %v12726
        %v12935 = vpack.c.b16 %v12731, %v12727
        %v12936 = vpack.c.b16 %v12732, %v12728
        %v12937 = vpack.c.b16 %v12733, %v12729
        %v12938 = vpack.c.b16 %v12738, %v12734
        %v12939 = vpack.c.b16 %v12739, %v12735
        %v12940 = vpack.c.b16 %v12740, %v12736
        %v12941 = vpack.c.b16 %v12741, %v12737
        %v12942 = vpack.c.b16 %v12746, %v12742
        %v12943 = vpack.c.b16 %v12747, %v12743
        %v12944 = vpack.c.b16 %v12748, %v12744
        %v12945 = vpack.c.b16 %v12749, %v12745
        %v12946 = vpack.c.b16 %v12754, %v12750
        %v12947 = vpack.c.b16 %v12755, %v12751
        %v12948 = vpack.c.b16 %v12756, %v12752
        %v12949 = vpack.c.b16 %v12757, %v12753
        %v12950 = vpack.c.b16 %v12762, %v12758
        %v12951 = vpack.c.b16 %v12763, %v12759
        %v12952 = vpack.c.b16 %v12764, %v12760
        %v12953 = vpack.c.b16 %v12765, %v12761
        %v12954 = vpack.c.b16 %v12770, %v12766
        %v12955 = vpack.c.b16 %v12771, %v12767
        %v12956 = vpack.c.b16 %v12772, %v12768
        %v12957 = vpack.c.b16 %v12773, %v12769
        %v12958 = vpack.c.b16 %v12778, %v12774
        %v12959 = vpack.c.b16 %v12779, %v12775
        %v12960 = vpack.c.b16 %v12780, %v12776
        %v12961 = vpack.c.b16 %v12781, %v12777
        %v12962 = vpack.c.b16 %v12786, %v12782
        %v12963 = vpack.c.b16 %v12787, %v12783
        %v12964 = vpack.c.b16 %v12788, %v12784
        %v12965 = vpack.c.b16 %v12789, %v12785
        %v12966 = vpack.c.b16 %v12794, %v12790
        %v12967 = vpack.c.b16 %v12795, %v12791
        %v12968 = vpack.c.b16 %v12796, %v12792
        %v12969 = vpack.c.b16 %v12797, %v12793
        %v12970 = vpack.c.b16 %v12802, %v12798
        %v12971 = vpack.c.b16 %v12803, %v12799
        %v12972 = vpack.c.b16 %v12804, %v12800
        %v12973 = vpack.c.b16 %v12805, %v12801
        %v12974 = vpack.c.b16 %v12810, %v12806
        %v12975 = vpack.c.b16 %v12811, %v12807
        %v12976 = vpack.c.b16 %v12812, %v12808
        %v12977 = vpack.c.b16 %v12813, %v12809
        %v12978 = vpack.c.b16 %v12818, %v12814
        %v12979 = vpack.c.b16 %v12819, %v12815
        %v12980 = vpack.c.b16 %v12820, %v12816
        %v12981 = vpack.c.b16 %v12821, %v12817
        %v12982 = vpack.c.b16 %v12826, %v12822
        %v12983 = vpack.c.b16 %v12827, %v12823
        %v12984 = vpack.c.b16 %v12828, %v12824
        %v12985 = vpack.c.b16 %v12829, %v12825
        %v12986 = vpack.c.b16 %v12834, %v12830
        %v12987 = vpack.c.b16 %v12835, %v12831
        %v12988 = vpack.c.b16 %v12836, %v12832
        %v12989 = vpack.c.b16 %v12837, %v12833
        %v12990 = vpack.c.b16 %v12842, %v12838
        %v12991 = vpack.c.b16 %v12843, %v12839
        %v12992 = vpack.c.b16 %v12844, %v12840
        %v12993 = vpack.c.b16 %v12845, %v12841
        %v12994 = vpack.c.b16 %v12850, %v12846
        %v12995 = vpack.c.b16 %v12851, %v12847
        %v12996 = vpack.c.b16 %v12852, %v12848
        %v12997 = vpack.c.b16 %v12853, %v12849
        %v12998 = vpack.c.b16 %v12858, %v12854
        %v12999 = vpack.c.b16 %v12859, %v12855
        %v13000 = vpack.c.b16 %v12860, %v12856
        %v13001 = vpack.c.b16 %v12861, %v12857
        %v13002 = vpack.c.b16 %v12866, %v12862
        %v13003 = vpack.c.b16 %v12867, %v12863
        %v13004 = vpack.c.b16 %v12868, %v12864
        %v13005 = vpack.c.b16 %v12869, %v12865
        %v13006 = vpack.c.b16 %v12874, %v12870
        %v13007 = vpack.c.b16 %v12875, %v12871
        %v13008 = vpack.c.b16 %v12876, %v12872
        %v13009 = vpack.c.b16 %v12877, %v12873
        %v13010 = vpack.c.b16 %v12882, %v12878
        %v13011 = vpack.c.b16 %v12883, %v12879
        %v13012 = vpack.c.b16 %v12884, %v12880
        %v13013 = vpack.c.b16 %v12885, %v12881
        %13142 = vmatpush.bf16.msra.mxu0 %v12914
        %13143 = vmatpush.bf16.msra.mxu0 %v12910
        %13144 = vmatpush.bf16.msra.mxu0 %v12906
        %13145 = vmatpush.bf16.msra.mxu0 %v12902
        %13146 = vmatpush.bf16.msra.mxu0 %v12898
        %13147 = vmatpush.bf16.msra.mxu0 %v12894
        %13148 = vmatpush.bf16.msra.mxu0 %v12890
        %13149 = vmatpush.bf16.msra.mxu0 %v12886
        %13150 = vmatmul.bf16.gmra.mxu0 %v12370
        %v13151 = vpop.f32.mrf.mxu0
        %v13152 = vadd.f32 0.0, %v13151
        %v13153 = vpop.f32.mrf.mxu0
        %13154 = vdwg.mxu0
        %13155 = vmatpush.bf16.msra.mxu0 %v12946
        %13156 = vmatpush.bf16.msra.mxu0 %v12942
        %13157 = vmatpush.bf16.msra.mxu0 %v12938
        %13158 = vmatpush.bf16.msra.mxu0 %v12934
        %13159 = vmatpush.bf16.msra.mxu0 %v12930
        %13160 = vmatpush.bf16.msra.mxu0 %v12926
        %13161 = vmatpush.bf16.msra.mxu0 %v12922
        %13162 = vmatpush.bf16.msra.mxu0 %v12918
        %13163 = vmatmul.bf16.gmra.mxu0 %v12371
        %v13164 = vpop.f32.mrf.mxu0
        %v13165 = vadd.f32 %v13152, %v13164
        %v13166 = vpop.f32.mrf.mxu0
        %13167 = vdwg.mxu0
        %13168 = vmatpush.bf16.msra.mxu0 %v12978
        %13169 = vmatpush.bf16.msra.mxu0 %v12974
        %13170 = vmatpush.bf16.msra.mxu0 %v12970
        %13171 = vmatpush.bf16.msra.mxu0 %v12966
        %13172 = vmatpush.bf16.msra.mxu0 %v12962
        %13173 = vmatpush.bf16.msra.mxu0 %v12958
        %13174 = vmatpush.bf16.msra.mxu0 %v12954
        %13175 = vmatpush.bf16.msra.mxu0 %v12950
        %13176 = vmatmul.bf16.gmra.mxu0 %v12372
        %v13177 = vpop.f32.mrf.mxu0
        %v13178 = vadd.f32 %v13165, %v13177
        %v13179 = vpop.f32.mrf.mxu0
        %13180 = vdwg.mxu0
        %13181 = vmatpush.bf16.msra.mxu0 %v13010
        %13182 = vmatpush.bf16.msra.mxu0 %v13006
        %13183 = vmatpush.bf16.msra.mxu0 %v13002
        %13184 = vmatpush.bf16.msra.mxu0 %v12998
        %13185 = vmatpush.bf16.msra.mxu0 %v12994
        %13186 = vmatpush.bf16.msra.mxu0 %v12990
        %13187 = vmatpush.bf16.msra.mxu0 %v12986
        %13188 = vmatpush.bf16.msra.mxu0 %v12982
        %13189 = vmatmul.bf16.gmra.mxu0 %v12373
        %v13190 = vpop.f32.mrf.mxu0
        %v13191 = vadd.f32 %v13178, %v13190
        %v13192 = vpop.f32.mrf.mxu0
        %13193 = vdwg.mxu0
        %13194 = vmatpush.bf16.msra.mxu0 %v12915
        %13195 = vmatpush.bf16.msra.mxu0 %v12911
        %13196 = vmatpush.bf16.msra.mxu0 %v12907
        %13197 = vmatpush.bf16.msra.mxu0 %v12903
        %13198 = vmatpush.bf16.msra.mxu0 %v12899
        %13199 = vmatpush.bf16.msra.mxu0 %v12895
        %13200 = vmatpush.bf16.msra.mxu0 %v12891
        %13201 = vmatpush.bf16.msra.mxu0 %v12887
        %13202 = vmatmul.bf16.gmra.mxu0 %v12370
        %v13203 = vpop.f32.mrf.mxu0
        %v13204 = vadd.f32 0.0, %v13203
        %v13205 = vpop.f32.mrf.mxu0
        %13206 = vdwg.mxu0
        %13207 = vmatpush.bf16.msra.mxu0 %v12947
        %13208 = vmatpush.bf16.msra.mxu0 %v12943
        %13209 = vmatpush.bf16.msra.mxu0 %v12939
        %13210 = vmatpush.bf16.msra.mxu0 %v12935
        %13211 = vmatpush.bf16.msra.mxu0 %v12931
        %13212 = vmatpush.bf16.msra.mxu0 %v12927
        %13213 = vmatpush.bf16.msra.mxu0 %v12923
        %13214 = vmatpush.bf16.msra.mxu0 %v12919
        %13215 = vmatmul.bf16.gmra.mxu0 %v12371
        %v13216 = vpop.f32.mrf.mxu0
        %v13217 = vadd.f32 %v13204, %v13216
        %v13218 = vpop.f32.mrf.mxu0
        %13219 = vdwg.mxu0
        %13220 = vmatpush.bf16.msra.mxu0 %v12979
        %13221 = vmatpush.bf16.msra.mxu0 %v12975
        %13222 = vmatpush.bf16.msra.mxu0 %v12971
        %13223 = vmatpush.bf16.msra.mxu0 %v12967
        %13224 = vmatpush.bf16.msra.mxu0 %v12963
        %13225 = vmatpush.bf16.msra.mxu0 %v12959
        %13226 = vmatpush.bf16.msra.mxu0 %v12955
        %13227 = vmatpush.bf16.msra.mxu0 %v12951
        %13228 = vmatmul.bf16.gmra.mxu0 %v12372
        %v13229 = vpop.f32.mrf.mxu0
        %v13230 = vadd.f32 %v13217, %v13229
        %v13231 = vpop.f32.mrf.mxu0
        %13232 = vdwg.mxu0
        %13233 = vmatpush.bf16.msra.mxu0 %v13011
        %13234 = vmatpush.bf16.msra.mxu0 %v13007
        %13235 = vmatpush.bf16.msra.mxu0 %v13003
        %13236 = vmatpush.bf16.msra.mxu0 %v12999
        %13237 = vmatpush.bf16.msra.mxu0 %v12995
        %13238 = vmatpush.bf16.msra.mxu0 %v12991
        %13239 = vmatpush.bf16.msra.mxu0 %v12987
        %13240 = vmatpush.bf16.msra.mxu0 %v12983
        %13241 = vmatmul.bf16.gmra.mxu0 %v12373
        %v13242 = vpop.f32.mrf.mxu0
        %v13243 = vadd.f32 %v13230, %v13242
        %v13244 = vpop.f32.mrf.mxu0
        %13245 = vdwg.mxu0
        %13246 = vmatpush.bf16.msra.mxu0 %v12916
        %13247 = vmatpush.bf16.msra.mxu0 %v12912
        %13248 = vmatpush.bf16.msra.mxu0 %v12908
        %13249 = vmatpush.bf16.msra.mxu0 %v12904
        %13250 = vmatpush.bf16.msra.mxu0 %v12900
        %13251 = vmatpush.bf16.msra.mxu0 %v12896
        %13252 = vmatpush.bf16.msra.mxu0 %v12892
        %13253 = vmatpush.bf16.msra.mxu0 %v12888
        %13254 = vmatmul.bf16.gmra.mxu0 %v12370
        %v13255 = vpop.f32.mrf.mxu0
        %v13256 = vadd.f32 0.0, %v13255
        %v13257 = vpop.f32.mrf.mxu0
        %13258 = vdwg.mxu0
        %13259 = vmatpush.bf16.msra.mxu0 %v12948
        %13260 = vmatpush.bf16.msra.mxu0 %v12944
        %13261 = vmatpush.bf16.msra.mxu0 %v12940
        %13262 = vmatpush.bf16.msra.mxu0 %v12936
        %13263 = vmatpush.bf16.msra.mxu0 %v12932
        %13264 = vmatpush.bf16.msra.mxu0 %v12928
        %13265 = vmatpush.bf16.msra.mxu0 %v12924
        %13266 = vmatpush.bf16.msra.mxu0 %v12920
        %13267 = vmatmul.bf16.gmra.mxu0 %v12371
        %v13268 = vpop.f32.mrf.mxu0
        %v13269 = vadd.f32 %v13256, %v13268
        %v13270 = vpop.f32.mrf.mxu0
        %13271 = vdwg.mxu0
        %13272 = vmatpush.bf16.msra.mxu0 %v12980
        %13273 = vmatpush.bf16.msra.mxu0 %v12976
        %13274 = vmatpush.bf16.msra.mxu0 %v12972
        %13275 = vmatpush.bf16.msra.mxu0 %v12968
        %13276 = vmatpush.bf16.msra.mxu0 %v12964
        %13277 = vmatpush.bf16.msra.mxu0 %v12960
        %13278 = vmatpush.bf16.msra.mxu0 %v12956
        %13279 = vmatpush.bf16.msra.mxu0 %v12952
        %13280 = vmatmul.bf16.gmra.mxu0 %v12372
        %v13281 = vpop.f32.mrf.mxu0
        %v13282 = vadd.f32 %v13269, %v13281
        %v13283 = vpop.f32.mrf.mxu0
        %13284 = vdwg.mxu0
        %13285 = vmatpush.bf16.msra.mxu0 %v13012
        %13286 = vmatpush.bf16.msra.mxu0 %v13008
        %13287 = vmatpush.bf16.msra.mxu0 %v13004
        %13288 = vmatpush.bf16.msra.mxu0 %v13000
        %13289 = vmatpush.bf16.msra.mxu0 %v12996
        %13290 = vmatpush.bf16.msra.mxu0 %v12992
        %13291 = vmatpush.bf16.msra.mxu0 %v12988
        %13292 = vmatpush.bf16.msra.mxu0 %v12984
        %13293 = vmatmul.bf16.gmra.mxu0 %v12373
        %v13294 = vpop.f32.mrf.mxu0
        %v13295 = vadd.f32 %v13282, %v13294
        %v13296 = vpop.f32.mrf.mxu0
        %13297 = vdwg.mxu0
        %13298 = vmatpush.bf16.msra.mxu0 %v12917
        %13299 = vmatpush.bf16.msra.mxu0 %v12913
        %13300 = vmatpush.bf16.msra.mxu0 %v12909
        %13301 = vmatpush.bf16.msra.mxu0 %v12905
        %13302 = vmatpush.bf16.msra.mxu0 %v12901
        %13303 = vmatpush.bf16.msra.mxu0 %v12897
        %13304 = vmatpush.bf16.msra.mxu0 %v12893
        %13305 = vmatpush.bf16.msra.mxu0 %v12889
        %13306 = vmatmul.bf16.gmra.mxu0 %v12370
        %v13307 = vpop.f32.mrf.mxu0
        %v13308 = vadd.f32 0.0, %v13307
        %v13309 = vpop.f32.mrf.mxu0
        %13310 = vdwg.mxu0
        %13311 = vmatpush.bf16.msra.mxu0 %v12949
        %13312 = vmatpush.bf16.msra.mxu0 %v12945
        %13313 = vmatpush.bf16.msra.mxu0 %v12941
        %13314 = vmatpush.bf16.msra.mxu0 %v12937
        %13315 = vmatpush.bf16.msra.mxu0 %v12933
        %13316 = vmatpush.bf16.msra.mxu0 %v12929
        %13317 = vmatpush.bf16.msra.mxu0 %v12925
        %13318 = vmatpush.bf16.msra.mxu0 %v12921
        %13319 = vmatmul.bf16.gmra.mxu0 %v12371
        %v13320 = vpop.f32.mrf.mxu0
        %v13321 = vadd.f32 %v13308, %v13320
        %v13322 = vpop.f32.mrf.mxu0
        %13323 = vdwg.mxu0
        %13324 = vmatpush.bf16.msra.mxu0 %v12981
        %13325 = vmatpush.bf16.msra.mxu0 %v12977
        %13326 = vmatpush.bf16.msra.mxu0 %v12973
        %13327 = vmatpush.bf16.msra.mxu0 %v12969
        %13328 = vmatpush.bf16.msra.mxu0 %v12965
        %13329 = vmatpush.bf16.msra.mxu0 %v12961
        %13330 = vmatpush.bf16.msra.mxu0 %v12957
        %13331 = vmatpush.bf16.msra.mxu0 %v12953
        %13332 = vmatmul.bf16.gmra.mxu0 %v12372
        %v13333 = vpop.f32.mrf.mxu0
        %v13334 = vadd.f32 %v13321, %v13333
        %v13335 = vpop.f32.mrf.mxu0
        %13336 = vdwg.mxu0
        %13337 = vmatpush.bf16.msra.mxu0 %v13013
        %13338 = vmatpush.bf16.msra.mxu0 %v13009
        %13339 = vmatpush.bf16.msra.mxu0 %v13005
        %13340 = vmatpush.bf16.msra.mxu0 %v13001
        %13341 = vmatpush.bf16.msra.mxu0 %v12997
        %13342 = vmatpush.bf16.msra.mxu0 %v12993
        %13343 = vmatpush.bf16.msra.mxu0 %v12989
        %13344 = vmatpush.bf16.msra.mxu0 %v12985
        %13345 = vmatmul.bf16.gmra.mxu0 %v12373
        %v13346 = vpop.f32.mrf.mxu0
        %v13347 = vadd.f32 %v13334, %v13346
        %v13348 = vpop.f32.mrf.mxu0
        %13349 = vdwg.mxu0
        %13350 = vst [vmem:[%s301] sm:$0xff] %v13191
        %13351 = vst [vmem:[%s301 + $0x8] sm:$0xff] %v13243
        %13352 = vst [vmem:[%s301 + $0x10] sm:$0xff] %v13295
        %13353 = vst [vmem:[%s301 + $0x18] sm:$0xff] %v13347
        %p13354 = scmp.lt.s32.totalorder %s21, 1
        %s13355 = scalar_select %p13354, %s21, 1
        %s13356 = smul.addr %s13355, 4
        %s13357 = smul.addr %s13356, 8
        %s13358 = scalar_lea.vmem %s4, %s13357
        // Predicated region
        $region49: #{texas_encoder_pallas.1} parent=35 // pred_check
          %p13359 = pneg %p138
        $region50: #{texas_encoder_pallas.1} parent=35 // pred_check_branch
          %13361 = sbr.rel (%p13359) target = $region52
        $region51: #{texas_encoder_pallas.1} parent=35 // pred_region
          _
        $region52: #{texas_encoder_pallas.1} parent=35 // pred_fallthru
          _
      $region36: #{texas_encoder_pallas.1} parent=5 // pred_fallthru
        _
      %p13362 = scmp.le.s32.totalorder 2, %s16
      // Predicated region
      $region53: #{texas_encoder_pallas.1} parent=5 // pred_check
        %p13363 = pneg %p13362
      $region54: #{texas_encoder_pallas.1} parent=5 // pred_check_branch
        %13365 = sbr.rel (%p13363) target = $region56
      $region55: #{texas_encoder_pallas.1} parent=5 // pred_region
        %s13366 = ssub.s32 %s16, 2
        // Predicated region
        $region57: #{texas_encoder_pallas.1} parent=55 // pred_check
          %p13367 = pneg %p144
        $region58: #{texas_encoder_pallas.1} parent=55 // pred_check_branch
          %13369 = sbr.rel (%p13367) target = $region60
        $region59: #{texas_encoder_pallas.1} parent=55 // pred_region
          %p13370 = scmp.lt.s32.totalorder %s22, 1
          %s13371 = scalar_select %p13370, %s22, 1
          %s13372 = smul.addr %s13371, 4
          %s13373 = smul.addr %s13372, 8
          %s13374 = scalar_lea.vmem %s4, %s13373
        $region60: #{texas_encoder_pallas.1} parent=55 // pred_fallthru
          _
      $region56: #{texas_encoder_pallas.1} parent=5 // pred_fallthru
        _
    $region6: #{texas_encoder_pallas.1} parent=1 // loop_footer
      %s20 = sadd.s32 1, %s16
    $region7: #{texas_encoder_pallas.1} parent=1 // loop_footer_branch
      %15 = sbr.rel target = $region3
    $region8: #{texas_encoder_pallas.1} parent=1 // loop_exit
      _
    %13375 = vsyncpa [#allocation3], 1
    %s13376 = scalar_lea.sflag [#allocation3], 1
    %13377 = vsyncpa %s13376, 1
    %13378 = vsyncpa [#allocation5], 1
    %s13379 = scalar_lea.sflag [#allocation5], 1
    %13380 = vsyncpa %s13379, 1

</llo_original>
